<compile_context>
chip_gen: v6e
topology: v6e:2x2x1
jax: 0.10.0
libtpu: 0.0.40
codegen_flags: <defaults>
</compile_context>

<pallas_src>
import functools

import jax
import jax.numpy as jnp
from jax import lax
from jax.experimental import pallas as pl
from jax.experimental.pallas import tpu as pltpu

LANE = 128  # TPU lane width; conv output channels padded to this so stores are lane-dense.


def _round_up(x, m):
    return (x + m - 1) // m * m


def _pick_tm(m):
    """M tile: never below 128 rows (half-empty MXU) just to get extra grid steps."""
    if m <= 256:
        tm = m
    elif m >= 1024 and m % 512 == 0:
        tm = 512
    elif m % 256 == 0:
        tm = 256
    elif m % 128 == 0:
        tm = 128
    else:
        tm = m
    if m % tm != 0:
        tm = m
    return tm


# ----------------------------------------------------------------------------- kernels

def _conv_bn_kernel(*refs, relu, relu_cols, has_res):
    """Single-shot bf16 matmul (K fits one tile) + fused BN(+residual)(+ReLU) epilogue."""
    if has_res:
        a_ref, b_ref, scale_ref, shift_ref, res_ref, o_ref = refs
    else:
        a_ref, b_ref, scale_ref, shift_ref, o_ref = refs
        res_ref = None
    y = jnp.dot(a_ref[...], b_ref[...], preferred_element_type=jnp.float32)
    y = y * scale_ref[...] + shift_ref[...]
    if has_res:
        y = y + res_ref[...].astype(jnp.float32)
    if relu:
        if relu_cols is None:
            y = jnp.maximum(y, 0.0)
        else:
            # packed conv1+downsample output: ReLU only the conv1 half (cols < relu_cols)
            cols = lax.broadcasted_iota(jnp.int32, y.shape, 1)
            y = jnp.where(cols < relu_cols, jnp.maximum(y, 0.0), y)
    o_ref[...] = y.astype(o_ref.dtype)


def _maxpool_kernel(p0_ref, p1_ref, p2_ref, o_ref, *, ho):
    """MaxPool2d(3, stride=2, padding=1). Inputs are the three stride-2 column phases of the
    -inf padded activation; the three row taps are taken in-kernel via leading-dim reshapes
    (trailing (Wo, C) layout preserved), whole tensor resident in VMEM, single step."""
    def row_max(p_ref):
        x = p_ref[...]                                   # (N, 2*ho + 2, Wo, C)
        n, _, wo, c = x.shape
        a = x[:, :2 * ho].reshape(n, ho, 2, wo, c)       # rows 2r and 2r+1
        b = x[:, 2:2 * ho + 2].reshape(n, ho, 2, wo, c)  # rows 2r+2 (and 2r+3, unused)
        return jnp.maximum(jnp.maximum(a[:, :, 0], a[:, :, 1]), b[:, :, 0])

    o_ref[...] = jnp.maximum(jnp.maximum(row_max(p0_ref), row_max(p1_ref)),
                             row_max(p2_ref))


def _gap_fc_kernel(x_ref, w_ref, b_ref, o_ref):
    """Fused AdaptiveAvgPool2d((1,1)) + flatten + Linear (bf16 matmul, f32 accumulate)."""
    feats = jnp.mean(x_ref[...].astype(jnp.float32), axis=1)           # (N, C)
    o_ref[...] = jnp.dot(feats.astype(jnp.bfloat16), w_ref[...],
                         preferred_element_type=jnp.float32) + b_ref[...]


# ----------------------------------------------------------------------------- wrappers

def _fused_conv_matmul(a, b, scale, shift, res, relu, relu_cols):
    """a:(Mp,Kp) bf16, b:(Kp,Npad) bf16 -> (Mp,Npad) bf16 with fused BN/res/ReLU epilogue.

    K always fits one tile here, so the grid has a single (parallel) M axis and there is no
    accumulator scratch.
    """
    mp, kp = a.shape
    npad = b.shape[1]
    tm = _pick_tm(mp)
    has_res = res is not None

    kern = functools.partial(_conv_bn_kernel, relu=relu, relu_cols=relu_cols,
                             has_res=has_res)
    in_specs = [
        pl.BlockSpec((tm, kp), lambda i: (i, 0)),
        pl.BlockSpec((kp, npad), lambda i: (0, 0)),
        pl.BlockSpec((1, npad), lambda i: (0, 0)),
        pl.BlockSpec((1, npad), lambda i: (0, 0)),
    ]
    args = [a, b, scale, shift]
    if has_res:
        in_specs.append(pl.BlockSpec((tm, npad), lambda i: (i, 0)))
        args.append(res)

    return pl.pallas_call(
        kern,
        out_shape=jax.ShapeDtypeStruct((mp, npad), jnp.bfloat16),
        grid=(mp // tm,),
        in_specs=in_specs,
        out_specs=pl.BlockSpec((tm, npad), lambda i: (i, 0)),
        compiler_params=pltpu.CompilerParams(dimension_semantics=("parallel",)),
    )(*args)


def _im2col(x, kh, kw, stride, pad):
    """NHWC (bf16, true channel count) -> (N*Ho*Wo, kh*kw*C) patch matrix (plain-JAX glue)."""
    n, h, w, c = x.shape
    xp = jnp.pad(x, ((0, 0), (pad, pad), (pad, pad), (0, 0)), constant_values=0.0)
    ho = (h + 2 * pad - kh) // stride + 1
    wo = (w + 2 * pad - kw) // stride + 1
    cols = []
    for i in range(kh):
        for j in range(kw):
            cols.append(xp[:, i:i + stride * (ho - 1) + 1:stride,
                           j:j + stride * (wo - 1) + 1:stride, :])
    patches = jnp.stack(cols, axis=3)                    # (N, Ho, Wo, kh*kw, C)
    return patches.reshape(n * ho * wo, kh * kw * c), (n, ho, wo)


def _pack_weight(w, kp):
    """PyTorch conv weight (Cout, Cin, kh, kw) -> (kp, LANE) bf16, (kh,kw,Cin) row layout."""
    cout, cin, kh, kw = w.shape
    wt = jnp.transpose(w, (2, 3, 1, 0)).reshape(kh * kw * cin, cout)
    wt = jnp.pad(wt, ((0, kp - kh * kw * cin), (0, LANE - cout)))
    return wt.astype(jnp.bfloat16)


def _pack_down_weight(wd, cin, kp):
    """1x1/stride-2 downsample weight placed at the centre-tap rows of the 3x3 patch layout
    (rows [4*cin, 5*cin)), so the same (M, K) patch matrix drives both conv1 and downsample."""
    cout = wd.shape[0]
    wt = jnp.transpose(wd[:, :, 0, 0])                   # (cin, cout)
    wt = jnp.pad(wt, ((4 * cin, kp - 5 * cin), (0, LANE - cout)))
    return wt.astype(jnp.bfloat16)


def _bn_scale_shift(bn, cout, width):
    scale = bn["gamma"] / jnp.sqrt(bn["var"] + 1e-5)
    shift = bn["beta"] - bn["mean"] * scale
    scale = jnp.pad(scale, (0, width - cout)).astype(jnp.float32)
    shift = jnp.pad(shift, (0, width - cout)).astype(jnp.float32)
    return scale, shift


def conv_bn_act(x, w, bn, *, stride, pad, relu, residual=None, down_w=None, down_bn=None):
    """Conv2d (bias=False) + eval-mode BatchNorm2d (+ residual add) (+ ReLU), fused.

    x: NHWC; only the first Cin (= w.shape[1]) channels are used (extra channels are the
    lane padding of the previous conv output and are zero).  Output: NHWC bf16, C = LANE.

    If `down_w`/`down_bn` are given (first block of a downsampling stage), the 1x1/stride-2
    downsample is packed into output columns 128..255 of the same matmul and the function
    returns (out1_nhwc, identity_(M,128)).
    """
    cin = w.shape[1]
    cout = w.shape[0]
    x = x[..., :cin].astype(jnp.bfloat16)
    cols, (n, ho, wo) = _im2col(x, w.shape[2], w.shape[3], stride, pad)
    m, k = cols.shape
    mp, kp = _round_up(m, 8), _round_up(k, LANE)
    if mp != m or kp != k:
        cols = jnp.pad(cols, ((0, mp - m), (0, kp - k)))

    b = _pack_weight(w, kp)
    scale, shift = _bn_scale_shift(bn, cout, LANE)
    relu_cols = None
    if down_w is not None:
        b = jnp.concatenate([b, _pack_down_weight(down_w, cin, kp)], axis=1)
        d_scale, d_shift = _bn_scale_shift(down_bn, down_w.shape[0], LANE)
        scale = jnp.concatenate([scale, d_scale])
        shift = jnp.concatenate([shift, d_shift])
        relu_cols = LANE                          # ReLU only the conv1 half
    npad = b.shape[1]
    scale = scale.reshape(1, npad)
    shift = shift.reshape(1, npad)

    res2 = None
    if residual is not None:
        res2 = residual.reshape(m, LANE).astype(jnp.bfloat16)
        if mp != m:
            res2 = jnp.pad(res2, ((0, mp - m), (0, 0)))

    out = _fused_conv_matmul(cols, b, scale, shift, res2, relu, relu_cols)[:m]
    if down_w is not None:
        return out[:, :LANE].reshape(n, ho, wo, LANE), out[:, LANE:]
    return out.reshape(n, ho, wo, LANE)


def maxpool3x3_s2(x):
    """MaxPool2d(kernel_size=3, stride=2, padding=1), NHWC bf16 with C = LANE."""
    n, h, w, c = x.shape
    ho = (h + 2 - 3) // 2 + 1
    wo = (w + 2 - 3) // 2 + 1
    xp = jnp.pad(x, ((0, 0), (1, 1), (1, 1), (0, 0)), constant_values=-jnp.inf)
    # Stride-2 column phases in glue; row taps done in-kernel (single grid step, 3 DMAs).
    phases = [xp[:, :, dj::2, :][:, :, :wo, :] for dj in range(3)]   # (N, H+2, Wo, C) each
    return pl.pallas_call(
        functools.partial(_maxpool_kernel, ho=ho),
        out_shape=jax.ShapeDtypeStruct((n, ho, wo, c), x.dtype),
    )(*phases)


def gap_fc(x, fc_w, fc_b):
    """Fused AdaptiveAvgPool2d((1,1)) + flatten + nn.Linear. x: NHWC bf16 with C = LANE."""
    n, h, w, c = x.shape
    num_classes, in_f = fc_w.shape
    wp = jnp.pad(jnp.transpose(fc_w),
                 ((0, c - in_f), (0, LANE - num_classes))).astype(jnp.bfloat16)
    bp = jnp.pad(fc_b, (0, LANE - num_classes)).reshape(1, LANE).astype(jnp.float32)
    out = pl.pallas_call(
        _gap_fc_kernel,
        out_shape=jax.ShapeDtypeStruct((n, LANE), jnp.float32),
    )(x.reshape(n, h * w, c), wp, bp)
    return out[:, :num_classes]


# ----------------------------------------------------------------------------- model

def basic_block(x, p, stride):
    if "down_conv" in p:
        # conv1 and the 1x1 downsample share one matmul (N = 256 packed weight).
        out1, identity = conv_bn_act(x, p["conv1"], p["bn1"], stride=stride, pad=1,
                                     relu=True, down_w=p["down_conv"],
                                     down_bn=p["down_bn"])
    else:
        out1 = conv_bn_act(x, p["conv1"], p["bn1"], stride=stride, pad=1, relu=True)
        identity = x      # stride == 1 and Cin == Cout here; padded channels are zero
    # residual add + final ReLU fused into the second conv's epilogue
    return conv_bn_act(out1, p["conv2"], p["bn2"], stride=1, pad=1, relu=True,
                       residual=identity)


def wilds_vision_forward(params, x_nchw):
    x = jnp.transpose(x_nchw, (0, 2, 3, 1))                         # NCHW -> NHWC
    x = conv_bn_act(x, params["conv1"], params["bn1"], stride=2, pad=3, relu=True)
    x = maxpool3x3_s2(x)
    for layer in params["layers"]:
        for bi, blk in enumerate(layer["blocks"]):
            s = layer["stride"] if bi == 0 else 1
            x = basic_block(x, blk, s)
    return gap_fc(x, params["fc_w"], params["fc_b"])


def init_params(key, widths=(8, 16, 32, 64), blocks=(3, 4, 6, 3),
                num_classes=10, in_ch=3):
    keys = iter(jax.random.split(key, 512))

    def conv_w(cout, cin, k):
        return 0.05 * jax.random.normal(next(keys), (cout, cin, k, k), jnp.float32)

    def bn(c):
        return dict(
            gamma=1.0 + 0.1 * jax.random.normal(next(keys), (c,), jnp.float32),
            beta=0.1 * jax.random.normal(next(keys), (c,), jnp.float32),
            mean=0.1 * jax.random.normal(next(keys), (c,), jnp.float32),
            var=jnp.abs(jax.random.normal(next(keys), (c,), jnp.float32)) + 1.0,
        )

    params = dict(conv1=conv_w(widths[0], in_ch, 7), bn1=bn(widths[0]))
    layers = []
    cin = widths[0]
    for li, (w, nb) in enumerate(zip(widths, blocks)):
        stride = 1 if li == 0 else 2
        blks = []
        for bi in range(nb):
            s = stride if bi == 0 else 1
            bcin = cin if bi == 0 else w
            p = dict(conv1=conv_w(w, bcin, 3), bn1=bn(w),
                     conv2=conv_w(w, w, 3), bn2=bn(w))
            if s != 1 or bcin != w:
                p["down_conv"] = conv_w(w, bcin, 1)
                p["down_bn"] = bn(w)
            blks.append(p)
        layers.append(dict(stride=stride, blocks=blks))
        cin = w
    params["layers"] = layers
    params["fc_w"] = 0.05 * jax.random.normal(next(keys), (num_classes, widths[-1]),
                                              jnp.float32)
    params["fc_b"] = 0.05 * jax.random.normal(next(keys), (num_classes,), jnp.float32)
    return params


if __name__ == "__main__":
    key = jax.random.PRNGKey(0)
    pkey, xkey = jax.random.split(key)
    params = init_params(pkey)

    # small input consistent with an ImageNet-style vision model: (batch=2, C=3, H=W=64)
    x = jax.random.normal(xkey, (2, 3, 64, 64), jnp.float32)

    fwd = jax.jit(lambda inp: wilds_vision_forward(params, inp))
    logits = fwd(x)
    jax.block_until_ready(logits)
    assert logits.shape == (2, 10) and logits.dtype == jnp.float32
    print("KERNEL_OK")
</pallas_src>

<mosaic_0001>
module attributes {stable_mosaic.version = 11 : i64} {
  func.func @_conv_bn_kernel(%arg0: i32, %arg1: memref<512x256xbf16, #tpu.memory_space<vmem>>, %arg2: memref<256x128xbf16, #tpu.memory_space<vmem>>, %arg3: memref<1x128xf32, #tpu.memory_space<vmem>>, %arg4: memref<1x128xf32, #tpu.memory_space<vmem>>, %arg5: memref<512x128xbf16, #tpu.memory_space<vmem>>) attributes {dimension_semantics = [#tpu.dimension_semantics<parallel>], iteration_bounds = array<i64: 4>, scalar_prefetch = 0 : i64, scratch_operands = 0 : i64, tpu.core_type = #tpu.core_type<tc>, window_params = [{transform_indices = @transform_0, window_bounds = array<i64: 512, 256>}, {pipeline_mode = #tpu.pipeline_mode<synchronous>, transform_indices = @transform_1, window_bounds = array<i64: 256, 128>}, {pipeline_mode = #tpu.pipeline_mode<synchronous>, transform_indices = @transform_2, window_bounds = array<i64: 1, 128>}, {pipeline_mode = #tpu.pipeline_mode<synchronous>, transform_indices = @transform_3, window_bounds = array<i64: 1, 128>}, {transform_indices = @transform_4, window_bounds = array<i64: 512, 128>}]} {
    %c0 = arith.constant 0 : index
    %c0_0 = arith.constant 0 : index
    %0 = vector.load %arg1[%c0, %c0_0] : memref<512x256xbf16, #tpu.memory_space<vmem>>, vector<512x256xbf16>
    %c0_1 = arith.constant 0 : index
    %c0_2 = arith.constant 0 : index
    %1 = vector.load %arg2[%c0_1, %c0_2] : memref<256x128xbf16, #tpu.memory_space<vmem>>, vector<256x128xbf16>
    %cst = arith.constant dense<0.000000e+00> : vector<512x128xf32>
    %2 = tpu.matmul %0, %1, %cst {dimension_numbers = #tpu.dot_dimension_numbers<[1], [0], [0], [1], [0, 0, 1, 1], [], []>} : vector<512x256xbf16>, vector<256x128xbf16>, vector<512x128xf32> -> vector<512x128xf32>
    %c0_3 = arith.constant 0 : index
    %c0_4 = arith.constant 0 : index
    %3 = vector.load %arg3[%c0_3, %c0_4] : memref<1x128xf32, #tpu.memory_space<vmem>>, vector<1x128xf32>
    %4 = vector.broadcast %3 : vector<1x128xf32> to vector<512x128xf32>
    %5 = arith.mulf %2, %4 : vector<512x128xf32>
    %c0_5 = arith.constant 0 : index
    %c0_6 = arith.constant 0 : index
    %6 = vector.load %arg4[%c0_5, %c0_6] : memref<1x128xf32, #tpu.memory_space<vmem>>, vector<1x128xf32>
    %7 = vector.broadcast %6 : vector<1x128xf32> to vector<512x128xf32>
    %8 = arith.addf %5, %7 : vector<512x128xf32>
    %cst_7 = arith.constant 0.000000e+00 : f32
    %9 = vector.broadcast %cst_7 : f32 to vector<512x128xf32>
    %10 = arith.maximumf %8, %9 : vector<512x128xf32>
    %11 = arith.truncf %10 : vector<512x128xf32> to vector<512x128xbf16>
    %c0_8 = arith.constant 0 : index
    %c0_9 = arith.constant 0 : index
    %12 = vector.load %arg5[%c0_8, %c0_9] : memref<512x128xbf16, #tpu.memory_space<vmem>>, vector<512x128xbf16>
    tpu.vector_store %arg5[%c0_8, %c0_9], %11 {strides = array<i32>} : memref<512x128xbf16, #tpu.memory_space<vmem>>, vector<512x128xbf16>,
    return
  }
  func.func @transform_0(%arg0: i32) -> (i32, i32) {
    %c0_i32 = arith.constant 0 : i32
    %c0_i32_0 = arith.constant 0 : i32
    return %arg0, %c0_i32 : i32, i32
  }
  func.func @transform_1(%arg0: i32) -> (i32, i32) {
    %c0_i32 = arith.constant 0 : i32
    %c0_i32_0 = arith.constant 0 : i32
    %c0_i32_1 = arith.constant 0 : i32
    return %c0_i32, %c0_i32_0 : i32, i32
  }
  func.func @transform_2(%arg0: i32) -> (i32, i32) {
    %c0_i32 = arith.constant 0 : i32
    %c0_i32_0 = arith.constant 0 : i32
    %c0_i32_1 = arith.constant 0 : i32
    return %c0_i32, %c0_i32_0 : i32, i32
  }
  func.func @transform_3(%arg0: i32) -> (i32, i32) {
    %c0_i32 = arith.constant 0 : i32
    %c0_i32_0 = arith.constant 0 : i32
    %c0_i32_1 = arith.constant 0 : i32
    return %c0_i32, %c0_i32_0 : i32, i32
  }
  func.func @transform_4(%arg0: i32) -> (i32, i32) {
    %c0_i32 = arith.constant 0 : i32
    %c0_i32_0 = arith.constant 0 : i32
    return %arg0, %c0_i32 : i32, i32
  }
}

module attributes {stable_mosaic.version = 11 : i64} {
  func.func @_maxpool_kernel(%arg0: memref<2x34x16x128xbf16, #tpu.memory_space<vmem>>, %arg1: memref<2x34x16x128xbf16, #tpu.memory_space<vmem>>, %arg2: memref<2x34x16x128xbf16, #tpu.memory_space<vmem>>, %arg3: memref<2x16x16x128xbf16, #tpu.memory_space<vmem>>) attributes {dimension_semantics = [], scalar_prefetch = 0 : i64, scratch_operands = 0 : i64, tpu.core_type = #tpu.core_type<tc>} {
    %c0 = arith.constant 0 : index
    %c0_0 = arith.constant 0 : index
    %c0_1 = arith.constant 0 : index
    %c0_2 = arith.constant 0 : index
    %0 = vector.load %arg0[%c0, %c0_0, %c0_1, %c0_2] : memref<2x34x16x128xbf16, #tpu.memory_space<vmem>>, vector<2x34x16x128xbf16>
    %1 = vector.extract_strided_slice %0 {offsets = [0, 0, 0, 0], sizes = [2, 32, 16, 128], strides = [1, 1, 1, 1]} : vector<2x34x16x128xbf16> to vector<2x32x16x128xbf16>
    %2 = vector.shape_cast %1 : vector<2x32x16x128xbf16> to vector<2x16x2x16x128xbf16>
    %3 = vector.extract_strided_slice %0 {offsets = [0, 2, 0, 0], sizes = [2, 32, 16, 128], strides = [1, 1, 1, 1]} : vector<2x34x16x128xbf16> to vector<2x32x16x128xbf16>
    %4 = vector.shape_cast %3 : vector<2x32x16x128xbf16> to vector<2x16x2x16x128xbf16>
    %5 = vector.extract_strided_slice %2 {offsets = [0, 0, 0, 0, 0], sizes = [2, 16, 1, 16, 128], strides = [1, 1, 1, 1, 1]} : vector<2x16x2x16x128xbf16> to vector<2x16x1x16x128xbf16>
    %6 = vector.shape_cast %5 : vector<2x16x1x16x128xbf16> to vector<2x16x16x128xbf16>
    %7 = vector.extract_strided_slice %2 {offsets = [0, 0, 1, 0, 0], sizes = [2, 16, 1, 16, 128], strides = [1, 1, 1, 1, 1]} : vector<2x16x2x16x128xbf16> to vector<2x16x1x16x128xbf16>
    %8 = vector.shape_cast %7 : vector<2x16x1x16x128xbf16> to vector<2x16x16x128xbf16>
    %9 = arith.maximumf %6, %8 : vector<2x16x16x128xbf16>
    %10 = vector.extract_strided_slice %4 {offsets = [0, 0, 0, 0, 0], sizes = [2, 16, 1, 16, 128], strides = [1, 1, 1, 1, 1]} : vector<2x16x2x16x128xbf16> to vector<2x16x1x16x128xbf16>
    %11 = vector.shape_cast %10 : vector<2x16x1x16x128xbf16> to vector<2x16x16x128xbf16>
    %12 = arith.maximumf %9, %11 : vector<2x16x16x128xbf16>
    %c0_3 = arith.constant 0 : index
    %c0_4 = arith.constant 0 : index
    %c0_5 = arith.constant 0 : index
    %c0_6 = arith.constant 0 : index
    %13 = vector.load %arg1[%c0_3, %c0_4, %c0_5, %c0_6] : memref<2x34x16x128xbf16, #tpu.memory_space<vmem>>, vector<2x34x16x128xbf16>
    %14 = vector.extract_strided_slice %13 {offsets = [0, 0, 0, 0], sizes = [2, 32, 16, 128], strides = [1, 1, 1, 1]} : vector<2x34x16x128xbf16> to vector<2x32x16x128xbf16>
    %15 = vector.shape_cast %14 : vector<2x32x16x128xbf16> to vector<2x16x2x16x128xbf16>
    %16 = vector.extract_strided_slice %13 {offsets = [0, 2, 0, 0], sizes = [2, 32, 16, 128], strides = [1, 1, 1, 1]} : vector<2x34x16x128xbf16> to vector<2x32x16x128xbf16>
    %17 = vector.shape_cast %16 : vector<2x32x16x128xbf16> to vector<2x16x2x16x128xbf16>
    %18 = vector.extract_strided_slice %15 {offsets = [0, 0, 0, 0, 0], sizes = [2, 16, 1, 16, 128], strides = [1, 1, 1, 1, 1]} : vector<2x16x2x16x128xbf16> to vector<2x16x1x16x128xbf16>
    %19 = vector.shape_cast %18 : vector<2x16x1x16x128xbf16> to vector<2x16x16x128xbf16>
    %20 = vector.extract_strided_slice %15 {offsets = [0, 0, 1, 0, 0], sizes = [2, 16, 1, 16, 128], strides = [1, 1, 1, 1, 1]} : vector<2x16x2x16x128xbf16> to vector<2x16x1x16x128xbf16>
    %21 = vector.shape_cast %20 : vector<2x16x1x16x128xbf16> to vector<2x16x16x128xbf16>
    %22 = arith.maximumf %19, %21 : vector<2x16x16x128xbf16>
    %23 = vector.extract_strided_slice %17 {offsets = [0, 0, 0, 0, 0], sizes = [2, 16, 1, 16, 128], strides = [1, 1, 1, 1, 1]} : vector<2x16x2x16x128xbf16> to vector<2x16x1x16x128xbf16>
    %24 = vector.shape_cast %23 : vector<2x16x1x16x128xbf16> to vector<2x16x16x128xbf16>
    %25 = arith.maximumf %22, %24 : vector<2x16x16x128xbf16>
    %26 = arith.maximumf %12, %25 : vector<2x16x16x128xbf16>
    %c0_7 = arith.constant 0 : index
    %c0_8 = arith.constant 0 : index
    %c0_9 = arith.constant 0 : index
    %c0_10 = arith.constant 0 : index
    %27 = vector.load %arg2[%c0_7, %c0_8, %c0_9, %c0_10] : memref<2x34x16x128xbf16, #tpu.memory_space<vmem>>, vector<2x34x16x128xbf16>
    %28 = vector.extract_strided_slice %27 {offsets = [0, 0, 0, 0], sizes = [2, 32, 16, 128], strides = [1, 1, 1, 1]} : vector<2x34x16x128xbf16> to vector<2x32x16x128xbf16>
    %29 = vector.shape_cast %28 : vector<2x32x16x128xbf16> to vector<2x16x2x16x128xbf16>
    %30 = vector.extract_strided_slice %27 {offsets = [0, 2, 0, 0], sizes = [2, 32, 16, 128], strides = [1, 1, 1, 1]} : vector<2x34x16x128xbf16> to vector<2x32x16x128xbf16>
    %31 = vector.shape_cast %30 : vector<2x32x16x128xbf16> to vector<2x16x2x16x128xbf16>
    %32 = vector.extract_strided_slice %29 {offsets = [0, 0, 0, 0, 0], sizes = [2, 16, 1, 16, 128], strides = [1, 1, 1, 1, 1]} : vector<2x16x2x16x128xbf16> to vector<2x16x1x16x128xbf16>
    %33 = vector.shape_cast %32 : vector<2x16x1x16x128xbf16> to vector<2x16x16x128xbf16>
    %34 = vector.extract_strided_slice %29 {offsets = [0, 0, 1, 0, 0], sizes = [2, 16, 1, 16, 128], strides = [1, 1, 1, 1, 1]} : vector<2x16x2x16x128xbf16> to vector<2x16x1x16x128xbf16>
    %35 = vector.shape_cast %34 : vector<2x16x1x16x128xbf16> to vector<2x16x16x128xbf16>
    %36 = arith.maximumf %33, %35 : vector<2x16x16x128xbf16>
    %37 = vector.extract_strided_slice %31 {offsets = [0, 0, 0, 0, 0], sizes = [2, 16, 1, 16, 128], strides = [1, 1, 1, 1, 1]} : vector<2x16x2x16x128xbf16> to vector<2x16x1x16x128xbf16>
    %38 = vector.shape_cast %37 : vector<2x16x1x16x128xbf16> to vector<2x16x16x128xbf16>
    %39 = arith.maximumf %36, %38 : vector<2x16x16x128xbf16>
    %40 = arith.maximumf %26, %39 : vector<2x16x16x128xbf16>
    %c0_11 = arith.constant 0 : index
    %c0_12 = arith.constant 0 : index
    %c0_13 = arith.constant 0 : index
    %c0_14 = arith.constant 0 : index
    %41 = vector.load %arg3[%c0_11, %c0_12, %c0_13, %c0_14] : memref<2x16x16x128xbf16, #tpu.memory_space<vmem>>, vector<2x16x16x128xbf16>
    tpu.vector_store %arg3[%c0_11, %c0_12, %c0_13, %c0_14], %40 {strides = array<i32>} : memref<2x16x16x128xbf16, #tpu.memory_space<vmem>>, vector<2x16x16x128xbf16>,
    return
  }
}

module attributes {stable_mosaic.version = 11 : i64} {
  func.func @_conv_bn_kernel(%arg0: i32, %arg1: memref<256x128xbf16, #tpu.memory_space<vmem>>, %arg2: memref<128x128xbf16, #tpu.memory_space<vmem>>, %arg3: memref<1x128xf32, #tpu.memory_space<vmem>>, %arg4: memref<1x128xf32, #tpu.memory_space<vmem>>, %arg5: memref<256x128xbf16, #tpu.memory_space<vmem>>) attributes {dimension_semantics = [#tpu.dimension_semantics<parallel>], iteration_bounds = array<i64: 2>, scalar_prefetch = 0 : i64, scratch_operands = 0 : i64, tpu.core_type = #tpu.core_type<tc>, window_params = [{transform_indices = @transform_0, window_bounds = array<i64: 256, 128>}, {pipeline_mode = #tpu.pipeline_mode<synchronous>, transform_indices = @transform_1, window_bounds = array<i64: 128, 128>}, {pipeline_mode = #tpu.pipeline_mode<synchronous>, transform_indices = @transform_2, window_bounds = array<i64: 1, 128>}, {pipeline_mode = #tpu.pipeline_mode<synchronous>, transform_indices = @transform_3, window_bounds = array<i64: 1, 128>}, {transform_indices = @transform_4, window_bounds = array<i64: 256, 128>}]} {
    %c0 = arith.constant 0 : index
    %c0_0 = arith.constant 0 : index
    %0 = vector.load %arg1[%c0, %c0_0] : memref<256x128xbf16, #tpu.memory_space<vmem>>, vector<256x128xbf16>
    %c0_1 = arith.constant 0 : index
    %c0_2 = arith.constant 0 : index
    %1 = vector.load %arg2[%c0_1, %c0_2] : memref<128x128xbf16, #tpu.memory_space<vmem>>, vector<128x128xbf16>
    %cst = arith.constant dense<0.000000e+00> : vector<256x128xf32>
    %2 = tpu.matmul %0, %1, %cst {dimension_numbers = #tpu.dot_dimension_numbers<[1], [0], [0], [1], [0, 0, 1, 1], [], []>} : vector<256x128xbf16>, vector<128x128xbf16>, vector<256x128xf32> -> vector<256x128xf32>
    %c0_3 = arith.constant 0 : index
    %c0_4 = arith.constant 0 : index
    %3 = vector.load %arg3[%c0_3, %c0_4] : memref<1x128xf32, #tpu.memory_space<vmem>>, vector<1x128xf32>
    %4 = vector.broadcast %3 : vector<1x128xf32> to vector<256x128xf32>
    %5 = arith.mulf %2, %4 : vector<256x128xf32>
    %c0_5 = arith.constant 0 : index
    %c0_6 = arith.constant 0 : index
    %6 = vector.load %arg4[%c0_5, %c0_6] : memref<1x128xf32, #tpu.memory_space<vmem>>, vector<1x128xf32>
    %7 = vector.broadcast %6 : vector<1x128xf32> to vector<256x128xf32>
    %8 = arith.addf %5, %7 : vector<256x128xf32>
    %cst_7 = arith.constant 0.000000e+00 : f32
    %9 = vector.broadcast %cst_7 : f32 to vector<256x128xf32>
    %10 = arith.maximumf %8, %9 : vector<256x128xf32>
    %11 = arith.truncf %10 : vector<256x128xf32> to vector<256x128xbf16>
    %c0_8 = arith.constant 0 : index
    %c0_9 = arith.constant 0 : index
    %12 = vector.load %arg5[%c0_8, %c0_9] : memref<256x128xbf16, #tpu.memory_space<vmem>>, vector<256x128xbf16>
    tpu.vector_store %arg5[%c0_8, %c0_9], %11 {strides = array<i32>} : memref<256x128xbf16, #tpu.memory_space<vmem>>, vector<256x128xbf16>,
    return
  }
  func.func @transform_0(%arg0: i32) -> (i32, i32) {
    %c0_i32 = arith.constant 0 : i32
    %c0_i32_0 = arith.constant 0 : i32
    return %arg0, %c0_i32 : i32, i32
  }
  func.func @transform_1(%arg0: i32) -> (i32, i32) {
    %c0_i32 = arith.constant 0 : i32
    %c0_i32_0 = arith.constant 0 : i32
    %c0_i32_1 = arith.constant 0 : i32
    return %c0_i32, %c0_i32_0 : i32, i32
  }
  func.func @transform_2(%arg0: i32) -> (i32, i32) {
    %c0_i32 = arith.constant 0 : i32
    %c0_i32_0 = arith.constant 0 : i32
    %c0_i32_1 = arith.constant 0 : i32
    return %c0_i32, %c0_i32_0 : i32, i32
  }
  func.func @transform_3(%arg0: i32) -> (i32, i32) {
    %c0_i32 = arith.constant 0 : i32
    %c0_i32_0 = arith.constant 0 : i32
    %c0_i32_1 = arith.constant 0 : i32
    return %c0_i32, %c0_i32_0 : i32, i32
  }
  func.func @transform_4(%arg0: i32) -> (i32, i32) {
    %c0_i32 = arith.constant 0 : i32
    %c0_i32_0 = arith.constant 0 : i32
    return %arg0, %c0_i32 : i32, i32
  }
}

module attributes {stable_mosaic.version = 11 : i64} {
  func.func @_conv_bn_kernel(%arg0: i32, %arg1: memref<256x128xbf16, #tpu.memory_space<vmem>>, %arg2: memref<128x128xbf16, #tpu.memory_space<vmem>>, %arg3: memref<1x128xf32, #tpu.memory_space<vmem>>, %arg4: memref<1x128xf32, #tpu.memory_space<vmem>>, %arg5: memref<256x128xbf16, #tpu.memory_space<vmem>>, %arg6: memref<256x128xbf16, #tpu.memory_space<vmem>>) attributes {dimension_semantics = [#tpu.dimension_semantics<parallel>], iteration_bounds = array<i64: 2>, scalar_prefetch = 0 : i64, scratch_operands = 0 : i64, tpu.core_type = #tpu.core_type<tc>, window_params = [{transform_indices = @transform_0, window_bounds = array<i64: 256, 128>}, {pipeline_mode = #tpu.pipeline_mode<synchronous>, transform_indices = @transform_1, window_bounds = array<i64: 128, 128>}, {pipeline_mode = #tpu.pipeline_mode<synchronous>, transform_indices = @transform_2, window_bounds = array<i64: 1, 128>}, {pipeline_mode = #tpu.pipeline_mode<synchronous>, transform_indices = @transform_3, window_bounds = array<i64: 1, 128>}, {transform_indices = @transform_4, window_bounds = array<i64: 256, 128>}, {transform_indices = @transform_5, window_bounds = array<i64: 256, 128>}]} {
    %c0 = arith.constant 0 : index
    %c0_0 = arith.constant 0 : index
    %0 = vector.load %arg1[%c0, %c0_0] : memref<256x128xbf16, #tpu.memory_space<vmem>>, vector<256x128xbf16>
    %c0_1 = arith.constant 0 : index
    %c0_2 = arith.constant 0 : index
    %1 = vector.load %arg2[%c0_1, %c0_2] : memref<128x128xbf16, #tpu.memory_space<vmem>>, vector<128x128xbf16>
    %cst = arith.constant dense<0.000000e+00> : vector<256x128xf32>
    %2 = tpu.matmul %0, %1, %cst {dimension_numbers = #tpu.dot_dimension_numbers<[1], [0], [0], [1], [0, 0, 1, 1], [], []>} : vector<256x128xbf16>, vector<128x128xbf16>, vector<256x128xf32> -> vector<256x128xf32>
    %c0_3 = arith.constant 0 : index
    %c0_4 = arith.constant 0 : index
    %3 = vector.load %arg3[%c0_3, %c0_4] : memref<1x128xf32, #tpu.memory_space<vmem>>, vector<1x128xf32>
    %4 = vector.broadcast %3 : vector<1x128xf32> to vector<256x128xf32>
    %5 = arith.mulf %2, %4 : vector<256x128xf32>
    %c0_5 = arith.constant 0 : index
    %c0_6 = arith.constant 0 : index
    %6 = vector.load %arg4[%c0_5, %c0_6] : memref<1x128xf32, #tpu.memory_space<vmem>>, vector<1x128xf32>
    %7 = vector.broadcast %6 : vector<1x128xf32> to vector<256x128xf32>
    %8 = arith.addf %5, %7 : vector<256x128xf32>
    %c0_7 = arith.constant 0 : index
    %c0_8 = arith.constant 0 : index
    %9 = vector.load %arg5[%c0_7, %c0_8] : memref<256x128xbf16, #tpu.memory_space<vmem>>, vector<256x128xbf16>
    %10 = arith.extf %9 : vector<256x128xbf16> to vector<256x128xf32>
    %11 = arith.addf %8, %10 : vector<256x128xf32>
    %cst_9 = arith.constant 0.000000e+00 : f32
    %12 = vector.broadcast %cst_9 : f32 to vector<256x128xf32>
    %13 = arith.maximumf %11, %12 : vector<256x128xf32>
    %14 = arith.truncf %13 : vector<256x128xf32> to vector<256x128xbf16>
    %c0_10 = arith.constant 0 : index
    %c0_11 = arith.constant 0 : index
    %15 = vector.load %arg6[%c0_10, %c0_11] : memref<256x128xbf16, #tpu.memory_space<vmem>>, vector<256x128xbf16>
    tpu.vector_store %arg6[%c0_10, %c0_11], %14 {strides = array<i32>} : memref<256x128xbf16, #tpu.memory_space<vmem>>, vector<256x128xbf16>,
    return
  }
  func.func @transform_0(%arg0: i32) -> (i32, i32) {
    %c0_i32 = arith.constant 0 : i32
    %c0_i32_0 = arith.constant 0 : i32
    return %arg0, %c0_i32 : i32, i32
  }
  func.func @transform_1(%arg0: i32) -> (i32, i32) {
    %c0_i32 = arith.constant 0 : i32
    %c0_i32_0 = arith.constant 0 : i32
    %c0_i32_1 = arith.constant 0 : i32
    return %c0_i32, %c0_i32_0 : i32, i32
  }
  func.func @transform_2(%arg0: i32) -> (i32, i32) {
    %c0_i32 = arith.constant 0 : i32
    %c0_i32_0 = arith.constant 0 : i32
    %c0_i32_1 = arith.constant 0 : i32
    return %c0_i32, %c0_i32_0 : i32, i32
  }
  func.func @transform_3(%arg0: i32) -> (i32, i32) {
    %c0_i32 = arith.constant 0 : i32
    %c0_i32_0 = arith.constant 0 : i32
    %c0_i32_1 = arith.constant 0 : i32
    return %c0_i32, %c0_i32_0 : i32, i32
  }
  func.func @transform_4(%arg0: i32) -> (i32, i32) {
    %c0_i32 = arith.constant 0 : i32
    %c0_i32_0 = arith.constant 0 : i32
    return %arg0, %c0_i32 : i32, i32
  }
  func.func @transform_5(%arg0: i32) -> (i32, i32) {
    %c0_i32 = arith.constant 0 : i32
    %c0_i32_0 = arith.constant 0 : i32
    return %arg0, %c0_i32 : i32, i32
  }
}

module attributes {stable_mosaic.version = 11 : i64} {
  func.func @_conv_bn_kernel(%arg0: i32, %arg1: memref<128x128xbf16, #tpu.memory_space<vmem>>, %arg2: memref<128x256xbf16, #tpu.memory_space<vmem>>, %arg3: memref<1x256xf32, #tpu.memory_space<vmem>>, %arg4: memref<1x256xf32, #tpu.memory_space<vmem>>, %arg5: memref<128x256xbf16, #tpu.memory_space<vmem>>) attributes {dimension_semantics = [#tpu.dimension_semantics<parallel>], iteration_bounds = array<i64: 1>, scalar_prefetch = 0 : i64, scratch_operands = 0 : i64, tpu.core_type = #tpu.core_type<tc>, window_params = [{transform_indices = @transform_0, window_bounds = array<i64: 128, 128>}, {pipeline_mode = #tpu.pipeline_mode<synchronous>, transform_indices = @transform_1, window_bounds = array<i64: 128, 256>}, {pipeline_mode = #tpu.pipeline_mode<synchronous>, transform_indices = @transform_2, window_bounds = array<i64: 1, 256>}, {pipeline_mode = #tpu.pipeline_mode<synchronous>, transform_indices = @transform_3, window_bounds = array<i64: 1, 256>}, {transform_indices = @transform_4, window_bounds = array<i64: 128, 256>}]} {
    %c0 = arith.constant 0 : index
    %c0_0 = arith.constant 0 : index
    %0 = vector.load %arg1[%c0, %c0_0] : memref<128x128xbf16, #tpu.memory_space<vmem>>, vector<128x128xbf16>
    %c0_1 = arith.constant 0 : index
    %c0_2 = arith.constant 0 : index
    %1 = vector.load %arg2[%c0_1, %c0_2] : memref<128x256xbf16, #tpu.memory_space<vmem>>, vector<128x256xbf16>
    %cst = arith.constant dense<0.000000e+00> : vector<128x256xf32>
    %2 = tpu.matmul %0, %1, %cst {dimension_numbers = #tpu.dot_dimension_numbers<[1], [0], [0], [1], [0, 0, 1, 1], [], []>} : vector<128x128xbf16>, vector<128x256xbf16>, vector<128x256xf32> -> vector<128x256xf32>
    %c0_3 = arith.constant 0 : index
    %c0_4 = arith.constant 0 : index
    %3 = vector.load %arg3[%c0_3, %c0_4] : memref<1x256xf32, #tpu.memory_space<vmem>>, vector<1x256xf32>
    %4 = vector.broadcast %3 : vector<1x256xf32> to vector<128x256xf32>
    %5 = arith.mulf %2, %4 : vector<128x256xf32>
    %c0_5 = arith.constant 0 : index
    %c0_6 = arith.constant 0 : index
    %6 = vector.load %arg4[%c0_5, %c0_6] : memref<1x256xf32, #tpu.memory_space<vmem>>, vector<1x256xf32>
    %7 = vector.broadcast %6 : vector<1x256xf32> to vector<128x256xf32>
    %8 = arith.addf %5, %7 : vector<128x256xf32>
    %9 = tpu.iota {dimensions = array<i32: 1>} : vector<128x256xi32>
    %c128_i32 = arith.constant 128 : i32
    %10 = vector.broadcast %c128_i32 : i32 to vector<128x256xi32>
    %11 = arith.cmpi slt, %9, %10 : vector<128x256xi32>
    %cst_7 = arith.constant 0.000000e+00 : f32
    %12 = vector.broadcast %cst_7 : f32 to vector<128x256xf32>
    %13 = arith.maximumf %8, %12 : vector<128x256xf32>
    %14 = arith.select %11, %13, %8 : vector<128x256xi1>, vector<128x256xf32>
    %15 = arith.truncf %14 : vector<128x256xf32> to vector<128x256xbf16>
    %c0_8 = arith.constant 0 : index
    %c0_9 = arith.constant 0 : index
    %16 = vector.load %arg5[%c0_8, %c0_9] : memref<128x256xbf16, #tpu.memory_space<vmem>>, vector<128x256xbf16>
    tpu.vector_store %arg5[%c0_8, %c0_9], %15 {strides = array<i32>} : memref<128x256xbf16, #tpu.memory_space<vmem>>, vector<128x256xbf16>,
    return
  }
  func.func @transform_0(%arg0: i32) -> (i32, i32) {
    %c0_i32 = arith.constant 0 : i32
    %c0_i32_0 = arith.constant 0 : i32
    return %arg0, %c0_i32 : i32, i32
  }
  func.func @transform_1(%arg0: i32) -> (i32, i32) {
    %c0_i32 = arith.constant 0 : i32
    %c0_i32_0 = arith.constant 0 : i32
    %c0_i32_1 = arith.constant 0 : i32
    return %c0_i32, %c0_i32_0 : i32, i32
  }
  func.func @transform_2(%arg0: i32) -> (i32, i32) {
    %c0_i32 = arith.constant 0 : i32
    %c0_i32_0 = arith.constant 0 : i32
    %c0_i32_1 = arith.constant 0 : i32
    return %c0_i32, %c0_i32_0 : i32, i32
  }
  func.func @transform_3(%arg0: i32) -> (i32, i32) {
    %c0_i32 = arith.constant 0 : i32
    %c0_i32_0 = arith.constant 0 : i32
    %c0_i32_1 = arith.constant 0 : i32
    return %c0_i32, %c0_i32_0 : i32, i32
  }
  func.func @transform_4(%arg0: i32) -> (i32, i32) {
    %c0_i32 = arith.constant 0 : i32
    %c0_i32_0 = arith.constant 0 : i32
    return %arg0, %c0_i32 : i32, i32
  }
}

module attributes {stable_mosaic.version = 11 : i64} {
  func.func @_conv_bn_kernel(%arg0: i32, %arg1: memref<128x256xbf16, #tpu.memory_space<vmem>>, %arg2: memref<256x128xbf16, #tpu.memory_space<vmem>>, %arg3: memref<1x128xf32, #tpu.memory_space<vmem>>, %arg4: memref<1x128xf32, #tpu.memory_space<vmem>>, %arg5: memref<128x128xbf16, #tpu.memory_space<vmem>>, %arg6: memref<128x128xbf16, #tpu.memory_space<vmem>>) attributes {dimension_semantics = [#tpu.dimension_semantics<parallel>], iteration_bounds = array<i64: 1>, scalar_prefetch = 0 : i64, scratch_operands = 0 : i64, tpu.core_type = #tpu.core_type<tc>, window_params = [{transform_indices = @transform_0, window_bounds = array<i64: 128, 256>}, {pipeline_mode = #tpu.pipeline_mode<synchronous>, transform_indices = @transform_1, window_bounds = array<i64: 256, 128>}, {pipeline_mode = #tpu.pipeline_mode<synchronous>, transform_indices = @transform_2, window_bounds = array<i64: 1, 128>}, {pipeline_mode = #tpu.pipeline_mode<synchronous>, transform_indices = @transform_3, window_bounds = array<i64: 1, 128>}, {transform_indices = @transform_4, window_bounds = array<i64: 128, 128>}, {transform_indices = @transform_5, window_bounds = array<i64: 128, 128>}]} {
    %c0 = arith.constant 0 : index
    %c0_0 = arith.constant 0 : index
    %0 = vector.load %arg1[%c0, %c0_0] : memref<128x256xbf16, #tpu.memory_space<vmem>>, vector<128x256xbf16>
    %c0_1 = arith.constant 0 : index
    %c0_2 = arith.constant 0 : index
    %1 = vector.load %arg2[%c0_1, %c0_2] : memref<256x128xbf16, #tpu.memory_space<vmem>>, vector<256x128xbf16>
    %cst = arith.constant dense<0.000000e+00> : vector<128x128xf32>
    %2 = tpu.matmul %0, %1, %cst {dimension_numbers = #tpu.dot_dimension_numbers<[1], [0], [0], [1], [0, 0, 1, 1], [], []>} : vector<128x256xbf16>, vector<256x128xbf16>, vector<128x128xf32> -> vector<128x128xf32>
    %c0_3 = arith.constant 0 : index
    %c0_4 = arith.constant 0 : index
    %3 = vector.load %arg3[%c0_3, %c0_4] : memref<1x128xf32, #tpu.memory_space<vmem>>, vector<1x128xf32>
    %4 = vector.broadcast %3 : vector<1x128xf32> to vector<128x128xf32>
    %5 = arith.mulf %2, %4 : vector<128x128xf32>
    %c0_5 = arith.constant 0 : index
    %c0_6 = arith.constant 0 : index
    %6 = vector.load %arg4[%c0_5, %c0_6] : memref<1x128xf32, #tpu.memory_space<vmem>>, vector<1x128xf32>
    %7 = vector.broadcast %6 : vector<1x128xf32> to vector<128x128xf32>
    %8 = arith.addf %5, %7 : vector<128x128xf32>
    %c0_7 = arith.constant 0 : index
    %c0_8 = arith.constant 0 : index
    %9 = vector.load %arg5[%c0_7, %c0_8] : memref<128x128xbf16, #tpu.memory_space<vmem>>, vector<128x128xbf16>
    %10 = arith.extf %9 : vector<128x128xbf16> to vector<128x128xf32>
    %11 = arith.addf %8, %10 : vector<128x128xf32>
    %cst_9 = arith.constant 0.000000e+00 : f32
    %12 = vector.broadcast %cst_9 : f32 to vector<128x128xf32>
    %13 = arith.maximumf %11, %12 : vector<128x128xf32>
    %14 = arith.truncf %13 : vector<128x128xf32> to vector<128x128xbf16>
    %c0_10 = arith.constant 0 : index
    %c0_11 = arith.constant 0 : index
    %15 = vector.load %arg6[%c0_10, %c0_11] : memref<128x128xbf16, #tpu.memory_space<vmem>>, vector<128x128xbf16>
    tpu.vector_store %arg6[%c0_10, %c0_11], %14 {strides = array<i32>} : memref<128x128xbf16, #tpu.memory_space<vmem>>, vector<128x128xbf16>,
    return
  }
  func.func @transform_0(%arg0: i32) -> (i32, i32) {
    %c0_i32 = arith.constant 0 : i32
    %c0_i32_0 = arith.constant 0 : i32
    return %arg0, %c0_i32 : i32, i32
  }
  func.func @transform_1(%arg0: i32) -> (i32, i32) {
    %c0_i32 = arith.constant 0 : i32
    %c0_i32_0 = arith.constant 0 : i32
    %c0_i32_1 = arith.constant 0 : i32
    return %c0_i32, %c0_i32_0 : i32, i32
  }
  func.func @transform_2(%arg0: i32) -> (i32, i32) {
    %c0_i32 = arith.constant 0 : i32
    %c0_i32_0 = arith.constant 0 : i32
    %c0_i32_1 = arith.constant 0 : i32
    return %c0_i32, %c0_i32_0 : i32, i32
  }
  func.func @transform_3(%arg0: i32) -> (i32, i32) {
    %c0_i32 = arith.constant 0 : i32
    %c0_i32_0 = arith.constant 0 : i32
    %c0_i32_1 = arith.constant 0 : i32
    return %c0_i32, %c0_i32_0 : i32, i32
  }
  func.func @transform_4(%arg0: i32) -> (i32, i32) {
    %c0_i32 = arith.constant 0 : i32
    %c0_i32_0 = arith.constant 0 : i32
    return %arg0, %c0_i32 : i32, i32
  }
  func.func @transform_5(%arg0: i32) -> (i32, i32) {
    %c0_i32 = arith.constant 0 : i32
    %c0_i32_0 = arith.constant 0 : i32
    return %arg0, %c0_i32 : i32, i32
  }
}

module attributes {stable_mosaic.version = 11 : i64} {
  func.func @_conv_bn_kernel(%arg0: i32, %arg1: memref<128x256xbf16, #tpu.memory_space<vmem>>, %arg2: memref<256x128xbf16, #tpu.memory_space<vmem>>, %arg3: memref<1x128xf32, #tpu.memory_space<vmem>>, %arg4: memref<1x128xf32, #tpu.memory_space<vmem>>, %arg5: memref<128x128xbf16, #tpu.memory_space<vmem>>) attributes {dimension_semantics = [#tpu.dimension_semantics<parallel>], iteration_bounds = array<i64: 1>, scalar_prefetch = 0 : i64, scratch_operands = 0 : i64, tpu.core_type = #tpu.core_type<tc>, window_params = [{transform_indices = @transform_0, window_bounds = array<i64: 128, 256>}, {pipeline_mode = #tpu.pipeline_mode<synchronous>, transform_indices = @transform_1, window_bounds = array<i64: 256, 128>}, {pipeline_mode = #tpu.pipeline_mode<synchronous>, transform_indices = @transform_2, window_bounds = array<i64: 1, 128>}, {pipeline_mode = #tpu.pipeline_mode<synchronous>, transform_indices = @transform_3, window_bounds = array<i64: 1, 128>}, {transform_indices = @transform_4, window_bounds = array<i64: 128, 128>}]} {
    %c0 = arith.constant 0 : index
    %c0_0 = arith.constant 0 : index
    %0 = vector.load %arg1[%c0, %c0_0] : memref<128x256xbf16, #tpu.memory_space<vmem>>, vector<128x256xbf16>
    %c0_1 = arith.constant 0 : index
    %c0_2 = arith.constant 0 : index
    %1 = vector.load %arg2[%c0_1, %c0_2] : memref<256x128xbf16, #tpu.memory_space<vmem>>, vector<256x128xbf16>
    %cst = arith.constant dense<0.000000e+00> : vector<128x128xf32>
    %2 = tpu.matmul %0, %1, %cst {dimension_numbers = #tpu.dot_dimension_numbers<[1], [0], [0], [1], [0, 0, 1, 1], [], []>} : vector<128x256xbf16>, vector<256x128xbf16>, vector<128x128xf32> -> vector<128x128xf32>
    %c0_3 = arith.constant 0 : index
    %c0_4 = arith.constant 0 : index
    %3 = vector.load %arg3[%c0_3, %c0_4] : memref<1x128xf32, #tpu.memory_space<vmem>>, vector<1x128xf32>
    %4 = vector.broadcast %3 : vector<1x128xf32> to vector<128x128xf32>
    %5 = arith.mulf %2, %4 : vector<128x128xf32>
    %c0_5 = arith.constant 0 : index
    %c0_6 = arith.constant 0 : index
    %6 = vector.load %arg4[%c0_5, %c0_6] : memref<1x128xf32, #tpu.memory_space<vmem>>, vector<1x128xf32>
    %7 = vector.broadcast %6 : vector<1x128xf32> to vector<128x128xf32>
    %8 = arith.addf %5, %7 : vector<128x128xf32>
    %cst_7 = arith.constant 0.000000e+00 : f32
    %9 = vector.broadcast %cst_7 : f32 to vector<128x128xf32>
    %10 = arith.maximumf %8, %9 : vector<128x128xf32>
    %11 = arith.truncf %10 : vector<128x128xf32> to vector<128x128xbf16>
    %c0_8 = arith.constant 0 : index
    %c0_9 = arith.constant 0 : index
    %12 = vector.load %arg5[%c0_8, %c0_9] : memref<128x128xbf16, #tpu.memory_space<vmem>>, vector<128x128xbf16>
    tpu.vector_store %arg5[%c0_8, %c0_9], %11 {strides = array<i32>} : memref<128x128xbf16, #tpu.memory_space<vmem>>, vector<128x128xbf16>,
    return
  }
  func.func @transform_0(%arg0: i32) -> (i32, i32) {
    %c0_i32 = arith.constant 0 : i32
    %c0_i32_0 = arith.constant 0 : i32
    return %arg0, %c0_i32 : i32, i32
  }
  func.func @transform_1(%arg0: i32) -> (i32, i32) {
    %c0_i32 = arith.constant 0 : i32
    %c0_i32_0 = arith.constant 0 : i32
    %c0_i32_1 = arith.constant 0 : i32
    return %c0_i32, %c0_i32_0 : i32, i32
  }
  func.func @transform_2(%arg0: i32) -> (i32, i32) {
    %c0_i32 = arith.constant 0 : i32
    %c0_i32_0 = arith.constant 0 : i32
    %c0_i32_1 = arith.constant 0 : i32
    return %c0_i32, %c0_i32_0 : i32, i32
  }
  func.func @transform_3(%arg0: i32) -> (i32, i32) {
    %c0_i32 = arith.constant 0 : i32
    %c0_i32_0 = arith.constant 0 : i32
    %c0_i32_1 = arith.constant 0 : i32
    return %c0_i32, %c0_i32_0 : i32, i32
  }
  func.func @transform_4(%arg0: i32) -> (i32, i32) {
    %c0_i32 = arith.constant 0 : i32
    %c0_i32_0 = arith.constant 0 : i32
    return %arg0, %c0_i32 : i32, i32
  }
}

module attributes {stable_mosaic.version = 11 : i64} {
  func.func @_conv_bn_kernel(%arg0: i32, %arg1: memref<32x256xbf16, #tpu.memory_space<vmem>>, %arg2: memref<256x256xbf16, #tpu.memory_space<vmem>>, %arg3: memref<1x256xf32, #tpu.memory_space<vmem>>, %arg4: memref<1x256xf32, #tpu.memory_space<vmem>>, %arg5: memref<32x256xbf16, #tpu.memory_space<vmem>>) attributes {dimension_semantics = [#tpu.dimension_semantics<parallel>], iteration_bounds = array<i64: 1>, scalar_prefetch = 0 : i64, scratch_operands = 0 : i64, tpu.core_type = #tpu.core_type<tc>, window_params = [{transform_indices = @transform_0, window_bounds = array<i64: 32, 256>}, {pipeline_mode = #tpu.pipeline_mode<synchronous>, transform_indices = @transform_1, window_bounds = array<i64: 256, 256>}, {pipeline_mode = #tpu.pipeline_mode<synchronous>, transform_indices = @transform_2, window_bounds = array<i64: 1, 256>}, {pipeline_mode = #tpu.pipeline_mode<synchronous>, transform_indices = @transform_3, window_bounds = array<i64: 1, 256>}, {transform_indices = @transform_4, window_bounds = array<i64: 32, 256>}]} {
    %c0 = arith.constant 0 : index
    %c0_0 = arith.constant 0 : index
    %0 = vector.load %arg1[%c0, %c0_0] : memref<32x256xbf16, #tpu.memory_space<vmem>>, vector<32x256xbf16>
    %c0_1 = arith.constant 0 : index
    %c0_2 = arith.constant 0 : index
    %1 = vector.load %arg2[%c0_1, %c0_2] : memref<256x256xbf16, #tpu.memory_space<vmem>>, vector<256x256xbf16>
    %cst = arith.constant dense<0.000000e+00> : vector<32x256xf32>
    %2 = tpu.matmul %0, %1, %cst {dimension_numbers = #tpu.dot_dimension_numbers<[1], [0], [0], [1], [0, 0, 1, 1], [], []>} : vector<32x256xbf16>, vector<256x256xbf16>, vector<32x256xf32> -> vector<32x256xf32>
    %c0_3 = arith.constant 0 : index
    %c0_4 = arith.constant 0 : index
    %3 = vector.load %arg3[%c0_3, %c0_4] : memref<1x256xf32, #tpu.memory_space<vmem>>, vector<1x256xf32>
    %4 = vector.broadcast %3 : vector<1x256xf32> to vector<32x256xf32>
    %5 = arith.mulf %2, %4 : vector<32x256xf32>
    %c0_5 = arith.constant 0 : index
    %c0_6 = arith.constant 0 : index
    %6 = vector.load %arg4[%c0_5, %c0_6] : memref<1x256xf32, #tpu.memory_space<vmem>>, vector<1x256xf32>
    %7 = vector.broadcast %6 : vector<1x256xf32> to vector<32x256xf32>
    %8 = arith.addf %5, %7 : vector<32x256xf32>
    %9 = tpu.iota {dimensions = array<i32: 1>} : vector<32x256xi32>
    %c128_i32 = arith.constant 128 : i32
    %10 = vector.broadcast %c128_i32 : i32 to vector<32x256xi32>
    %11 = arith.cmpi slt, %9, %10 : vector<32x256xi32>
    %cst_7 = arith.constant 0.000000e+00 : f32
    %12 = vector.broadcast %cst_7 : f32 to vector<32x256xf32>
    %13 = arith.maximumf %8, %12 : vector<32x256xf32>
    %14 = arith.select %11, %13, %8 : vector<32x256xi1>, vector<32x256xf32>
    %15 = arith.truncf %14 : vector<32x256xf32> to vector<32x256xbf16>
    %c0_8 = arith.constant 0 : index
    %c0_9 = arith.constant 0 : index
    %16 = vector.load %arg5[%c0_8, %c0_9] : memref<32x256xbf16, #tpu.memory_space<vmem>>, vector<32x256xbf16>
    tpu.vector_store %arg5[%c0_8, %c0_9], %15 {strides = array<i32>} : memref<32x256xbf16, #tpu.memory_space<vmem>>, vector<32x256xbf16>,
    return
  }
  func.func @transform_0(%arg0: i32) -> (i32, i32) {
    %c0_i32 = arith.constant 0 : i32
    %c0_i32_0 = arith.constant 0 : i32
    return %arg0, %c0_i32 : i32, i32
  }
  func.func @transform_1(%arg0: i32) -> (i32, i32) {
    %c0_i32 = arith.constant 0 : i32
    %c0_i32_0 = arith.constant 0 : i32
    %c0_i32_1 = arith.constant 0 : i32
    return %c0_i32, %c0_i32_0 : i32, i32
  }
  func.func @transform_2(%arg0: i32) -> (i32, i32) {
    %c0_i32 = arith.constant 0 : i32
    %c0_i32_0 = arith.constant 0 : i32
    %c0_i32_1 = arith.constant 0 : i32
    return %c0_i32, %c0_i32_0 : i32, i32
  }
  func.func @transform_3(%arg0: i32) -> (i32, i32) {
    %c0_i32 = arith.constant 0 : i32
    %c0_i32_0 = arith.constant 0 : i32
    %c0_i32_1 = arith.constant 0 : i32
    return %c0_i32, %c0_i32_0 : i32, i32
  }
  func.func @transform_4(%arg0: i32) -> (i32, i32) {
    %c0_i32 = arith.constant 0 : i32
    %c0_i32_0 = arith.constant 0 : i32
    return %arg0, %c0_i32 : i32, i32
  }
}

module attributes {stable_mosaic.version = 11 : i64} {
  func.func @_conv_bn_kernel(%arg0: i32, %arg1: memref<32x384xbf16, #tpu.memory_space<vmem>>, %arg2: memref<384x128xbf16, #tpu.memory_space<vmem>>, %arg3: memref<1x128xf32, #tpu.memory_space<vmem>>, %arg4: memref<1x128xf32, #tpu.memory_space<vmem>>, %arg5: memref<32x128xbf16, #tpu.memory_space<vmem>>, %arg6: memref<32x128xbf16, #tpu.memory_space<vmem>>) attributes {dimension_semantics = [#tpu.dimension_semantics<parallel>], iteration_bounds = array<i64: 1>, scalar_prefetch = 0 : i64, scratch_operands = 0 : i64, tpu.core_type = #tpu.core_type<tc>, window_params = [{transform_indices = @transform_0, window_bounds = array<i64: 32, 384>}, {pipeline_mode = #tpu.pipeline_mode<synchronous>, transform_indices = @transform_1, window_bounds = array<i64: 384, 128>}, {pipeline_mode = #tpu.pipeline_mode<synchronous>, transform_indices = @transform_2, window_bounds = array<i64: 1, 128>}, {pipeline_mode = #tpu.pipeline_mode<synchronous>, transform_indices = @transform_3, window_bounds = array<i64: 1, 128>}, {transform_indices = @transform_4, window_bounds = array<i64: 32, 128>}, {transform_indices = @transform_5, window_bounds = array<i64: 32, 128>}]} {
    %c0 = arith.constant 0 : index
    %c0_0 = arith.constant 0 : index
    %0 = vector.load %arg1[%c0, %c0_0] : memref<32x384xbf16, #tpu.memory_space<vmem>>, vector<32x384xbf16>
    %c0_1 = arith.constant 0 : index
    %c0_2 = arith.constant 0 : index
    %1 = vector.load %arg2[%c0_1, %c0_2] : memref<384x128xbf16, #tpu.memory_space<vmem>>, vector<384x128xbf16>
    %cst = arith.constant dense<0.000000e+00> : vector<32x128xf32>
    %2 = tpu.matmul %0, %1, %cst {dimension_numbers = #tpu.dot_dimension_numbers<[1], [0], [0], [1], [0, 0, 1, 1], [], []>} : vector<32x384xbf16>, vector<384x128xbf16>, vector<32x128xf32> -> vector<32x128xf32>
    %c0_3 = arith.constant 0 : index
    %c0_4 = arith.constant 0 : index
    %3 = vector.load %arg3[%c0_3, %c0_4] : memref<1x128xf32, #tpu.memory_space<vmem>>, vector<1x128xf32>
    %4 = vector.broadcast %3 : vector<1x128xf32> to vector<32x128xf32>
    %5 = arith.mulf %2, %4 : vector<32x128xf32>
    %c0_5 = arith.constant 0 : index
    %c0_6 = arith.constant 0 : index
    %6 = vector.load %arg4[%c0_5, %c0_6] : memref<1x128xf32, #tpu.memory_space<vmem>>, vector<1x128xf32>
    %7 = vector.broadcast %6 : vector<1x128xf32> to vector<32x128xf32>
    %8 = arith.addf %5, %7 : vector<32x128xf32>
    %c0_7 = arith.constant 0 : index
    %c0_8 = arith.constant 0 : index
    %9 = vector.load %arg5[%c0_7, %c0_8] : memref<32x128xbf16, #tpu.memory_space<vmem>>, vector<32x128xbf16>
    %10 = arith.extf %9 : vector<32x128xbf16> to vector<32x128xf32>
    %11 = arith.addf %8, %10 : vector<32x128xf32>
    %cst_9 = arith.constant 0.000000e+00 : f32
    %12 = vector.broadcast %cst_9 : f32 to vector<32x128xf32>
    %13 = arith.maximumf %11, %12 : vector<32x128xf32>
    %14 = arith.truncf %13 : vector<32x128xf32> to vector<32x128xbf16>
    %c0_10 = arith.constant 0 : index
    %c0_11 = arith.constant 0 : index
    %15 = vector.load %arg6[%c0_10, %c0_11] : memref<32x128xbf16, #tpu.memory_space<vmem>>, vector<32x128xbf16>
    tpu.vector_store %arg6[%c0_10, %c0_11], %14 {strides = array<i32>} : memref<32x128xbf16, #tpu.memory_space<vmem>>, vector<32x128xbf16>,
    return
  }
  func.func @transform_0(%arg0: i32) -> (i32, i32) {
    %c0_i32 = arith.constant 0 : i32
    %c0_i32_0 = arith.constant 0 : i32
    return %arg0, %c0_i32 : i32, i32
  }
  func.func @transform_1(%arg0: i32) -> (i32, i32) {
    %c0_i32 = arith.constant 0 : i32
    %c0_i32_0 = arith.constant 0 : i32
    %c0_i32_1 = arith.constant 0 : i32
    return %c0_i32, %c0_i32_0 : i32, i32
  }
  func.func @transform_2(%arg0: i32) -> (i32, i32) {
    %c0_i32 = arith.constant 0 : i32
    %c0_i32_0 = arith.constant 0 : i32
    %c0_i32_1 = arith.constant 0 : i32
    return %c0_i32, %c0_i32_0 : i32, i32
  }
  func.func @transform_3(%arg0: i32) -> (i32, i32) {
    %c0_i32 = arith.constant 0 : i32
    %c0_i32_0 = arith.constant 0 : i32
    %c0_i32_1 = arith.constant 0 : i32
    return %c0_i32, %c0_i32_0 : i32, i32
  }
  func.func @transform_4(%arg0: i32) -> (i32, i32) {
    %c0_i32 = arith.constant 0 : i32
    %c0_i32_0 = arith.constant 0 : i32
    return %arg0, %c0_i32 : i32, i32
  }
  func.func @transform_5(%arg0: i32) -> (i32, i32) {
    %c0_i32 = arith.constant 0 : i32
    %c0_i32_0 = arith.constant 0 : i32
    return %arg0, %c0_i32 : i32, i32
  }
}

module attributes {stable_mosaic.version = 11 : i64} {
  func.func @_conv_bn_kernel(%arg0: i32, %arg1: memref<32x384xbf16, #tpu.memory_space<vmem>>, %arg2: memref<384x128xbf16, #tpu.memory_space<vmem>>, %arg3: memref<1x128xf32, #tpu.memory_space<vmem>>, %arg4: memref<1x128xf32, #tpu.memory_space<vmem>>, %arg5: memref<32x128xbf16, #tpu.memory_space<vmem>>) attributes {dimension_semantics = [#tpu.dimension_semantics<parallel>], iteration_bounds = array<i64: 1>, scalar_prefetch = 0 : i64, scratch_operands = 0 : i64, tpu.core_type = #tpu.core_type<tc>, window_params = [{transform_indices = @transform_0, window_bounds = array<i64: 32, 384>}, {pipeline_mode = #tpu.pipeline_mode<synchronous>, transform_indices = @transform_1, window_bounds = array<i64: 384, 128>}, {pipeline_mode = #tpu.pipeline_mode<synchronous>, transform_indices = @transform_2, window_bounds = array<i64: 1, 128>}, {pipeline_mode = #tpu.pipeline_mode<synchronous>, transform_indices = @transform_3, window_bounds = array<i64: 1, 128>}, {transform_indices = @transform_4, window_bounds = array<i64: 32, 128>}]} {
    %c0 = arith.constant 0 : index
    %c0_0 = arith.constant 0 : index
    %0 = vector.load %arg1[%c0, %c0_0] : memref<32x384xbf16, #tpu.memory_space<vmem>>, vector<32x384xbf16>
    %c0_1 = arith.constant 0 : index
    %c0_2 = arith.constant 0 : index
    %1 = vector.load %arg2[%c0_1, %c0_2] : memref<384x128xbf16, #tpu.memory_space<vmem>>, vector<384x128xbf16>
    %cst = arith.constant dense<0.000000e+00> : vector<32x128xf32>
    %2 = tpu.matmul %0, %1, %cst {dimension_numbers = #tpu.dot_dimension_numbers<[1], [0], [0], [1], [0, 0, 1, 1], [], []>} : vector<32x384xbf16>, vector<384x128xbf16>, vector<32x128xf32> -> vector<32x128xf32>
    %c0_3 = arith.constant 0 : index
    %c0_4 = arith.constant 0 : index
    %3 = vector.load %arg3[%c0_3, %c0_4] : memref<1x128xf32, #tpu.memory_space<vmem>>, vector<1x128xf32>
    %4 = vector.broadcast %3 : vector<1x128xf32> to vector<32x128xf32>
    %5 = arith.mulf %2, %4 : vector<32x128xf32>
    %c0_5 = arith.constant 0 : index
    %c0_6 = arith.constant 0 : index
    %6 = vector.load %arg4[%c0_5, %c0_6] : memref<1x128xf32, #tpu.memory_space<vmem>>, vector<1x128xf32>
    %7 = vector.broadcast %6 : vector<1x128xf32> to vector<32x128xf32>
    %8 = arith.addf %5, %7 : vector<32x128xf32>
    %cst_7 = arith.constant 0.000000e+00 : f32
    %9 = vector.broadcast %cst_7 : f32 to vector<32x128xf32>
    %10 = arith.maximumf %8, %9 : vector<32x128xf32>
    %11 = arith.truncf %10 : vector<32x128xf32> to vector<32x128xbf16>
    %c0_8 = arith.constant 0 : index
    %c0_9 = arith.constant 0 : index
    %12 = vector.load %arg5[%c0_8, %c0_9] : memref<32x128xbf16, #tpu.memory_space<vmem>>, vector<32x128xbf16>
    tpu.vector_store %arg5[%c0_8, %c0_9], %11 {strides = array<i32>} : memref<32x128xbf16, #tpu.memory_space<vmem>>, vector<32x128xbf16>,
    return
  }
  func.func @transform_0(%arg0: i32) -> (i32, i32) {
    %c0_i32 = arith.constant 0 : i32
    %c0_i32_0 = arith.constant 0 : i32
    return %arg0, %c0_i32 : i32, i32
  }
  func.func @transform_1(%arg0: i32) -> (i32, i32) {
    %c0_i32 = arith.constant 0 : i32
    %c0_i32_0 = arith.constant 0 : i32
    %c0_i32_1 = arith.constant 0 : i32
    return %c0_i32, %c0_i32_0 : i32, i32
  }
  func.func @transform_2(%arg0: i32) -> (i32, i32) {
    %c0_i32 = arith.constant 0 : i32
    %c0_i32_0 = arith.constant 0 : i32
    %c0_i32_1 = arith.constant 0 : i32
    return %c0_i32, %c0_i32_0 : i32, i32
  }
  func.func @transform_3(%arg0: i32) -> (i32, i32) {
    %c0_i32 = arith.constant 0 : i32
    %c0_i32_0 = arith.constant 0 : i32
    %c0_i32_1 = arith.constant 0 : i32
    return %c0_i32, %c0_i32_0 : i32, i32
  }
  func.func @transform_4(%arg0: i32) -> (i32, i32) {
    %c0_i32 = arith.constant 0 : i32
    %c0_i32_0 = arith.constant 0 : i32
    return %arg0, %c0_i32 : i32, i32
  }
}

module attributes {stable_mosaic.version = 11 : i64} {
  func.func @_conv_bn_kernel(%arg0: i32, %arg1: memref<8x384xbf16, #tpu.memory_space<vmem>>, %arg2: memref<384x256xbf16, #tpu.memory_space<vmem>>, %arg3: memref<1x256xf32, #tpu.memory_space<vmem>>, %arg4: memref<1x256xf32, #tpu.memory_space<vmem>>, %arg5: memref<8x256xbf16, #tpu.memory_space<vmem>>) attributes {dimension_semantics = [#tpu.dimension_semantics<parallel>], iteration_bounds = array<i64: 1>, scalar_prefetch = 0 : i64, scratch_operands = 0 : i64, tpu.core_type = #tpu.core_type<tc>, window_params = [{transform_indices = @transform_0, window_bounds = array<i64: 8, 384>}, {pipeline_mode = #tpu.pipeline_mode<synchronous>, transform_indices = @transform_1, window_bounds = array<i64: 384, 256>}, {pipeline_mode = #tpu.pipeline_mode<synchronous>, transform_indices = @transform_2, window_bounds = array<i64: 1, 256>}, {pipeline_mode = #tpu.pipeline_mode<synchronous>, transform_indices = @transform_3, window_bounds = array<i64: 1, 256>}, {transform_indices = @transform_4, window_bounds = array<i64: 8, 256>}]} {
    %c0 = arith.constant 0 : index
    %c0_0 = arith.constant 0 : index
    %0 = vector.load %arg1[%c0, %c0_0] : memref<8x384xbf16, #tpu.memory_space<vmem>>, vector<8x384xbf16>
    %c0_1 = arith.constant 0 : index
    %c0_2 = arith.constant 0 : index
    %1 = vector.load %arg2[%c0_1, %c0_2] : memref<384x256xbf16, #tpu.memory_space<vmem>>, vector<384x256xbf16>
    %cst = arith.constant dense<0.000000e+00> : vector<8x256xf32>
    %2 = tpu.matmul %0, %1, %cst {dimension_numbers = #tpu.dot_dimension_numbers<[1], [0], [0], [1], [0, 0, 1, 1], [], []>} : vector<8x384xbf16>, vector<384x256xbf16>, vector<8x256xf32> -> vector<8x256xf32>
    %c0_3 = arith.constant 0 : index
    %c0_4 = arith.constant 0 : index
    %3 = vector.load %arg3[%c0_3, %c0_4] : memref<1x256xf32, #tpu.memory_space<vmem>>, vector<1x256xf32>
    %4 = vector.broadcast %3 : vector<1x256xf32> to vector<8x256xf32>
    %5 = arith.mulf %2, %4 : vector<8x256xf32>
    %c0_5 = arith.constant 0 : index
    %c0_6 = arith.constant 0 : index
    %6 = vector.load %arg4[%c0_5, %c0_6] : memref<1x256xf32, #tpu.memory_space<vmem>>, vector<1x256xf32>
    %7 = vector.broadcast %6 : vector<1x256xf32> to vector<8x256xf32>
    %8 = arith.addf %5, %7 : vector<8x256xf32>
    %9 = tpu.iota {dimensions = array<i32: 1>} : vector<8x256xi32>
    %c128_i32 = arith.constant 128 : i32
    %10 = vector.broadcast %c128_i32 : i32 to vector<8x256xi32>
    %11 = arith.cmpi slt, %9, %10 : vector<8x256xi32>
    %cst_7 = arith.constant 0.000000e+00 : f32
    %12 = vector.broadcast %cst_7 : f32 to vector<8x256xf32>
    %13 = arith.maximumf %8, %12 : vector<8x256xf32>
    %14 = arith.select %11, %13, %8 : vector<8x256xi1>, vector<8x256xf32>
    %15 = arith.truncf %14 : vector<8x256xf32> to vector<8x256xbf16>
    %c0_8 = arith.constant 0 : index
    %c0_9 = arith.constant 0 : index
    %16 = vector.load %arg5[%c0_8, %c0_9] : memref<8x256xbf16, #tpu.memory_space<vmem>>, vector<8x256xbf16>
    tpu.vector_store %arg5[%c0_8, %c0_9], %15 {strides = array<i32>} : memref<8x256xbf16, #tpu.memory_space<vmem>>, vector<8x256xbf16>,
    return
  }
  func.func @transform_0(%arg0: i32) -> (i32, i32) {
    %c0_i32 = arith.constant 0 : i32
    %c0_i32_0 = arith.constant 0 : i32
    return %arg0, %c0_i32 : i32, i32
  }
  func.func @transform_1(%arg0: i32) -> (i32, i32) {
    %c0_i32 = arith.constant 0 : i32
    %c0_i32_0 = arith.constant 0 : i32
    %c0_i32_1 = arith.constant 0 : i32
    return %c0_i32, %c0_i32_0 : i32, i32
  }
  func.func @transform_2(%arg0: i32) -> (i32, i32) {
    %c0_i32 = arith.constant 0 : i32
    %c0_i32_0 = arith.constant 0 : i32
    %c0_i32_1 = arith.constant 0 : i32
    return %c0_i32, %c0_i32_0 : i32, i32
  }
  func.func @transform_3(%arg0: i32) -> (i32, i32) {
    %c0_i32 = arith.constant 0 : i32
    %c0_i32_0 = arith.constant 0 : i32
    %c0_i32_1 = arith.constant 0 : i32
    return %c0_i32, %c0_i32_0 : i32, i32
  }
  func.func @transform_4(%arg0: i32) -> (i32, i32) {
    %c0_i32 = arith.constant 0 : i32
    %c0_i32_0 = arith.constant 0 : i32
    return %arg0, %c0_i32 : i32, i32
  }
}

module attributes {stable_mosaic.version = 11 : i64} {
  func.func @_conv_bn_kernel(%arg0: i32, %arg1: memref<8x640xbf16, #tpu.memory_space<vmem>>, %arg2: memref<640x128xbf16, #tpu.memory_space<vmem>>, %arg3: memref<1x128xf32, #tpu.memory_space<vmem>>, %arg4: memref<1x128xf32, #tpu.memory_space<vmem>>, %arg5: memref<8x128xbf16, #tpu.memory_space<vmem>>) attributes {dimension_semantics = [#tpu.dimension_semantics<parallel>], iteration_bounds = array<i64: 1>, scalar_prefetch = 0 : i64, scratch_operands = 0 : i64, tpu.core_type = #tpu.core_type<tc>, window_params = [{transform_indices = @transform_0, window_bounds = array<i64: 8, 640>}, {pipeline_mode = #tpu.pipeline_mode<synchronous>, transform_indices = @transform_1, window_bounds = array<i64: 640, 128>}, {pipeline_mode = #tpu.pipeline_mode<synchronous>, transform_indices = @transform_2, window_bounds = array<i64: 1, 128>}, {pipeline_mode = #tpu.pipeline_mode<synchronous>, transform_indices = @transform_3, window_bounds = array<i64: 1, 128>}, {transform_indices = @transform_4, window_bounds = array<i64: 8, 128>}]} {
    %c0 = arith.constant 0 : index
    %c0_0 = arith.constant 0 : index
    %0 = vector.load %arg1[%c0, %c0_0] : memref<8x640xbf16, #tpu.memory_space<vmem>>, vector<8x640xbf16>
    %c0_1 = arith.constant 0 : index
    %c0_2 = arith.constant 0 : index
    %1 = vector.load %arg2[%c0_1, %c0_2] : memref<640x128xbf16, #tpu.memory_space<vmem>>, vector<640x128xbf16>
    %cst = arith.constant dense<0.000000e+00> : vector<8x128xf32>
    %2 = tpu.matmul %0, %1, %cst {dimension_numbers = #tpu.dot_dimension_numbers<[1], [0], [0], [1], [0, 0, 1, 1], [], []>} : vector<8x640xbf16>, vector<640x128xbf16>, vector<8x128xf32> -> vector<8x128xf32>
    %c0_3 = arith.constant 0 : index
    %c0_4 = arith.constant 0 : index
    %3 = vector.load %arg3[%c0_3, %c0_4] : memref<1x128xf32, #tpu.memory_space<vmem>>, vector<1x128xf32>
    %4 = vector.broadcast %3 : vector<1x128xf32> to vector<8x128xf32>
    %5 = arith.mulf %2, %4 : vector<8x128xf32>
    %c0_5 = arith.constant 0 : index
    %c0_6 = arith.constant 0 : index
    %6 = vector.load %arg4[%c0_5, %c0_6] : memref<1x128xf32, #tpu.memory_space<vmem>>, vector<1x128xf32>
    %7 = vector.broadcast %6 : vector<1x128xf32> to vector<8x128xf32>
    %8 = arith.addf %5, %7 : vector<8x128xf32>
    %cst_7 = arith.constant 0.000000e+00 : f32
    %9 = vector.broadcast %cst_7 : f32 to vector<8x128xf32>
    %10 = arith.maximumf %8, %9 : vector<8x128xf32>
    %11 = arith.truncf %10 : vector<8x128xf32> to vector<8x128xbf16>
    %c0_8 = arith.constant 0 : index
    %c0_9 = arith.constant 0 : index
    %12 = vector.load %arg5[%c0_8, %c0_9] : memref<8x128xbf16, #tpu.memory_space<vmem>>, vector<8x128xbf16>
    tpu.vector_store %arg5[%c0_8, %c0_9], %11 {strides = array<i32>} : memref<8x128xbf16, #tpu.memory_space<vmem>>, vector<8x128xbf16>,
    return
  }
  func.func @transform_0(%arg0: i32) -> (i32, i32) {
    %c0_i32 = arith.constant 0 : i32
    %c0_i32_0 = arith.constant 0 : i32
    return %arg0, %c0_i32 : i32, i32
  }
  func.func @transform_1(%arg0: i32) -> (i32, i32) {
    %c0_i32 = arith.constant 0 : i32
    %c0_i32_0 = arith.constant 0 : i32
    %c0_i32_1 = arith.constant 0 : i32
    return %c0_i32, %c0_i32_0 : i32, i32
  }
  func.func @transform_2(%arg0: i32) -> (i32, i32) {
    %c0_i32 = arith.constant 0 : i32
    %c0_i32_0 = arith.constant 0 : i32
    %c0_i32_1 = arith.constant 0 : i32
    return %c0_i32, %c0_i32_0 : i32, i32
  }
  func.func @transform_3(%arg0: i32) -> (i32, i32) {
    %c0_i32 = arith.constant 0 : i32
    %c0_i32_0 = arith.constant 0 : i32
    %c0_i32_1 = arith.constant 0 : i32
    return %c0_i32, %c0_i32_0 : i32, i32
  }
  func.func @transform_4(%arg0: i32) -> (i32, i32) {
    %c0_i32 = arith.constant 0 : i32
    %c0_i32_0 = arith.constant 0 : i32
    return %arg0, %c0_i32 : i32, i32
  }
}

module attributes {stable_mosaic.version = 11 : i64} {
  func.func @_conv_bn_kernel(%arg0: i32, %arg1: memref<8x640xbf16, #tpu.memory_space<vmem>>, %arg2: memref<640x128xbf16, #tpu.memory_space<vmem>>, %arg3: memref<1x128xf32, #tpu.memory_space<vmem>>, %arg4: memref<1x128xf32, #tpu.memory_space<vmem>>, %arg5: memref<8x128xbf16, #tpu.memory_space<vmem>>, %arg6: memref<8x128xbf16, #tpu.memory_space<vmem>>) attributes {dimension_semantics = [#tpu.dimension_semantics<parallel>], iteration_bounds = array<i64: 1>, scalar_prefetch = 0 : i64, scratch_operands = 0 : i64, tpu.core_type = #tpu.core_type<tc>, window_params = [{transform_indices = @transform_0, window_bounds = array<i64: 8, 640>}, {pipeline_mode = #tpu.pipeline_mode<synchronous>, transform_indices = @transform_1, window_bounds = array<i64: 640, 128>}, {pipeline_mode = #tpu.pipeline_mode<synchronous>, transform_indices = @transform_2, window_bounds = array<i64: 1, 128>}, {pipeline_mode = #tpu.pipeline_mode<synchronous>, transform_indices = @transform_3, window_bounds = array<i64: 1, 128>}, {transform_indices = @transform_4, window_bounds = array<i64: 8, 128>}, {transform_indices = @transform_5, window_bounds = array<i64: 8, 128>}]} {
    %c0 = arith.constant 0 : index
    %c0_0 = arith.constant 0 : index
    %0 = vector.load %arg1[%c0, %c0_0] : memref<8x640xbf16, #tpu.memory_space<vmem>>, vector<8x640xbf16>
    %c0_1 = arith.constant 0 : index
    %c0_2 = arith.constant 0 : index
    %1 = vector.load %arg2[%c0_1, %c0_2] : memref<640x128xbf16, #tpu.memory_space<vmem>>, vector<640x128xbf16>
    %cst = arith.constant dense<0.000000e+00> : vector<8x128xf32>
    %2 = tpu.matmul %0, %1, %cst {dimension_numbers = #tpu.dot_dimension_numbers<[1], [0], [0], [1], [0, 0, 1, 1], [], []>} : vector<8x640xbf16>, vector<640x128xbf16>, vector<8x128xf32> -> vector<8x128xf32>
    %c0_3 = arith.constant 0 : index
    %c0_4 = arith.constant 0 : index
    %3 = vector.load %arg3[%c0_3, %c0_4] : memref<1x128xf32, #tpu.memory_space<vmem>>, vector<1x128xf32>
    %4 = vector.broadcast %3 : vector<1x128xf32> to vector<8x128xf32>
    %5 = arith.mulf %2, %4 : vector<8x128xf32>
    %c0_5 = arith.constant 0 : index
    %c0_6 = arith.constant 0 : index
    %6 = vector.load %arg4[%c0_5, %c0_6] : memref<1x128xf32, #tpu.memory_space<vmem>>, vector<1x128xf32>
    %7 = vector.broadcast %6 : vector<1x128xf32> to vector<8x128xf32>
    %8 = arith.addf %5, %7 : vector<8x128xf32>
    %c0_7 = arith.constant 0 : index
    %c0_8 = arith.constant 0 : index
    %9 = vector.load %arg5[%c0_7, %c0_8] : memref<8x128xbf16, #tpu.memory_space<vmem>>, vector<8x128xbf16>
    %10 = arith.extf %9 : vector<8x128xbf16> to vector<8x128xf32>
    %11 = arith.addf %8, %10 : vector<8x128xf32>
    %cst_9 = arith.constant 0.000000e+00 : f32
    %12 = vector.broadcast %cst_9 : f32 to vector<8x128xf32>
    %13 = arith.maximumf %11, %12 : vector<8x128xf32>
    %14 = arith.truncf %13 : vector<8x128xf32> to vector<8x128xbf16>
    %c0_10 = arith.constant 0 : index
    %c0_11 = arith.constant 0 : index
    %15 = vector.load %arg6[%c0_10, %c0_11] : memref<8x128xbf16, #tpu.memory_space<vmem>>, vector<8x128xbf16>
    tpu.vector_store %arg6[%c0_10, %c0_11], %14 {strides = array<i32>} : memref<8x128xbf16, #tpu.memory_space<vmem>>, vector<8x128xbf16>,
    return
  }
  func.func @transform_0(%arg0: i32) -> (i32, i32) {
    %c0_i32 = arith.constant 0 : i32
    %c0_i32_0 = arith.constant 0 : i32
    return %arg0, %c0_i32 : i32, i32
  }
  func.func @transform_1(%arg0: i32) -> (i32, i32) {
    %c0_i32 = arith.constant 0 : i32
    %c0_i32_0 = arith.constant 0 : i32
    %c0_i32_1 = arith.constant 0 : i32
    return %c0_i32, %c0_i32_0 : i32, i32
  }
  func.func @transform_2(%arg0: i32) -> (i32, i32) {
    %c0_i32 = arith.constant 0 : i32
    %c0_i32_0 = arith.constant 0 : i32
    %c0_i32_1 = arith.constant 0 : i32
    return %c0_i32, %c0_i32_0 : i32, i32
  }
  func.func @transform_3(%arg0: i32) -> (i32, i32) {
    %c0_i32 = arith.constant 0 : i32
    %c0_i32_0 = arith.constant 0 : i32
    %c0_i32_1 = arith.constant 0 : i32
    return %c0_i32, %c0_i32_0 : i32, i32
  }
  func.func @transform_4(%arg0: i32) -> (i32, i32) {
    %c0_i32 = arith.constant 0 : i32
    %c0_i32_0 = arith.constant 0 : i32
    return %arg0, %c0_i32 : i32, i32
  }
  func.func @transform_5(%arg0: i32) -> (i32, i32) {
    %c0_i32 = arith.constant 0 : i32
    %c0_i32_0 = arith.constant 0 : i32
    return %arg0, %c0_i32 : i32, i32
  }
}

module attributes {stable_mosaic.version = 11 : i64} {
  func.func @_gap_fc_kernel(%arg0: memref<2x4x128xbf16, #tpu.memory_space<vmem>>, %arg1: memref<128x128xbf16, #tpu.memory_space<vmem>>, %arg2: memref<1x128xf32, #tpu.memory_space<vmem>>, %arg3: memref<2x128xf32, #tpu.memory_space<vmem>>) attributes {dimension_semantics = [], scalar_prefetch = 0 : i64, scratch_operands = 0 : i64, tpu.core_type = #tpu.core_type<tc>} {
    %c0 = arith.constant 0 : index
    %c0_0 = arith.constant 0 : index
    %c0_1 = arith.constant 0 : index
    %0 = vector.load %arg0[%c0, %c0_0, %c0_1] : memref<2x4x128xbf16, #tpu.memory_space<vmem>>, vector<2x4x128xbf16>
    %1 = arith.extf %0 : vector<2x4x128xbf16> to vector<2x4x128xf32>
    %cst = arith.constant dense<0.000000e+00> : vector<2x128xf32>
    %2 = vector.multi_reduction <add>, %1, %cst [1] : vector<2x4x128xf32> to vector<2x128xf32>
    %cst_2 = arith.constant 4.000000e+00 : f32
    %3 = vector.broadcast %cst_2 : f32 to vector<2x128xf32>
    %4 = arith.divf %2, %3 : vector<2x128xf32>
    %5 = arith.truncf %4 : vector<2x128xf32> to vector<2x128xbf16>
    %c0_3 = arith.constant 0 : index
    %c0_4 = arith.constant 0 : index
    %6 = vector.load %arg1[%c0_3, %c0_4] : memref<128x128xbf16, #tpu.memory_space<vmem>>, vector<128x128xbf16>
    %cst_5 = arith.constant dense<0.000000e+00> : vector<2x128xf32>
    %7 = tpu.matmul %5, %6, %cst_5 {dimension_numbers = #tpu.dot_dimension_numbers<[1], [0], [0], [1], [0, 0, 1, 1], [], []>} : vector<2x128xbf16>, vector<128x128xbf16>, vector<2x128xf32> -> vector<2x128xf32>
    %c0_6 = arith.constant 0 : index
    %c0_7 = arith.constant 0 : index
    %8 = vector.load %arg2[%c0_6, %c0_7] : memref<1x128xf32, #tpu.memory_space<vmem>>, vector<1x128xf32>
    %9 = vector.broadcast %8 : vector<1x128xf32> to vector<2x128xf32>
    %10 = arith.addf %7, %9 : vector<2x128xf32>
    %c0_8 = arith.constant 0 : index
    %c0_9 = arith.constant 0 : index
    %11 = vector.load %arg3[%c0_8, %c0_9] : memref<2x128xf32, #tpu.memory_space<vmem>>, vector<2x128xf32>
    tpu.vector_store %arg3[%c0_8, %c0_9], %10 {strides = array<i32>} : memref<2x128xf32, #tpu.memory_space<vmem>>, vector<2x128xf32>,
    return
  }
}

</mosaic_0001>

<llo_original>
// kernel: _lambda_.35
$region0: #{_lambda_.35}
  #allocation0 [shape = 'u32[]', space=smem, size = 0x4, offset = 0x4, fixed_abs, tag = 'smem constant byte address 0x4 - core index']
  #allocation1 [shape = 'u32[144,128]{1,0:T(1,128)}', space=vmem, size = 0x12000, scoped, tag = 'internal scratch']
  %s0 = inlined_call_operand.vmem [shape: bf16[2048,256], index: 0, kind: input, shape index: {}]
  %s1 = inlined_call_operand.vmem [shape: bf16[256,128], index: 1, kind: input, shape index: {}]
  %s2 = inlined_call_operand.vmem [shape: f32[1,128], index: 2, kind: input, shape index: {}]
  %s3 = inlined_call_operand.vmem [shape: f32[1,128], index: 3, kind: input, shape index: {}]
  %s4 = inlined_call_operand.vmem [shape: bf16[2048,128], index: 4, kind: output, shape index: {}]
  %s5 = sld [smem:[#allocation0]]
  $region49: #{_lambda_.35} parent=0
    _
  %s7 = ssub.s32 1, %s5
  %s8 = scalar_select 0, %s7, %s5
  loop: start=0, step=1, limit=6
  $region2: #{_lambda_.35} parent=0 // loop_pre_header
    _
  $region3: #{_lambda_.35} parent=0 // loop_header
    %s10 = sphi 0, %s14
    %p11 = scmp.ge.s32.totalorder %s10, 6
    %s20 = sphi 0, %s22
    %s23 = sphi 0, %s20
    %s24 = sphi 0, %s23
    %s40 = sphi 0, %s24
    %s44 = sphi 0, %s44
    %s46 = sphi 0, %s44
    %s47 = sphi 0, %s46
    %s61 = sphi 0, %s47
    %s65 = sphi 0, %s65
    %s67 = sphi 0, %s65
    %s68 = sphi 0, %s67
    %s82 = sphi 0, %s68
    %s86 = sphi 0, %s86
    %s88 = sphi 0, %s86
    %s89 = sphi 0, %s88
    %s103 = sphi 0, %s89
    %s109 = sphi 0, %s111
    %s112 = sphi 0, %s109
    %s113 = sphi 0, %s112
    %s129 = sphi 0, %s113
  $region4: #{_lambda_.35} parent=0 // loop_header_branch
    %13 = sbr.rel (%p11) target = $region8
  $region5: #{_lambda_.35} parent=0 // loop_body
    %s15 = ssub.s32 %s10, 1
    %s16 = ssub.s32 %s10, 2
    %s17 = sadd.s32 %s10, 1
    %s18 = ssub.s32 %s10, %s17
    %p19 = scmp.eq.s32.totalorder %s18, 0
    %s21 = sadd.s32 %s20, 1
    %s22 = scalar_select %p19, %s20, %s21
    %p25 = pneg %p19
    %p26 = scmp.eq.s32.totalorder %s10, 3
    %p27 = por %p25, %p26
    %p28 = scmp.ne.s32.totalorder %s20, %s23
    %p29 = scmp.eq.s32.totalorder %s10, 0
    %p30 = por %p28, %p29
    %p31 = scmp.ne.s32.totalorder %s20, %s23
    %p32 = scmp.eq.s32.totalorder %s15, 3
    %p33 = por %p31, %p32
    %p34 = scmp.ne.s32.totalorder %s23, %s24
    %p35 = scmp.eq.s32.totalorder %s15, 0
    %p36 = por %p34, %p35
    %p37 = scmp.ne.s32.totalorder %s23, %s24
    %p38 = scmp.eq.s32.totalorder %s16, 3
    %p39 = por %p37, %p38
    %p41 = scmp.ne.s32.totalorder %s24, %s40
    %p42 = scmp.eq.s32.totalorder %s16, 0
    %p43 = por %p41, %p42
    %s45 = sadd.s32 %s44, 1
    %p48 = scmp.eq.s32.totalorder %s10, 3
    %p49 = scmp.ne.s32.totalorder %s44, %s46
    %p50 = scmp.eq.s32.totalorder %s10, 0
    %p51 = por %p49, %p50
    %p52 = scmp.ne.s32.totalorder %s44, %s46
    %p53 = scmp.eq.s32.totalorder %s15, 3
    %p54 = por %p52, %p53
    %p55 = scmp.ne.s32.totalorder %s46, %s47
    %p56 = scmp.eq.s32.totalorder %s15, 0
    %p57 = por %p55, %p56
    %p58 = scmp.ne.s32.totalorder %s46, %s47
    %p59 = scmp.eq.s32.totalorder %s16, 3
    %p60 = por %p58, %p59
    %p62 = scmp.ne.s32.totalorder %s47, %s61
    %p63 = scmp.eq.s32.totalorder %s16, 0
    %p64 = por %p62, %p63
    %s66 = sadd.s32 %s65, 1
    %p69 = scmp.eq.s32.totalorder %s10, 3
    %p70 = scmp.ne.s32.totalorder %s65, %s67
    %p71 = scmp.eq.s32.totalorder %s10, 0
    %p72 = por %p70, %p71
    %p73 = scmp.ne.s32.totalorder %s65, %s67
    %p74 = scmp.eq.s32.totalorder %s15, 3
    %p75 = por %p73, %p74
    %p76 = scmp.ne.s32.totalorder %s67, %s68
    %p77 = scmp.eq.s32.totalorder %s15, 0
    %p78 = por %p76, %p77
    %p79 = scmp.ne.s32.totalorder %s67, %s68
    %p80 = scmp.eq.s32.totalorder %s16, 3
    %p81 = por %p79, %p80
    %p83 = scmp.ne.s32.totalorder %s68, %s82
    %p84 = scmp.eq.s32.totalorder %s16, 0
    %p85 = por %p83, %p84
    %s87 = sadd.s32 %s86, 1
    %p90 = scmp.eq.s32.totalorder %s10, 3
    %p91 = scmp.ne.s32.totalorder %s86, %s88
    %p92 = scmp.eq.s32.totalorder %s10, 0
    %p93 = por %p91, %p92
    %p94 = scmp.ne.s32.totalorder %s86, %s88
    %p95 = scmp.eq.s32.totalorder %s15, 3
    %p96 = por %p94, %p95
    %p97 = scmp.ne.s32.totalorder %s88, %s89
    %p98 = scmp.eq.s32.totalorder %s15, 0
    %p99 = por %p97, %p98
    %p100 = scmp.ne.s32.totalorder %s88, %s89
    %p101 = scmp.eq.s32.totalorder %s16, 3
    %p102 = por %p100, %p101
    %p104 = scmp.ne.s32.totalorder %s89, %s103
    %p105 = scmp.eq.s32.totalorder %s16, 0
    %p106 = por %p104, %p105
    %s107 = ssub.s32 %s10, %s17
    %p108 = scmp.eq.s32.totalorder %s107, 0
    %s110 = sadd.s32 %s109, 1
    %s111 = scalar_select %p108, %s109, %s110
    %p114 = pneg %p108
    %p115 = scmp.eq.s32.totalorder %s10, 3
    %p116 = por %p114, %p115
    %p117 = scmp.ne.s32.totalorder %s109, %s112
    %p118 = scmp.eq.s32.totalorder %s10, 0
    %p119 = por %p117, %p118
    %p120 = scmp.ne.s32.totalorder %s109, %s112
    %p121 = scmp.eq.s32.totalorder %s15, 3
    %p122 = por %p120, %p121
    %p123 = scmp.ne.s32.totalorder %s112, %s113
    %p124 = scmp.eq.s32.totalorder %s15, 0
    %p125 = por %p123, %p124
    %p126 = scmp.ne.s32.totalorder %s112, %s113
    %p127 = scmp.eq.s32.totalorder %s16, 3
    %p128 = por %p126, %p127
    %p130 = scmp.ne.s32.totalorder %s113, %s129
    %p131 = scmp.eq.s32.totalorder %s16, 0
    %p132 = por %p130, %p131
    %p133 = scmp.le.s32.totalorder 1, %s10
    %p134 = scmp.lt.s32.totalorder %s10, 5
    %p135 = pnand %p133, %p134
    %p136 = pneg %p135
    // Predicated region
    $region9: #{_lambda_.35} parent=5 // pred_check
      _
    $region10: #{_lambda_.35} parent=5 // pred_check_branch
      %138 = sbr.rel (%p135) target = $region12
    $region11: #{_lambda_.35} parent=5 // pred_region
      %s139 = ssub.s32 %s10, 1
      // Predicated region
      $region13: #{_lambda_.35} parent=11 // pred_check
        %p140 = pneg %p57
      $region14: #{_lambda_.35} parent=11 // pred_check_branch
        %142 = sbr.rel (%p140) target = $region16
      $region15: #{_lambda_.35} parent=11 // pred_region
        _
      $region16: #{_lambda_.35} parent=11 // pred_fallthru
        _
      // Predicated region
      $region17: #{_lambda_.35} parent=11 // pred_check
        %p143 = pneg %p78
      $region18: #{_lambda_.35} parent=11 // pred_check_branch
        %145 = sbr.rel (%p143) target = $region20
      $region19: #{_lambda_.35} parent=11 // pred_region
        _
      $region20: #{_lambda_.35} parent=11 // pred_fallthru
        _
      // Predicated region
      $region21: #{_lambda_.35} parent=11 // pred_check
        %p146 = pneg %p99
      $region22: #{_lambda_.35} parent=11 // pred_check_branch
        %148 = sbr.rel (%p146) target = $region24
      $region23: #{_lambda_.35} parent=11 // pred_region
        _
      $region24: #{_lambda_.35} parent=11 // pred_fallthru
        _
    $region12: #{_lambda_.35} parent=5 // pred_fallthru
      _
    %p149 = scmp.lt.s32.totalorder %s10, 4
    // Predicated region
    $region25: #{_lambda_.35} parent=5 // pred_check
      %p150 = pneg %p149
    $region26: #{_lambda_.35} parent=5 // pred_check_branch
      %152 = sbr.rel (%p150) target = $region28
    $region27: #{_lambda_.35} parent=5 // pred_region
      // Predicated region
      $region29: #{_lambda_.35} parent=27 // pred_check
        %p153 = pneg %p30
      $region30: #{_lambda_.35} parent=27 // pred_check_branch
        %155 = sbr.rel (%p153) target = $region32
      $region31: #{_lambda_.35} parent=27 // pred_region
        %s156 = smul.u32 64, %s10
        %p157 = scmp.lt.s32.totalorder %s156, 255
        %s158 = scalar_select %p157, %s156, 255
        %s159 = smul.addr %s158, 2
        %s160 = smul.addr %s159, 4
        %s161 = scalar_lea.vmem %s0, %s160
        %s162 = smul.u32 64, %s10
      $region32: #{_lambda_.35} parent=27 // pred_fallthru
        _
    $region28: #{_lambda_.35} parent=5 // pred_fallthru
      _
    %p163 = scmp.le.s32.totalorder 1, %s10
    %p164 = scmp.lt.s32.totalorder %s10, 5
    %p165 = pnand %p163, %p164
    %p166 = pneg %p165
    // Predicated region
    $region33: #{_lambda_.35} parent=5 // pred_check
      _
    $region34: #{_lambda_.35} parent=5 // pred_check_branch
      %168 = sbr.rel (%p165) target = $region36
    $region35: #{_lambda_.35} parent=5 // pred_region
      %s169 = ssub.s32 %s10, 1
      %s170 = smul.u32 64, %s15
      %p171 = scmp.lt.s32.totalorder %s170, 255
      %s172 = scalar_select %p171, %s170, 255
      %s173 = smul.addr %s172, 2
      %s174 = smul.addr %s173, 4
      %s175 = scalar_lea.vmem %s0, %s174
      %p176 = pneg %p36
      %p177 = pneg %p33
      %p178 = pneg %p57
      %p179 = pneg %p54
      %p180 = pneg %p78
      %p181 = pneg %p75
      %p182 = pneg %p99
      %p183 = pneg %p96
      %p184 = pneg %p125
      %p185 = pneg %p122
      %s186 = smul.u32 64, %s15
      %p187 = scmp.lt.s32.totalorder %s186, 255
      %s188 = scalar_select %p187, %s186, 255
      %s189 = smul.addr %s188, 4
      %s190 = scalar_lea.vmem %s4, %s189
      %s191 = smul.u32 64, %s15
      %p192 = scmp.lt.s32.totalorder %s191, 255
      %s193 = scalar_select %p192, %s191, 255
      %s194 = smul.addr %s193, 2
      %s195 = smul.addr %s194, 4
      %s196 = scalar_lea.vmem %s0, %s195
      %s197 = smul.u32 64, %s15
      %s198 = smul.u32 64, %s15
      %p199 = scmp.lt.s32.totalorder %s198, 255
      %s200 = scalar_select %p199, %s198, 255
      %s201 = smul.addr %s200, 4
      %s202 = scalar_lea.vmem %s4, %s201
      %s203 = smul.u32 64, %s15
      %v205 = vld [vmem:[%s196] sm:$0xff]
      %v206 = vld [vmem:[%s196 + $0x8] sm:$0xff]
      %v207 = vld [vmem:[%s196 + $0x10] sm:$0xff]
      %v208 = vld [vmem:[%s196 + $0x18] sm:$0xff]
      %v209 = vld [vmem:[%s196 + $0x20] sm:$0xff]
      %v210 = vld [vmem:[%s196 + $0x28] sm:$0xff]
      %v211 = vld [vmem:[%s196 + $0x30] sm:$0xff]
      %v212 = vld [vmem:[%s196 + $0x38] sm:$0xff]
      %v213 = vld [vmem:[%s196 + $0x40] sm:$0xff]
      %v214 = vld [vmem:[%s196 + $0x48] sm:$0xff]
      %v215 = vld [vmem:[%s196 + $0x50] sm:$0xff]
      %v216 = vld [vmem:[%s196 + $0x58] sm:$0xff]
      %v217 = vld [vmem:[%s196 + $0x60] sm:$0xff]
      %v218 = vld [vmem:[%s196 + $0x68] sm:$0xff]
      %v219 = vld [vmem:[%s196 + $0x70] sm:$0xff]
      %v220 = vld [vmem:[%s196 + $0x78] sm:$0xff]
      %v221 = vld [vmem:[%s196 + $0x80] sm:$0xff]
      %v222 = vld [vmem:[%s196 + $0x88] sm:$0xff]
      %v223 = vld [vmem:[%s196 + $0x90] sm:$0xff]
      %v224 = vld [vmem:[%s196 + $0x98] sm:$0xff]
      %v225 = vld [vmem:[%s196 + $0xa0] sm:$0xff]
      %v226 = vld [vmem:[%s196 + $0xa8] sm:$0xff]
      %v227 = vld [vmem:[%s196 + $0xb0] sm:$0xff]
      %v228 = vld [vmem:[%s196 + $0xb8] sm:$0xff]
      %v229 = vld [vmem:[%s196 + $0xc0] sm:$0xff]
      %v230 = vld [vmem:[%s196 + $0xc8] sm:$0xff]
      %v231 = vld [vmem:[%s196 + $0xd0] sm:$0xff]
      %v232 = vld [vmem:[%s196 + $0xd8] sm:$0xff]
      %v233 = vld [vmem:[%s196 + $0xe0] sm:$0xff]
      %v234 = vld [vmem:[%s196 + $0xe8] sm:$0xff]
      %v235 = vld [vmem:[%s196 + $0xf0] sm:$0xff]
      %v236 = vld [vmem:[%s196 + $0xf8] sm:$0xff]
      %v237 = vld [vmem:[%s196 + $0x100] sm:$0xff]
      %v238 = vld [vmem:[%s196 + $0x108] sm:$0xff]
      %v239 = vld [vmem:[%s196 + $0x110] sm:$0xff]
      %v240 = vld [vmem:[%s196 + $0x118] sm:$0xff]
      %v241 = vld [vmem:[%s196 + $0x120] sm:$0xff]
      %v242 = vld [vmem:[%s196 + $0x128] sm:$0xff]
      %v243 = vld [vmem:[%s196 + $0x130] sm:$0xff]
      %v244 = vld [vmem:[%s196 + $0x138] sm:$0xff]
      %v245 = vld [vmem:[%s196 + $0x140] sm:$0xff]
      %v246 = vld [vmem:[%s196 + $0x148] sm:$0xff]
      %v247 = vld [vmem:[%s196 + $0x150] sm:$0xff]
      %v248 = vld [vmem:[%s196 + $0x158] sm:$0xff]
      %v249 = vld [vmem:[%s196 + $0x160] sm:$0xff]
      %v250 = vld [vmem:[%s196 + $0x168] sm:$0xff]
      %v251 = vld [vmem:[%s196 + $0x170] sm:$0xff]
      %v252 = vld [vmem:[%s196 + $0x178] sm:$0xff]
      %v253 = vld [vmem:[%s196 + $0x180] sm:$0xff]
      %v254 = vld [vmem:[%s196 + $0x188] sm:$0xff]
      %v255 = vld [vmem:[%s196 + $0x190] sm:$0xff]
      %v256 = vld [vmem:[%s196 + $0x198] sm:$0xff]
      %v257 = vld [vmem:[%s196 + $0x1a0] sm:$0xff]
      %v258 = vld [vmem:[%s196 + $0x1a8] sm:$0xff]
      %v259 = vld [vmem:[%s196 + $0x1b0] sm:$0xff]
      %v260 = vld [vmem:[%s196 + $0x1b8] sm:$0xff]
      %v261 = vld [vmem:[%s196 + $0x1c0] sm:$0xff]
      %v262 = vld [vmem:[%s196 + $0x1c8] sm:$0xff]
      %v263 = vld [vmem:[%s196 + $0x1d0] sm:$0xff]
      %v264 = vld [vmem:[%s196 + $0x1d8] sm:$0xff]
      %v265 = vld [vmem:[%s196 + $0x1e0] sm:$0xff]
      %v266 = vld [vmem:[%s196 + $0x1e8] sm:$0xff]
      %v267 = vld [vmem:[%s196 + $0x1f0] sm:$0xff]
      %v268 = vld [vmem:[%s196 + $0x1f8] sm:$0xff]
      %v269 = vld [vmem:[%s1] sm:$0xf]
      %v270 = vld [vmem:[%s1 + $0x4] sm:$0xf]
      %v271 = vld [vmem:[%s1 + $0x8] sm:$0xf]
      %v272 = vld [vmem:[%s1 + $0xc] sm:$0xf]
      %v273 = vld [vmem:[%s1 + $0x10] sm:$0xf]
      %v274 = vld [vmem:[%s1 + $0x14] sm:$0xf]
      %v275 = vld [vmem:[%s1 + $0x18] sm:$0xf]
      %v276 = vld [vmem:[%s1 + $0x1c] sm:$0xf]
      %v277 = vld [vmem:[%s1 + $0x20] sm:$0xf]
      %v278 = vld [vmem:[%s1 + $0x24] sm:$0xf]
      %v279 = vld [vmem:[%s1 + $0x28] sm:$0xf]
      %v280 = vld [vmem:[%s1 + $0x2c] sm:$0xf]
      %v281 = vld [vmem:[%s1 + $0x30] sm:$0xf]
      %v282 = vld [vmem:[%s1 + $0x34] sm:$0xf]
      %v283 = vld [vmem:[%s1 + $0x38] sm:$0xf]
      %v284 = vld [vmem:[%s1 + $0x3c] sm:$0xf]
      %v285 = vld [vmem:[%s1 + $0x40] sm:$0xf]
      %v286 = vld [vmem:[%s1 + $0x44] sm:$0xf]
      %v287 = vld [vmem:[%s1 + $0x48] sm:$0xf]
      %v288 = vld [vmem:[%s1 + $0x4c] sm:$0xf]
      %v289 = vld [vmem:[%s1 + $0x50] sm:$0xf]
      %v290 = vld [vmem:[%s1 + $0x54] sm:$0xf]
      %v291 = vld [vmem:[%s1 + $0x58] sm:$0xf]
      %v292 = vld [vmem:[%s1 + $0x5c] sm:$0xf]
      %v293 = vld [vmem:[%s1 + $0x60] sm:$0xf]
      %v294 = vld [vmem:[%s1 + $0x64] sm:$0xf]
      %v295 = vld [vmem:[%s1 + $0x68] sm:$0xf]
      %v296 = vld [vmem:[%s1 + $0x6c] sm:$0xf]
      %v297 = vld [vmem:[%s1 + $0x70] sm:$0xf]
      %v298 = vld [vmem:[%s1 + $0x74] sm:$0xf]
      %v299 = vld [vmem:[%s1 + $0x78] sm:$0xf]
      %v300 = vld [vmem:[%s1 + $0x7c] sm:$0xf]
      %v365 = vunpack.c.l.b16 %v205
      %v366 = vunpack.c.h.b16 %v205
      %v367 = vunpack.c.l.b16 %v206
      %v368 = vunpack.c.h.b16 %v206
      %v369 = vunpack.c.l.b16 %v207
      %v370 = vunpack.c.h.b16 %v207
      %v371 = vunpack.c.l.b16 %v208
      %v372 = vunpack.c.h.b16 %v208
      %v373 = vunpack.c.l.b16 %v209
      %v374 = vunpack.c.h.b16 %v209
      %v375 = vunpack.c.l.b16 %v210
      %v376 = vunpack.c.h.b16 %v210
      %v377 = vunpack.c.l.b16 %v211
      %v378 = vunpack.c.h.b16 %v211
      %v379 = vunpack.c.l.b16 %v212
      %v380 = vunpack.c.h.b16 %v212
      %v381 = vunpack.c.l.b16 %v213
      %v382 = vunpack.c.h.b16 %v213
      %v383 = vunpack.c.l.b16 %v214
      %v384 = vunpack.c.h.b16 %v214
      %v385 = vunpack.c.l.b16 %v215
      %v386 = vunpack.c.h.b16 %v215
      %v387 = vunpack.c.l.b16 %v216
      %v388 = vunpack.c.h.b16 %v216
      %v389 = vunpack.c.l.b16 %v217
      %v390 = vunpack.c.h.b16 %v217
      %v391 = vunpack.c.l.b16 %v218
      %v392 = vunpack.c.h.b16 %v218
      %v393 = vunpack.c.l.b16 %v219
      %v394 = vunpack.c.h.b16 %v219
      %v395 = vunpack.c.l.b16 %v220
      %v396 = vunpack.c.h.b16 %v220
      %v397 = vunpack.c.l.b16 %v221
      %v398 = vunpack.c.h.b16 %v221
      %v399 = vunpack.c.l.b16 %v222
      %v400 = vunpack.c.h.b16 %v222
      %v401 = vunpack.c.l.b16 %v223
      %v402 = vunpack.c.h.b16 %v223
      %v403 = vunpack.c.l.b16 %v224
      %v404 = vunpack.c.h.b16 %v224
      %v405 = vunpack.c.l.b16 %v225
      %v406 = vunpack.c.h.b16 %v225
      %v407 = vunpack.c.l.b16 %v226
      %v408 = vunpack.c.h.b16 %v226
      %v409 = vunpack.c.l.b16 %v227
      %v410 = vunpack.c.h.b16 %v227
      %v411 = vunpack.c.l.b16 %v228
      %v412 = vunpack.c.h.b16 %v228
      %v413 = vunpack.c.l.b16 %v229
      %v414 = vunpack.c.h.b16 %v229
      %v415 = vunpack.c.l.b16 %v230
      %v416 = vunpack.c.h.b16 %v230
      %v417 = vunpack.c.l.b16 %v231
      %v418 = vunpack.c.h.b16 %v231
      %v419 = vunpack.c.l.b16 %v232
      %v420 = vunpack.c.h.b16 %v232
      %v421 = vunpack.c.l.b16 %v233
      %v422 = vunpack.c.h.b16 %v233
      %v423 = vunpack.c.l.b16 %v234
      %v424 = vunpack.c.h.b16 %v234
      %v425 = vunpack.c.l.b16 %v235
      %v426 = vunpack.c.h.b16 %v235
      %v427 = vunpack.c.l.b16 %v236
      %v428 = vunpack.c.h.b16 %v236
      %v429 = vunpack.c.l.b16 %v237
      %v430 = vunpack.c.h.b16 %v237
      %v431 = vunpack.c.l.b16 %v238
      %v432 = vunpack.c.h.b16 %v238
      %v433 = vunpack.c.l.b16 %v239
      %v434 = vunpack.c.h.b16 %v239
      %v435 = vunpack.c.l.b16 %v240
      %v436 = vunpack.c.h.b16 %v240
      %v437 = vunpack.c.l.b16 %v241
      %v438 = vunpack.c.h.b16 %v241
      %v439 = vunpack.c.l.b16 %v242
      %v440 = vunpack.c.h.b16 %v242
      %v441 = vunpack.c.l.b16 %v243
      %v442 = vunpack.c.h.b16 %v243
      %v443 = vunpack.c.l.b16 %v244
      %v444 = vunpack.c.h.b16 %v244
      %v445 = vunpack.c.l.b16 %v245
      %v446 = vunpack.c.h.b16 %v245
      %v447 = vunpack.c.l.b16 %v246
      %v448 = vunpack.c.h.b16 %v246
      %v449 = vunpack.c.l.b16 %v247
      %v450 = vunpack.c.h.b16 %v247
      %v451 = vunpack.c.l.b16 %v248
      %v452 = vunpack.c.h.b16 %v248
      %v453 = vunpack.c.l.b16 %v249
      %v454 = vunpack.c.h.b16 %v249
      %v455 = vunpack.c.l.b16 %v250
      %v456 = vunpack.c.h.b16 %v250
      %v457 = vunpack.c.l.b16 %v251
      %v458 = vunpack.c.h.b16 %v251
      %v459 = vunpack.c.l.b16 %v252
      %v460 = vunpack.c.h.b16 %v252
      %v461 = vunpack.c.l.b16 %v253
      %v462 = vunpack.c.h.b16 %v253
      %v463 = vunpack.c.l.b16 %v254
      %v464 = vunpack.c.h.b16 %v254
      %v465 = vunpack.c.l.b16 %v255
      %v466 = vunpack.c.h.b16 %v255
      %v467 = vunpack.c.l.b16 %v256
      %v468 = vunpack.c.h.b16 %v256
      %v469 = vunpack.c.l.b16 %v257
      %v470 = vunpack.c.h.b16 %v257
      %v471 = vunpack.c.l.b16 %v258
      %v472 = vunpack.c.h.b16 %v258
      %v473 = vunpack.c.l.b16 %v259
      %v474 = vunpack.c.h.b16 %v259
      %v475 = vunpack.c.l.b16 %v260
      %v476 = vunpack.c.h.b16 %v260
      %v477 = vunpack.c.l.b16 %v261
      %v478 = vunpack.c.h.b16 %v261
      %v479 = vunpack.c.l.b16 %v262
      %v480 = vunpack.c.h.b16 %v262
      %v481 = vunpack.c.l.b16 %v263
      %v482 = vunpack.c.h.b16 %v263
      %v483 = vunpack.c.l.b16 %v264
      %v484 = vunpack.c.h.b16 %v264
      %v485 = vunpack.c.l.b16 %v265
      %v486 = vunpack.c.h.b16 %v265
      %v487 = vunpack.c.l.b16 %v266
      %v488 = vunpack.c.h.b16 %v266
      %v489 = vunpack.c.l.b16 %v267
      %v490 = vunpack.c.h.b16 %v267
      %v491 = vunpack.c.l.b16 %v268
      %v492 = vunpack.c.h.b16 %v268
      %v493 = vpack.c.b16 %v367, %v365
      %v494 = vpack.c.b16 %v368, %v366
      %v495 = vpack.c.b16 %v371, %v369
      %v496 = vpack.c.b16 %v372, %v370
      %v497 = vpack.c.b16 %v375, %v373
      %v498 = vpack.c.b16 %v376, %v374
      %v499 = vpack.c.b16 %v379, %v377
      %v500 = vpack.c.b16 %v380, %v378
      %v501 = vpack.c.b16 %v383, %v381
      %v502 = vpack.c.b16 %v384, %v382
      %v503 = vpack.c.b16 %v387, %v385
      %v504 = vpack.c.b16 %v388, %v386
      %v505 = vpack.c.b16 %v391, %v389
      %v506 = vpack.c.b16 %v392, %v390
      %v507 = vpack.c.b16 %v395, %v393
      %v508 = vpack.c.b16 %v396, %v394
      %v509 = vpack.c.b16 %v399, %v397
      %v510 = vpack.c.b16 %v400, %v398
      %v511 = vpack.c.b16 %v403, %v401
      %v512 = vpack.c.b16 %v404, %v402
      %v513 = vpack.c.b16 %v407, %v405
      %v514 = vpack.c.b16 %v408, %v406
      %v515 = vpack.c.b16 %v411, %v409
      %v516 = vpack.c.b16 %v412, %v410
      %v517 = vpack.c.b16 %v415, %v413
      %v518 = vpack.c.b16 %v416, %v414
      %v519 = vpack.c.b16 %v419, %v417
      %v520 = vpack.c.b16 %v420, %v418
      %v521 = vpack.c.b16 %v423, %v421
      %v522 = vpack.c.b16 %v424, %v422
      %v523 = vpack.c.b16 %v427, %v425
      %v524 = vpack.c.b16 %v428, %v426
      %v525 = vpack.c.b16 %v431, %v429
      %v526 = vpack.c.b16 %v432, %v430
      %v527 = vpack.c.b16 %v435, %v433
      %v528 = vpack.c.b16 %v436, %v434
      %v529 = vpack.c.b16 %v439, %v437
      %v530 = vpack.c.b16 %v440, %v438
      %v531 = vpack.c.b16 %v443, %v441
      %v532 = vpack.c.b16 %v444, %v442
      %v533 = vpack.c.b16 %v447, %v445
      %v534 = vpack.c.b16 %v448, %v446
      %v535 = vpack.c.b16 %v451, %v449
      %v536 = vpack.c.b16 %v452, %v450
      %v537 = vpack.c.b16 %v455, %v453
      %v538 = vpack.c.b16 %v456, %v454
      %v539 = vpack.c.b16 %v459, %v457
      %v540 = vpack.c.b16 %v460, %v458
      %v541 = vpack.c.b16 %v463, %v461
      %v542 = vpack.c.b16 %v464, %v462
      %v543 = vpack.c.b16 %v467, %v465
      %v544 = vpack.c.b16 %v468, %v466
      %v545 = vpack.c.b16 %v471, %v469
      %v546 = vpack.c.b16 %v472, %v470
      %v547 = vpack.c.b16 %v475, %v473
      %v548 = vpack.c.b16 %v476, %v474
      %v549 = vpack.c.b16 %v479, %v477
      %v550 = vpack.c.b16 %v480, %v478
      %v551 = vpack.c.b16 %v483, %v481
      %v552 = vpack.c.b16 %v484, %v482
      %v553 = vpack.c.b16 %v487, %v485
      %v554 = vpack.c.b16 %v488, %v486
      %v555 = vpack.c.b16 %v491, %v489
      %v556 = vpack.c.b16 %v492, %v490
      %v653 = vunpack.c.l.b16 %v269
      %v654 = vunpack.c.l.b16 %v270
      %v655 = vunpack.c.l.b16 %v271
      %v656 = vunpack.c.l.b16 %v272
      %v657 = vunpack.c.l.b16 %v273
      %v658 = vunpack.c.l.b16 %v274
      %v659 = vunpack.c.l.b16 %v275
      %v660 = vunpack.c.l.b16 %v276
      %v661 = vunpack.c.l.b16 %v277
      %v662 = vunpack.c.l.b16 %v278
      %v663 = vunpack.c.l.b16 %v279
      %v664 = vunpack.c.l.b16 %v280
      %v665 = vunpack.c.l.b16 %v281
      %v666 = vunpack.c.l.b16 %v282
      %v667 = vunpack.c.l.b16 %v283
      %v668 = vunpack.c.l.b16 %v284
      %v669 = vunpack.c.l.b16 %v285
      %v670 = vunpack.c.l.b16 %v286
      %v671 = vunpack.c.l.b16 %v287
      %v672 = vunpack.c.l.b16 %v288
      %v673 = vunpack.c.l.b16 %v289
      %v674 = vunpack.c.l.b16 %v290
      %v675 = vunpack.c.l.b16 %v291
      %v676 = vunpack.c.l.b16 %v292
      %v677 = vunpack.c.l.b16 %v293
      %v678 = vunpack.c.l.b16 %v294
      %v679 = vunpack.c.l.b16 %v295
      %v680 = vunpack.c.l.b16 %v296
      %v681 = vunpack.c.l.b16 %v297
      %v682 = vunpack.c.l.b16 %v298
      %v683 = vunpack.c.l.b16 %v299
      %v684 = vunpack.c.l.b16 %v300
      %v685 = vpack.c.b16 %v654, %v653
      %v686 = vpack.c.b16 %v656, %v655
      %v687 = vpack.c.b16 %v658, %v657
      %v688 = vpack.c.b16 %v660, %v659
      %v689 = vpack.c.b16 %v662, %v661
      %v690 = vpack.c.b16 %v664, %v663
      %v691 = vpack.c.b16 %v666, %v665
      %v692 = vpack.c.b16 %v668, %v667
      %v693 = vpack.c.b16 %v670, %v669
      %v694 = vpack.c.b16 %v672, %v671
      %v695 = vpack.c.b16 %v674, %v673
      %v696 = vpack.c.b16 %v676, %v675
      %v697 = vpack.c.b16 %v678, %v677
      %v698 = vpack.c.b16 %v680, %v679
      %v699 = vpack.c.b16 %v682, %v681
      %v700 = vpack.c.b16 %v684, %v683
      %717 = vmatprep.subr.bf16.mxu0 0
      %718 = vmatpush1.bf16.msra.mxu0 %v692
      %719 = vmatprep.subr.bf16.mxu0 0
      %720 = vmatpush1.bf16.msra.mxu0 %v691
      %721 = vmatprep.subr.bf16.mxu0 0
      %722 = vmatpush1.bf16.msra.mxu0 %v690
      %723 = vmatprep.subr.bf16.mxu0 0
      %724 = vmatpush1.bf16.msra.mxu0 %v689
      %725 = vmatprep.subr.bf16.mxu0 0
      %726 = vmatpush1.bf16.msra.mxu0 %v688
      %727 = vmatprep.subr.bf16.mxu0 0
      %728 = vmatpush1.bf16.msra.mxu0 %v687
      %729 = vmatprep.subr.bf16.mxu0 0
      %730 = vmatpush1.bf16.msra.mxu0 %v686
      %731 = vmatprep.subr.bf16.mxu0 0
      %732 = vmatpush1.bf16.msra.mxu0 %v685
      %733 = vmatprep.subr.bf16.mxu0 0
      %734 = vmatpush2.bf16.msra.mxu0 %v700
      %735 = vmatprep.subr.bf16.mxu0 0
      %736 = vmatpush2.bf16.msra.mxu0 %v699
      %737 = vmatprep.subr.bf16.mxu0 0
      %738 = vmatpush2.bf16.msra.mxu0 %v698
      %739 = vmatprep.subr.bf16.mxu0 0
      %740 = vmatpush2.bf16.msra.mxu0 %v697
      %741 = vmatprep.subr.bf16.mxu0 0
      %742 = vmatpush2.bf16.msra.mxu0 %v696
      %743 = vmatprep.subr.bf16.mxu0 0
      %744 = vmatpush2.bf16.msra.mxu0 %v695
      %745 = vmatprep.subr.bf16.mxu0 0
      %746 = vmatpush2.bf16.msra.mxu0 %v694
      %747 = vmatprep.subr.bf16.mxu0 0
      %748 = vmatpush2.bf16.msra.mxu0 %v693
      %749 = vmatprep.mubr.bf16.mxu0 %v494
      %750 = vmatmul.mubr.bf16.gmra.mxu0 %v493
      %v751 = vpop.f32.mrf.mxu0
      %v752 = vadd.f32 0.0, %v751
      %v753 = vpop.f32.mrf.mxu0
      %v754 = vpop.f32.mrf.mxu0
      %v755 = vadd.f32 0.0, %v754
      %v756 = vpop.f32.mrf.mxu0
      %757 = vmatprep.mubr.bf16.mxu0 %v496
      %758 = vmatmul.mubr.bf16.gmra.mxu0 %v495
      %v759 = vpop.f32.mrf.mxu0
      %v760 = vadd.f32 0.0, %v759
      %v761 = vpop.f32.mrf.mxu0
      %v762 = vpop.f32.mrf.mxu0
      %v763 = vadd.f32 0.0, %v762
      %v764 = vpop.f32.mrf.mxu0
      %765 = vmatprep.mubr.bf16.mxu0 %v498
      %766 = vmatmul.mubr.bf16.gmra.mxu0 %v497
      %v767 = vpop.f32.mrf.mxu0
      %v768 = vadd.f32 0.0, %v767
      %v769 = vpop.f32.mrf.mxu0
      %v770 = vpop.f32.mrf.mxu0
      %v771 = vadd.f32 0.0, %v770
      %v772 = vpop.f32.mrf.mxu0
      %773 = vmatprep.mubr.bf16.mxu0 %v500
      %774 = vmatmul.mubr.bf16.gmra.mxu0 %v499
      %v775 = vpop.f32.mrf.mxu0
      %v776 = vadd.f32 0.0, %v775
      %v777 = vpop.f32.mrf.mxu0
      %v778 = vpop.f32.mrf.mxu0
      %v779 = vadd.f32 0.0, %v778
      %v780 = vpop.f32.mrf.mxu0
      %781 = vmatprep.mubr.bf16.mxu0 %v502
      %782 = vmatmul.mubr.bf16.gmra.mxu0 %v501
      %v783 = vpop.f32.mrf.mxu0
      %v784 = vadd.f32 0.0, %v783
      %v785 = vpop.f32.mrf.mxu0
      %v786 = vpop.f32.mrf.mxu0
      %v787 = vadd.f32 0.0, %v786
      %v788 = vpop.f32.mrf.mxu0
      %789 = vmatprep.mubr.bf16.mxu0 %v504
      %790 = vmatmul.mubr.bf16.gmra.mxu0 %v503
      %v791 = vpop.f32.mrf.mxu0
      %v792 = vadd.f32 0.0, %v791
      %v793 = vpop.f32.mrf.mxu0
      %v794 = vpop.f32.mrf.mxu0
      %v795 = vadd.f32 0.0, %v794
      %v796 = vpop.f32.mrf.mxu0
      %797 = vmatprep.mubr.bf16.mxu0 %v506
      %798 = vmatmul.mubr.bf16.gmra.mxu0 %v505
      %v799 = vpop.f32.mrf.mxu0
      %v800 = vadd.f32 0.0, %v799
      %v801 = vpop.f32.mrf.mxu0
      %v802 = vpop.f32.mrf.mxu0
      %v803 = vadd.f32 0.0, %v802
      %v804 = vpop.f32.mrf.mxu0
      %805 = vmatprep.mubr.bf16.mxu0 %v508
      %806 = vmatmul.mubr.bf16.gmra.mxu0 %v507
      %v807 = vpop.f32.mrf.mxu0
      %v808 = vadd.f32 0.0, %v807
      %v809 = vpop.f32.mrf.mxu0
      %v810 = vpop.f32.mrf.mxu0
      %v811 = vadd.f32 0.0, %v810
      %v812 = vpop.f32.mrf.mxu0
      %813 = vmatprep.mubr.bf16.mxu0 %v510
      %814 = vmatmul.mubr.bf16.gmra.mxu0 %v509
      %v815 = vpop.f32.mrf.mxu0
      %v816 = vadd.f32 0.0, %v815
      %v817 = vpop.f32.mrf.mxu0
      %v818 = vpop.f32.mrf.mxu0
      %v819 = vadd.f32 0.0, %v818
      %v820 = vpop.f32.mrf.mxu0
      %821 = vmatprep.mubr.bf16.mxu0 %v512
      %822 = vmatmul.mubr.bf16.gmra.mxu0 %v511
      %v823 = vpop.f32.mrf.mxu0
      %v824 = vadd.f32 0.0, %v823
      %v825 = vpop.f32.mrf.mxu0
      %v826 = vpop.f32.mrf.mxu0
      %v827 = vadd.f32 0.0, %v826
      %v828 = vpop.f32.mrf.mxu0
      %829 = vmatprep.mubr.bf16.mxu0 %v514
      %830 = vmatmul.mubr.bf16.gmra.mxu0 %v513
      %v831 = vpop.f32.mrf.mxu0
      %v832 = vadd.f32 0.0, %v831
      %v833 = vpop.f32.mrf.mxu0
      %v834 = vpop.f32.mrf.mxu0
      %v835 = vadd.f32 0.0, %v834
      %v836 = vpop.f32.mrf.mxu0
      %837 = vmatprep.mubr.bf16.mxu0 %v516
      %838 = vmatmul.mubr.bf16.gmra.mxu0 %v515
      %v839 = vpop.f32.mrf.mxu0
      %v840 = vadd.f32 0.0, %v839
      %v841 = vpop.f32.mrf.mxu0
      %v842 = vpop.f32.mrf.mxu0
      %v843 = vadd.f32 0.0, %v842
      %v844 = vpop.f32.mrf.mxu0
      %845 = vmatprep.mubr.bf16.mxu0 %v518
      %846 = vmatmul.mubr.bf16.gmra.mxu0 %v517
      %v847 = vpop.f32.mrf.mxu0
      %v848 = vadd.f32 0.0, %v847
      %v849 = vpop.f32.mrf.mxu0
      %v850 = vpop.f32.mrf.mxu0
      %v851 = vadd.f32 0.0, %v850
      %v852 = vpop.f32.mrf.mxu0
      %853 = vmatprep.mubr.bf16.mxu0 %v520
      %854 = vmatmul.mubr.bf16.gmra.mxu0 %v519
      %v855 = vpop.f32.mrf.mxu0
      %v856 = vadd.f32 0.0, %v855
      %v857 = vpop.f32.mrf.mxu0
      %v858 = vpop.f32.mrf.mxu0
      %v859 = vadd.f32 0.0, %v858
      %v860 = vpop.f32.mrf.mxu0
      %861 = vmatprep.mubr.bf16.mxu0 %v522
      %862 = vmatmul.mubr.bf16.gmra.mxu0 %v521
      %v863 = vpop.f32.mrf.mxu0
      %v864 = vadd.f32 0.0, %v863
      %v865 = vpop.f32.mrf.mxu0
      %v866 = vpop.f32.mrf.mxu0
      %v867 = vadd.f32 0.0, %v866
      %v868 = vpop.f32.mrf.mxu0
      %869 = vmatprep.mubr.bf16.mxu0 %v524
      %870 = vmatmul.mubr.bf16.gmra.mxu0 %v523
      %v871 = vpop.f32.mrf.mxu0
      %v872 = vadd.f32 0.0, %v871
      %v873 = vpop.f32.mrf.mxu0
      %v874 = vpop.f32.mrf.mxu0
      %v875 = vadd.f32 0.0, %v874
      %v876 = vpop.f32.mrf.mxu0
      %877 = vmatprep.mubr.bf16.mxu0 %v526
      %878 = vmatmul.mubr.bf16.gmra.mxu0 %v525
      %v879 = vpop.f32.mrf.mxu0
      %v880 = vadd.f32 0.0, %v879
      %v881 = vpop.f32.mrf.mxu0
      %v882 = vpop.f32.mrf.mxu0
      %v883 = vadd.f32 0.0, %v882
      %v884 = vpop.f32.mrf.mxu0
      %885 = vmatprep.mubr.bf16.mxu0 %v528
      %886 = vmatmul.mubr.bf16.gmra.mxu0 %v527
      %v887 = vpop.f32.mrf.mxu0
      %v888 = vadd.f32 0.0, %v887
      %v889 = vpop.f32.mrf.mxu0
      %v890 = vpop.f32.mrf.mxu0
      %v891 = vadd.f32 0.0, %v890
      %v892 = vpop.f32.mrf.mxu0
      %893 = vmatprep.mubr.bf16.mxu0 %v530
      %894 = vmatmul.mubr.bf16.gmra.mxu0 %v529
      %v895 = vpop.f32.mrf.mxu0
      %v896 = vadd.f32 0.0, %v895
      %v897 = vpop.f32.mrf.mxu0
      %v898 = vpop.f32.mrf.mxu0
      %v899 = vadd.f32 0.0, %v898
      %v900 = vpop.f32.mrf.mxu0
      %901 = vmatprep.mubr.bf16.mxu0 %v532
      %902 = vmatmul.mubr.bf16.gmra.mxu0 %v531
      %v903 = vpop.f32.mrf.mxu0
      %v904 = vadd.f32 0.0, %v903
      %v905 = vpop.f32.mrf.mxu0
      %v906 = vpop.f32.mrf.mxu0
      %v907 = vadd.f32 0.0, %v906
      %v908 = vpop.f32.mrf.mxu0
      %909 = vmatprep.mubr.bf16.mxu0 %v534
      %910 = vmatmul.mubr.bf16.gmra.mxu0 %v533
      %v911 = vpop.f32.mrf.mxu0
      %v912 = vadd.f32 0.0, %v911
      %v913 = vpop.f32.mrf.mxu0
      %v914 = vpop.f32.mrf.mxu0
      %v915 = vadd.f32 0.0, %v914
      %v916 = vpop.f32.mrf.mxu0
      %917 = vmatprep.mubr.bf16.mxu0 %v536
      %918 = vmatmul.mubr.bf16.gmra.mxu0 %v535
      %v919 = vpop.f32.mrf.mxu0
      %v920 = vadd.f32 0.0, %v919
      %v921 = vpop.f32.mrf.mxu0
      %v922 = vpop.f32.mrf.mxu0
      %v923 = vadd.f32 0.0, %v922
      %v924 = vpop.f32.mrf.mxu0
      %925 = vmatprep.mubr.bf16.mxu0 %v538
      %926 = vmatmul.mubr.bf16.gmra.mxu0 %v537
      %v927 = vpop.f32.mrf.mxu0
      %v928 = vadd.f32 0.0, %v927
      %v929 = vpop.f32.mrf.mxu0
      %v930 = vpop.f32.mrf.mxu0
      %v931 = vadd.f32 0.0, %v930
      %v932 = vpop.f32.mrf.mxu0
      %933 = vmatprep.mubr.bf16.mxu0 %v540
      %934 = vmatmul.mubr.bf16.gmra.mxu0 %v539
      %v935 = vpop.f32.mrf.mxu0
      %v936 = vadd.f32 0.0, %v935
      %v937 = vpop.f32.mrf.mxu0
      %v938 = vpop.f32.mrf.mxu0
      %v939 = vadd.f32 0.0, %v938
      %v940 = vpop.f32.mrf.mxu0
      %941 = vmatprep.mubr.bf16.mxu0 %v542
      %942 = vmatmul.mubr.bf16.gmra.mxu0 %v541
      %v943 = vpop.f32.mrf.mxu0
      %v944 = vadd.f32 0.0, %v943
      %v945 = vpop.f32.mrf.mxu0
      %v946 = vpop.f32.mrf.mxu0
      %v947 = vadd.f32 0.0, %v946
      %v948 = vpop.f32.mrf.mxu0
      %949 = vmatprep.mubr.bf16.mxu0 %v544
      %950 = vmatmul.mubr.bf16.gmra.mxu0 %v543
      %v951 = vpop.f32.mrf.mxu0
      %v952 = vadd.f32 0.0, %v951
      %v953 = vpop.f32.mrf.mxu0
      %v954 = vpop.f32.mrf.mxu0
      %v955 = vadd.f32 0.0, %v954
      %v956 = vpop.f32.mrf.mxu0
      %957 = vmatprep.mubr.bf16.mxu0 %v546
      %958 = vmatmul.mubr.bf16.gmra.mxu0 %v545
      %v959 = vpop.f32.mrf.mxu0
      %v960 = vadd.f32 0.0, %v959
      %v961 = vpop.f32.mrf.mxu0
      %v962 = vpop.f32.mrf.mxu0
      %v963 = vadd.f32 0.0, %v962
      %v964 = vpop.f32.mrf.mxu0
      %965 = vmatprep.mubr.bf16.mxu0 %v548
      %966 = vmatmul.mubr.bf16.gmra.mxu0 %v547
      %v967 = vpop.f32.mrf.mxu0
      %v968 = vadd.f32 0.0, %v967
      %v969 = vpop.f32.mrf.mxu0
      %v970 = vpop.f32.mrf.mxu0
      %v971 = vadd.f32 0.0, %v970
      %v972 = vpop.f32.mrf.mxu0
      %973 = vmatprep.mubr.bf16.mxu0 %v550
      %974 = vmatmul.mubr.bf16.gmra.mxu0 %v549
      %v975 = vpop.f32.mrf.mxu0
      %v976 = vadd.f32 0.0, %v975
      %v977 = vpop.f32.mrf.mxu0
      %v978 = vpop.f32.mrf.mxu0
      %v979 = vadd.f32 0.0, %v978
      %v980 = vpop.f32.mrf.mxu0
      %981 = vmatprep.mubr.bf16.mxu0 %v552
      %982 = vmatmul.mubr.bf16.gmra.mxu0 %v551
      %v983 = vpop.f32.mrf.mxu0
      %v984 = vadd.f32 0.0, %v983
      %v985 = vpop.f32.mrf.mxu0
      %v986 = vpop.f32.mrf.mxu0
      %v987 = vadd.f32 0.0, %v986
      %v988 = vpop.f32.mrf.mxu0
      %989 = vmatprep.mubr.bf16.mxu0 %v554
      %990 = vmatmul.mubr.bf16.gmra.mxu0 %v553
      %v991 = vpop.f32.mrf.mxu0
      %v992 = vadd.f32 0.0, %v991
      %v993 = vpop.f32.mrf.mxu0
      %v994 = vpop.f32.mrf.mxu0
      %v995 = vadd.f32 0.0, %v994
      %v996 = vpop.f32.mrf.mxu0
      %997 = vmatprep.mubr.bf16.mxu0 %v556
      %998 = vmatmul.mubr.bf16.gmra.mxu0 %v555
      %v999 = vpop.f32.mrf.mxu0
      %v1000 = vadd.f32 0.0, %v999
      %v1001 = vpop.f32.mrf.mxu0
      %v1002 = vpop.f32.mrf.mxu0
      %v1003 = vadd.f32 0.0, %v1002
      %v1004 = vpop.f32.mrf.mxu0
      %1005 = vdwg.mxu0
      %v1006 = vld [vmem:[%s2] sm:$0x1]
      %v1008 = vlaneseq
      %v1009 = vshrl.u32 %v1008, 7
      %v1010 = vsub.s32 0, %v1009
      %v1011 = vrot.slane %v1006, %v1010
      %v1013 = vmul.f32 %v752, %v1011
      %v1014 = vmul.f32 %v755, %v1011
      %v1015 = vmul.f32 %v760, %v1011
      %v1016 = vmul.f32 %v763, %v1011
      %v1017 = vmul.f32 %v768, %v1011
      %v1018 = vmul.f32 %v771, %v1011
      %v1019 = vmul.f32 %v776, %v1011
      %v1020 = vmul.f32 %v779, %v1011
      %v1021 = vmul.f32 %v784, %v1011
      %v1022 = vmul.f32 %v787, %v1011
      %v1023 = vmul.f32 %v792, %v1011
      %v1024 = vmul.f32 %v795, %v1011
      %v1025 = vmul.f32 %v800, %v1011
      %v1026 = vmul.f32 %v803, %v1011
      %v1027 = vmul.f32 %v808, %v1011
      %v1028 = vmul.f32 %v811, %v1011
      %v1029 = vmul.f32 %v816, %v1011
      %v1030 = vmul.f32 %v819, %v1011
      %v1031 = vmul.f32 %v824, %v1011
      %v1032 = vmul.f32 %v827, %v1011
      %v1033 = vmul.f32 %v832, %v1011
      %v1034 = vmul.f32 %v835, %v1011
      %v1035 = vmul.f32 %v840, %v1011
      %v1036 = vmul.f32 %v843, %v1011
      %v1037 = vmul.f32 %v848, %v1011
      %v1038 = vmul.f32 %v851, %v1011
      %v1039 = vmul.f32 %v856, %v1011
      %v1040 = vmul.f32 %v859, %v1011
      %v1041 = vmul.f32 %v864, %v1011
      %v1042 = vmul.f32 %v867, %v1011
      %v1043 = vmul.f32 %v872, %v1011
      %v1044 = vmul.f32 %v875, %v1011
      %v1045 = vmul.f32 %v880, %v1011
      %v1046 = vmul.f32 %v883, %v1011
      %v1047 = vmul.f32 %v888, %v1011
      %v1048 = vmul.f32 %v891, %v1011
      %v1049 = vmul.f32 %v896, %v1011
      %v1050 = vmul.f32 %v899, %v1011
      %v1051 = vmul.f32 %v904, %v1011
      %v1052 = vmul.f32 %v907, %v1011
      %v1053 = vmul.f32 %v912, %v1011
      %v1054 = vmul.f32 %v915, %v1011
      %v1055 = vmul.f32 %v920, %v1011
      %v1056 = vmul.f32 %v923, %v1011
      %v1057 = vmul.f32 %v928, %v1011
      %v1058 = vmul.f32 %v931, %v1011
      %v1059 = vmul.f32 %v936, %v1011
      %v1060 = vmul.f32 %v939, %v1011
      %v1061 = vmul.f32 %v944, %v1011
      %v1062 = vmul.f32 %v947, %v1011
      %v1063 = vmul.f32 %v952, %v1011
      %v1064 = vmul.f32 %v955, %v1011
      %v1065 = vmul.f32 %v960, %v1011
      %v1066 = vmul.f32 %v963, %v1011
      %v1067 = vmul.f32 %v968, %v1011
      %v1068 = vmul.f32 %v971, %v1011
      %v1069 = vmul.f32 %v976, %v1011
      %v1070 = vmul.f32 %v979, %v1011
      %v1071 = vmul.f32 %v984, %v1011
      %v1072 = vmul.f32 %v987, %v1011
      %v1073 = vmul.f32 %v992, %v1011
      %v1074 = vmul.f32 %v995, %v1011
      %v1075 = vmul.f32 %v1000, %v1011
      %v1076 = vmul.f32 %v1003, %v1011
      %v1077 = vld [vmem:[%s3] sm:$0x1]
      %v1079 = vlaneseq
      %v1080 = vshrl.u32 %v1079, 7
      %v1081 = vsub.s32 0, %v1080
      %v1082 = vrot.slane %v1077, %v1081
      %v1084 = vadd.f32 %v1013, %v1082
      %v1085 = vadd.f32 %v1014, %v1082
      %v1086 = vadd.f32 %v1015, %v1082
      %v1087 = vadd.f32 %v1016, %v1082
      %v1088 = vadd.f32 %v1017, %v1082
      %v1089 = vadd.f32 %v1018, %v1082
      %v1090 = vadd.f32 %v1019, %v1082
      %v1091 = vadd.f32 %v1020, %v1082
      %v1092 = vadd.f32 %v1021, %v1082
      %v1093 = vadd.f32 %v1022, %v1082
      %v1094 = vadd.f32 %v1023, %v1082
      %v1095 = vadd.f32 %v1024, %v1082
      %v1096 = vadd.f32 %v1025, %v1082
      %v1097 = vadd.f32 %v1026, %v1082
      %v1098 = vadd.f32 %v1027, %v1082
      %v1099 = vadd.f32 %v1028, %v1082
      %v1100 = vadd.f32 %v1029, %v1082
      %v1101 = vadd.f32 %v1030, %v1082
      %v1102 = vadd.f32 %v1031, %v1082
      %v1103 = vadd.f32 %v1032, %v1082
      %v1104 = vadd.f32 %v1033, %v1082
      %v1105 = vadd.f32 %v1034, %v1082
      %v1106 = vadd.f32 %v1035, %v1082
      %v1107 = vadd.f32 %v1036, %v1082
      %v1108 = vadd.f32 %v1037, %v1082
      %v1109 = vadd.f32 %v1038, %v1082
      %v1110 = vadd.f32 %v1039, %v1082
      %v1111 = vadd.f32 %v1040, %v1082
      %v1112 = vadd.f32 %v1041, %v1082
      %v1113 = vadd.f32 %v1042, %v1082
      %v1114 = vadd.f32 %v1043, %v1082
      %v1115 = vadd.f32 %v1044, %v1082
      %v1116 = vadd.f32 %v1045, %v1082
      %v1117 = vadd.f32 %v1046, %v1082
      %v1118 = vadd.f32 %v1047, %v1082
      %v1119 = vadd.f32 %v1048, %v1082
      %v1120 = vadd.f32 %v1049, %v1082
      %v1121 = vadd.f32 %v1050, %v1082
      %v1122 = vadd.f32 %v1051, %v1082
      %v1123 = vadd.f32 %v1052, %v1082
      %v1124 = vadd.f32 %v1053, %v1082
      %v1125 = vadd.f32 %v1054, %v1082
      %v1126 = vadd.f32 %v1055, %v1082
      %v1127 = vadd.f32 %v1056, %v1082
      %v1128 = vadd.f32 %v1057, %v1082
      %v1129 = vadd.f32 %v1058, %v1082
      %v1130 = vadd.f32 %v1059, %v1082
      %v1131 = vadd.f32 %v1060, %v1082
      %v1132 = vadd.f32 %v1061, %v1082
      %v1133 = vadd.f32 %v1062, %v1082
      %v1134 = vadd.f32 %v1063, %v1082
      %v1135 = vadd.f32 %v1064, %v1082
      %v1136 = vadd.f32 %v1065, %v1082
      %v1137 = vadd.f32 %v1066, %v1082
      %v1138 = vadd.f32 %v1067, %v1082
      %v1139 = vadd.f32 %v1068, %v1082
      %v1140 = vadd.f32 %v1069, %v1082
      %v1141 = vadd.f32 %v1070, %v1082
      %v1142 = vadd.f32 %v1071, %v1082
      %v1143 = vadd.f32 %v1072, %v1082
      %v1144 = vadd.f32 %v1073, %v1082
      %v1145 = vadd.f32 %v1074, %v1082
      %v1146 = vadd.f32 %v1075, %v1082
      %v1147 = vadd.f32 %v1076, %v1082
      %v1148 = vmax.f32 %v1084, 0.0
      %v1149 = vmax.f32 %v1085, 0.0
      %v1150 = vmax.f32 %v1086, 0.0
      %v1151 = vmax.f32 %v1087, 0.0
      %v1152 = vmax.f32 %v1088, 0.0
      %v1153 = vmax.f32 %v1089, 0.0
      %v1154 = vmax.f32 %v1090, 0.0
      %v1155 = vmax.f32 %v1091, 0.0
      %v1156 = vmax.f32 %v1092, 0.0
      %v1157 = vmax.f32 %v1093, 0.0
      %v1158 = vmax.f32 %v1094, 0.0
      %v1159 = vmax.f32 %v1095, 0.0
      %v1160 = vmax.f32 %v1096, 0.0
      %v1161 = vmax.f32 %v1097, 0.0
      %v1162 = vmax.f32 %v1098, 0.0
      %v1163 = vmax.f32 %v1099, 0.0
      %v1164 = vmax.f32 %v1100, 0.0
      %v1165 = vmax.f32 %v1101, 0.0
      %v1166 = vmax.f32 %v1102, 0.0
      %v1167 = vmax.f32 %v1103, 0.0
      %v1168 = vmax.f32 %v1104, 0.0
      %v1169 = vmax.f32 %v1105, 0.0
      %v1170 = vmax.f32 %v1106, 0.0
      %v1171 = vmax.f32 %v1107, 0.0
      %v1172 = vmax.f32 %v1108, 0.0
      %v1173 = vmax.f32 %v1109, 0.0
      %v1174 = vmax.f32 %v1110, 0.0
      %v1175 = vmax.f32 %v1111, 0.0
      %v1176 = vmax.f32 %v1112, 0.0
      %v1177 = vmax.f32 %v1113, 0.0
      %v1178 = vmax.f32 %v1114, 0.0
      %v1179 = vmax.f32 %v1115, 0.0
      %v1180 = vmax.f32 %v1116, 0.0
      %v1181 = vmax.f32 %v1117, 0.0
      %v1182 = vmax.f32 %v1118, 0.0
      %v1183 = vmax.f32 %v1119, 0.0
      %v1184 = vmax.f32 %v1120, 0.0
      %v1185 = vmax.f32 %v1121, 0.0
      %v1186 = vmax.f32 %v1122, 0.0
      %v1187 = vmax.f32 %v1123, 0.0
      %v1188 = vmax.f32 %v1124, 0.0
      %v1189 = vmax.f32 %v1125, 0.0
      %v1190 = vmax.f32 %v1126, 0.0
      %v1191 = vmax.f32 %v1127, 0.0
      %v1192 = vmax.f32 %v1128, 0.0
      %v1193 = vmax.f32 %v1129, 0.0
      %v1194 = vmax.f32 %v1130, 0.0
      %v1195 = vmax.f32 %v1131, 0.0
      %v1196 = vmax.f32 %v1132, 0.0
      %v1197 = vmax.f32 %v1133, 0.0
      %v1198 = vmax.f32 %v1134, 0.0
      %v1199 = vmax.f32 %v1135, 0.0
      %v1200 = vmax.f32 %v1136, 0.0
      %v1201 = vmax.f32 %v1137, 0.0
      %v1202 = vmax.f32 %v1138, 0.0
      %v1203 = vmax.f32 %v1139, 0.0
      %v1204 = vmax.f32 %v1140, 0.0
      %v1205 = vmax.f32 %v1141, 0.0
      %v1206 = vmax.f32 %v1142, 0.0
      %v1207 = vmax.f32 %v1143, 0.0
      %v1208 = vmax.f32 %v1144, 0.0
      %v1209 = vmax.f32 %v1145, 0.0
      %v1210 = vmax.f32 %v1146, 0.0
      %v1211 = vmax.f32 %v1147, 0.0
      %v1212 = vpack.c.bf16 %v1149, %v1148
      %v1213 = vpack.c.bf16 %v1151, %v1150
      %v1214 = vpack.c.bf16 %v1153, %v1152
      %v1215 = vpack.c.bf16 %v1155, %v1154
      %v1216 = vpack.c.bf16 %v1157, %v1156
      %v1217 = vpack.c.bf16 %v1159, %v1158
      %v1218 = vpack.c.bf16 %v1161, %v1160
      %v1219 = vpack.c.bf16 %v1163, %v1162
      %v1220 = vpack.c.bf16 %v1165, %v1164
      %v1221 = vpack.c.bf16 %v1167, %v1166
      %v1222 = vpack.c.bf16 %v1169, %v1168
      %v1223 = vpack.c.bf16 %v1171, %v1170
      %v1224 = vpack.c.bf16 %v1173, %v1172
      %v1225 = vpack.c.bf16 %v1175, %v1174
      %v1226 = vpack.c.bf16 %v1177, %v1176
      %v1227 = vpack.c.bf16 %v1179, %v1178
      %v1228 = vpack.c.bf16 %v1181, %v1180
      %v1229 = vpack.c.bf16 %v1183, %v1182
      %v1230 = vpack.c.bf16 %v1185, %v1184
      %v1231 = vpack.c.bf16 %v1187, %v1186
      %v1232 = vpack.c.bf16 %v1189, %v1188
      %v1233 = vpack.c.bf16 %v1191, %v1190
      %v1234 = vpack.c.bf16 %v1193, %v1192
      %v1235 = vpack.c.bf16 %v1195, %v1194
      %v1236 = vpack.c.bf16 %v1197, %v1196
      %v1237 = vpack.c.bf16 %v1199, %v1198
      %v1238 = vpack.c.bf16 %v1201, %v1200
      %v1239 = vpack.c.bf16 %v1203, %v1202
      %v1240 = vpack.c.bf16 %v1205, %v1204
      %v1241 = vpack.c.bf16 %v1207, %v1206
      %v1242 = vpack.c.bf16 %v1209, %v1208
      %v1243 = vpack.c.bf16 %v1211, %v1210
      %v1276 = vunpack.c.l.b16 %v1212
      %v1277 = vunpack.c.h.b16 %v1212
      %v1278 = vunpack.c.l.b16 %v1213
      %v1279 = vunpack.c.h.b16 %v1213
      %v1280 = vunpack.c.l.b16 %v1214
      %v1281 = vunpack.c.h.b16 %v1214
      %v1282 = vunpack.c.l.b16 %v1215
      %v1283 = vunpack.c.h.b16 %v1215
      %v1284 = vunpack.c.l.b16 %v1216
      %v1285 = vunpack.c.h.b16 %v1216
      %v1286 = vunpack.c.l.b16 %v1217
      %v1287 = vunpack.c.h.b16 %v1217
      %v1288 = vunpack.c.l.b16 %v1218
      %v1289 = vunpack.c.h.b16 %v1218
      %v1290 = vunpack.c.l.b16 %v1219
      %v1291 = vunpack.c.h.b16 %v1219
      %v1292 = vunpack.c.l.b16 %v1220
      %v1293 = vunpack.c.h.b16 %v1220
      %v1294 = vunpack.c.l.b16 %v1221
      %v1295 = vunpack.c.h.b16 %v1221
      %v1296 = vunpack.c.l.b16 %v1222
      %v1297 = vunpack.c.h.b16 %v1222
      %v1298 = vunpack.c.l.b16 %v1223
      %v1299 = vunpack.c.h.b16 %v1223
      %v1300 = vunpack.c.l.b16 %v1224
      %v1301 = vunpack.c.h.b16 %v1224
      %v1302 = vunpack.c.l.b16 %v1225
      %v1303 = vunpack.c.h.b16 %v1225
      %v1304 = vunpack.c.l.b16 %v1226
      %v1305 = vunpack.c.h.b16 %v1226
      %v1306 = vunpack.c.l.b16 %v1227
      %v1307 = vunpack.c.h.b16 %v1227
      %v1308 = vunpack.c.l.b16 %v1228
      %v1309 = vunpack.c.h.b16 %v1228
      %v1310 = vunpack.c.l.b16 %v1229
      %v1311 = vunpack.c.h.b16 %v1229
      %v1312 = vunpack.c.l.b16 %v1230
      %v1313 = vunpack.c.h.b16 %v1230
      %v1314 = vunpack.c.l.b16 %v1231
      %v1315 = vunpack.c.h.b16 %v1231
      %v1316 = vunpack.c.l.b16 %v1232
      %v1317 = vunpack.c.h.b16 %v1232
      %v1318 = vunpack.c.l.b16 %v1233
      %v1319 = vunpack.c.h.b16 %v1233
      %v1320 = vunpack.c.l.b16 %v1234
      %v1321 = vunpack.c.h.b16 %v1234
      %v1322 = vunpack.c.l.b16 %v1235
      %v1323 = vunpack.c.h.b16 %v1235
      %v1324 = vunpack.c.l.b16 %v1236
      %v1325 = vunpack.c.h.b16 %v1236
      %v1326 = vunpack.c.l.b16 %v1237
      %v1327 = vunpack.c.h.b16 %v1237
      %v1328 = vunpack.c.l.b16 %v1238
      %v1329 = vunpack.c.h.b16 %v1238
      %v1330 = vunpack.c.l.b16 %v1239
      %v1331 = vunpack.c.h.b16 %v1239
      %v1332 = vunpack.c.l.b16 %v1240
      %v1333 = vunpack.c.h.b16 %v1240
      %v1334 = vunpack.c.l.b16 %v1241
      %v1335 = vunpack.c.h.b16 %v1241
      %v1336 = vunpack.c.l.b16 %v1242
      %v1337 = vunpack.c.h.b16 %v1242
      %v1338 = vunpack.c.l.b16 %v1243
      %v1339 = vunpack.c.h.b16 %v1243
      %v1340 = vpack.c.b16 %v1276, %v1276
      %v1341 = vpack.c.b16 %v1277, %v1277
      %v1342 = vpack.c.b16 %v1278, %v1278
      %v1343 = vpack.c.b16 %v1279, %v1279
      %v1344 = vpack.c.b16 %v1280, %v1280
      %v1345 = vpack.c.b16 %v1281, %v1281
      %v1346 = vpack.c.b16 %v1282, %v1282
      %v1347 = vpack.c.b16 %v1283, %v1283
      %v1348 = vpack.c.b16 %v1284, %v1284
      %v1349 = vpack.c.b16 %v1285, %v1285
      %v1350 = vpack.c.b16 %v1286, %v1286
      %v1351 = vpack.c.b16 %v1287, %v1287
      %v1352 = vpack.c.b16 %v1288, %v1288
      %v1353 = vpack.c.b16 %v1289, %v1289
      %v1354 = vpack.c.b16 %v1290, %v1290
      %v1355 = vpack.c.b16 %v1291, %v1291
      %v1356 = vpack.c.b16 %v1292, %v1292
      %v1357 = vpack.c.b16 %v1293, %v1293
      %v1358 = vpack.c.b16 %v1294, %v1294
      %v1359 = vpack.c.b16 %v1295, %v1295
      %v1360 = vpack.c.b16 %v1296, %v1296
      %v1361 = vpack.c.b16 %v1297, %v1297
      %v1362 = vpack.c.b16 %v1298, %v1298
      %v1363 = vpack.c.b16 %v1299, %v1299
      %v1364 = vpack.c.b16 %v1300, %v1300
      %v1365 = vpack.c.b16 %v1301, %v1301
      %v1366 = vpack.c.b16 %v1302, %v1302
      %v1367 = vpack.c.b16 %v1303, %v1303
      %v1368 = vpack.c.b16 %v1304, %v1304
      %v1369 = vpack.c.b16 %v1305, %v1305
      %v1370 = vpack.c.b16 %v1306, %v1306
      %v1371 = vpack.c.b16 %v1307, %v1307
      %v1372 = vpack.c.b16 %v1308, %v1308
      %v1373 = vpack.c.b16 %v1309, %v1309
      %v1374 = vpack.c.b16 %v1310, %v1310
      %v1375 = vpack.c.b16 %v1311, %v1311
      %v1376 = vpack.c.b16 %v1312, %v1312
      %v1377 = vpack.c.b16 %v1313, %v1313
      %v1378 = vpack.c.b16 %v1314, %v1314
      %v1379 = vpack.c.b16 %v1315, %v1315
      %v1380 = vpack.c.b16 %v1316, %v1316
      %v1381 = vpack.c.b16 %v1317, %v1317
      %v1382 = vpack.c.b16 %v1318, %v1318
      %v1383 = vpack.c.b16 %v1319, %v1319
      %v1384 = vpack.c.b16 %v1320, %v1320
      %v1385 = vpack.c.b16 %v1321, %v1321
      %v1386 = vpack.c.b16 %v1322, %v1322
      %v1387 = vpack.c.b16 %v1323, %v1323
      %v1388 = vpack.c.b16 %v1324, %v1324
      %v1389 = vpack.c.b16 %v1325, %v1325
      %v1390 = vpack.c.b16 %v1326, %v1326
      %v1391 = vpack.c.b16 %v1327, %v1327
      %v1392 = vpack.c.b16 %v1328, %v1328
      %v1393 = vpack.c.b16 %v1329, %v1329
      %v1394 = vpack.c.b16 %v1330, %v1330
      %v1395 = vpack.c.b16 %v1331, %v1331
      %v1396 = vpack.c.b16 %v1332, %v1332
      %v1397 = vpack.c.b16 %v1333, %v1333
      %v1398 = vpack.c.b16 %v1334, %v1334
      %v1399 = vpack.c.b16 %v1335, %v1335
      %v1400 = vpack.c.b16 %v1336, %v1336
      %v1401 = vpack.c.b16 %v1337, %v1337
      %v1402 = vpack.c.b16 %v1338, %v1338
      %v1403 = vpack.c.b16 %v1339, %v1339
      %1468 = vst [vmem:[%s202] sm:$0xf] %v1340
      %1469 = vst [vmem:[%s202 + $0x4] sm:$0xf] %v1341
      %1470 = vst [vmem:[%s202 + $0x8] sm:$0xf] %v1342
      %1471 = vst [vmem:[%s202 + $0xc] sm:$0xf] %v1343
      %1472 = vst [vmem:[%s202 + $0x10] sm:$0xf] %v1344
      %1473 = vst [vmem:[%s202 + $0x14] sm:$0xf] %v1345
      %1474 = vst [vmem:[%s202 + $0x18] sm:$0xf] %v1346
      %1475 = vst [vmem:[%s202 + $0x1c] sm:$0xf] %v1347
      %1476 = vst [vmem:[%s202 + $0x20] sm:$0xf] %v1348
      %1477 = vst [vmem:[%s202 + $0x24] sm:$0xf] %v1349
      %1478 = vst [vmem:[%s202 + $0x28] sm:$0xf] %v1350
      %1479 = vst [vmem:[%s202 + $0x2c] sm:$0xf] %v1351
      %1480 = vst [vmem:[%s202 + $0x30] sm:$0xf] %v1352
      %1481 = vst [vmem:[%s202 + $0x34] sm:$0xf] %v1353
      %1482 = vst [vmem:[%s202 + $0x38] sm:$0xf] %v1354
      %1483 = vst [vmem:[%s202 + $0x3c] sm:$0xf] %v1355
      %1484 = vst [vmem:[%s202 + $0x40] sm:$0xf] %v1356
      %1485 = vst [vmem:[%s202 + $0x44] sm:$0xf] %v1357
      %1486 = vst [vmem:[%s202 + $0x48] sm:$0xf] %v1358
      %1487 = vst [vmem:[%s202 + $0x4c] sm:$0xf] %v1359
      %1488 = vst [vmem:[%s202 + $0x50] sm:$0xf] %v1360
      %1489 = vst [vmem:[%s202 + $0x54] sm:$0xf] %v1361
      %1490 = vst [vmem:[%s202 + $0x58] sm:$0xf] %v1362
      %1491 = vst [vmem:[%s202 + $0x5c] sm:$0xf] %v1363
      %1492 = vst [vmem:[%s202 + $0x60] sm:$0xf] %v1364
      %1493 = vst [vmem:[%s202 + $0x64] sm:$0xf] %v1365
      %1494 = vst [vmem:[%s202 + $0x68] sm:$0xf] %v1366
      %1495 = vst [vmem:[%s202 + $0x6c] sm:$0xf] %v1367
      %1496 = vst [vmem:[%s202 + $0x70] sm:$0xf] %v1368
      %1497 = vst [vmem:[%s202 + $0x74] sm:$0xf] %v1369
      %1498 = vst [vmem:[%s202 + $0x78] sm:$0xf] %v1370
      %1499 = vst [vmem:[%s202 + $0x7c] sm:$0xf] %v1371
      %1500 = vst [vmem:[%s202 + $0x80] sm:$0xf] %v1372
      %1501 = vst [vmem:[%s202 + $0x84] sm:$0xf] %v1373
      %1502 = vst [vmem:[%s202 + $0x88] sm:$0xf] %v1374
      %1503 = vst [vmem:[%s202 + $0x8c] sm:$0xf] %v1375
      %1504 = vst [vmem:[%s202 + $0x90] sm:$0xf] %v1376
      %1505 = vst [vmem:[%s202 + $0x94] sm:$0xf] %v1377
      %1506 = vst [vmem:[%s202 + $0x98] sm:$0xf] %v1378
      %1507 = vst [vmem:[%s202 + $0x9c] sm:$0xf] %v1379
      %1508 = vst [vmem:[%s202 + $0xa0] sm:$0xf] %v1380
      %1509 = vst [vmem:[%s202 + $0xa4] sm:$0xf] %v1381
      %1510 = vst [vmem:[%s202 + $0xa8] sm:$0xf] %v1382
      %1511 = vst [vmem:[%s202 + $0xac] sm:$0xf] %v1383
      %1512 = vst [vmem:[%s202 + $0xb0] sm:$0xf] %v1384
      %1513 = vst [vmem:[%s202 + $0xb4] sm:$0xf] %v1385
      %1514 = vst [vmem:[%s202 + $0xb8] sm:$0xf] %v1386
      %1515 = vst [vmem:[%s202 + $0xbc] sm:$0xf] %v1387
      %1516 = vst [vmem:[%s202 + $0xc0] sm:$0xf] %v1388
      %1517 = vst [vmem:[%s202 + $0xc4] sm:$0xf] %v1389
      %1518 = vst [vmem:[%s202 + $0xc8] sm:$0xf] %v1390
      %1519 = vst [vmem:[%s202 + $0xcc] sm:$0xf] %v1391
      %1520 = vst [vmem:[%s202 + $0xd0] sm:$0xf] %v1392
      %1521 = vst [vmem:[%s202 + $0xd4] sm:$0xf] %v1393
      %1522 = vst [vmem:[%s202 + $0xd8] sm:$0xf] %v1394
      %1523 = vst [vmem:[%s202 + $0xdc] sm:$0xf] %v1395
      %1524 = vst [vmem:[%s202 + $0xe0] sm:$0xf] %v1396
      %1525 = vst [vmem:[%s202 + $0xe4] sm:$0xf] %v1397
      %1526 = vst [vmem:[%s202 + $0xe8] sm:$0xf] %v1398
      %1527 = vst [vmem:[%s202 + $0xec] sm:$0xf] %v1399
      %1528 = vst [vmem:[%s202 + $0xf0] sm:$0xf] %v1400
      %1529 = vst [vmem:[%s202 + $0xf4] sm:$0xf] %v1401
      %1530 = vst [vmem:[%s202 + $0xf8] sm:$0xf] %v1402
      %1531 = vst [vmem:[%s202 + $0xfc] sm:$0xf] %v1403
      %s1532 = smul.u32 64, %s15
      %p1533 = scmp.lt.s32.totalorder %s1532, 255
      %s1534 = scalar_select %p1533, %s1532, 255
      %s1535 = smul.addr %s1534, 4
      %s1536 = scalar_lea.vmem %s4, %s1535
      // Predicated region
      $region37: #{_lambda_.35} parent=35 // pred_check
        %p1537 = pneg %p122
      $region38: #{_lambda_.35} parent=35 // pred_check_branch
        %1539 = sbr.rel (%p1537) target = $region40
      $region39: #{_lambda_.35} parent=35 // pred_region
        %s1540 = smul.u32 64, %s15
      $region40: #{_lambda_.35} parent=35 // pred_fallthru
        _
    $region36: #{_lambda_.35} parent=5 // pred_fallthru
      _
    %p1541 = scmp.le.s32.totalorder 2, %s10
    // Predicated region
    $region41: #{_lambda_.35} parent=5 // pred_check
      %p1542 = pneg %p1541
    $region42: #{_lambda_.35} parent=5 // pred_check_branch
      %1544 = sbr.rel (%p1542) target = $region44
    $region43: #{_lambda_.35} parent=5 // pred_region
      %s1545 = ssub.s32 %s10, 2
      // Predicated region
      $region45: #{_lambda_.35} parent=43 // pred_check
        %p1546 = pneg %p128
      $region46: #{_lambda_.35} parent=43 // pred_check_branch
        %1548 = sbr.rel (%p1546) target = $region48
      $region47: #{_lambda_.35} parent=43 // pred_region
        %s1549 = smul.u32 64, %s16
        %p1550 = scmp.lt.s32.totalorder %s1549, 255
        %s1551 = scalar_select %p1550, %s1549, 255
        %s1552 = smul.addr %s1551, 4
        %s1553 = scalar_lea.vmem %s4, %s1552
      $region48: #{_lambda_.35} parent=43 // pred_fallthru
        _
    $region44: #{_lambda_.35} parent=5 // pred_fallthru
      _
  $region6: #{_lambda_.35} parent=0 // loop_footer
    %s14 = sadd.s32 1, %s10
  $region7: #{_lambda_.35} parent=0 // loop_footer_branch
    %9 = sbr.rel target = $region3
  $region8: #{_lambda_.35} parent=0 // loop_exit
    _

// kernel: _lambda_.36
$region0: #{_lambda_.36}
  #allocation0 [shape = 'u32[]', space=smem, size = 0x4, offset = 0x4, fixed_abs, tag = 'smem constant byte address 0x4 - core index']
  #allocation1 [shape = 'u32[144,128]{1,0:T(1,128)}', space=vmem, size = 0x12000, scoped, tag = 'internal scratch']
  %s0 = inlined_call_operand.vmem [shape: bf16[2,34,16,128], index: 0, kind: input, shape index: {}]
  %s1 = inlined_call_operand.vmem [shape: bf16[2,34,16,128], index: 1, kind: input, shape index: {}]
  %s2 = inlined_call_operand.vmem [shape: bf16[2,34,16,128], index: 2, kind: input, shape index: {}]
  %s3 = inlined_call_operand.vmem [shape: bf16[2,16,16,128], index: 3, kind: output, shape index: {}]
  %s4 = sld [smem:[#allocation0]]
  $region22: #{_lambda_.36} parent=0
    _
  %s6 = ssub.s32 1, %s4
  %s7 = scalar_select 0, %s6, %s4
  // Predicated region
  $region2: #{_lambda_.36} parent=0 // pred_check
    _
  $region3: #{_lambda_.36} parent=0 // pred_check_branch
    %9 = sbr.rel (0) target = $region5
  $region4: #{_lambda_.36} parent=0 // pred_region
    _
  $region5: #{_lambda_.36} parent=0 // pred_fallthru
    _
  // Predicated region
  $region6: #{_lambda_.36} parent=0 // pred_check
    _
  $region7: #{_lambda_.36} parent=0 // pred_check_branch
    %11 = sbr.rel (0) target = $region9
  $region8: #{_lambda_.36} parent=0 // pred_region
    _
  $region9: #{_lambda_.36} parent=0 // pred_fallthru
    _
  // Predicated region
  $region10: #{_lambda_.36} parent=0 // pred_check
    _
  $region11: #{_lambda_.36} parent=0 // pred_check_branch
    %13 = sbr.rel (0) target = $region13
  $region12: #{_lambda_.36} parent=0 // pred_region
    _
  $region13: #{_lambda_.36} parent=0 // pred_fallthru
    _
  %v14 = vld [vmem:[%s0] sm:$0xf]
  %v15 = vld [vmem:[%s0 + $0x4] sm:$0xf]
  %v16 = vld [vmem:[%s0 + $0x8] sm:$0xf]
  %v17 = vld [vmem:[%s0 + $0xc] sm:$0xf]
  %v18 = vld [vmem:[%s0 + $0x10] sm:$0xf]
  %v19 = vld [vmem:[%s0 + $0x14] sm:$0xf]
  %v20 = vld [vmem:[%s0 + $0x18] sm:$0xf]
  %v21 = vld [vmem:[%s0 + $0x1c] sm:$0xf]
  %v22 = vld [vmem:[%s0 + $0x20] sm:$0xf]
  %v23 = vld [vmem:[%s0 + $0x24] sm:$0xf]
  %v24 = vld [vmem:[%s0 + $0x28] sm:$0xf]
  %v25 = vld [vmem:[%s0 + $0x2c] sm:$0xf]
  %v26 = vld [vmem:[%s0 + $0x30] sm:$0xf]
  %v27 = vld [vmem:[%s0 + $0x34] sm:$0xf]
  %v28 = vld [vmem:[%s0 + $0x38] sm:$0xf]
  %v29 = vld [vmem:[%s0 + $0x3c] sm:$0xf]
  %v30 = vld [vmem:[%s0 + $0x40] sm:$0xf]
  %v31 = vld [vmem:[%s0 + $0x44] sm:$0xf]
  %v32 = vld [vmem:[%s0 + $0x48] sm:$0xf]
  %v33 = vld [vmem:[%s0 + $0x4c] sm:$0xf]
  %v34 = vld [vmem:[%s0 + $0x50] sm:$0xf]
  %v35 = vld [vmem:[%s0 + $0x54] sm:$0xf]
  %v36 = vld [vmem:[%s0 + $0x58] sm:$0xf]
  %v37 = vld [vmem:[%s0 + $0x5c] sm:$0xf]
  %v38 = vld [vmem:[%s0 + $0x60] sm:$0xf]
  %v39 = vld [vmem:[%s0 + $0x64] sm:$0xf]
  %v40 = vld [vmem:[%s0 + $0x68] sm:$0xf]
  %v41 = vld [vmem:[%s0 + $0x6c] sm:$0xf]
  %v42 = vld [vmem:[%s0 + $0x70] sm:$0xf]
  %v43 = vld [vmem:[%s0 + $0x74] sm:$0xf]
  %v44 = vld [vmem:[%s0 + $0x78] sm:$0xf]
  %v45 = vld [vmem:[%s0 + $0x7c] sm:$0xf]
  %v46 = vld [vmem:[%s0 + $0x80] sm:$0xf]
  %v47 = vld [vmem:[%s0 + $0x84] sm:$0xf]
  %v48 = vld [vmem:[%s0 + $0x88] sm:$0xf]
  %v49 = vld [vmem:[%s0 + $0x8c] sm:$0xf]
  %v50 = vld [vmem:[%s0 + $0x90] sm:$0xf]
  %v51 = vld [vmem:[%s0 + $0x94] sm:$0xf]
  %v52 = vld [vmem:[%s0 + $0x98] sm:$0xf]
  %v53 = vld [vmem:[%s0 + $0x9c] sm:$0xf]
  %v54 = vld [vmem:[%s0 + $0xa0] sm:$0xf]
  %v55 = vld [vmem:[%s0 + $0xa4] sm:$0xf]
  %v56 = vld [vmem:[%s0 + $0xa8] sm:$0xf]
  %v57 = vld [vmem:[%s0 + $0xac] sm:$0xf]
  %v58 = vld [vmem:[%s0 + $0xb0] sm:$0xf]
  %v59 = vld [vmem:[%s0 + $0xb4] sm:$0xf]
  %v60 = vld [vmem:[%s0 + $0xb8] sm:$0xf]
  %v61 = vld [vmem:[%s0 + $0xbc] sm:$0xf]
  %v62 = vld [vmem:[%s0 + $0xc0] sm:$0xf]
  %v63 = vld [vmem:[%s0 + $0xc4] sm:$0xf]
  %v64 = vld [vmem:[%s0 + $0xc8] sm:$0xf]
  %v65 = vld [vmem:[%s0 + $0xcc] sm:$0xf]
  %v66 = vld [vmem:[%s0 + $0xd0] sm:$0xf]
  %v67 = vld [vmem:[%s0 + $0xd4] sm:$0xf]
  %v68 = vld [vmem:[%s0 + $0xd8] sm:$0xf]
  %v69 = vld [vmem:[%s0 + $0xdc] sm:$0xf]
  %v70 = vld [vmem:[%s0 + $0xe0] sm:$0xf]
  %v71 = vld [vmem:[%s0 + $0xe4] sm:$0xf]
  %v72 = vld [vmem:[%s0 + $0xe8] sm:$0xf]
  %v73 = vld [vmem:[%s0 + $0xec] sm:$0xf]
  %v74 = vld [vmem:[%s0 + $0xf0] sm:$0xf]
  %v75 = vld [vmem:[%s0 + $0xf4] sm:$0xf]
  %v76 = vld [vmem:[%s0 + $0xf8] sm:$0xf]
  %v77 = vld [vmem:[%s0 + $0xfc] sm:$0xf]
  %v78 = vld [vmem:[%s0 + $0x100] sm:$0xf]
  %v79 = vld [vmem:[%s0 + $0x104] sm:$0xf]
  %v80 = vld [vmem:[%s0 + $0x110] sm:$0xf]
  %v81 = vld [vmem:[%s0 + $0x114] sm:$0xf]
  %v82 = vld [vmem:[%s0 + $0x118] sm:$0xf]
  %v83 = vld [vmem:[%s0 + $0x11c] sm:$0xf]
  %v84 = vld [vmem:[%s0 + $0x120] sm:$0xf]
  %v85 = vld [vmem:[%s0 + $0x124] sm:$0xf]
  %v86 = vld [vmem:[%s0 + $0x128] sm:$0xf]
  %v87 = vld [vmem:[%s0 + $0x12c] sm:$0xf]
  %v88 = vld [vmem:[%s0 + $0x130] sm:$0xf]
  %v89 = vld [vmem:[%s0 + $0x134] sm:$0xf]
  %v90 = vld [vmem:[%s0 + $0x138] sm:$0xf]
  %v91 = vld [vmem:[%s0 + $0x13c] sm:$0xf]
  %v92 = vld [vmem:[%s0 + $0x140] sm:$0xf]
  %v93 = vld [vmem:[%s0 + $0x144] sm:$0xf]
  %v94 = vld [vmem:[%s0 + $0x148] sm:$0xf]
  %v95 = vld [vmem:[%s0 + $0x14c] sm:$0xf]
  %v96 = vld [vmem:[%s0 + $0x150] sm:$0xf]
  %v97 = vld [vmem:[%s0 + $0x154] sm:$0xf]
  %v98 = vld [vmem:[%s0 + $0x158] sm:$0xf]
  %v99 = vld [vmem:[%s0 + $0x15c] sm:$0xf]
  %v100 = vld [vmem:[%s0 + $0x160] sm:$0xf]
  %v101 = vld [vmem:[%s0 + $0x164] sm:$0xf]
  %v102 = vld [vmem:[%s0 + $0x168] sm:$0xf]
  %v103 = vld [vmem:[%s0 + $0x16c] sm:$0xf]
  %v104 = vld [vmem:[%s0 + $0x170] sm:$0xf]
  %v105 = vld [vmem:[%s0 + $0x174] sm:$0xf]
  %v106 = vld [vmem:[%s0 + $0x178] sm:$0xf]
  %v107 = vld [vmem:[%s0 + $0x17c] sm:$0xf]
  %v108 = vld [vmem:[%s0 + $0x180] sm:$0xf]
  %v109 = vld [vmem:[%s0 + $0x184] sm:$0xf]
  %v110 = vld [vmem:[%s0 + $0x188] sm:$0xf]
  %v111 = vld [vmem:[%s0 + $0x18c] sm:$0xf]
  %v112 = vld [vmem:[%s0 + $0x190] sm:$0xf]
  %v113 = vld [vmem:[%s0 + $0x194] sm:$0xf]
  %v114 = vld [vmem:[%s0 + $0x198] sm:$0xf]
  %v115 = vld [vmem:[%s0 + $0x19c] sm:$0xf]
  %v116 = vld [vmem:[%s0 + $0x1a0] sm:$0xf]
  %v117 = vld [vmem:[%s0 + $0x1a4] sm:$0xf]
  %v118 = vld [vmem:[%s0 + $0x1a8] sm:$0xf]
  %v119 = vld [vmem:[%s0 + $0x1ac] sm:$0xf]
  %v120 = vld [vmem:[%s0 + $0x1b0] sm:$0xf]
  %v121 = vld [vmem:[%s0 + $0x1b4] sm:$0xf]
  %v122 = vld [vmem:[%s0 + $0x1b8] sm:$0xf]
  %v123 = vld [vmem:[%s0 + $0x1bc] sm:$0xf]
  %v124 = vld [vmem:[%s0 + $0x1c0] sm:$0xf]
  %v125 = vld [vmem:[%s0 + $0x1c4] sm:$0xf]
  %v126 = vld [vmem:[%s0 + $0x1c8] sm:$0xf]
  %v127 = vld [vmem:[%s0 + $0x1cc] sm:$0xf]
  %v128 = vld [vmem:[%s0 + $0x1d0] sm:$0xf]
  %v129 = vld [vmem:[%s0 + $0x1d4] sm:$0xf]
  %v130 = vld [vmem:[%s0 + $0x1d8] sm:$0xf]
  %v131 = vld [vmem:[%s0 + $0x1dc] sm:$0xf]
  %v132 = vld [vmem:[%s0 + $0x1e0] sm:$0xf]
  %v133 = vld [vmem:[%s0 + $0x1e4] sm:$0xf]
  %v134 = vld [vmem:[%s0 + $0x1e8] sm:$0xf]
  %v135 = vld [vmem:[%s0 + $0x1ec] sm:$0xf]
  %v136 = vld [vmem:[%s0 + $0x1f0] sm:$0xf]
  %v137 = vld [vmem:[%s0 + $0x1f4] sm:$0xf]
  %v138 = vld [vmem:[%s0 + $0x1f8] sm:$0xf]
  %v139 = vld [vmem:[%s0 + $0x1fc] sm:$0xf]
  %v140 = vld [vmem:[%s0 + $0x200] sm:$0xf]
  %v141 = vld [vmem:[%s0 + $0x204] sm:$0xf]
  %v142 = vld [vmem:[%s0 + $0x208] sm:$0xf]
  %v143 = vld [vmem:[%s0 + $0x20c] sm:$0xf]
  %v144 = vld [vmem:[%s0 + $0x210] sm:$0xf]
  %v145 = vld [vmem:[%s0 + $0x214] sm:$0xf]
  %v146 = vmax.bf16 %v14, %v16
  %v147 = vmax.bf16 %v15, %v17
  %v148 = vmax.bf16 %v18, %v20
  %v149 = vmax.bf16 %v19, %v21
  %v150 = vmax.bf16 %v22, %v24
  %v151 = vmax.bf16 %v23, %v25
  %v152 = vmax.bf16 %v26, %v28
  %v153 = vmax.bf16 %v27, %v29
  %v154 = vmax.bf16 %v30, %v32
  %v155 = vmax.bf16 %v31, %v33
  %v156 = vmax.bf16 %v34, %v36
  %v157 = vmax.bf16 %v35, %v37
  %v158 = vmax.bf16 %v38, %v40
  %v159 = vmax.bf16 %v39, %v41
  %v160 = vmax.bf16 %v42, %v44
  %v161 = vmax.bf16 %v43, %v45
  %v162 = vmax.bf16 %v46, %v48
  %v163 = vmax.bf16 %v47, %v49
  %v164 = vmax.bf16 %v50, %v52
  %v165 = vmax.bf16 %v51, %v53
  %v166 = vmax.bf16 %v54, %v56
  %v167 = vmax.bf16 %v55, %v57
  %v168 = vmax.bf16 %v58, %v60
  %v169 = vmax.bf16 %v59, %v61
  %v170 = vmax.bf16 %v62, %v64
  %v171 = vmax.bf16 %v63, %v65
  %v172 = vmax.bf16 %v66, %v68
  %v173 = vmax.bf16 %v67, %v69
  %v174 = vmax.bf16 %v70, %v72
  %v175 = vmax.bf16 %v71, %v73
  %v176 = vmax.bf16 %v74, %v76
  %v177 = vmax.bf16 %v75, %v77
  %v178 = vmax.bf16 %v80, %v82
  %v179 = vmax.bf16 %v81, %v83
  %v180 = vmax.bf16 %v84, %v86
  %v181 = vmax.bf16 %v85, %v87
  %v182 = vmax.bf16 %v88, %v90
  %v183 = vmax.bf16 %v89, %v91
  %v184 = vmax.bf16 %v92, %v94
  %v185 = vmax.bf16 %v93, %v95
  %v186 = vmax.bf16 %v96, %v98
  %v187 = vmax.bf16 %v97, %v99
  %v188 = vmax.bf16 %v100, %v102
  %v189 = vmax.bf16 %v101, %v103
  %v190 = vmax.bf16 %v104, %v106
  %v191 = vmax.bf16 %v105, %v107
  %v192 = vmax.bf16 %v108, %v110
  %v193 = vmax.bf16 %v109, %v111
  %v194 = vmax.bf16 %v112, %v114
  %v195 = vmax.bf16 %v113, %v115
  %v196 = vmax.bf16 %v116, %v118
  %v197 = vmax.bf16 %v117, %v119
  %v198 = vmax.bf16 %v120, %v122
  %v199 = vmax.bf16 %v121, %v123
  %v200 = vmax.bf16 %v124, %v126
  %v201 = vmax.bf16 %v125, %v127
  %v202 = vmax.bf16 %v128, %v130
  %v203 = vmax.bf16 %v129, %v131
  %v204 = vmax.bf16 %v132, %v134
  %v205 = vmax.bf16 %v133, %v135
  %v206 = vmax.bf16 %v136, %v138
  %v207 = vmax.bf16 %v137, %v139
  %v208 = vmax.bf16 %v140, %v142
  %v209 = vmax.bf16 %v141, %v143
  %v210 = vmax.bf16 %v146, %v18
  %v211 = vmax.bf16 %v147, %v19
  %v212 = vmax.bf16 %v148, %v22
  %v213 = vmax.bf16 %v149, %v23
  %v214 = vmax.bf16 %v150, %v26
  %v215 = vmax.bf16 %v151, %v27
  %v216 = vmax.bf16 %v152, %v30
  %v217 = vmax.bf16 %v153, %v31
  %v218 = vmax.bf16 %v154, %v34
  %v219 = vmax.bf16 %v155, %v35
  %v220 = vmax.bf16 %v156, %v38
  %v221 = vmax.bf16 %v157, %v39
  %v222 = vmax.bf16 %v158, %v42
  %v223 = vmax.bf16 %v159, %v43
  %v224 = vmax.bf16 %v160, %v46
  %v225 = vmax.bf16 %v161, %v47
  %v226 = vmax.bf16 %v162, %v50
  %v227 = vmax.bf16 %v163, %v51
  %v228 = vmax.bf16 %v164, %v54
  %v229 = vmax.bf16 %v165, %v55
  %v230 = vmax.bf16 %v166, %v58
  %v231 = vmax.bf16 %v167, %v59
  %v232 = vmax.bf16 %v168, %v62
  %v233 = vmax.bf16 %v169, %v63
  %v234 = vmax.bf16 %v170, %v66
  %v235 = vmax.bf16 %v171, %v67
  %v236 = vmax.bf16 %v172, %v70
  %v237 = vmax.bf16 %v173, %v71
  %v238 = vmax.bf16 %v174, %v74
  %v239 = vmax.bf16 %v175, %v75
  %v240 = vmax.bf16 %v176, %v78
  %v241 = vmax.bf16 %v177, %v79
  %v242 = vmax.bf16 %v178, %v84
  %v243 = vmax.bf16 %v179, %v85
  %v244 = vmax.bf16 %v180, %v88
  %v245 = vmax.bf16 %v181, %v89
  %v246 = vmax.bf16 %v182, %v92
  %v247 = vmax.bf16 %v183, %v93
  %v248 = vmax.bf16 %v184, %v96
  %v249 = vmax.bf16 %v185, %v97
  %v250 = vmax.bf16 %v186, %v100
  %v251 = vmax.bf16 %v187, %v101
  %v252 = vmax.bf16 %v188, %v104
  %v253 = vmax.bf16 %v189, %v105
  %v254 = vmax.bf16 %v190, %v108
  %v255 = vmax.bf16 %v191, %v109
  %v256 = vmax.bf16 %v192, %v112
  %v257 = vmax.bf16 %v193, %v113
  %v258 = vmax.bf16 %v194, %v116
  %v259 = vmax.bf16 %v195, %v117
  %v260 = vmax.bf16 %v196, %v120
  %v261 = vmax.bf16 %v197, %v121
  %v262 = vmax.bf16 %v198, %v124
  %v263 = vmax.bf16 %v199, %v125
  %v264 = vmax.bf16 %v200, %v128
  %v265 = vmax.bf16 %v201, %v129
  %v266 = vmax.bf16 %v202, %v132
  %v267 = vmax.bf16 %v203, %v133
  %v268 = vmax.bf16 %v204, %v136
  %v269 = vmax.bf16 %v205, %v137
  %v270 = vmax.bf16 %v206, %v140
  %v271 = vmax.bf16 %v207, %v141
  %v272 = vmax.bf16 %v208, %v144
  %v273 = vmax.bf16 %v209, %v145
  %v274 = vld [vmem:[%s1] sm:$0xf]
  %v275 = vld [vmem:[%s1 + $0x4] sm:$0xf]
  %v276 = vld [vmem:[%s1 + $0x8] sm:$0xf]
  %v277 = vld [vmem:[%s1 + $0xc] sm:$0xf]
  %v278 = vld [vmem:[%s1 + $0x10] sm:$0xf]
  %v279 = vld [vmem:[%s1 + $0x14] sm:$0xf]
  %v280 = vld [vmem:[%s1 + $0x18] sm:$0xf]
  %v281 = vld [vmem:[%s1 + $0x1c] sm:$0xf]
  %v282 = vld [vmem:[%s1 + $0x20] sm:$0xf]
  %v283 = vld [vmem:[%s1 + $0x24] sm:$0xf]
  %v284 = vld [vmem:[%s1 + $0x28] sm:$0xf]
  %v285 = vld [vmem:[%s1 + $0x2c] sm:$0xf]
  %v286 = vld [vmem:[%s1 + $0x30] sm:$0xf]
  %v287 = vld [vmem:[%s1 + $0x34] sm:$0xf]
  %v288 = vld [vmem:[%s1 + $0x38] sm:$0xf]
  %v289 = vld [vmem:[%s1 + $0x3c] sm:$0xf]
  %v290 = vld [vmem:[%s1 + $0x40] sm:$0xf]
  %v291 = vld [vmem:[%s1 + $0x44] sm:$0xf]
  %v292 = vld [vmem:[%s1 + $0x48] sm:$0xf]
  %v293 = vld [vmem:[%s1 + $0x4c] sm:$0xf]
  %v294 = vld [vmem:[%s1 + $0x50] sm:$0xf]
  %v295 = vld [vmem:[%s1 + $0x54] sm:$0xf]
  %v296 = vld [vmem:[%s1 + $0x58] sm:$0xf]
  %v297 = vld [vmem:[%s1 + $0x5c] sm:$0xf]
  %v298 = vld [vmem:[%s1 + $0x60] sm:$0xf]
  %v299 = vld [vmem:[%s1 + $0x64] sm:$0xf]
  %v300 = vld [vmem:[%s1 + $0x68] sm:$0xf]
  %v301 = vld [vmem:[%s1 + $0x6c] sm:$0xf]
  %v302 = vld [vmem:[%s1 + $0x70] sm:$0xf]
  %v303 = vld [vmem:[%s1 + $0x74] sm:$0xf]
  %v304 = vld [vmem:[%s1 + $0x78] sm:$0xf]
  %v305 = vld [vmem:[%s1 + $0x7c] sm:$0xf]
  %v306 = vld [vmem:[%s1 + $0x80] sm:$0xf]
  %v307 = vld [vmem:[%s1 + $0x84] sm:$0xf]
  %v308 = vld [vmem:[%s1 + $0x88] sm:$0xf]
  %v309 = vld [vmem:[%s1 + $0x8c] sm:$0xf]
  %v310 = vld [vmem:[%s1 + $0x90] sm:$0xf]
  %v311 = vld [vmem:[%s1 + $0x94] sm:$0xf]
  %v312 = vld [vmem:[%s1 + $0x98] sm:$0xf]
  %v313 = vld [vmem:[%s1 + $0x9c] sm:$0xf]
  %v314 = vld [vmem:[%s1 + $0xa0] sm:$0xf]
  %v315 = vld [vmem:[%s1 + $0xa4] sm:$0xf]
  %v316 = vld [vmem:[%s1 + $0xa8] sm:$0xf]
  %v317 = vld [vmem:[%s1 + $0xac] sm:$0xf]
  %v318 = vld [vmem:[%s1 + $0xb0] sm:$0xf]
  %v319 = vld [vmem:[%s1 + $0xb4] sm:$0xf]
  %v320 = vld [vmem:[%s1 + $0xb8] sm:$0xf]
  %v321 = vld [vmem:[%s1 + $0xbc] sm:$0xf]
  %v322 = vld [vmem:[%s1 + $0xc0] sm:$0xf]
  %v323 = vld [vmem:[%s1 + $0xc4] sm:$0xf]
  %v324 = vld [vmem:[%s1 + $0xc8] sm:$0xf]
  %v325 = vld [vmem:[%s1 + $0xcc] sm:$0xf]
  %v326 = vld [vmem:[%s1 + $0xd0] sm:$0xf]
  %v327 = vld [vmem:[%s1 + $0xd4] sm:$0xf]
  %v328 = vld [vmem:[%s1 + $0xd8] sm:$0xf]
  %v329 = vld [vmem:[%s1 + $0xdc] sm:$0xf]
  %v330 = vld [vmem:[%s1 + $0xe0] sm:$0xf]
  %v331 = vld [vmem:[%s1 + $0xe4] sm:$0xf]
  %v332 = vld [vmem:[%s1 + $0xe8] sm:$0xf]
  %v333 = vld [vmem:[%s1 + $0xec] sm:$0xf]
  %v334 = vld [vmem:[%s1 + $0xf0] sm:$0xf]
  %v335 = vld [vmem:[%s1 + $0xf4] sm:$0xf]
  %v336 = vld [vmem:[%s1 + $0xf8] sm:$0xf]
  %v337 = vld [vmem:[%s1 + $0xfc] sm:$0xf]
  %v338 = vld [vmem:[%s1 + $0x100] sm:$0xf]
  %v339 = vld [vmem:[%s1 + $0x104] sm:$0xf]
  %v340 = vld [vmem:[%s1 + $0x110] sm:$0xf]
  %v341 = vld [vmem:[%s1 + $0x114] sm:$0xf]
  %v342 = vld [vmem:[%s1 + $0x118] sm:$0xf]
  %v343 = vld [vmem:[%s1 + $0x11c] sm:$0xf]
  %v344 = vld [vmem:[%s1 + $0x120] sm:$0xf]
  %v345 = vld [vmem:[%s1 + $0x124] sm:$0xf]
  %v346 = vld [vmem:[%s1 + $0x128] sm:$0xf]
  %v347 = vld [vmem:[%s1 + $0x12c] sm:$0xf]
  %v348 = vld [vmem:[%s1 + $0x130] sm:$0xf]
  %v349 = vld [vmem:[%s1 + $0x134] sm:$0xf]
  %v350 = vld [vmem:[%s1 + $0x138] sm:$0xf]
  %v351 = vld [vmem:[%s1 + $0x13c] sm:$0xf]
  %v352 = vld [vmem:[%s1 + $0x140] sm:$0xf]
  %v353 = vld [vmem:[%s1 + $0x144] sm:$0xf]
  %v354 = vld [vmem:[%s1 + $0x148] sm:$0xf]
  %v355 = vld [vmem:[%s1 + $0x14c] sm:$0xf]
  %v356 = vld [vmem:[%s1 + $0x150] sm:$0xf]
  %v357 = vld [vmem:[%s1 + $0x154] sm:$0xf]
  %v358 = vld [vmem:[%s1 + $0x158] sm:$0xf]
  %v359 = vld [vmem:[%s1 + $0x15c] sm:$0xf]
  %v360 = vld [vmem:[%s1 + $0x160] sm:$0xf]
  %v361 = vld [vmem:[%s1 + $0x164] sm:$0xf]
  %v362 = vld [vmem:[%s1 + $0x168] sm:$0xf]
  %v363 = vld [vmem:[%s1 + $0x16c] sm:$0xf]
  %v364 = vld [vmem:[%s1 + $0x170] sm:$0xf]
  %v365 = vld [vmem:[%s1 + $0x174] sm:$0xf]
  %v366 = vld [vmem:[%s1 + $0x178] sm:$0xf]
  %v367 = vld [vmem:[%s1 + $0x17c] sm:$0xf]
  %v368 = vld [vmem:[%s1 + $0x180] sm:$0xf]
  %v369 = vld [vmem:[%s1 + $0x184] sm:$0xf]
  %v370 = vld [vmem:[%s1 + $0x188] sm:$0xf]
  %v371 = vld [vmem:[%s1 + $0x18c] sm:$0xf]
  %v372 = vld [vmem:[%s1 + $0x190] sm:$0xf]
  %v373 = vld [vmem:[%s1 + $0x194] sm:$0xf]
  %v374 = vld [vmem:[%s1 + $0x198] sm:$0xf]
  %v375 = vld [vmem:[%s1 + $0x19c] sm:$0xf]
  %v376 = vld [vmem:[%s1 + $0x1a0] sm:$0xf]
  %v377 = vld [vmem:[%s1 + $0x1a4] sm:$0xf]
  %v378 = vld [vmem:[%s1 + $0x1a8] sm:$0xf]
  %v379 = vld [vmem:[%s1 + $0x1ac] sm:$0xf]
  %v380 = vld [vmem:[%s1 + $0x1b0] sm:$0xf]
  %v381 = vld [vmem:[%s1 + $0x1b4] sm:$0xf]
  %v382 = vld [vmem:[%s1 + $0x1b8] sm:$0xf]
  %v383 = vld [vmem:[%s1 + $0x1bc] sm:$0xf]
  %v384 = vld [vmem:[%s1 + $0x1c0] sm:$0xf]
  %v385 = vld [vmem:[%s1 + $0x1c4] sm:$0xf]
  %v386 = vld [vmem:[%s1 + $0x1c8] sm:$0xf]
  %v387 = vld [vmem:[%s1 + $0x1cc] sm:$0xf]
  %v388 = vld [vmem:[%s1 + $0x1d0] sm:$0xf]
  %v389 = vld [vmem:[%s1 + $0x1d4] sm:$0xf]
  %v390 = vld [vmem:[%s1 + $0x1d8] sm:$0xf]
  %v391 = vld [vmem:[%s1 + $0x1dc] sm:$0xf]
  %v392 = vld [vmem:[%s1 + $0x1e0] sm:$0xf]
  %v393 = vld [vmem:[%s1 + $0x1e4] sm:$0xf]
  %v394 = vld [vmem:[%s1 + $0x1e8] sm:$0xf]
  %v395 = vld [vmem:[%s1 + $0x1ec] sm:$0xf]
  %v396 = vld [vmem:[%s1 + $0x1f0] sm:$0xf]
  %v397 = vld [vmem:[%s1 + $0x1f4] sm:$0xf]
  %v398 = vld [vmem:[%s1 + $0x1f8] sm:$0xf]
  %v399 = vld [vmem:[%s1 + $0x1fc] sm:$0xf]
  %v400 = vld [vmem:[%s1 + $0x200] sm:$0xf]
  %v401 = vld [vmem:[%s1 + $0x204] sm:$0xf]
  %v402 = vld [vmem:[%s1 + $0x208] sm:$0xf]
  %v403 = vld [vmem:[%s1 + $0x20c] sm:$0xf]
  %v404 = vld [vmem:[%s1 + $0x210] sm:$0xf]
  %v405 = vld [vmem:[%s1 + $0x214] sm:$0xf]
  %v406 = vmax.bf16 %v274, %v276
  %v407 = vmax.bf16 %v275, %v277
  %v408 = vmax.bf16 %v278, %v280
  %v409 = vmax.bf16 %v279, %v281
  %v410 = vmax.bf16 %v282, %v284
  %v411 = vmax.bf16 %v283, %v285
  %v412 = vmax.bf16 %v286, %v288
  %v413 = vmax.bf16 %v287, %v289
  %v414 = vmax.bf16 %v290, %v292
  %v415 = vmax.bf16 %v291, %v293
  %v416 = vmax.bf16 %v294, %v296
  %v417 = vmax.bf16 %v295, %v297
  %v418 = vmax.bf16 %v298, %v300
  %v419 = vmax.bf16 %v299, %v301
  %v420 = vmax.bf16 %v302, %v304
  %v421 = vmax.bf16 %v303, %v305
  %v422 = vmax.bf16 %v306, %v308
  %v423 = vmax.bf16 %v307, %v309
  %v424 = vmax.bf16 %v310, %v312
  %v425 = vmax.bf16 %v311, %v313
  %v426 = vmax.bf16 %v314, %v316
  %v427 = vmax.bf16 %v315, %v317
  %v428 = vmax.bf16 %v318, %v320
  %v429 = vmax.bf16 %v319, %v321
  %v430 = vmax.bf16 %v322, %v324
  %v431 = vmax.bf16 %v323, %v325
  %v432 = vmax.bf16 %v326, %v328
  %v433 = vmax.bf16 %v327, %v329
  %v434 = vmax.bf16 %v330, %v332
  %v435 = vmax.bf16 %v331, %v333
  %v436 = vmax.bf16 %v334, %v336
  %v437 = vmax.bf16 %v335, %v337
  %v438 = vmax.bf16 %v340, %v342
  %v439 = vmax.bf16 %v341, %v343
  %v440 = vmax.bf16 %v344, %v346
  %v441 = vmax.bf16 %v345, %v347
  %v442 = vmax.bf16 %v348, %v350
  %v443 = vmax.bf16 %v349, %v351
  %v444 = vmax.bf16 %v352, %v354
  %v445 = vmax.bf16 %v353, %v355
  %v446 = vmax.bf16 %v356, %v358
  %v447 = vmax.bf16 %v357, %v359
  %v448 = vmax.bf16 %v360, %v362
  %v449 = vmax.bf16 %v361, %v363
  %v450 = vmax.bf16 %v364, %v366
  %v451 = vmax.bf16 %v365, %v367
  %v452 = vmax.bf16 %v368, %v370
  %v453 = vmax.bf16 %v369, %v371
  %v454 = vmax.bf16 %v372, %v374
  %v455 = vmax.bf16 %v373, %v375
  %v456 = vmax.bf16 %v376, %v378
  %v457 = vmax.bf16 %v377, %v379
  %v458 = vmax.bf16 %v380, %v382
  %v459 = vmax.bf16 %v381, %v383
  %v460 = vmax.bf16 %v384, %v386
  %v461 = vmax.bf16 %v385, %v387
  %v462 = vmax.bf16 %v388, %v390
  %v463 = vmax.bf16 %v389, %v391
  %v464 = vmax.bf16 %v392, %v394
  %v465 = vmax.bf16 %v393, %v395
  %v466 = vmax.bf16 %v396, %v398
  %v467 = vmax.bf16 %v397, %v399
  %v468 = vmax.bf16 %v400, %v402
  %v469 = vmax.bf16 %v401, %v403
  %v470 = vmax.bf16 %v406, %v278
  %v471 = vmax.bf16 %v407, %v279
  %v472 = vmax.bf16 %v408, %v282
  %v473 = vmax.bf16 %v409, %v283
  %v474 = vmax.bf16 %v410, %v286
  %v475 = vmax.bf16 %v411, %v287
  %v476 = vmax.bf16 %v412, %v290
  %v477 = vmax.bf16 %v413, %v291
  %v478 = vmax.bf16 %v414, %v294
  %v479 = vmax.bf16 %v415, %v295
  %v480 = vmax.bf16 %v416, %v298
  %v481 = vmax.bf16 %v417, %v299
  %v482 = vmax.bf16 %v418, %v302
  %v483 = vmax.bf16 %v419, %v303
  %v484 = vmax.bf16 %v420, %v306
  %v485 = vmax.bf16 %v421, %v307
  %v486 = vmax.bf16 %v422, %v310
  %v487 = vmax.bf16 %v423, %v311
  %v488 = vmax.bf16 %v424, %v314
  %v489 = vmax.bf16 %v425, %v315
  %v490 = vmax.bf16 %v426, %v318
  %v491 = vmax.bf16 %v427, %v319
  %v492 = vmax.bf16 %v428, %v322
  %v493 = vmax.bf16 %v429, %v323
  %v494 = vmax.bf16 %v430, %v326
  %v495 = vmax.bf16 %v431, %v327
  %v496 = vmax.bf16 %v432, %v330
  %v497 = vmax.bf16 %v433, %v331
  %v498 = vmax.bf16 %v434, %v334
  %v499 = vmax.bf16 %v435, %v335
  %v500 = vmax.bf16 %v436, %v338
  %v501 = vmax.bf16 %v437, %v339
  %v502 = vmax.bf16 %v438, %v344
  %v503 = vmax.bf16 %v439, %v345
  %v504 = vmax.bf16 %v440, %v348
  %v505 = vmax.bf16 %v441, %v349
  %v506 = vmax.bf16 %v442, %v352
  %v507 = vmax.bf16 %v443, %v353
  %v508 = vmax.bf16 %v444, %v356
  %v509 = vmax.bf16 %v445, %v357
  %v510 = vmax.bf16 %v446, %v360
  %v511 = vmax.bf16 %v447, %v361
  %v512 = vmax.bf16 %v448, %v364
  %v513 = vmax.bf16 %v449, %v365
  %v514 = vmax.bf16 %v450, %v368
  %v515 = vmax.bf16 %v451, %v369
  %v516 = vmax.bf16 %v452, %v372
  %v517 = vmax.bf16 %v453, %v373
  %v518 = vmax.bf16 %v454, %v376
  %v519 = vmax.bf16 %v455, %v377
  %v520 = vmax.bf16 %v456, %v380
  %v521 = vmax.bf16 %v457, %v381
  %v522 = vmax.bf16 %v458, %v384
  %v523 = vmax.bf16 %v459, %v385
  %v524 = vmax.bf16 %v460, %v388
  %v525 = vmax.bf16 %v461, %v389
  %v526 = vmax.bf16 %v462, %v392
  %v527 = vmax.bf16 %v463, %v393
  %v528 = vmax.bf16 %v464, %v396
  %v529 = vmax.bf16 %v465, %v397
  %v530 = vmax.bf16 %v466, %v400
  %v531 = vmax.bf16 %v467, %v401
  %v532 = vmax.bf16 %v468, %v404
  %v533 = vmax.bf16 %v469, %v405
  %v534 = vmax.bf16 %v210, %v470
  %v535 = vmax.bf16 %v211, %v471
  %v536 = vmax.bf16 %v212, %v472
  %v537 = vmax.bf16 %v213, %v473
  %v538 = vmax.bf16 %v214, %v474
  %v539 = vmax.bf16 %v215, %v475
  %v540 = vmax.bf16 %v216, %v476
  %v541 = vmax.bf16 %v217, %v477
  %v542 = vmax.bf16 %v218, %v478
  %v543 = vmax.bf16 %v219, %v479
  %v544 = vmax.bf16 %v220, %v480
  %v545 = vmax.bf16 %v221, %v481
  %v546 = vmax.bf16 %v222, %v482
  %v547 = vmax.bf16 %v223, %v483
  %v548 = vmax.bf16 %v224, %v484
  %v549 = vmax.bf16 %v225, %v485
  %v550 = vmax.bf16 %v226, %v486
  %v551 = vmax.bf16 %v227, %v487
  %v552 = vmax.bf16 %v228, %v488
  %v553 = vmax.bf16 %v229, %v489
  %v554 = vmax.bf16 %v230, %v490
  %v555 = vmax.bf16 %v231, %v491
  %v556 = vmax.bf16 %v232, %v492
  %v557 = vmax.bf16 %v233, %v493
  %v558 = vmax.bf16 %v234, %v494
  %v559 = vmax.bf16 %v235, %v495
  %v560 = vmax.bf16 %v236, %v496
  %v561 = vmax.bf16 %v237, %v497
  %v562 = vmax.bf16 %v238, %v498
  %v563 = vmax.bf16 %v239, %v499
  %v564 = vmax.bf16 %v240, %v500
  %v565 = vmax.bf16 %v241, %v501
  %v566 = vmax.bf16 %v242, %v502
  %v567 = vmax.bf16 %v243, %v503
  %v568 = vmax.bf16 %v244, %v504
  %v569 = vmax.bf16 %v245, %v505
  %v570 = vmax.bf16 %v246, %v506
  %v571 = vmax.bf16 %v247, %v507
  %v572 = vmax.bf16 %v248, %v508
  %v573 = vmax.bf16 %v249, %v509
  %v574 = vmax.bf16 %v250, %v510
  %v575 = vmax.bf16 %v251, %v511
  %v576 = vmax.bf16 %v252, %v512
  %v577 = vmax.bf16 %v253, %v513
  %v578 = vmax.bf16 %v254, %v514
  %v579 = vmax.bf16 %v255, %v515
  %v580 = vmax.bf16 %v256, %v516
  %v581 = vmax.bf16 %v257, %v517
  %v582 = vmax.bf16 %v258, %v518
  %v583 = vmax.bf16 %v259, %v519
  %v584 = vmax.bf16 %v260, %v520
  %v585 = vmax.bf16 %v261, %v521
  %v586 = vmax.bf16 %v262, %v522
  %v587 = vmax.bf16 %v263, %v523
  %v588 = vmax.bf16 %v264, %v524
  %v589 = vmax.bf16 %v265, %v525
  %v590 = vmax.bf16 %v266, %v526
  %v591 = vmax.bf16 %v267, %v527
  %v592 = vmax.bf16 %v268, %v528
  %v593 = vmax.bf16 %v269, %v529
  %v594 = vmax.bf16 %v270, %v530
  %v595 = vmax.bf16 %v271, %v531
  %v596 = vmax.bf16 %v272, %v532
  %v597 = vmax.bf16 %v273, %v533
  %v598 = vld [vmem:[%s2] sm:$0xf]
  %v599 = vld [vmem:[%s2 + $0x4] sm:$0xf]
  %v600 = vld [vmem:[%s2 + $0x8] sm:$0xf]
  %v601 = vld [vmem:[%s2 + $0xc] sm:$0xf]
  %v602 = vld [vmem:[%s2 + $0x10] sm:$0xf]
  %v603 = vld [vmem:[%s2 + $0x14] sm:$0xf]
  %v604 = vld [vmem:[%s2 + $0x18] sm:$0xf]
  %v605 = vld [vmem:[%s2 + $0x1c] sm:$0xf]
  %v606 = vld [vmem:[%s2 + $0x20] sm:$0xf]
  %v607 = vld [vmem:[%s2 + $0x24] sm:$0xf]
  %v608 = vld [vmem:[%s2 + $0x28] sm:$0xf]
  %v609 = vld [vmem:[%s2 + $0x2c] sm:$0xf]
  %v610 = vld [vmem:[%s2 + $0x30] sm:$0xf]
  %v611 = vld [vmem:[%s2 + $0x34] sm:$0xf]
  %v612 = vld [vmem:[%s2 + $0x38] sm:$0xf]
  %v613 = vld [vmem:[%s2 + $0x3c] sm:$0xf]
  %v614 = vld [vmem:[%s2 + $0x40] sm:$0xf]
  %v615 = vld [vmem:[%s2 + $0x44] sm:$0xf]
  %v616 = vld [vmem:[%s2 + $0x48] sm:$0xf]
  %v617 = vld [vmem:[%s2 + $0x4c] sm:$0xf]
  %v618 = vld [vmem:[%s2 + $0x50] sm:$0xf]
  %v619 = vld [vmem:[%s2 + $0x54] sm:$0xf]
  %v620 = vld [vmem:[%s2 + $0x58] sm:$0xf]
  %v621 = vld [vmem:[%s2 + $0x5c] sm:$0xf]
  %v622 = vld [vmem:[%s2 + $0x60] sm:$0xf]
  %v623 = vld [vmem:[%s2 + $0x64] sm:$0xf]
  %v624 = vld [vmem:[%s2 + $0x68] sm:$0xf]
  %v625 = vld [vmem:[%s2 + $0x6c] sm:$0xf]
  %v626 = vld [vmem:[%s2 + $0x70] sm:$0xf]
  %v627 = vld [vmem:[%s2 + $0x74] sm:$0xf]
  %v628 = vld [vmem:[%s2 + $0x78] sm:$0xf]
  %v629 = vld [vmem:[%s2 + $0x7c] sm:$0xf]
  %v630 = vld [vmem:[%s2 + $0x80] sm:$0xf]
  %v631 = vld [vmem:[%s2 + $0x84] sm:$0xf]
  %v632 = vld [vmem:[%s2 + $0x88] sm:$0xf]
  %v633 = vld [vmem:[%s2 + $0x8c] sm:$0xf]
  %v634 = vld [vmem:[%s2 + $0x90] sm:$0xf]
  %v635 = vld [vmem:[%s2 + $0x94] sm:$0xf]
  %v636 = vld [vmem:[%s2 + $0x98] sm:$0xf]
  %v637 = vld [vmem:[%s2 + $0x9c] sm:$0xf]
  %v638 = vld [vmem:[%s2 + $0xa0] sm:$0xf]
  %v639 = vld [vmem:[%s2 + $0xa4] sm:$0xf]
  %v640 = vld [vmem:[%s2 + $0xa8] sm:$0xf]
  %v641 = vld [vmem:[%s2 + $0xac] sm:$0xf]
  %v642 = vld [vmem:[%s2 + $0xb0] sm:$0xf]
  %v643 = vld [vmem:[%s2 + $0xb4] sm:$0xf]
  %v644 = vld [vmem:[%s2 + $0xb8] sm:$0xf]
  %v645 = vld [vmem:[%s2 + $0xbc] sm:$0xf]
  %v646 = vld [vmem:[%s2 + $0xc0] sm:$0xf]
  %v647 = vld [vmem:[%s2 + $0xc4] sm:$0xf]
  %v648 = vld [vmem:[%s2 + $0xc8] sm:$0xf]
  %v649 = vld [vmem:[%s2 + $0xcc] sm:$0xf]
  %v650 = vld [vmem:[%s2 + $0xd0] sm:$0xf]
  %v651 = vld [vmem:[%s2 + $0xd4] sm:$0xf]
  %v652 = vld [vmem:[%s2 + $0xd8] sm:$0xf]
  %v653 = vld [vmem:[%s2 + $0xdc] sm:$0xf]
  %v654 = vld [vmem:[%s2 + $0xe0] sm:$0xf]
  %v655 = vld [vmem:[%s2 + $0xe4] sm:$0xf]
  %v656 = vld [vmem:[%s2 + $0xe8] sm:$0xf]
  %v657 = vld [vmem:[%s2 + $0xec] sm:$0xf]
  %v658 = vld [vmem:[%s2 + $0xf0] sm:$0xf]
  %v659 = vld [vmem:[%s2 + $0xf4] sm:$0xf]
  %v660 = vld [vmem:[%s2 + $0xf8] sm:$0xf]
  %v661 = vld [vmem:[%s2 + $0xfc] sm:$0xf]
  %v662 = vld [vmem:[%s2 + $0x100] sm:$0xf]
  %v663 = vld [vmem:[%s2 + $0x104] sm:$0xf]
  %v664 = vld [vmem:[%s2 + $0x110] sm:$0xf]
  %v665 = vld [vmem:[%s2 + $0x114] sm:$0xf]
  %v666 = vld [vmem:[%s2 + $0x118] sm:$0xf]
  %v667 = vld [vmem:[%s2 + $0x11c] sm:$0xf]
  %v668 = vld [vmem:[%s2 + $0x120] sm:$0xf]
  %v669 = vld [vmem:[%s2 + $0x124] sm:$0xf]
  %v670 = vld [vmem:[%s2 + $0x128] sm:$0xf]
  %v671 = vld [vmem:[%s2 + $0x12c] sm:$0xf]
  %v672 = vld [vmem:[%s2 + $0x130] sm:$0xf]
  %v673 = vld [vmem:[%s2 + $0x134] sm:$0xf]
  %v674 = vld [vmem:[%s2 + $0x138] sm:$0xf]
  %v675 = vld [vmem:[%s2 + $0x13c] sm:$0xf]
  %v676 = vld [vmem:[%s2 + $0x140] sm:$0xf]
  %v677 = vld [vmem:[%s2 + $0x144] sm:$0xf]
  %v678 = vld [vmem:[%s2 + $0x148] sm:$0xf]
  %v679 = vld [vmem:[%s2 + $0x14c] sm:$0xf]
  %v680 = vld [vmem:[%s2 + $0x150] sm:$0xf]
  %v681 = vld [vmem:[%s2 + $0x154] sm:$0xf]
  %v682 = vld [vmem:[%s2 + $0x158] sm:$0xf]
  %v683 = vld [vmem:[%s2 + $0x15c] sm:$0xf]
  %v684 = vld [vmem:[%s2 + $0x160] sm:$0xf]
  %v685 = vld [vmem:[%s2 + $0x164] sm:$0xf]
  %v686 = vld [vmem:[%s2 + $0x168] sm:$0xf]
  %v687 = vld [vmem:[%s2 + $0x16c] sm:$0xf]
  %v688 = vld [vmem:[%s2 + $0x170] sm:$0xf]
  %v689 = vld [vmem:[%s2 + $0x174] sm:$0xf]
  %v690 = vld [vmem:[%s2 + $0x178] sm:$0xf]
  %v691 = vld [vmem:[%s2 + $0x17c] sm:$0xf]
  %v692 = vld [vmem:[%s2 + $0x180] sm:$0xf]
  %v693 = vld [vmem:[%s2 + $0x184] sm:$0xf]
  %v694 = vld [vmem:[%s2 + $0x188] sm:$0xf]
  %v695 = vld [vmem:[%s2 + $0x18c] sm:$0xf]
  %v696 = vld [vmem:[%s2 + $0x190] sm:$0xf]
  %v697 = vld [vmem:[%s2 + $0x194] sm:$0xf]
  %v698 = vld [vmem:[%s2 + $0x198] sm:$0xf]
  %v699 = vld [vmem:[%s2 + $0x19c] sm:$0xf]
  %v700 = vld [vmem:[%s2 + $0x1a0] sm:$0xf]
  %v701 = vld [vmem:[%s2 + $0x1a4] sm:$0xf]
  %v702 = vld [vmem:[%s2 + $0x1a8] sm:$0xf]
  %v703 = vld [vmem:[%s2 + $0x1ac] sm:$0xf]
  %v704 = vld [vmem:[%s2 + $0x1b0] sm:$0xf]
  %v705 = vld [vmem:[%s2 + $0x1b4] sm:$0xf]
  %v706 = vld [vmem:[%s2 + $0x1b8] sm:$0xf]
  %v707 = vld [vmem:[%s2 + $0x1bc] sm:$0xf]
  %v708 = vld [vmem:[%s2 + $0x1c0] sm:$0xf]
  %v709 = vld [vmem:[%s2 + $0x1c4] sm:$0xf]
  %v710 = vld [vmem:[%s2 + $0x1c8] sm:$0xf]
  %v711 = vld [vmem:[%s2 + $0x1cc] sm:$0xf]
  %v712 = vld [vmem:[%s2 + $0x1d0] sm:$0xf]
  %v713 = vld [vmem:[%s2 + $0x1d4] sm:$0xf]
  %v714 = vld [vmem:[%s2 + $0x1d8] sm:$0xf]
  %v715 = vld [vmem:[%s2 + $0x1dc] sm:$0xf]
  %v716 = vld [vmem:[%s2 + $0x1e0] sm:$0xf]
  %v717 = vld [vmem:[%s2 + $0x1e4] sm:$0xf]
  %v718 = vld [vmem:[%s2 + $0x1e8] sm:$0xf]
  %v719 = vld [vmem:[%s2 + $0x1ec] sm:$0xf]
  %v720 = vld [vmem:[%s2 + $0x1f0] sm:$0xf]
  %v721 = vld [vmem:[%s2 + $0x1f4] sm:$0xf]
  %v722 = vld [vmem:[%s2 + $0x1f8] sm:$0xf]
  %v723 = vld [vmem:[%s2 + $0x1fc] sm:$0xf]
  %v724 = vld [vmem:[%s2 + $0x200] sm:$0xf]
  %v725 = vld [vmem:[%s2 + $0x204] sm:$0xf]
  %v726 = vld [vmem:[%s2 + $0x208] sm:$0xf]
  %v727 = vld [vmem:[%s2 + $0x20c] sm:$0xf]
  %v728 = vld [vmem:[%s2 + $0x210] sm:$0xf]
  %v729 = vld [vmem:[%s2 + $0x214] sm:$0xf]
  %v730 = vmax.bf16 %v598, %v600
  %v731 = vmax.bf16 %v599, %v601
  %v732 = vmax.bf16 %v602, %v604
  %v733 = vmax.bf16 %v603, %v605
  %v734 = vmax.bf16 %v606, %v608
  %v735 = vmax.bf16 %v607, %v609
  %v736 = vmax.bf16 %v610, %v612
  %v737 = vmax.bf16 %v611, %v613
  %v738 = vmax.bf16 %v614, %v616
  %v739 = vmax.bf16 %v615, %v617
  %v740 = vmax.bf16 %v618, %v620
  %v741 = vmax.bf16 %v619, %v621
  %v742 = vmax.bf16 %v622, %v624
  %v743 = vmax.bf16 %v623, %v625
  %v744 = vmax.bf16 %v626, %v628
  %v745 = vmax.bf16 %v627, %v629
  %v746 = vmax.bf16 %v630, %v632
  %v747 = vmax.bf16 %v631, %v633
  %v748 = vmax.bf16 %v634, %v636
  %v749 = vmax.bf16 %v635, %v637
  %v750 = vmax.bf16 %v638, %v640
  %v751 = vmax.bf16 %v639, %v641
  %v752 = vmax.bf16 %v642, %v644
  %v753 = vmax.bf16 %v643, %v645
  %v754 = vmax.bf16 %v646, %v648
  %v755 = vmax.bf16 %v647, %v649
  %v756 = vmax.bf16 %v650, %v652
  %v757 = vmax.bf16 %v651, %v653
  %v758 = vmax.bf16 %v654, %v656
  %v759 = vmax.bf16 %v655, %v657
  %v760 = vmax.bf16 %v658, %v660
  %v761 = vmax.bf16 %v659, %v661
  %v762 = vmax.bf16 %v664, %v666
  %v763 = vmax.bf16 %v665, %v667
  %v764 = vmax.bf16 %v668, %v670
  %v765 = vmax.bf16 %v669, %v671
  %v766 = vmax.bf16 %v672, %v674
  %v767 = vmax.bf16 %v673, %v675
  %v768 = vmax.bf16 %v676, %v678
  %v769 = vmax.bf16 %v677, %v679
  %v770 = vmax.bf16 %v680, %v682
  %v771 = vmax.bf16 %v681, %v683
  %v772 = vmax.bf16 %v684, %v686
  %v773 = vmax.bf16 %v685, %v687
  %v774 = vmax.bf16 %v688, %v690
  %v775 = vmax.bf16 %v689, %v691
  %v776 = vmax.bf16 %v692, %v694
  %v777 = vmax.bf16 %v693, %v695
  %v778 = vmax.bf16 %v696, %v698
  %v779 = vmax.bf16 %v697, %v699
  %v780 = vmax.bf16 %v700, %v702
  %v781 = vmax.bf16 %v701, %v703
  %v782 = vmax.bf16 %v704, %v706
  %v783 = vmax.bf16 %v705, %v707
  %v784 = vmax.bf16 %v708, %v710
  %v785 = vmax.bf16 %v709, %v711
  %v786 = vmax.bf16 %v712, %v714
  %v787 = vmax.bf16 %v713, %v715
  %v788 = vmax.bf16 %v716, %v718
  %v789 = vmax.bf16 %v717, %v719
  %v790 = vmax.bf16 %v720, %v722
  %v791 = vmax.bf16 %v721, %v723
  %v792 = vmax.bf16 %v724, %v726
  %v793 = vmax.bf16 %v725, %v727
  %v794 = vmax.bf16 %v730, %v602
  %v795 = vmax.bf16 %v731, %v603
  %v796 = vmax.bf16 %v732, %v606
  %v797 = vmax.bf16 %v733, %v607
  %v798 = vmax.bf16 %v734, %v610
  %v799 = vmax.bf16 %v735, %v611
  %v800 = vmax.bf16 %v736, %v614
  %v801 = vmax.bf16 %v737, %v615
  %v802 = vmax.bf16 %v738, %v618
  %v803 = vmax.bf16 %v739, %v619
  %v804 = vmax.bf16 %v740, %v622
  %v805 = vmax.bf16 %v741, %v623
  %v806 = vmax.bf16 %v742, %v626
  %v807 = vmax.bf16 %v743, %v627
  %v808 = vmax.bf16 %v744, %v630
  %v809 = vmax.bf16 %v745, %v631
  %v810 = vmax.bf16 %v746, %v634
  %v811 = vmax.bf16 %v747, %v635
  %v812 = vmax.bf16 %v748, %v638
  %v813 = vmax.bf16 %v749, %v639
  %v814 = vmax.bf16 %v750, %v642
  %v815 = vmax.bf16 %v751, %v643
  %v816 = vmax.bf16 %v752, %v646
  %v817 = vmax.bf16 %v753, %v647
  %v818 = vmax.bf16 %v754, %v650
  %v819 = vmax.bf16 %v755, %v651
  %v820 = vmax.bf16 %v756, %v654
  %v821 = vmax.bf16 %v757, %v655
  %v822 = vmax.bf16 %v758, %v658
  %v823 = vmax.bf16 %v759, %v659
  %v824 = vmax.bf16 %v760, %v662
  %v825 = vmax.bf16 %v761, %v663
  %v826 = vmax.bf16 %v762, %v668
  %v827 = vmax.bf16 %v763, %v669
  %v828 = vmax.bf16 %v764, %v672
  %v829 = vmax.bf16 %v765, %v673
  %v830 = vmax.bf16 %v766, %v676
  %v831 = vmax.bf16 %v767, %v677
  %v832 = vmax.bf16 %v768, %v680
  %v833 = vmax.bf16 %v769, %v681
  %v834 = vmax.bf16 %v770, %v684
  %v835 = vmax.bf16 %v771, %v685
  %v836 = vmax.bf16 %v772, %v688
  %v837 = vmax.bf16 %v773, %v689
  %v838 = vmax.bf16 %v774, %v692
  %v839 = vmax.bf16 %v775, %v693
  %v840 = vmax.bf16 %v776, %v696
  %v841 = vmax.bf16 %v777, %v697
  %v842 = vmax.bf16 %v778, %v700
  %v843 = vmax.bf16 %v779, %v701
  %v844 = vmax.bf16 %v780, %v704
  %v845 = vmax.bf16 %v781, %v705
  %v846 = vmax.bf16 %v782, %v708
  %v847 = vmax.bf16 %v783, %v709
  %v848 = vmax.bf16 %v784, %v712
  %v849 = vmax.bf16 %v785, %v713
  %v850 = vmax.bf16 %v786, %v716
  %v851 = vmax.bf16 %v787, %v717
  %v852 = vmax.bf16 %v788, %v720
  %v853 = vmax.bf16 %v789, %v721
  %v854 = vmax.bf16 %v790, %v724
  %v855 = vmax.bf16 %v791, %v725
  %v856 = vmax.bf16 %v792, %v728
  %v857 = vmax.bf16 %v793, %v729
  %v858 = vmax.bf16 %v534, %v794
  %v859 = vmax.bf16 %v535, %v795
  %v860 = vmax.bf16 %v536, %v796
  %v861 = vmax.bf16 %v537, %v797
  %v862 = vmax.bf16 %v538, %v798
  %v863 = vmax.bf16 %v539, %v799
  %v864 = vmax.bf16 %v540, %v800
  %v865 = vmax.bf16 %v541, %v801
  %v866 = vmax.bf16 %v542, %v802
  %v867 = vmax.bf16 %v543, %v803
  %v868 = vmax.bf16 %v544, %v804
  %v869 = vmax.bf16 %v545, %v805
  %v870 = vmax.bf16 %v546, %v806
  %v871 = vmax.bf16 %v547, %v807
  %v872 = vmax.bf16 %v548, %v808
  %v873 = vmax.bf16 %v549, %v809
  %v874 = vmax.bf16 %v550, %v810
  %v875 = vmax.bf16 %v551, %v811
  %v876 = vmax.bf16 %v552, %v812
  %v877 = vmax.bf16 %v553, %v813
  %v878 = vmax.bf16 %v554, %v814
  %v879 = vmax.bf16 %v555, %v815
  %v880 = vmax.bf16 %v556, %v816
  %v881 = vmax.bf16 %v557, %v817
  %v882 = vmax.bf16 %v558, %v818
  %v883 = vmax.bf16 %v559, %v819
  %v884 = vmax.bf16 %v560, %v820
  %v885 = vmax.bf16 %v561, %v821
  %v886 = vmax.bf16 %v562, %v822
  %v887 = vmax.bf16 %v563, %v823
  %v888 = vmax.bf16 %v564, %v824
  %v889 = vmax.bf16 %v565, %v825
  %v890 = vmax.bf16 %v566, %v826
  %v891 = vmax.bf16 %v567, %v827
  %v892 = vmax.bf16 %v568, %v828
  %v893 = vmax.bf16 %v569, %v829
  %v894 = vmax.bf16 %v570, %v830
  %v895 = vmax.bf16 %v571, %v831
  %v896 = vmax.bf16 %v572, %v832
  %v897 = vmax.bf16 %v573, %v833
  %v898 = vmax.bf16 %v574, %v834
  %v899 = vmax.bf16 %v575, %v835
  %v900 = vmax.bf16 %v576, %v836
  %v901 = vmax.bf16 %v577, %v837
  %v902 = vmax.bf16 %v578, %v838
  %v903 = vmax.bf16 %v579, %v839
  %v904 = vmax.bf16 %v580, %v840
  %v905 = vmax.bf16 %v581, %v841
  %v906 = vmax.bf16 %v582, %v842
  %v907 = vmax.bf16 %v583, %v843
  %v908 = vmax.bf16 %v584, %v844
  %v909 = vmax.bf16 %v585, %v845
  %v910 = vmax.bf16 %v586, %v846
  %v911 = vmax.bf16 %v587, %v847
  %v912 = vmax.bf16 %v588, %v848
  %v913 = vmax.bf16 %v589, %v849
  %v914 = vmax.bf16 %v590, %v850
  %v915 = vmax.bf16 %v591, %v851
  %v916 = vmax.bf16 %v592, %v852
  %v917 = vmax.bf16 %v593, %v853
  %v918 = vmax.bf16 %v594, %v854
  %v919 = vmax.bf16 %v595, %v855
  %v920 = vmax.bf16 %v596, %v856
  %v921 = vmax.bf16 %v597, %v857
  %922 = vst [vmem:[%s3] sm:$0xf] %v858
  %923 = vst [vmem:[%s3 + $0x4] sm:$0xf] %v859
  %924 = vst [vmem:[%s3 + $0x8] sm:$0xf] %v860
  %925 = vst [vmem:[%s3 + $0xc] sm:$0xf] %v861
  %926 = vst [vmem:[%s3 + $0x10] sm:$0xf] %v862
  %927 = vst [vmem:[%s3 + $0x14] sm:$0xf] %v863
  %928 = vst [vmem:[%s3 + $0x18] sm:$0xf] %v864
  %929 = vst [vmem:[%s3 + $0x1c] sm:$0xf] %v865
  %930 = vst [vmem:[%s3 + $0x20] sm:$0xf] %v866
  %931 = vst [vmem:[%s3 + $0x24] sm:$0xf] %v867
  %932 = vst [vmem:[%s3 + $0x28] sm:$0xf] %v868
  %933 = vst [vmem:[%s3 + $0x2c] sm:$0xf] %v869
  %934 = vst [vmem:[%s3 + $0x30] sm:$0xf] %v870
  %935 = vst [vmem:[%s3 + $0x34] sm:$0xf] %v871
  %936 = vst [vmem:[%s3 + $0x38] sm:$0xf] %v872
  %937 = vst [vmem:[%s3 + $0x3c] sm:$0xf] %v873
  %938 = vst [vmem:[%s3 + $0x40] sm:$0xf] %v874
  %939 = vst [vmem:[%s3 + $0x44] sm:$0xf] %v875
  %940 = vst [vmem:[%s3 + $0x48] sm:$0xf] %v876
  %941 = vst [vmem:[%s3 + $0x4c] sm:$0xf] %v877
  %942 = vst [vmem:[%s3 + $0x50] sm:$0xf] %v878
  %943 = vst [vmem:[%s3 + $0x54] sm:$0xf] %v879
  %944 = vst [vmem:[%s3 + $0x58] sm:$0xf] %v880
  %945 = vst [vmem:[%s3 + $0x5c] sm:$0xf] %v881
  %946 = vst [vmem:[%s3 + $0x60] sm:$0xf] %v882
  %947 = vst [vmem:[%s3 + $0x64] sm:$0xf] %v883
  %948 = vst [vmem:[%s3 + $0x68] sm:$0xf] %v884
  %949 = vst [vmem:[%s3 + $0x6c] sm:$0xf] %v885
  %950 = vst [vmem:[%s3 + $0x70] sm:$0xf] %v886
  %951 = vst [vmem:[%s3 + $0x74] sm:$0xf] %v887
  %952 = vst [vmem:[%s3 + $0x78] sm:$0xf] %v888
  %953 = vst [vmem:[%s3 + $0x7c] sm:$0xf] %v889
  %954 = vst [vmem:[%s3 + $0x80] sm:$0xf] %v890
  %955 = vst [vmem:[%s3 + $0x84] sm:$0xf] %v891
  %956 = vst [vmem:[%s3 + $0x88] sm:$0xf] %v892
  %957 = vst [vmem:[%s3 + $0x8c] sm:$0xf] %v893
  %958 = vst [vmem:[%s3 + $0x90] sm:$0xf] %v894
  %959 = vst [vmem:[%s3 + $0x94] sm:$0xf] %v895
  %960 = vst [vmem:[%s3 + $0x98] sm:$0xf] %v896
  %961 = vst [vmem:[%s3 + $0x9c] sm:$0xf] %v897
  %962 = vst [vmem:[%s3 + $0xa0] sm:$0xf] %v898
  %963 = vst [vmem:[%s3 + $0xa4] sm:$0xf] %v899
  %964 = vst [vmem:[%s3 + $0xa8] sm:$0xf] %v900
  %965 = vst [vmem:[%s3 + $0xac] sm:$0xf] %v901
  %966 = vst [vmem:[%s3 + $0xb0] sm:$0xf] %v902
  %967 = vst [vmem:[%s3 + $0xb4] sm:$0xf] %v903
  %968 = vst [vmem:[%s3 + $0xb8] sm:$0xf] %v904
  %969 = vst [vmem:[%s3 + $0xbc] sm:$0xf] %v905
  %970 = vst [vmem:[%s3 + $0xc0] sm:$0xf] %v906
  %971 = vst [vmem:[%s3 + $0xc4] sm:$0xf] %v907
  %972 = vst [vmem:[%s3 + $0xc8] sm:$0xf] %v908
  %973 = vst [vmem:[%s3 + $0xcc] sm:$0xf] %v909
  %974 = vst [vmem:[%s3 + $0xd0] sm:$0xf] %v910
  %975 = vst [vmem:[%s3 + $0xd4] sm:$0xf] %v911
  %976 = vst [vmem:[%s3 + $0xd8] sm:$0xf] %v912
  %977 = vst [vmem:[%s3 + $0xdc] sm:$0xf] %v913
  %978 = vst [vmem:[%s3 + $0xe0] sm:$0xf] %v914
  %979 = vst [vmem:[%s3 + $0xe4] sm:$0xf] %v915
  %980 = vst [vmem:[%s3 + $0xe8] sm:$0xf] %v916
  %981 = vst [vmem:[%s3 + $0xec] sm:$0xf] %v917
  %982 = vst [vmem:[%s3 + $0xf0] sm:$0xf] %v918
  %983 = vst [vmem:[%s3 + $0xf4] sm:$0xf] %v919
  %984 = vst [vmem:[%s3 + $0xf8] sm:$0xf] %v920
  %985 = vst [vmem:[%s3 + $0xfc] sm:$0xf] %v921
  // Predicated region
  $region14: #{_lambda_.36} parent=0 // pred_check
    _
  $region15: #{_lambda_.36} parent=0 // pred_check_branch
    %987 = sbr.rel (0) target = $region17
  $region16: #{_lambda_.36} parent=0 // pred_region
    _
  $region17: #{_lambda_.36} parent=0 // pred_fallthru
    _
  // Predicated region
  $region18: #{_lambda_.36} parent=0 // pred_check
    _
  $region19: #{_lambda_.36} parent=0 // pred_check_branch
    %989 = sbr.rel (0) target = $region21
  $region20: #{_lambda_.36} parent=0 // pred_region
    _
  $region21: #{_lambda_.36} parent=0 // pred_fallthru
    _

// kernel: _lambda_.37
$region0: #{_lambda_.37}
  #allocation0 [shape = 'u32[]', space=smem, size = 0x4, offset = 0x4, fixed_abs, tag = 'smem constant byte address 0x4 - core index']
  #allocation1 [shape = 'u32[144,128]{1,0:T(1,128)}', space=vmem, size = 0x12000, scoped, tag = 'internal scratch']
  %s0 = inlined_call_operand.vmem [shape: bf16[512,128], index: 0, kind: input, shape index: {}]
  %s1 = inlined_call_operand.vmem [shape: bf16[128,128], index: 1, kind: input, shape index: {}]
  %s2 = inlined_call_operand.vmem [shape: f32[1,128], index: 2, kind: input, shape index: {}]
  %s3 = inlined_call_operand.vmem [shape: f32[1,128], index: 3, kind: input, shape index: {}]
  %s4 = inlined_call_operand.vmem [shape: bf16[512,128], index: 4, kind: output, shape index: {}]
  %s5 = sld [smem:[#allocation0]]
  $region49: #{_lambda_.37} parent=0
    _
  %s7 = ssub.s32 1, %s5
  %s8 = scalar_select 0, %s7, %s5
  loop: start=0, step=1, limit=4
  $region2: #{_lambda_.37} parent=0 // loop_pre_header
    _
  $region3: #{_lambda_.37} parent=0 // loop_header
    %s10 = sphi 0, %s14
    %p11 = scmp.ge.s32.totalorder %s10, 4
    %s20 = sphi 0, %s22
    %s23 = sphi 0, %s20
    %s24 = sphi 0, %s23
    %s40 = sphi 0, %s24
    %s44 = sphi 0, %s44
    %s46 = sphi 0, %s44
    %s47 = sphi 0, %s46
    %s61 = sphi 0, %s47
    %s65 = sphi 0, %s65
    %s67 = sphi 0, %s65
    %s68 = sphi 0, %s67
    %s82 = sphi 0, %s68
    %s86 = sphi 0, %s86
    %s88 = sphi 0, %s86
    %s89 = sphi 0, %s88
    %s103 = sphi 0, %s89
    %s109 = sphi 0, %s111
    %s112 = sphi 0, %s109
    %s113 = sphi 0, %s112
    %s129 = sphi 0, %s113
  $region4: #{_lambda_.37} parent=0 // loop_header_branch
    %13 = sbr.rel (%p11) target = $region8
  $region5: #{_lambda_.37} parent=0 // loop_body
    %s15 = ssub.s32 %s10, 1
    %s16 = ssub.s32 %s10, 2
    %s17 = sadd.s32 %s10, 1
    %s18 = ssub.s32 %s10, %s17
    %p19 = scmp.eq.s32.totalorder %s18, 0
    %s21 = sadd.s32 %s20, 1
    %s22 = scalar_select %p19, %s20, %s21
    %p25 = pneg %p19
    %p26 = scmp.eq.s32.totalorder %s10, 1
    %p27 = por %p25, %p26
    %p28 = scmp.ne.s32.totalorder %s20, %s23
    %p29 = scmp.eq.s32.totalorder %s10, 0
    %p30 = por %p28, %p29
    %p31 = scmp.ne.s32.totalorder %s20, %s23
    %p32 = scmp.eq.s32.totalorder %s15, 1
    %p33 = por %p31, %p32
    %p34 = scmp.ne.s32.totalorder %s23, %s24
    %p35 = scmp.eq.s32.totalorder %s15, 0
    %p36 = por %p34, %p35
    %p37 = scmp.ne.s32.totalorder %s23, %s24
    %p38 = scmp.eq.s32.totalorder %s16, 1
    %p39 = por %p37, %p38
    %p41 = scmp.ne.s32.totalorder %s24, %s40
    %p42 = scmp.eq.s32.totalorder %s16, 0
    %p43 = por %p41, %p42
    %s45 = sadd.s32 %s44, 1
    %p48 = scmp.eq.s32.totalorder %s10, 1
    %p49 = scmp.ne.s32.totalorder %s44, %s46
    %p50 = scmp.eq.s32.totalorder %s10, 0
    %p51 = por %p49, %p50
    %p52 = scmp.ne.s32.totalorder %s44, %s46
    %p53 = scmp.eq.s32.totalorder %s15, 1
    %p54 = por %p52, %p53
    %p55 = scmp.ne.s32.totalorder %s46, %s47
    %p56 = scmp.eq.s32.totalorder %s15, 0
    %p57 = por %p55, %p56
    %p58 = scmp.ne.s32.totalorder %s46, %s47
    %p59 = scmp.eq.s32.totalorder %s16, 1
    %p60 = por %p58, %p59
    %p62 = scmp.ne.s32.totalorder %s47, %s61
    %p63 = scmp.eq.s32.totalorder %s16, 0
    %p64 = por %p62, %p63
    %s66 = sadd.s32 %s65, 1
    %p69 = scmp.eq.s32.totalorder %s10, 1
    %p70 = scmp.ne.s32.totalorder %s65, %s67
    %p71 = scmp.eq.s32.totalorder %s10, 0
    %p72 = por %p70, %p71
    %p73 = scmp.ne.s32.totalorder %s65, %s67
    %p74 = scmp.eq.s32.totalorder %s15, 1
    %p75 = por %p73, %p74
    %p76 = scmp.ne.s32.totalorder %s67, %s68
    %p77 = scmp.eq.s32.totalorder %s15, 0
    %p78 = por %p76, %p77
    %p79 = scmp.ne.s32.totalorder %s67, %s68
    %p80 = scmp.eq.s32.totalorder %s16, 1
    %p81 = por %p79, %p80
    %p83 = scmp.ne.s32.totalorder %s68, %s82
    %p84 = scmp.eq.s32.totalorder %s16, 0
    %p85 = por %p83, %p84
    %s87 = sadd.s32 %s86, 1
    %p90 = scmp.eq.s32.totalorder %s10, 1
    %p91 = scmp.ne.s32.totalorder %s86, %s88
    %p92 = scmp.eq.s32.totalorder %s10, 0
    %p93 = por %p91, %p92
    %p94 = scmp.ne.s32.totalorder %s86, %s88
    %p95 = scmp.eq.s32.totalorder %s15, 1
    %p96 = por %p94, %p95
    %p97 = scmp.ne.s32.totalorder %s88, %s89
    %p98 = scmp.eq.s32.totalorder %s15, 0
    %p99 = por %p97, %p98
    %p100 = scmp.ne.s32.totalorder %s88, %s89
    %p101 = scmp.eq.s32.totalorder %s16, 1
    %p102 = por %p100, %p101
    %p104 = scmp.ne.s32.totalorder %s89, %s103
    %p105 = scmp.eq.s32.totalorder %s16, 0
    %p106 = por %p104, %p105
    %s107 = ssub.s32 %s10, %s17
    %p108 = scmp.eq.s32.totalorder %s107, 0
    %s110 = sadd.s32 %s109, 1
    %s111 = scalar_select %p108, %s109, %s110
    %p114 = pneg %p108
    %p115 = scmp.eq.s32.totalorder %s10, 1
    %p116 = por %p114, %p115
    %p117 = scmp.ne.s32.totalorder %s109, %s112
    %p118 = scmp.eq.s32.totalorder %s10, 0
    %p119 = por %p117, %p118
    %p120 = scmp.ne.s32.totalorder %s109, %s112
    %p121 = scmp.eq.s32.totalorder %s15, 1
    %p122 = por %p120, %p121
    %p123 = scmp.ne.s32.totalorder %s112, %s113
    %p124 = scmp.eq.s32.totalorder %s15, 0
    %p125 = por %p123, %p124
    %p126 = scmp.ne.s32.totalorder %s112, %s113
    %p127 = scmp.eq.s32.totalorder %s16, 1
    %p128 = por %p126, %p127
    %p130 = scmp.ne.s32.totalorder %s113, %s129
    %p131 = scmp.eq.s32.totalorder %s16, 0
    %p132 = por %p130, %p131
    %p133 = scmp.le.s32.totalorder 1, %s10
    %p134 = scmp.lt.s32.totalorder %s10, 3
    %p135 = pnand %p133, %p134
    %p136 = pneg %p135
    // Predicated region
    $region9: #{_lambda_.37} parent=5 // pred_check
      _
    $region10: #{_lambda_.37} parent=5 // pred_check_branch
      %138 = sbr.rel (%p135) target = $region12
    $region11: #{_lambda_.37} parent=5 // pred_region
      %s139 = ssub.s32 %s10, 1
      // Predicated region
      $region13: #{_lambda_.37} parent=11 // pred_check
        %p140 = pneg %p57
      $region14: #{_lambda_.37} parent=11 // pred_check_branch
        %142 = sbr.rel (%p140) target = $region16
      $region15: #{_lambda_.37} parent=11 // pred_region
        _
      $region16: #{_lambda_.37} parent=11 // pred_fallthru
        _
      // Predicated region
      $region17: #{_lambda_.37} parent=11 // pred_check
        %p143 = pneg %p78
      $region18: #{_lambda_.37} parent=11 // pred_check_branch
        %145 = sbr.rel (%p143) target = $region20
      $region19: #{_lambda_.37} parent=11 // pred_region
        _
      $region20: #{_lambda_.37} parent=11 // pred_fallthru
        _
      // Predicated region
      $region21: #{_lambda_.37} parent=11 // pred_check
        %p146 = pneg %p99
      $region22: #{_lambda_.37} parent=11 // pred_check_branch
        %148 = sbr.rel (%p146) target = $region24
      $region23: #{_lambda_.37} parent=11 // pred_region
        _
      $region24: #{_lambda_.37} parent=11 // pred_fallthru
        _
    $region12: #{_lambda_.37} parent=5 // pred_fallthru
      _
    %p149 = scmp.lt.s32.totalorder %s10, 2
    // Predicated region
    $region25: #{_lambda_.37} parent=5 // pred_check
      %p150 = pneg %p149
    $region26: #{_lambda_.37} parent=5 // pred_check_branch
      %152 = sbr.rel (%p150) target = $region28
    $region27: #{_lambda_.37} parent=5 // pred_region
      // Predicated region
      $region29: #{_lambda_.37} parent=27 // pred_check
        %p153 = pneg %p30
      $region30: #{_lambda_.37} parent=27 // pred_check_branch
        %155 = sbr.rel (%p153) target = $region32
      $region31: #{_lambda_.37} parent=27 // pred_region
        %s156 = smul.u32 32, %s10
        %p157 = scmp.lt.s32.totalorder %s156, 63
        %s158 = scalar_select %p157, %s156, 63
        %s159 = smul.addr %s158, 4
        %s160 = scalar_lea.vmem %s0, %s159
        %s161 = smul.u32 32, %s10
      $region32: #{_lambda_.37} parent=27 // pred_fallthru
        _
    $region28: #{_lambda_.37} parent=5 // pred_fallthru
      _
    %p162 = scmp.le.s32.totalorder 1, %s10
    %p163 = scmp.lt.s32.totalorder %s10, 3
    %p164 = pnand %p162, %p163
    %p165 = pneg %p164
    // Predicated region
    $region33: #{_lambda_.37} parent=5 // pred_check
      _
    $region34: #{_lambda_.37} parent=5 // pred_check_branch
      %167 = sbr.rel (%p164) target = $region36
    $region35: #{_lambda_.37} parent=5 // pred_region
      %s168 = ssub.s32 %s10, 1
      %s169 = smul.u32 32, %s15
      %p170 = scmp.lt.s32.totalorder %s169, 63
      %s171 = scalar_select %p170, %s169, 63
      %s172 = smul.addr %s171, 4
      %s173 = scalar_lea.vmem %s0, %s172
      %p174 = pneg %p36
      %p175 = pneg %p33
      %p176 = pneg %p57
      %p177 = pneg %p54
      %p178 = pneg %p78
      %p179 = pneg %p75
      %p180 = pneg %p99
      %p181 = pneg %p96
      %p182 = pneg %p125
      %p183 = pneg %p122
      %s184 = smul.u32 32, %s15
      %p185 = scmp.lt.s32.totalorder %s184, 63
      %s186 = scalar_select %p185, %s184, 63
      %s187 = smul.addr %s186, 4
      %s188 = scalar_lea.vmem %s4, %s187
      %s189 = smul.u32 32, %s15
      %p190 = scmp.lt.s32.totalorder %s189, 63
      %s191 = scalar_select %p190, %s189, 63
      %s192 = smul.addr %s191, 4
      %s193 = scalar_lea.vmem %s0, %s192
      %s194 = smul.u32 32, %s15
      %s195 = smul.u32 32, %s15
      %p196 = scmp.lt.s32.totalorder %s195, 63
      %s197 = scalar_select %p196, %s195, 63
      %s198 = smul.addr %s197, 4
      %s199 = scalar_lea.vmem %s4, %s198
      %s200 = smul.u32 32, %s15
      %v202 = vld [vmem:[%s193] sm:$0xf]
      %v203 = vld [vmem:[%s193 + $0x4] sm:$0xf]
      %v204 = vld [vmem:[%s193 + $0x8] sm:$0xf]
      %v205 = vld [vmem:[%s193 + $0xc] sm:$0xf]
      %v206 = vld [vmem:[%s193 + $0x10] sm:$0xf]
      %v207 = vld [vmem:[%s193 + $0x14] sm:$0xf]
      %v208 = vld [vmem:[%s193 + $0x18] sm:$0xf]
      %v209 = vld [vmem:[%s193 + $0x1c] sm:$0xf]
      %v210 = vld [vmem:[%s193 + $0x20] sm:$0xf]
      %v211 = vld [vmem:[%s193 + $0x24] sm:$0xf]
      %v212 = vld [vmem:[%s193 + $0x28] sm:$0xf]
      %v213 = vld [vmem:[%s193 + $0x2c] sm:$0xf]
      %v214 = vld [vmem:[%s193 + $0x30] sm:$0xf]
      %v215 = vld [vmem:[%s193 + $0x34] sm:$0xf]
      %v216 = vld [vmem:[%s193 + $0x38] sm:$0xf]
      %v217 = vld [vmem:[%s193 + $0x3c] sm:$0xf]
      %v218 = vld [vmem:[%s193 + $0x40] sm:$0xf]
      %v219 = vld [vmem:[%s193 + $0x44] sm:$0xf]
      %v220 = vld [vmem:[%s193 + $0x48] sm:$0xf]
      %v221 = vld [vmem:[%s193 + $0x4c] sm:$0xf]
      %v222 = vld [vmem:[%s193 + $0x50] sm:$0xf]
      %v223 = vld [vmem:[%s193 + $0x54] sm:$0xf]
      %v224 = vld [vmem:[%s193 + $0x58] sm:$0xf]
      %v225 = vld [vmem:[%s193 + $0x5c] sm:$0xf]
      %v226 = vld [vmem:[%s193 + $0x60] sm:$0xf]
      %v227 = vld [vmem:[%s193 + $0x64] sm:$0xf]
      %v228 = vld [vmem:[%s193 + $0x68] sm:$0xf]
      %v229 = vld [vmem:[%s193 + $0x6c] sm:$0xf]
      %v230 = vld [vmem:[%s193 + $0x70] sm:$0xf]
      %v231 = vld [vmem:[%s193 + $0x74] sm:$0xf]
      %v232 = vld [vmem:[%s193 + $0x78] sm:$0xf]
      %v233 = vld [vmem:[%s193 + $0x7c] sm:$0xf]
      %v234 = vld [vmem:[%s1] sm:$0xf]
      %v235 = vld [vmem:[%s1 + $0x4] sm:$0xf]
      %v236 = vld [vmem:[%s1 + $0x8] sm:$0xf]
      %v237 = vld [vmem:[%s1 + $0xc] sm:$0xf]
      %v238 = vld [vmem:[%s1 + $0x10] sm:$0xf]
      %v239 = vld [vmem:[%s1 + $0x14] sm:$0xf]
      %v240 = vld [vmem:[%s1 + $0x18] sm:$0xf]
      %v241 = vld [vmem:[%s1 + $0x1c] sm:$0xf]
      %v242 = vld [vmem:[%s1 + $0x20] sm:$0xf]
      %v243 = vld [vmem:[%s1 + $0x24] sm:$0xf]
      %v244 = vld [vmem:[%s1 + $0x28] sm:$0xf]
      %v245 = vld [vmem:[%s1 + $0x2c] sm:$0xf]
      %v246 = vld [vmem:[%s1 + $0x30] sm:$0xf]
      %v247 = vld [vmem:[%s1 + $0x34] sm:$0xf]
      %v248 = vld [vmem:[%s1 + $0x38] sm:$0xf]
      %v249 = vld [vmem:[%s1 + $0x3c] sm:$0xf]
      %v282 = vunpack.c.l.b16 %v202
      %v283 = vunpack.c.l.b16 %v203
      %v284 = vunpack.c.l.b16 %v204
      %v285 = vunpack.c.l.b16 %v205
      %v286 = vunpack.c.l.b16 %v206
      %v287 = vunpack.c.l.b16 %v207
      %v288 = vunpack.c.l.b16 %v208
      %v289 = vunpack.c.l.b16 %v209
      %v290 = vunpack.c.l.b16 %v210
      %v291 = vunpack.c.l.b16 %v211
      %v292 = vunpack.c.l.b16 %v212
      %v293 = vunpack.c.l.b16 %v213
      %v294 = vunpack.c.l.b16 %v214
      %v295 = vunpack.c.l.b16 %v215
      %v296 = vunpack.c.l.b16 %v216
      %v297 = vunpack.c.l.b16 %v217
      %v298 = vunpack.c.l.b16 %v218
      %v299 = vunpack.c.l.b16 %v219
      %v300 = vunpack.c.l.b16 %v220
      %v301 = vunpack.c.l.b16 %v221
      %v302 = vunpack.c.l.b16 %v222
      %v303 = vunpack.c.l.b16 %v223
      %v304 = vunpack.c.l.b16 %v224
      %v305 = vunpack.c.l.b16 %v225
      %v306 = vunpack.c.l.b16 %v226
      %v307 = vunpack.c.l.b16 %v227
      %v308 = vunpack.c.l.b16 %v228
      %v309 = vunpack.c.l.b16 %v229
      %v310 = vunpack.c.l.b16 %v230
      %v311 = vunpack.c.l.b16 %v231
      %v312 = vunpack.c.l.b16 %v232
      %v313 = vunpack.c.l.b16 %v233
      %v314 = vpack.c.b16 %v283, %v282
      %v315 = vpack.c.b16 %v285, %v284
      %v316 = vpack.c.b16 %v287, %v286
      %v317 = vpack.c.b16 %v289, %v288
      %v318 = vpack.c.b16 %v291, %v290
      %v319 = vpack.c.b16 %v293, %v292
      %v320 = vpack.c.b16 %v295, %v294
      %v321 = vpack.c.b16 %v297, %v296
      %v322 = vpack.c.b16 %v299, %v298
      %v323 = vpack.c.b16 %v301, %v300
      %v324 = vpack.c.b16 %v303, %v302
      %v325 = vpack.c.b16 %v305, %v304
      %v326 = vpack.c.b16 %v307, %v306
      %v327 = vpack.c.b16 %v309, %v308
      %v328 = vpack.c.b16 %v311, %v310
      %v329 = vpack.c.b16 %v313, %v312
      %v362 = vunpack.c.l.b16 %v234
      %v363 = vunpack.c.l.b16 %v235
      %v364 = vunpack.c.l.b16 %v236
      %v365 = vunpack.c.l.b16 %v237
      %v366 = vunpack.c.l.b16 %v238
      %v367 = vunpack.c.l.b16 %v239
      %v368 = vunpack.c.l.b16 %v240
      %v369 = vunpack.c.l.b16 %v241
      %v370 = vunpack.c.l.b16 %v242
      %v371 = vunpack.c.l.b16 %v243
      %v372 = vunpack.c.l.b16 %v244
      %v373 = vunpack.c.l.b16 %v245
      %v374 = vunpack.c.l.b16 %v246
      %v375 = vunpack.c.l.b16 %v247
      %v376 = vunpack.c.l.b16 %v248
      %v377 = vunpack.c.l.b16 %v249
      %v378 = vpack.c.b16 %v363, %v362
      %v379 = vpack.c.b16 %v365, %v364
      %v380 = vpack.c.b16 %v367, %v366
      %v381 = vpack.c.b16 %v369, %v368
      %v382 = vpack.c.b16 %v371, %v370
      %v383 = vpack.c.b16 %v373, %v372
      %v384 = vpack.c.b16 %v375, %v374
      %v385 = vpack.c.b16 %v377, %v376
      %394 = vmatprep.subr.bf16.mxu0 0
      %395 = vmatpush1.bf16.msra.mxu0 %v385
      %396 = vmatprep.subr.bf16.mxu0 0
      %397 = vmatpush1.bf16.msra.mxu0 %v384
      %398 = vmatprep.subr.bf16.mxu0 0
      %399 = vmatpush1.bf16.msra.mxu0 %v383
      %400 = vmatprep.subr.bf16.mxu0 0
      %401 = vmatpush1.bf16.msra.mxu0 %v382
      %402 = vmatprep.subr.bf16.mxu0 0
      %403 = vmatpush1.bf16.msra.mxu0 %v381
      %404 = vmatprep.subr.bf16.mxu0 0
      %405 = vmatpush1.bf16.msra.mxu0 %v380
      %406 = vmatprep.subr.bf16.mxu0 0
      %407 = vmatpush1.bf16.msra.mxu0 %v379
      %408 = vmatprep.subr.bf16.mxu0 0
      %409 = vmatpush1.bf16.msra.mxu0 %v378
      %410 = vmatprep.subr.bf16.mxu0 0
      %411 = vmatpush2.bf16.msra.mxu0 0
      %412 = vmatprep.subr.bf16.mxu0 0
      %413 = vmatpush2.bf16.msra.mxu0 0
      %414 = vmatprep.subr.bf16.mxu0 0
      %415 = vmatpush2.bf16.msra.mxu0 0
      %416 = vmatprep.subr.bf16.mxu0 0
      %417 = vmatpush2.bf16.msra.mxu0 0
      %418 = vmatprep.subr.bf16.mxu0 0
      %419 = vmatpush2.bf16.msra.mxu0 0
      %420 = vmatprep.subr.bf16.mxu0 0
      %421 = vmatpush2.bf16.msra.mxu0 0
      %422 = vmatprep.subr.bf16.mxu0 0
      %423 = vmatpush2.bf16.msra.mxu0 0
      %424 = vmatprep.subr.bf16.mxu0 0
      %425 = vmatpush2.bf16.msra.mxu0 0
      %426 = vmatprep.mubr.bf16.mxu0 0
      %427 = vmatmul.mubr.bf16.gmra.mxu0 %v314
      %v428 = vpop.f32.mrf.mxu0
      %v429 = vadd.f32 0.0, %v428
      %v430 = vpop.f32.mrf.mxu0
      %v431 = vpop.f32.mrf.mxu0
      %v432 = vadd.f32 0.0, %v431
      %v433 = vpop.f32.mrf.mxu0
      %434 = vmatprep.mubr.bf16.mxu0 0
      %435 = vmatmul.mubr.bf16.gmra.mxu0 %v315
      %v436 = vpop.f32.mrf.mxu0
      %v437 = vadd.f32 0.0, %v436
      %v438 = vpop.f32.mrf.mxu0
      %v439 = vpop.f32.mrf.mxu0
      %v440 = vadd.f32 0.0, %v439
      %v441 = vpop.f32.mrf.mxu0
      %442 = vmatprep.mubr.bf16.mxu0 0
      %443 = vmatmul.mubr.bf16.gmra.mxu0 %v316
      %v444 = vpop.f32.mrf.mxu0
      %v445 = vadd.f32 0.0, %v444
      %v446 = vpop.f32.mrf.mxu0
      %v447 = vpop.f32.mrf.mxu0
      %v448 = vadd.f32 0.0, %v447
      %v449 = vpop.f32.mrf.mxu0
      %450 = vmatprep.mubr.bf16.mxu0 0
      %451 = vmatmul.mubr.bf16.gmra.mxu0 %v317
      %v452 = vpop.f32.mrf.mxu0
      %v453 = vadd.f32 0.0, %v452
      %v454 = vpop.f32.mrf.mxu0
      %v455 = vpop.f32.mrf.mxu0
      %v456 = vadd.f32 0.0, %v455
      %v457 = vpop.f32.mrf.mxu0
      %458 = vmatprep.mubr.bf16.mxu0 0
      %459 = vmatmul.mubr.bf16.gmra.mxu0 %v318
      %v460 = vpop.f32.mrf.mxu0
      %v461 = vadd.f32 0.0, %v460
      %v462 = vpop.f32.mrf.mxu0
      %v463 = vpop.f32.mrf.mxu0
      %v464 = vadd.f32 0.0, %v463
      %v465 = vpop.f32.mrf.mxu0
      %466 = vmatprep.mubr.bf16.mxu0 0
      %467 = vmatmul.mubr.bf16.gmra.mxu0 %v319
      %v468 = vpop.f32.mrf.mxu0
      %v469 = vadd.f32 0.0, %v468
      %v470 = vpop.f32.mrf.mxu0
      %v471 = vpop.f32.mrf.mxu0
      %v472 = vadd.f32 0.0, %v471
      %v473 = vpop.f32.mrf.mxu0
      %474 = vmatprep.mubr.bf16.mxu0 0
      %475 = vmatmul.mubr.bf16.gmra.mxu0 %v320
      %v476 = vpop.f32.mrf.mxu0
      %v477 = vadd.f32 0.0, %v476
      %v478 = vpop.f32.mrf.mxu0
      %v479 = vpop.f32.mrf.mxu0
      %v480 = vadd.f32 0.0, %v479
      %v481 = vpop.f32.mrf.mxu0
      %482 = vmatprep.mubr.bf16.mxu0 0
      %483 = vmatmul.mubr.bf16.gmra.mxu0 %v321
      %v484 = vpop.f32.mrf.mxu0
      %v485 = vadd.f32 0.0, %v484
      %v486 = vpop.f32.mrf.mxu0
      %v487 = vpop.f32.mrf.mxu0
      %v488 = vadd.f32 0.0, %v487
      %v489 = vpop.f32.mrf.mxu0
      %490 = vmatprep.mubr.bf16.mxu0 0
      %491 = vmatmul.mubr.bf16.gmra.mxu0 %v322
      %v492 = vpop.f32.mrf.mxu0
      %v493 = vadd.f32 0.0, %v492
      %v494 = vpop.f32.mrf.mxu0
      %v495 = vpop.f32.mrf.mxu0
      %v496 = vadd.f32 0.0, %v495
      %v497 = vpop.f32.mrf.mxu0
      %498 = vmatprep.mubr.bf16.mxu0 0
      %499 = vmatmul.mubr.bf16.gmra.mxu0 %v323
      %v500 = vpop.f32.mrf.mxu0
      %v501 = vadd.f32 0.0, %v500
      %v502 = vpop.f32.mrf.mxu0
      %v503 = vpop.f32.mrf.mxu0
      %v504 = vadd.f32 0.0, %v503
      %v505 = vpop.f32.mrf.mxu0
      %506 = vmatprep.mubr.bf16.mxu0 0
      %507 = vmatmul.mubr.bf16.gmra.mxu0 %v324
      %v508 = vpop.f32.mrf.mxu0
      %v509 = vadd.f32 0.0, %v508
      %v510 = vpop.f32.mrf.mxu0
      %v511 = vpop.f32.mrf.mxu0
      %v512 = vadd.f32 0.0, %v511
      %v513 = vpop.f32.mrf.mxu0
      %514 = vmatprep.mubr.bf16.mxu0 0
      %515 = vmatmul.mubr.bf16.gmra.mxu0 %v325
      %v516 = vpop.f32.mrf.mxu0
      %v517 = vadd.f32 0.0, %v516
      %v518 = vpop.f32.mrf.mxu0
      %v519 = vpop.f32.mrf.mxu0
      %v520 = vadd.f32 0.0, %v519
      %v521 = vpop.f32.mrf.mxu0
      %522 = vmatprep.mubr.bf16.mxu0 0
      %523 = vmatmul.mubr.bf16.gmra.mxu0 %v326
      %v524 = vpop.f32.mrf.mxu0
      %v525 = vadd.f32 0.0, %v524
      %v526 = vpop.f32.mrf.mxu0
      %v527 = vpop.f32.mrf.mxu0
      %v528 = vadd.f32 0.0, %v527
      %v529 = vpop.f32.mrf.mxu0
      %530 = vmatprep.mubr.bf16.mxu0 0
      %531 = vmatmul.mubr.bf16.gmra.mxu0 %v327
      %v532 = vpop.f32.mrf.mxu0
      %v533 = vadd.f32 0.0, %v532
      %v534 = vpop.f32.mrf.mxu0
      %v535 = vpop.f32.mrf.mxu0
      %v536 = vadd.f32 0.0, %v535
      %v537 = vpop.f32.mrf.mxu0
      %538 = vmatprep.mubr.bf16.mxu0 0
      %539 = vmatmul.mubr.bf16.gmra.mxu0 %v328
      %v540 = vpop.f32.mrf.mxu0
      %v541 = vadd.f32 0.0, %v540
      %v542 = vpop.f32.mrf.mxu0
      %v543 = vpop.f32.mrf.mxu0
      %v544 = vadd.f32 0.0, %v543
      %v545 = vpop.f32.mrf.mxu0
      %546 = vmatprep.mubr.bf16.mxu0 0
      %547 = vmatmul.mubr.bf16.gmra.mxu0 %v329
      %v548 = vpop.f32.mrf.mxu0
      %v549 = vadd.f32 0.0, %v548
      %v550 = vpop.f32.mrf.mxu0
      %v551 = vpop.f32.mrf.mxu0
      %v552 = vadd.f32 0.0, %v551
      %v553 = vpop.f32.mrf.mxu0
      %554 = vdwg.mxu0
      %v555 = vld [vmem:[%s2] sm:$0x1]
      %v557 = vlaneseq
      %v558 = vshrl.u32 %v557, 7
      %v559 = vsub.s32 0, %v558
      %v560 = vrot.slane %v555, %v559
      %v562 = vmul.f32 %v429, %v560
      %v563 = vmul.f32 %v432, %v560
      %v564 = vmul.f32 %v437, %v560
      %v565 = vmul.f32 %v440, %v560
      %v566 = vmul.f32 %v445, %v560
      %v567 = vmul.f32 %v448, %v560
      %v568 = vmul.f32 %v453, %v560
      %v569 = vmul.f32 %v456, %v560
      %v570 = vmul.f32 %v461, %v560
      %v571 = vmul.f32 %v464, %v560
      %v572 = vmul.f32 %v469, %v560
      %v573 = vmul.f32 %v472, %v560
      %v574 = vmul.f32 %v477, %v560
      %v575 = vmul.f32 %v480, %v560
      %v576 = vmul.f32 %v485, %v560
      %v577 = vmul.f32 %v488, %v560
      %v578 = vmul.f32 %v493, %v560
      %v579 = vmul.f32 %v496, %v560
      %v580 = vmul.f32 %v501, %v560
      %v581 = vmul.f32 %v504, %v560
      %v582 = vmul.f32 %v509, %v560
      %v583 = vmul.f32 %v512, %v560
      %v584 = vmul.f32 %v517, %v560
      %v585 = vmul.f32 %v520, %v560
      %v586 = vmul.f32 %v525, %v560
      %v587 = vmul.f32 %v528, %v560
      %v588 = vmul.f32 %v533, %v560
      %v589 = vmul.f32 %v536, %v560
      %v590 = vmul.f32 %v541, %v560
      %v591 = vmul.f32 %v544, %v560
      %v592 = vmul.f32 %v549, %v560
      %v593 = vmul.f32 %v552, %v560
      %v594 = vld [vmem:[%s3] sm:$0x1]
      %v596 = vlaneseq
      %v597 = vshrl.u32 %v596, 7
      %v598 = vsub.s32 0, %v597
      %v599 = vrot.slane %v594, %v598
      %v601 = vadd.f32 %v562, %v599
      %v602 = vadd.f32 %v563, %v599
      %v603 = vadd.f32 %v564, %v599
      %v604 = vadd.f32 %v565, %v599
      %v605 = vadd.f32 %v566, %v599
      %v606 = vadd.f32 %v567, %v599
      %v607 = vadd.f32 %v568, %v599
      %v608 = vadd.f32 %v569, %v599
      %v609 = vadd.f32 %v570, %v599
      %v610 = vadd.f32 %v571, %v599
      %v611 = vadd.f32 %v572, %v599
      %v612 = vadd.f32 %v573, %v599
      %v613 = vadd.f32 %v574, %v599
      %v614 = vadd.f32 %v575, %v599
      %v615 = vadd.f32 %v576, %v599
      %v616 = vadd.f32 %v577, %v599
      %v617 = vadd.f32 %v578, %v599
      %v618 = vadd.f32 %v579, %v599
      %v619 = vadd.f32 %v580, %v599
      %v620 = vadd.f32 %v581, %v599
      %v621 = vadd.f32 %v582, %v599
      %v622 = vadd.f32 %v583, %v599
      %v623 = vadd.f32 %v584, %v599
      %v624 = vadd.f32 %v585, %v599
      %v625 = vadd.f32 %v586, %v599
      %v626 = vadd.f32 %v587, %v599
      %v627 = vadd.f32 %v588, %v599
      %v628 = vadd.f32 %v589, %v599
      %v629 = vadd.f32 %v590, %v599
      %v630 = vadd.f32 %v591, %v599
      %v631 = vadd.f32 %v592, %v599
      %v632 = vadd.f32 %v593, %v599
      %v633 = vmax.f32 %v601, 0.0
      %v634 = vmax.f32 %v602, 0.0
      %v635 = vmax.f32 %v603, 0.0
      %v636 = vmax.f32 %v604, 0.0
      %v637 = vmax.f32 %v605, 0.0
      %v638 = vmax.f32 %v606, 0.0
      %v639 = vmax.f32 %v607, 0.0
      %v640 = vmax.f32 %v608, 0.0
      %v641 = vmax.f32 %v609, 0.0
      %v642 = vmax.f32 %v610, 0.0
      %v643 = vmax.f32 %v611, 0.0
      %v644 = vmax.f32 %v612, 0.0
      %v645 = vmax.f32 %v613, 0.0
      %v646 = vmax.f32 %v614, 0.0
      %v647 = vmax.f32 %v615, 0.0
      %v648 = vmax.f32 %v616, 0.0
      %v649 = vmax.f32 %v617, 0.0
      %v650 = vmax.f32 %v618, 0.0
      %v651 = vmax.f32 %v619, 0.0
      %v652 = vmax.f32 %v620, 0.0
      %v653 = vmax.f32 %v621, 0.0
      %v654 = vmax.f32 %v622, 0.0
      %v655 = vmax.f32 %v623, 0.0
      %v656 = vmax.f32 %v624, 0.0
      %v657 = vmax.f32 %v625, 0.0
      %v658 = vmax.f32 %v626, 0.0
      %v659 = vmax.f32 %v627, 0.0
      %v660 = vmax.f32 %v628, 0.0
      %v661 = vmax.f32 %v629, 0.0
      %v662 = vmax.f32 %v630, 0.0
      %v663 = vmax.f32 %v631, 0.0
      %v664 = vmax.f32 %v632, 0.0
      %v665 = vpack.c.bf16 %v634, %v633
      %v666 = vpack.c.bf16 %v636, %v635
      %v667 = vpack.c.bf16 %v638, %v637
      %v668 = vpack.c.bf16 %v640, %v639
      %v669 = vpack.c.bf16 %v642, %v641
      %v670 = vpack.c.bf16 %v644, %v643
      %v671 = vpack.c.bf16 %v646, %v645
      %v672 = vpack.c.bf16 %v648, %v647
      %v673 = vpack.c.bf16 %v650, %v649
      %v674 = vpack.c.bf16 %v652, %v651
      %v675 = vpack.c.bf16 %v654, %v653
      %v676 = vpack.c.bf16 %v656, %v655
      %v677 = vpack.c.bf16 %v658, %v657
      %v678 = vpack.c.bf16 %v660, %v659
      %v679 = vpack.c.bf16 %v662, %v661
      %v680 = vpack.c.bf16 %v664, %v663
      %v697 = vunpack.c.l.b16 %v665
      %v698 = vunpack.c.h.b16 %v665
      %v699 = vunpack.c.l.b16 %v666
      %v700 = vunpack.c.h.b16 %v666
      %v701 = vunpack.c.l.b16 %v667
      %v702 = vunpack.c.h.b16 %v667
      %v703 = vunpack.c.l.b16 %v668
      %v704 = vunpack.c.h.b16 %v668
      %v705 = vunpack.c.l.b16 %v669
      %v706 = vunpack.c.h.b16 %v669
      %v707 = vunpack.c.l.b16 %v670
      %v708 = vunpack.c.h.b16 %v670
      %v709 = vunpack.c.l.b16 %v671
      %v710 = vunpack.c.h.b16 %v671
      %v711 = vunpack.c.l.b16 %v672
      %v712 = vunpack.c.h.b16 %v672
      %v713 = vunpack.c.l.b16 %v673
      %v714 = vunpack.c.h.b16 %v673
      %v715 = vunpack.c.l.b16 %v674
      %v716 = vunpack.c.h.b16 %v674
      %v717 = vunpack.c.l.b16 %v675
      %v718 = vunpack.c.h.b16 %v675
      %v719 = vunpack.c.l.b16 %v676
      %v720 = vunpack.c.h.b16 %v676
      %v721 = vunpack.c.l.b16 %v677
      %v722 = vunpack.c.h.b16 %v677
      %v723 = vunpack.c.l.b16 %v678
      %v724 = vunpack.c.h.b16 %v678
      %v725 = vunpack.c.l.b16 %v679
      %v726 = vunpack.c.h.b16 %v679
      %v727 = vunpack.c.l.b16 %v680
      %v728 = vunpack.c.h.b16 %v680
      %v729 = vpack.c.b16 %v697, %v697
      %v730 = vpack.c.b16 %v698, %v698
      %v731 = vpack.c.b16 %v699, %v699
      %v732 = vpack.c.b16 %v700, %v700
      %v733 = vpack.c.b16 %v701, %v701
      %v734 = vpack.c.b16 %v702, %v702
      %v735 = vpack.c.b16 %v703, %v703
      %v736 = vpack.c.b16 %v704, %v704
      %v737 = vpack.c.b16 %v705, %v705
      %v738 = vpack.c.b16 %v706, %v706
      %v739 = vpack.c.b16 %v707, %v707
      %v740 = vpack.c.b16 %v708, %v708
      %v741 = vpack.c.b16 %v709, %v709
      %v742 = vpack.c.b16 %v710, %v710
      %v743 = vpack.c.b16 %v711, %v711
      %v744 = vpack.c.b16 %v712, %v712
      %v745 = vpack.c.b16 %v713, %v713
      %v746 = vpack.c.b16 %v714, %v714
      %v747 = vpack.c.b16 %v715, %v715
      %v748 = vpack.c.b16 %v716, %v716
      %v749 = vpack.c.b16 %v717, %v717
      %v750 = vpack.c.b16 %v718, %v718
      %v751 = vpack.c.b16 %v719, %v719
      %v752 = vpack.c.b16 %v720, %v720
      %v753 = vpack.c.b16 %v721, %v721
      %v754 = vpack.c.b16 %v722, %v722
      %v755 = vpack.c.b16 %v723, %v723
      %v756 = vpack.c.b16 %v724, %v724
      %v757 = vpack.c.b16 %v725, %v725
      %v758 = vpack.c.b16 %v726, %v726
      %v759 = vpack.c.b16 %v727, %v727
      %v760 = vpack.c.b16 %v728, %v728
      %793 = vst [vmem:[%s199] sm:$0xf] %v729
      %794 = vst [vmem:[%s199 + $0x4] sm:$0xf] %v730
      %795 = vst [vmem:[%s199 + $0x8] sm:$0xf] %v731
      %796 = vst [vmem:[%s199 + $0xc] sm:$0xf] %v732
      %797 = vst [vmem:[%s199 + $0x10] sm:$0xf] %v733
      %798 = vst [vmem:[%s199 + $0x14] sm:$0xf] %v734
      %799 = vst [vmem:[%s199 + $0x18] sm:$0xf] %v735
      %800 = vst [vmem:[%s199 + $0x1c] sm:$0xf] %v736
      %801 = vst [vmem:[%s199 + $0x20] sm:$0xf] %v737
      %802 = vst [vmem:[%s199 + $0x24] sm:$0xf] %v738
      %803 = vst [vmem:[%s199 + $0x28] sm:$0xf] %v739
      %804 = vst [vmem:[%s199 + $0x2c] sm:$0xf] %v740
      %805 = vst [vmem:[%s199 + $0x30] sm:$0xf] %v741
      %806 = vst [vmem:[%s199 + $0x34] sm:$0xf] %v742
      %807 = vst [vmem:[%s199 + $0x38] sm:$0xf] %v743
      %808 = vst [vmem:[%s199 + $0x3c] sm:$0xf] %v744
      %809 = vst [vmem:[%s199 + $0x40] sm:$0xf] %v745
      %810 = vst [vmem:[%s199 + $0x44] sm:$0xf] %v746
      %811 = vst [vmem:[%s199 + $0x48] sm:$0xf] %v747
      %812 = vst [vmem:[%s199 + $0x4c] sm:$0xf] %v748
      %813 = vst [vmem:[%s199 + $0x50] sm:$0xf] %v749
      %814 = vst [vmem:[%s199 + $0x54] sm:$0xf] %v750
      %815 = vst [vmem:[%s199 + $0x58] sm:$0xf] %v751
      %816 = vst [vmem:[%s199 + $0x5c] sm:$0xf] %v752
      %817 = vst [vmem:[%s199 + $0x60] sm:$0xf] %v753
      %818 = vst [vmem:[%s199 + $0x64] sm:$0xf] %v754
      %819 = vst [vmem:[%s199 + $0x68] sm:$0xf] %v755
      %820 = vst [vmem:[%s199 + $0x6c] sm:$0xf] %v756
      %821 = vst [vmem:[%s199 + $0x70] sm:$0xf] %v757
      %822 = vst [vmem:[%s199 + $0x74] sm:$0xf] %v758
      %823 = vst [vmem:[%s199 + $0x78] sm:$0xf] %v759
      %824 = vst [vmem:[%s199 + $0x7c] sm:$0xf] %v760
      %s825 = smul.u32 32, %s15
      %p826 = scmp.lt.s32.totalorder %s825, 63
      %s827 = scalar_select %p826, %s825, 63
      %s828 = smul.addr %s827, 4
      %s829 = scalar_lea.vmem %s4, %s828
      // Predicated region
      $region37: #{_lambda_.37} parent=35 // pred_check
        %p830 = pneg %p122
      $region38: #{_lambda_.37} parent=35 // pred_check_branch
        %832 = sbr.rel (%p830) target = $region40
      $region39: #{_lambda_.37} parent=35 // pred_region
        %s833 = smul.u32 32, %s15
      $region40: #{_lambda_.37} parent=35 // pred_fallthru
        _
    $region36: #{_lambda_.37} parent=5 // pred_fallthru
      _
    %p834 = scmp.le.s32.totalorder 2, %s10
    // Predicated region
    $region41: #{_lambda_.37} parent=5 // pred_check
      %p835 = pneg %p834
    $region42: #{_lambda_.37} parent=5 // pred_check_branch
      %837 = sbr.rel (%p835) target = $region44
    $region43: #{_lambda_.37} parent=5 // pred_region
      %s838 = ssub.s32 %s10, 2
      // Predicated region
      $region45: #{_lambda_.37} parent=43 // pred_check
        %p839 = pneg %p128
      $region46: #{_lambda_.37} parent=43 // pred_check_branch
        %841 = sbr.rel (%p839) target = $region48
      $region47: #{_lambda_.37} parent=43 // pred_region
        %s842 = smul.u32 32, %s16
        %p843 = scmp.lt.s32.totalorder %s842, 63
        %s844 = scalar_select %p843, %s842, 63
        %s845 = smul.addr %s844, 4
        %s846 = scalar_lea.vmem %s4, %s845
      $region48: #{_lambda_.37} parent=43 // pred_fallthru
        _
    $region44: #{_lambda_.37} parent=5 // pred_fallthru
      _
  $region6: #{_lambda_.37} parent=0 // loop_footer
    %s14 = sadd.s32 1, %s10
  $region7: #{_lambda_.37} parent=0 // loop_footer_branch
    %9 = sbr.rel target = $region3
  $region8: #{_lambda_.37} parent=0 // loop_exit
    _

// kernel: _lambda_.38
$region0: #{_lambda_.38}
  #allocation0 [shape = 'u32[]', space=smem, size = 0x4, offset = 0x4, fixed_abs, tag = 'smem constant byte address 0x4 - core index']
  #allocation1 [shape = 'u32[144,128]{1,0:T(1,128)}', space=vmem, size = 0x12000, scoped, tag = 'internal scratch']
  %s0 = inlined_call_operand.vmem [shape: bf16[512,128], index: 0, kind: input, shape index: {}]
  %s1 = inlined_call_operand.vmem [shape: bf16[128,128], index: 1, kind: input, shape index: {}]
  %s2 = inlined_call_operand.vmem [shape: f32[1,128], index: 2, kind: input, shape index: {}]
  %s3 = inlined_call_operand.vmem [shape: f32[1,128], index: 3, kind: input, shape index: {}]
  %s4 = inlined_call_operand.vmem [shape: bf16[512,128], index: 4, kind: input, shape index: {}]
  %s5 = inlined_call_operand.vmem [shape: bf16[512,128], index: 5, kind: output, shape index: {}]
  %s6 = sld [smem:[#allocation0]]
  $region53: #{_lambda_.38} parent=0
    _
  %s8 = ssub.s32 1, %s6
  %s9 = scalar_select 0, %s8, %s6
  loop: start=0, step=1, limit=4
  $region2: #{_lambda_.38} parent=0 // loop_pre_header
    _
  $region3: #{_lambda_.38} parent=0 // loop_header
    %s11 = sphi 0, %s15
    %p12 = scmp.ge.s32.totalorder %s11, 4
    %s21 = sphi 0, %s23
    %s24 = sphi 0, %s21
    %s25 = sphi 0, %s24
    %s41 = sphi 0, %s25
    %s45 = sphi 0, %s45
    %s47 = sphi 0, %s45
    %s48 = sphi 0, %s47
    %s62 = sphi 0, %s48
    %s66 = sphi 0, %s66
    %s68 = sphi 0, %s66
    %s69 = sphi 0, %s68
    %s83 = sphi 0, %s69
    %s87 = sphi 0, %s87
    %s89 = sphi 0, %s87
    %s90 = sphi 0, %s89
    %s104 = sphi 0, %s90
    %s110 = sphi 0, %s112
    %s113 = sphi 0, %s110
    %s114 = sphi 0, %s113
    %s130 = sphi 0, %s114
    %s136 = sphi 0, %s138
    %s139 = sphi 0, %s136
    %s140 = sphi 0, %s139
    %s156 = sphi 0, %s140
  $region4: #{_lambda_.38} parent=0 // loop_header_branch
    %14 = sbr.rel (%p12) target = $region8
  $region5: #{_lambda_.38} parent=0 // loop_body
    %s16 = ssub.s32 %s11, 1
    %s17 = ssub.s32 %s11, 2
    %s18 = sadd.s32 %s11, 1
    %s19 = ssub.s32 %s11, %s18
    %p20 = scmp.eq.s32.totalorder %s19, 0
    %s22 = sadd.s32 %s21, 1
    %s23 = scalar_select %p20, %s21, %s22
    %p26 = pneg %p20
    %p27 = scmp.eq.s32.totalorder %s11, 1
    %p28 = por %p26, %p27
    %p29 = scmp.ne.s32.totalorder %s21, %s24
    %p30 = scmp.eq.s32.totalorder %s11, 0
    %p31 = por %p29, %p30
    %p32 = scmp.ne.s32.totalorder %s21, %s24
    %p33 = scmp.eq.s32.totalorder %s16, 1
    %p34 = por %p32, %p33
    %p35 = scmp.ne.s32.totalorder %s24, %s25
    %p36 = scmp.eq.s32.totalorder %s16, 0
    %p37 = por %p35, %p36
    %p38 = scmp.ne.s32.totalorder %s24, %s25
    %p39 = scmp.eq.s32.totalorder %s17, 1
    %p40 = por %p38, %p39
    %p42 = scmp.ne.s32.totalorder %s25, %s41
    %p43 = scmp.eq.s32.totalorder %s17, 0
    %p44 = por %p42, %p43
    %s46 = sadd.s32 %s45, 1
    %p49 = scmp.eq.s32.totalorder %s11, 1
    %p50 = scmp.ne.s32.totalorder %s45, %s47
    %p51 = scmp.eq.s32.totalorder %s11, 0
    %p52 = por %p50, %p51
    %p53 = scmp.ne.s32.totalorder %s45, %s47
    %p54 = scmp.eq.s32.totalorder %s16, 1
    %p55 = por %p53, %p54
    %p56 = scmp.ne.s32.totalorder %s47, %s48
    %p57 = scmp.eq.s32.totalorder %s16, 0
    %p58 = por %p56, %p57
    %p59 = scmp.ne.s32.totalorder %s47, %s48
    %p60 = scmp.eq.s32.totalorder %s17, 1
    %p61 = por %p59, %p60
    %p63 = scmp.ne.s32.totalorder %s48, %s62
    %p64 = scmp.eq.s32.totalorder %s17, 0
    %p65 = por %p63, %p64
    %s67 = sadd.s32 %s66, 1
    %p70 = scmp.eq.s32.totalorder %s11, 1
    %p71 = scmp.ne.s32.totalorder %s66, %s68
    %p72 = scmp.eq.s32.totalorder %s11, 0
    %p73 = por %p71, %p72
    %p74 = scmp.ne.s32.totalorder %s66, %s68
    %p75 = scmp.eq.s32.totalorder %s16, 1
    %p76 = por %p74, %p75
    %p77 = scmp.ne.s32.totalorder %s68, %s69
    %p78 = scmp.eq.s32.totalorder %s16, 0
    %p79 = por %p77, %p78
    %p80 = scmp.ne.s32.totalorder %s68, %s69
    %p81 = scmp.eq.s32.totalorder %s17, 1
    %p82 = por %p80, %p81
    %p84 = scmp.ne.s32.totalorder %s69, %s83
    %p85 = scmp.eq.s32.totalorder %s17, 0
    %p86 = por %p84, %p85
    %s88 = sadd.s32 %s87, 1
    %p91 = scmp.eq.s32.totalorder %s11, 1
    %p92 = scmp.ne.s32.totalorder %s87, %s89
    %p93 = scmp.eq.s32.totalorder %s11, 0
    %p94 = por %p92, %p93
    %p95 = scmp.ne.s32.totalorder %s87, %s89
    %p96 = scmp.eq.s32.totalorder %s16, 1
    %p97 = por %p95, %p96
    %p98 = scmp.ne.s32.totalorder %s89, %s90
    %p99 = scmp.eq.s32.totalorder %s16, 0
    %p100 = por %p98, %p99
    %p101 = scmp.ne.s32.totalorder %s89, %s90
    %p102 = scmp.eq.s32.totalorder %s17, 1
    %p103 = por %p101, %p102
    %p105 = scmp.ne.s32.totalorder %s90, %s104
    %p106 = scmp.eq.s32.totalorder %s17, 0
    %p107 = por %p105, %p106
    %s108 = ssub.s32 %s11, %s18
    %p109 = scmp.eq.s32.totalorder %s108, 0
    %s111 = sadd.s32 %s110, 1
    %s112 = scalar_select %p109, %s110, %s111
    %p115 = pneg %p109
    %p116 = scmp.eq.s32.totalorder %s11, 1
    %p117 = por %p115, %p116
    %p118 = scmp.ne.s32.totalorder %s110, %s113
    %p119 = scmp.eq.s32.totalorder %s11, 0
    %p120 = por %p118, %p119
    %p121 = scmp.ne.s32.totalorder %s110, %s113
    %p122 = scmp.eq.s32.totalorder %s16, 1
    %p123 = por %p121, %p122
    %p124 = scmp.ne.s32.totalorder %s113, %s114
    %p125 = scmp.eq.s32.totalorder %s16, 0
    %p126 = por %p124, %p125
    %p127 = scmp.ne.s32.totalorder %s113, %s114
    %p128 = scmp.eq.s32.totalorder %s17, 1
    %p129 = por %p127, %p128
    %p131 = scmp.ne.s32.totalorder %s114, %s130
    %p132 = scmp.eq.s32.totalorder %s17, 0
    %p133 = por %p131, %p132
    %s134 = ssub.s32 %s11, %s18
    %p135 = scmp.eq.s32.totalorder %s134, 0
    %s137 = sadd.s32 %s136, 1
    %s138 = scalar_select %p135, %s136, %s137
    %p141 = pneg %p135
    %p142 = scmp.eq.s32.totalorder %s11, 1
    %p143 = por %p141, %p142
    %p144 = scmp.ne.s32.totalorder %s136, %s139
    %p145 = scmp.eq.s32.totalorder %s11, 0
    %p146 = por %p144, %p145
    %p147 = scmp.ne.s32.totalorder %s136, %s139
    %p148 = scmp.eq.s32.totalorder %s16, 1
    %p149 = por %p147, %p148
    %p150 = scmp.ne.s32.totalorder %s139, %s140
    %p151 = scmp.eq.s32.totalorder %s16, 0
    %p152 = por %p150, %p151
    %p153 = scmp.ne.s32.totalorder %s139, %s140
    %p154 = scmp.eq.s32.totalorder %s17, 1
    %p155 = por %p153, %p154
    %p157 = scmp.ne.s32.totalorder %s140, %s156
    %p158 = scmp.eq.s32.totalorder %s17, 0
    %p159 = por %p157, %p158
    %p160 = scmp.le.s32.totalorder 1, %s11
    %p161 = scmp.lt.s32.totalorder %s11, 3
    %p162 = pnand %p160, %p161
    %p163 = pneg %p162
    // Predicated region
    $region9: #{_lambda_.38} parent=5 // pred_check
      _
    $region10: #{_lambda_.38} parent=5 // pred_check_branch
      %165 = sbr.rel (%p162) target = $region12
    $region11: #{_lambda_.38} parent=5 // pred_region
      %s166 = ssub.s32 %s11, 1
      // Predicated region
      $region13: #{_lambda_.38} parent=11 // pred_check
        %p167 = pneg %p58
      $region14: #{_lambda_.38} parent=11 // pred_check_branch
        %169 = sbr.rel (%p167) target = $region16
      $region15: #{_lambda_.38} parent=11 // pred_region
        _
      $region16: #{_lambda_.38} parent=11 // pred_fallthru
        _
      // Predicated region
      $region17: #{_lambda_.38} parent=11 // pred_check
        %p170 = pneg %p79
      $region18: #{_lambda_.38} parent=11 // pred_check_branch
        %172 = sbr.rel (%p170) target = $region20
      $region19: #{_lambda_.38} parent=11 // pred_region
        _
      $region20: #{_lambda_.38} parent=11 // pred_fallthru
        _
      // Predicated region
      $region21: #{_lambda_.38} parent=11 // pred_check
        %p173 = pneg %p100
      $region22: #{_lambda_.38} parent=11 // pred_check_branch
        %175 = sbr.rel (%p173) target = $region24
      $region23: #{_lambda_.38} parent=11 // pred_region
        _
      $region24: #{_lambda_.38} parent=11 // pred_fallthru
        _
    $region12: #{_lambda_.38} parent=5 // pred_fallthru
      _
    %p176 = scmp.lt.s32.totalorder %s11, 2
    // Predicated region
    $region25: #{_lambda_.38} parent=5 // pred_check
      %p177 = pneg %p176
    $region26: #{_lambda_.38} parent=5 // pred_check_branch
      %179 = sbr.rel (%p177) target = $region28
    $region27: #{_lambda_.38} parent=5 // pred_region
      // Predicated region
      $region29: #{_lambda_.38} parent=27 // pred_check
        %p180 = pneg %p31
      $region30: #{_lambda_.38} parent=27 // pred_check_branch
        %182 = sbr.rel (%p180) target = $region32
      $region31: #{_lambda_.38} parent=27 // pred_region
        %s183 = smul.u32 32, %s11
        %p184 = scmp.lt.s32.totalorder %s183, 63
        %s185 = scalar_select %p184, %s183, 63
        %s186 = smul.addr %s185, 4
        %s187 = scalar_lea.vmem %s0, %s186
        %s188 = smul.u32 32, %s11
      $region32: #{_lambda_.38} parent=27 // pred_fallthru
        _
      // Predicated region
      $region33: #{_lambda_.38} parent=27 // pred_check
        %p189 = pneg %p120
      $region34: #{_lambda_.38} parent=27 // pred_check_branch
        %191 = sbr.rel (%p189) target = $region36
      $region35: #{_lambda_.38} parent=27 // pred_region
        %s192 = smul.u32 32, %s11
        %p193 = scmp.lt.s32.totalorder %s192, 63
        %s194 = scalar_select %p193, %s192, 63
        %s195 = smul.addr %s194, 4
        %s196 = scalar_lea.vmem %s4, %s195
        %s197 = smul.u32 32, %s11
      $region36: #{_lambda_.38} parent=27 // pred_fallthru
        _
    $region28: #{_lambda_.38} parent=5 // pred_fallthru
      _
    %p198 = scmp.le.s32.totalorder 1, %s11
    %p199 = scmp.lt.s32.totalorder %s11, 3
    %p200 = pnand %p198, %p199
    %p201 = pneg %p200
    // Predicated region
    $region37: #{_lambda_.38} parent=5 // pred_check
      _
    $region38: #{_lambda_.38} parent=5 // pred_check_branch
      %203 = sbr.rel (%p200) target = $region40
    $region39: #{_lambda_.38} parent=5 // pred_region
      %s204 = ssub.s32 %s11, 1
      %s205 = smul.u32 32, %s16
      %p206 = scmp.lt.s32.totalorder %s205, 63
      %s207 = scalar_select %p206, %s205, 63
      %s208 = smul.addr %s207, 4
      %s209 = scalar_lea.vmem %s0, %s208
      %p210 = pneg %p37
      %p211 = pneg %p34
      %p212 = pneg %p58
      %p213 = pneg %p55
      %p214 = pneg %p79
      %p215 = pneg %p76
      %p216 = pneg %p100
      %p217 = pneg %p97
      %s218 = smul.u32 32, %s16
      %p219 = scmp.lt.s32.totalorder %s218, 63
      %s220 = scalar_select %p219, %s218, 63
      %s221 = smul.addr %s220, 4
      %s222 = scalar_lea.vmem %s4, %s221
      %p223 = pneg %p126
      %p224 = pneg %p123
      %p225 = pneg %p152
      %p226 = pneg %p149
      %s227 = smul.u32 32, %s16
      %p228 = scmp.lt.s32.totalorder %s227, 63
      %s229 = scalar_select %p228, %s227, 63
      %s230 = smul.addr %s229, 4
      %s231 = scalar_lea.vmem %s5, %s230
      %s232 = smul.u32 32, %s16
      %p233 = scmp.lt.s32.totalorder %s232, 63
      %s234 = scalar_select %p233, %s232, 63
      %s235 = smul.addr %s234, 4
      %s236 = scalar_lea.vmem %s0, %s235
      %s237 = smul.u32 32, %s16
      %s238 = smul.u32 32, %s16
      %p239 = scmp.lt.s32.totalorder %s238, 63
      %s240 = scalar_select %p239, %s238, 63
      %s241 = smul.addr %s240, 4
      %s242 = scalar_lea.vmem %s4, %s241
      %s243 = smul.u32 32, %s16
      %s244 = smul.u32 32, %s16
      %p245 = scmp.lt.s32.totalorder %s244, 63
      %s246 = scalar_select %p245, %s244, 63
      %s247 = smul.addr %s246, 4
      %s248 = scalar_lea.vmem %s5, %s247
      %s249 = smul.u32 32, %s16
      %v251 = vld [vmem:[%s236] sm:$0xf]
      %v252 = vld [vmem:[%s236 + $0x4] sm:$0xf]
      %v253 = vld [vmem:[%s236 + $0x8] sm:$0xf]
      %v254 = vld [vmem:[%s236 + $0xc] sm:$0xf]
      %v255 = vld [vmem:[%s236 + $0x10] sm:$0xf]
      %v256 = vld [vmem:[%s236 + $0x14] sm:$0xf]
      %v257 = vld [vmem:[%s236 + $0x18] sm:$0xf]
      %v258 = vld [vmem:[%s236 + $0x1c] sm:$0xf]
      %v259 = vld [vmem:[%s236 + $0x20] sm:$0xf]
      %v260 = vld [vmem:[%s236 + $0x24] sm:$0xf]
      %v261 = vld [vmem:[%s236 + $0x28] sm:$0xf]
      %v262 = vld [vmem:[%s236 + $0x2c] sm:$0xf]
      %v263 = vld [vmem:[%s236 + $0x30] sm:$0xf]
      %v264 = vld [vmem:[%s236 + $0x34] sm:$0xf]
      %v265 = vld [vmem:[%s236 + $0x38] sm:$0xf]
      %v266 = vld [vmem:[%s236 + $0x3c] sm:$0xf]
      %v267 = vld [vmem:[%s236 + $0x40] sm:$0xf]
      %v268 = vld [vmem:[%s236 + $0x44] sm:$0xf]
      %v269 = vld [vmem:[%s236 + $0x48] sm:$0xf]
      %v270 = vld [vmem:[%s236 + $0x4c] sm:$0xf]
      %v271 = vld [vmem:[%s236 + $0x50] sm:$0xf]
      %v272 = vld [vmem:[%s236 + $0x54] sm:$0xf]
      %v273 = vld [vmem:[%s236 + $0x58] sm:$0xf]
      %v274 = vld [vmem:[%s236 + $0x5c] sm:$0xf]
      %v275 = vld [vmem:[%s236 + $0x60] sm:$0xf]
      %v276 = vld [vmem:[%s236 + $0x64] sm:$0xf]
      %v277 = vld [vmem:[%s236 + $0x68] sm:$0xf]
      %v278 = vld [vmem:[%s236 + $0x6c] sm:$0xf]
      %v279 = vld [vmem:[%s236 + $0x70] sm:$0xf]
      %v280 = vld [vmem:[%s236 + $0x74] sm:$0xf]
      %v281 = vld [vmem:[%s236 + $0x78] sm:$0xf]
      %v282 = vld [vmem:[%s236 + $0x7c] sm:$0xf]
      %v283 = vld [vmem:[%s1] sm:$0xf]
      %v284 = vld [vmem:[%s1 + $0x4] sm:$0xf]
      %v285 = vld [vmem:[%s1 + $0x8] sm:$0xf]
      %v286 = vld [vmem:[%s1 + $0xc] sm:$0xf]
      %v287 = vld [vmem:[%s1 + $0x10] sm:$0xf]
      %v288 = vld [vmem:[%s1 + $0x14] sm:$0xf]
      %v289 = vld [vmem:[%s1 + $0x18] sm:$0xf]
      %v290 = vld [vmem:[%s1 + $0x1c] sm:$0xf]
      %v291 = vld [vmem:[%s1 + $0x20] sm:$0xf]
      %v292 = vld [vmem:[%s1 + $0x24] sm:$0xf]
      %v293 = vld [vmem:[%s1 + $0x28] sm:$0xf]
      %v294 = vld [vmem:[%s1 + $0x2c] sm:$0xf]
      %v295 = vld [vmem:[%s1 + $0x30] sm:$0xf]
      %v296 = vld [vmem:[%s1 + $0x34] sm:$0xf]
      %v297 = vld [vmem:[%s1 + $0x38] sm:$0xf]
      %v298 = vld [vmem:[%s1 + $0x3c] sm:$0xf]
      %v331 = vunpack.c.l.b16 %v251
      %v332 = vunpack.c.l.b16 %v252
      %v333 = vunpack.c.l.b16 %v253
      %v334 = vunpack.c.l.b16 %v254
      %v335 = vunpack.c.l.b16 %v255
      %v336 = vunpack.c.l.b16 %v256
      %v337 = vunpack.c.l.b16 %v257
      %v338 = vunpack.c.l.b16 %v258
      %v339 = vunpack.c.l.b16 %v259
      %v340 = vunpack.c.l.b16 %v260
      %v341 = vunpack.c.l.b16 %v261
      %v342 = vunpack.c.l.b16 %v262
      %v343 = vunpack.c.l.b16 %v263
      %v344 = vunpack.c.l.b16 %v264
      %v345 = vunpack.c.l.b16 %v265
      %v346 = vunpack.c.l.b16 %v266
      %v347 = vunpack.c.l.b16 %v267
      %v348 = vunpack.c.l.b16 %v268
      %v349 = vunpack.c.l.b16 %v269
      %v350 = vunpack.c.l.b16 %v270
      %v351 = vunpack.c.l.b16 %v271
      %v352 = vunpack.c.l.b16 %v272
      %v353 = vunpack.c.l.b16 %v273
      %v354 = vunpack.c.l.b16 %v274
      %v355 = vunpack.c.l.b16 %v275
      %v356 = vunpack.c.l.b16 %v276
      %v357 = vunpack.c.l.b16 %v277
      %v358 = vunpack.c.l.b16 %v278
      %v359 = vunpack.c.l.b16 %v279
      %v360 = vunpack.c.l.b16 %v280
      %v361 = vunpack.c.l.b16 %v281
      %v362 = vunpack.c.l.b16 %v282
      %v363 = vpack.c.b16 %v332, %v331
      %v364 = vpack.c.b16 %v334, %v333
      %v365 = vpack.c.b16 %v336, %v335
      %v366 = vpack.c.b16 %v338, %v337
      %v367 = vpack.c.b16 %v340, %v339
      %v368 = vpack.c.b16 %v342, %v341
      %v369 = vpack.c.b16 %v344, %v343
      %v370 = vpack.c.b16 %v346, %v345
      %v371 = vpack.c.b16 %v348, %v347
      %v372 = vpack.c.b16 %v350, %v349
      %v373 = vpack.c.b16 %v352, %v351
      %v374 = vpack.c.b16 %v354, %v353
      %v375 = vpack.c.b16 %v356, %v355
      %v376 = vpack.c.b16 %v358, %v357
      %v377 = vpack.c.b16 %v360, %v359
      %v378 = vpack.c.b16 %v362, %v361
      %v411 = vunpack.c.l.b16 %v283
      %v412 = vunpack.c.l.b16 %v284
      %v413 = vunpack.c.l.b16 %v285
      %v414 = vunpack.c.l.b16 %v286
      %v415 = vunpack.c.l.b16 %v287
      %v416 = vunpack.c.l.b16 %v288
      %v417 = vunpack.c.l.b16 %v289
      %v418 = vunpack.c.l.b16 %v290
      %v419 = vunpack.c.l.b16 %v291
      %v420 = vunpack.c.l.b16 %v292
      %v421 = vunpack.c.l.b16 %v293
      %v422 = vunpack.c.l.b16 %v294
      %v423 = vunpack.c.l.b16 %v295
      %v424 = vunpack.c.l.b16 %v296
      %v425 = vunpack.c.l.b16 %v297
      %v426 = vunpack.c.l.b16 %v298
      %v427 = vpack.c.b16 %v412, %v411
      %v428 = vpack.c.b16 %v414, %v413
      %v429 = vpack.c.b16 %v416, %v415
      %v430 = vpack.c.b16 %v418, %v417
      %v431 = vpack.c.b16 %v420, %v419
      %v432 = vpack.c.b16 %v422, %v421
      %v433 = vpack.c.b16 %v424, %v423
      %v434 = vpack.c.b16 %v426, %v425
      %443 = vmatprep.subr.bf16.mxu0 0
      %444 = vmatpush1.bf16.msra.mxu0 %v434
      %445 = vmatprep.subr.bf16.mxu0 0
      %446 = vmatpush1.bf16.msra.mxu0 %v433
      %447 = vmatprep.subr.bf16.mxu0 0
      %448 = vmatpush1.bf16.msra.mxu0 %v432
      %449 = vmatprep.subr.bf16.mxu0 0
      %450 = vmatpush1.bf16.msra.mxu0 %v431
      %451 = vmatprep.subr.bf16.mxu0 0
      %452 = vmatpush1.bf16.msra.mxu0 %v430
      %453 = vmatprep.subr.bf16.mxu0 0
      %454 = vmatpush1.bf16.msra.mxu0 %v429
      %455 = vmatprep.subr.bf16.mxu0 0
      %456 = vmatpush1.bf16.msra.mxu0 %v428
      %457 = vmatprep.subr.bf16.mxu0 0
      %458 = vmatpush1.bf16.msra.mxu0 %v427
      %459 = vmatprep.subr.bf16.mxu0 0
      %460 = vmatpush2.bf16.msra.mxu0 0
      %461 = vmatprep.subr.bf16.mxu0 0
      %462 = vmatpush2.bf16.msra.mxu0 0
      %463 = vmatprep.subr.bf16.mxu0 0
      %464 = vmatpush2.bf16.msra.mxu0 0
      %465 = vmatprep.subr.bf16.mxu0 0
      %466 = vmatpush2.bf16.msra.mxu0 0
      %467 = vmatprep.subr.bf16.mxu0 0
      %468 = vmatpush2.bf16.msra.mxu0 0
      %469 = vmatprep.subr.bf16.mxu0 0
      %470 = vmatpush2.bf16.msra.mxu0 0
      %471 = vmatprep.subr.bf16.mxu0 0
      %472 = vmatpush2.bf16.msra.mxu0 0
      %473 = vmatprep.subr.bf16.mxu0 0
      %474 = vmatpush2.bf16.msra.mxu0 0
      %475 = vmatprep.mubr.bf16.mxu0 0
      %476 = vmatmul.mubr.bf16.gmra.mxu0 %v363
      %v477 = vpop.f32.mrf.mxu0
      %v478 = vadd.f32 0.0, %v477
      %v479 = vpop.f32.mrf.mxu0
      %v480 = vpop.f32.mrf.mxu0
      %v481 = vadd.f32 0.0, %v480
      %v482 = vpop.f32.mrf.mxu0
      %483 = vmatprep.mubr.bf16.mxu0 0
      %484 = vmatmul.mubr.bf16.gmra.mxu0 %v364
      %v485 = vpop.f32.mrf.mxu0
      %v486 = vadd.f32 0.0, %v485
      %v487 = vpop.f32.mrf.mxu0
      %v488 = vpop.f32.mrf.mxu0
      %v489 = vadd.f32 0.0, %v488
      %v490 = vpop.f32.mrf.mxu0
      %491 = vmatprep.mubr.bf16.mxu0 0
      %492 = vmatmul.mubr.bf16.gmra.mxu0 %v365
      %v493 = vpop.f32.mrf.mxu0
      %v494 = vadd.f32 0.0, %v493
      %v495 = vpop.f32.mrf.mxu0
      %v496 = vpop.f32.mrf.mxu0
      %v497 = vadd.f32 0.0, %v496
      %v498 = vpop.f32.mrf.mxu0
      %499 = vmatprep.mubr.bf16.mxu0 0
      %500 = vmatmul.mubr.bf16.gmra.mxu0 %v366
      %v501 = vpop.f32.mrf.mxu0
      %v502 = vadd.f32 0.0, %v501
      %v503 = vpop.f32.mrf.mxu0
      %v504 = vpop.f32.mrf.mxu0
      %v505 = vadd.f32 0.0, %v504
      %v506 = vpop.f32.mrf.mxu0
      %507 = vmatprep.mubr.bf16.mxu0 0
      %508 = vmatmul.mubr.bf16.gmra.mxu0 %v367
      %v509 = vpop.f32.mrf.mxu0
      %v510 = vadd.f32 0.0, %v509
      %v511 = vpop.f32.mrf.mxu0
      %v512 = vpop.f32.mrf.mxu0
      %v513 = vadd.f32 0.0, %v512
      %v514 = vpop.f32.mrf.mxu0
      %515 = vmatprep.mubr.bf16.mxu0 0
      %516 = vmatmul.mubr.bf16.gmra.mxu0 %v368
      %v517 = vpop.f32.mrf.mxu0
      %v518 = vadd.f32 0.0, %v517
      %v519 = vpop.f32.mrf.mxu0
      %v520 = vpop.f32.mrf.mxu0
      %v521 = vadd.f32 0.0, %v520
      %v522 = vpop.f32.mrf.mxu0
      %523 = vmatprep.mubr.bf16.mxu0 0
      %524 = vmatmul.mubr.bf16.gmra.mxu0 %v369
      %v525 = vpop.f32.mrf.mxu0
      %v526 = vadd.f32 0.0, %v525
      %v527 = vpop.f32.mrf.mxu0
      %v528 = vpop.f32.mrf.mxu0
      %v529 = vadd.f32 0.0, %v528
      %v530 = vpop.f32.mrf.mxu0
      %531 = vmatprep.mubr.bf16.mxu0 0
      %532 = vmatmul.mubr.bf16.gmra.mxu0 %v370
      %v533 = vpop.f32.mrf.mxu0
      %v534 = vadd.f32 0.0, %v533
      %v535 = vpop.f32.mrf.mxu0
      %v536 = vpop.f32.mrf.mxu0
      %v537 = vadd.f32 0.0, %v536
      %v538 = vpop.f32.mrf.mxu0
      %539 = vmatprep.mubr.bf16.mxu0 0
      %540 = vmatmul.mubr.bf16.gmra.mxu0 %v371
      %v541 = vpop.f32.mrf.mxu0
      %v542 = vadd.f32 0.0, %v541
      %v543 = vpop.f32.mrf.mxu0
      %v544 = vpop.f32.mrf.mxu0
      %v545 = vadd.f32 0.0, %v544
      %v546 = vpop.f32.mrf.mxu0
      %547 = vmatprep.mubr.bf16.mxu0 0
      %548 = vmatmul.mubr.bf16.gmra.mxu0 %v372
      %v549 = vpop.f32.mrf.mxu0
      %v550 = vadd.f32 0.0, %v549
      %v551 = vpop.f32.mrf.mxu0
      %v552 = vpop.f32.mrf.mxu0
      %v553 = vadd.f32 0.0, %v552
      %v554 = vpop.f32.mrf.mxu0
      %555 = vmatprep.mubr.bf16.mxu0 0
      %556 = vmatmul.mubr.bf16.gmra.mxu0 %v373
      %v557 = vpop.f32.mrf.mxu0
      %v558 = vadd.f32 0.0, %v557
      %v559 = vpop.f32.mrf.mxu0
      %v560 = vpop.f32.mrf.mxu0
      %v561 = vadd.f32 0.0, %v560
      %v562 = vpop.f32.mrf.mxu0
      %563 = vmatprep.mubr.bf16.mxu0 0
      %564 = vmatmul.mubr.bf16.gmra.mxu0 %v374
      %v565 = vpop.f32.mrf.mxu0
      %v566 = vadd.f32 0.0, %v565
      %v567 = vpop.f32.mrf.mxu0
      %v568 = vpop.f32.mrf.mxu0
      %v569 = vadd.f32 0.0, %v568
      %v570 = vpop.f32.mrf.mxu0
      %571 = vmatprep.mubr.bf16.mxu0 0
      %572 = vmatmul.mubr.bf16.gmra.mxu0 %v375
      %v573 = vpop.f32.mrf.mxu0
      %v574 = vadd.f32 0.0, %v573
      %v575 = vpop.f32.mrf.mxu0
      %v576 = vpop.f32.mrf.mxu0
      %v577 = vadd.f32 0.0, %v576
      %v578 = vpop.f32.mrf.mxu0
      %579 = vmatprep.mubr.bf16.mxu0 0
      %580 = vmatmul.mubr.bf16.gmra.mxu0 %v376
      %v581 = vpop.f32.mrf.mxu0
      %v582 = vadd.f32 0.0, %v581
      %v583 = vpop.f32.mrf.mxu0
      %v584 = vpop.f32.mrf.mxu0
      %v585 = vadd.f32 0.0, %v584
      %v586 = vpop.f32.mrf.mxu0
      %587 = vmatprep.mubr.bf16.mxu0 0
      %588 = vmatmul.mubr.bf16.gmra.mxu0 %v377
      %v589 = vpop.f32.mrf.mxu0
      %v590 = vadd.f32 0.0, %v589
      %v591 = vpop.f32.mrf.mxu0
      %v592 = vpop.f32.mrf.mxu0
      %v593 = vadd.f32 0.0, %v592
      %v594 = vpop.f32.mrf.mxu0
      %595 = vmatprep.mubr.bf16.mxu0 0
      %596 = vmatmul.mubr.bf16.gmra.mxu0 %v378
      %v597 = vpop.f32.mrf.mxu0
      %v598 = vadd.f32 0.0, %v597
      %v599 = vpop.f32.mrf.mxu0
      %v600 = vpop.f32.mrf.mxu0
      %v601 = vadd.f32 0.0, %v600
      %v602 = vpop.f32.mrf.mxu0
      %603 = vdwg.mxu0
      %v604 = vld [vmem:[%s2] sm:$0x1]
      %v606 = vlaneseq
      %v607 = vshrl.u32 %v606, 7
      %v608 = vsub.s32 0, %v607
      %v609 = vrot.slane %v604, %v608
      %v611 = vmul.f32 %v478, %v609
      %v612 = vmul.f32 %v481, %v609
      %v613 = vmul.f32 %v486, %v609
      %v614 = vmul.f32 %v489, %v609
      %v615 = vmul.f32 %v494, %v609
      %v616 = vmul.f32 %v497, %v609
      %v617 = vmul.f32 %v502, %v609
      %v618 = vmul.f32 %v505, %v609
      %v619 = vmul.f32 %v510, %v609
      %v620 = vmul.f32 %v513, %v609
      %v621 = vmul.f32 %v518, %v609
      %v622 = vmul.f32 %v521, %v609
      %v623 = vmul.f32 %v526, %v609
      %v624 = vmul.f32 %v529, %v609
      %v625 = vmul.f32 %v534, %v609
      %v626 = vmul.f32 %v537, %v609
      %v627 = vmul.f32 %v542, %v609
      %v628 = vmul.f32 %v545, %v609
      %v629 = vmul.f32 %v550, %v609
      %v630 = vmul.f32 %v553, %v609
      %v631 = vmul.f32 %v558, %v609
      %v632 = vmul.f32 %v561, %v609
      %v633 = vmul.f32 %v566, %v609
      %v634 = vmul.f32 %v569, %v609
      %v635 = vmul.f32 %v574, %v609
      %v636 = vmul.f32 %v577, %v609
      %v637 = vmul.f32 %v582, %v609
      %v638 = vmul.f32 %v585, %v609
      %v639 = vmul.f32 %v590, %v609
      %v640 = vmul.f32 %v593, %v609
      %v641 = vmul.f32 %v598, %v609
      %v642 = vmul.f32 %v601, %v609
      %v643 = vld [vmem:[%s3] sm:$0x1]
      %v645 = vlaneseq
      %v646 = vshrl.u32 %v645, 7
      %v647 = vsub.s32 0, %v646
      %v648 = vrot.slane %v643, %v647
      %v650 = vadd.f32 %v611, %v648
      %v651 = vadd.f32 %v612, %v648
      %v652 = vadd.f32 %v613, %v648
      %v653 = vadd.f32 %v614, %v648
      %v654 = vadd.f32 %v615, %v648
      %v655 = vadd.f32 %v616, %v648
      %v656 = vadd.f32 %v617, %v648
      %v657 = vadd.f32 %v618, %v648
      %v658 = vadd.f32 %v619, %v648
      %v659 = vadd.f32 %v620, %v648
      %v660 = vadd.f32 %v621, %v648
      %v661 = vadd.f32 %v622, %v648
      %v662 = vadd.f32 %v623, %v648
      %v663 = vadd.f32 %v624, %v648
      %v664 = vadd.f32 %v625, %v648
      %v665 = vadd.f32 %v626, %v648
      %v666 = vadd.f32 %v627, %v648
      %v667 = vadd.f32 %v628, %v648
      %v668 = vadd.f32 %v629, %v648
      %v669 = vadd.f32 %v630, %v648
      %v670 = vadd.f32 %v631, %v648
      %v671 = vadd.f32 %v632, %v648
      %v672 = vadd.f32 %v633, %v648
      %v673 = vadd.f32 %v634, %v648
      %v674 = vadd.f32 %v635, %v648
      %v675 = vadd.f32 %v636, %v648
      %v676 = vadd.f32 %v637, %v648
      %v677 = vadd.f32 %v638, %v648
      %v678 = vadd.f32 %v639, %v648
      %v679 = vadd.f32 %v640, %v648
      %v680 = vadd.f32 %v641, %v648
      %v681 = vadd.f32 %v642, %v648
      %v682 = vld [vmem:[%s242] sm:$0xf]
      %v683 = vld [vmem:[%s242 + $0x4] sm:$0xf]
      %v684 = vld [vmem:[%s242 + $0x8] sm:$0xf]
      %v685 = vld [vmem:[%s242 + $0xc] sm:$0xf]
      %v686 = vld [vmem:[%s242 + $0x10] sm:$0xf]
      %v687 = vld [vmem:[%s242 + $0x14] sm:$0xf]
      %v688 = vld [vmem:[%s242 + $0x18] sm:$0xf]
      %v689 = vld [vmem:[%s242 + $0x1c] sm:$0xf]
      %v690 = vld [vmem:[%s242 + $0x20] sm:$0xf]
      %v691 = vld [vmem:[%s242 + $0x24] sm:$0xf]
      %v692 = vld [vmem:[%s242 + $0x28] sm:$0xf]
      %v693 = vld [vmem:[%s242 + $0x2c] sm:$0xf]
      %v694 = vld [vmem:[%s242 + $0x30] sm:$0xf]
      %v695 = vld [vmem:[%s242 + $0x34] sm:$0xf]
      %v696 = vld [vmem:[%s242 + $0x38] sm:$0xf]
      %v697 = vld [vmem:[%s242 + $0x3c] sm:$0xf]
      %v698 = vld [vmem:[%s242 + $0x40] sm:$0xf]
      %v699 = vld [vmem:[%s242 + $0x44] sm:$0xf]
      %v700 = vld [vmem:[%s242 + $0x48] sm:$0xf]
      %v701 = vld [vmem:[%s242 + $0x4c] sm:$0xf]
      %v702 = vld [vmem:[%s242 + $0x50] sm:$0xf]
      %v703 = vld [vmem:[%s242 + $0x54] sm:$0xf]
      %v704 = vld [vmem:[%s242 + $0x58] sm:$0xf]
      %v705 = vld [vmem:[%s242 + $0x5c] sm:$0xf]
      %v706 = vld [vmem:[%s242 + $0x60] sm:$0xf]
      %v707 = vld [vmem:[%s242 + $0x64] sm:$0xf]
      %v708 = vld [vmem:[%s242 + $0x68] sm:$0xf]
      %v709 = vld [vmem:[%s242 + $0x6c] sm:$0xf]
      %v710 = vld [vmem:[%s242 + $0x70] sm:$0xf]
      %v711 = vld [vmem:[%s242 + $0x74] sm:$0xf]
      %v712 = vld [vmem:[%s242 + $0x78] sm:$0xf]
      %v713 = vld [vmem:[%s242 + $0x7c] sm:$0xf]
      %v714 = vunpack.c.l.bf16 %v682
      %v715 = vunpack.c.l.bf16 %v683
      %v716 = vunpack.c.l.bf16 %v684
      %v717 = vunpack.c.l.bf16 %v685
      %v718 = vunpack.c.l.bf16 %v686
      %v719 = vunpack.c.l.bf16 %v687
      %v720 = vunpack.c.l.bf16 %v688
      %v721 = vunpack.c.l.bf16 %v689
      %v722 = vunpack.c.l.bf16 %v690
      %v723 = vunpack.c.l.bf16 %v691
      %v724 = vunpack.c.l.bf16 %v692
      %v725 = vunpack.c.l.bf16 %v693
      %v726 = vunpack.c.l.bf16 %v694
      %v727 = vunpack.c.l.bf16 %v695
      %v728 = vunpack.c.l.bf16 %v696
      %v729 = vunpack.c.l.bf16 %v697
      %v730 = vunpack.c.l.bf16 %v698
      %v731 = vunpack.c.l.bf16 %v699
      %v732 = vunpack.c.l.bf16 %v700
      %v733 = vunpack.c.l.bf16 %v701
      %v734 = vunpack.c.l.bf16 %v702
      %v735 = vunpack.c.l.bf16 %v703
      %v736 = vunpack.c.l.bf16 %v704
      %v737 = vunpack.c.l.bf16 %v705
      %v738 = vunpack.c.l.bf16 %v706
      %v739 = vunpack.c.l.bf16 %v707
      %v740 = vunpack.c.l.bf16 %v708
      %v741 = vunpack.c.l.bf16 %v709
      %v742 = vunpack.c.l.bf16 %v710
      %v743 = vunpack.c.l.bf16 %v711
      %v744 = vunpack.c.l.bf16 %v712
      %v745 = vunpack.c.l.bf16 %v713
      %v746 = vadd.f32 %v650, %v714
      %v747 = vadd.f32 %v651, %v715
      %v748 = vadd.f32 %v652, %v716
      %v749 = vadd.f32 %v653, %v717
      %v750 = vadd.f32 %v654, %v718
      %v751 = vadd.f32 %v655, %v719
      %v752 = vadd.f32 %v656, %v720
      %v753 = vadd.f32 %v657, %v721
      %v754 = vadd.f32 %v658, %v722
      %v755 = vadd.f32 %v659, %v723
      %v756 = vadd.f32 %v660, %v724
      %v757 = vadd.f32 %v661, %v725
      %v758 = vadd.f32 %v662, %v726
      %v759 = vadd.f32 %v663, %v727
      %v760 = vadd.f32 %v664, %v728
      %v761 = vadd.f32 %v665, %v729
      %v762 = vadd.f32 %v666, %v730
      %v763 = vadd.f32 %v667, %v731
      %v764 = vadd.f32 %v668, %v732
      %v765 = vadd.f32 %v669, %v733
      %v766 = vadd.f32 %v670, %v734
      %v767 = vadd.f32 %v671, %v735
      %v768 = vadd.f32 %v672, %v736
      %v769 = vadd.f32 %v673, %v737
      %v770 = vadd.f32 %v674, %v738
      %v771 = vadd.f32 %v675, %v739
      %v772 = vadd.f32 %v676, %v740
      %v773 = vadd.f32 %v677, %v741
      %v774 = vadd.f32 %v678, %v742
      %v775 = vadd.f32 %v679, %v743
      %v776 = vadd.f32 %v680, %v744
      %v777 = vadd.f32 %v681, %v745
      %v778 = vmax.f32 %v746, 0.0
      %v779 = vmax.f32 %v747, 0.0
      %v780 = vmax.f32 %v748, 0.0
      %v781 = vmax.f32 %v749, 0.0
      %v782 = vmax.f32 %v750, 0.0
      %v783 = vmax.f32 %v751, 0.0
      %v784 = vmax.f32 %v752, 0.0
      %v785 = vmax.f32 %v753, 0.0
      %v786 = vmax.f32 %v754, 0.0
      %v787 = vmax.f32 %v755, 0.0
      %v788 = vmax.f32 %v756, 0.0
      %v789 = vmax.f32 %v757, 0.0
      %v790 = vmax.f32 %v758, 0.0
      %v791 = vmax.f32 %v759, 0.0
      %v792 = vmax.f32 %v760, 0.0
      %v793 = vmax.f32 %v761, 0.0
      %v794 = vmax.f32 %v762, 0.0
      %v795 = vmax.f32 %v763, 0.0
      %v796 = vmax.f32 %v764, 0.0
      %v797 = vmax.f32 %v765, 0.0
      %v798 = vmax.f32 %v766, 0.0
      %v799 = vmax.f32 %v767, 0.0
      %v800 = vmax.f32 %v768, 0.0
      %v801 = vmax.f32 %v769, 0.0
      %v802 = vmax.f32 %v770, 0.0
      %v803 = vmax.f32 %v771, 0.0
      %v804 = vmax.f32 %v772, 0.0
      %v805 = vmax.f32 %v773, 0.0
      %v806 = vmax.f32 %v774, 0.0
      %v807 = vmax.f32 %v775, 0.0
      %v808 = vmax.f32 %v776, 0.0
      %v809 = vmax.f32 %v777, 0.0
      %v810 = vpack.c.bf16 %v779, %v778
      %v811 = vpack.c.bf16 %v781, %v780
      %v812 = vpack.c.bf16 %v783, %v782
      %v813 = vpack.c.bf16 %v785, %v784
      %v814 = vpack.c.bf16 %v787, %v786
      %v815 = vpack.c.bf16 %v789, %v788
      %v816 = vpack.c.bf16 %v791, %v790
      %v817 = vpack.c.bf16 %v793, %v792
      %v818 = vpack.c.bf16 %v795, %v794
      %v819 = vpack.c.bf16 %v797, %v796
      %v820 = vpack.c.bf16 %v799, %v798
      %v821 = vpack.c.bf16 %v801, %v800
      %v822 = vpack.c.bf16 %v803, %v802
      %v823 = vpack.c.bf16 %v805, %v804
      %v824 = vpack.c.bf16 %v807, %v806
      %v825 = vpack.c.bf16 %v809, %v808
      %v842 = vunpack.c.l.b16 %v810
      %v843 = vunpack.c.h.b16 %v810
      %v844 = vunpack.c.l.b16 %v811
      %v845 = vunpack.c.h.b16 %v811
      %v846 = vunpack.c.l.b16 %v812
      %v847 = vunpack.c.h.b16 %v812
      %v848 = vunpack.c.l.b16 %v813
      %v849 = vunpack.c.h.b16 %v813
      %v850 = vunpack.c.l.b16 %v814
      %v851 = vunpack.c.h.b16 %v814
      %v852 = vunpack.c.l.b16 %v815
      %v853 = vunpack.c.h.b16 %v815
      %v854 = vunpack.c.l.b16 %v816
      %v855 = vunpack.c.h.b16 %v816
      %v856 = vunpack.c.l.b16 %v817
      %v857 = vunpack.c.h.b16 %v817
      %v858 = vunpack.c.l.b16 %v818
      %v859 = vunpack.c.h.b16 %v818
      %v860 = vunpack.c.l.b16 %v819
      %v861 = vunpack.c.h.b16 %v819
      %v862 = vunpack.c.l.b16 %v820
      %v863 = vunpack.c.h.b16 %v820
      %v864 = vunpack.c.l.b16 %v821
      %v865 = vunpack.c.h.b16 %v821
      %v866 = vunpack.c.l.b16 %v822
      %v867 = vunpack.c.h.b16 %v822
      %v868 = vunpack.c.l.b16 %v823
      %v869 = vunpack.c.h.b16 %v823
      %v870 = vunpack.c.l.b16 %v824
      %v871 = vunpack.c.h.b16 %v824
      %v872 = vunpack.c.l.b16 %v825
      %v873 = vunpack.c.h.b16 %v825
      %v874 = vpack.c.b16 %v842, %v842
      %v875 = vpack.c.b16 %v843, %v843
      %v876 = vpack.c.b16 %v844, %v844
      %v877 = vpack.c.b16 %v845, %v845
      %v878 = vpack.c.b16 %v846, %v846
      %v879 = vpack.c.b16 %v847, %v847
      %v880 = vpack.c.b16 %v848, %v848
      %v881 = vpack.c.b16 %v849, %v849
      %v882 = vpack.c.b16 %v850, %v850
      %v883 = vpack.c.b16 %v851, %v851
      %v884 = vpack.c.b16 %v852, %v852
      %v885 = vpack.c.b16 %v853, %v853
      %v886 = vpack.c.b16 %v854, %v854
      %v887 = vpack.c.b16 %v855, %v855
      %v888 = vpack.c.b16 %v856, %v856
      %v889 = vpack.c.b16 %v857, %v857
      %v890 = vpack.c.b16 %v858, %v858
      %v891 = vpack.c.b16 %v859, %v859
      %v892 = vpack.c.b16 %v860, %v860
      %v893 = vpack.c.b16 %v861, %v861
      %v894 = vpack.c.b16 %v862, %v862
      %v895 = vpack.c.b16 %v863, %v863
      %v896 = vpack.c.b16 %v864, %v864
      %v897 = vpack.c.b16 %v865, %v865
      %v898 = vpack.c.b16 %v866, %v866
      %v899 = vpack.c.b16 %v867, %v867
      %v900 = vpack.c.b16 %v868, %v868
      %v901 = vpack.c.b16 %v869, %v869
      %v902 = vpack.c.b16 %v870, %v870
      %v903 = vpack.c.b16 %v871, %v871
      %v904 = vpack.c.b16 %v872, %v872
      %v905 = vpack.c.b16 %v873, %v873
      %938 = vst [vmem:[%s248] sm:$0xf] %v874
      %939 = vst [vmem:[%s248 + $0x4] sm:$0xf] %v875
      %940 = vst [vmem:[%s248 + $0x8] sm:$0xf] %v876
      %941 = vst [vmem:[%s248 + $0xc] sm:$0xf] %v877
      %942 = vst [vmem:[%s248 + $0x10] sm:$0xf] %v878
      %943 = vst [vmem:[%s248 + $0x14] sm:$0xf] %v879
      %944 = vst [vmem:[%s248 + $0x18] sm:$0xf] %v880
      %945 = vst [vmem:[%s248 + $0x1c] sm:$0xf] %v881
      %946 = vst [vmem:[%s248 + $0x20] sm:$0xf] %v882
      %947 = vst [vmem:[%s248 + $0x24] sm:$0xf] %v883
      %948 = vst [vmem:[%s248 + $0x28] sm:$0xf] %v884
      %949 = vst [vmem:[%s248 + $0x2c] sm:$0xf] %v885
      %950 = vst [vmem:[%s248 + $0x30] sm:$0xf] %v886
      %951 = vst [vmem:[%s248 + $0x34] sm:$0xf] %v887
      %952 = vst [vmem:[%s248 + $0x38] sm:$0xf] %v888
      %953 = vst [vmem:[%s248 + $0x3c] sm:$0xf] %v889
      %954 = vst [vmem:[%s248 + $0x40] sm:$0xf] %v890
      %955 = vst [vmem:[%s248 + $0x44] sm:$0xf] %v891
      %956 = vst [vmem:[%s248 + $0x48] sm:$0xf] %v892
      %957 = vst [vmem:[%s248 + $0x4c] sm:$0xf] %v893
      %958 = vst [vmem:[%s248 + $0x50] sm:$0xf] %v894
      %959 = vst [vmem:[%s248 + $0x54] sm:$0xf] %v895
      %960 = vst [vmem:[%s248 + $0x58] sm:$0xf] %v896
      %961 = vst [vmem:[%s248 + $0x5c] sm:$0xf] %v897
      %962 = vst [vmem:[%s248 + $0x60] sm:$0xf] %v898
      %963 = vst [vmem:[%s248 + $0x64] sm:$0xf] %v899
      %964 = vst [vmem:[%s248 + $0x68] sm:$0xf] %v900
      %965 = vst [vmem:[%s248 + $0x6c] sm:$0xf] %v901
      %966 = vst [vmem:[%s248 + $0x70] sm:$0xf] %v902
      %967 = vst [vmem:[%s248 + $0x74] sm:$0xf] %v903
      %968 = vst [vmem:[%s248 + $0x78] sm:$0xf] %v904
      %969 = vst [vmem:[%s248 + $0x7c] sm:$0xf] %v905
      %s970 = smul.u32 32, %s16
      %p971 = scmp.lt.s32.totalorder %s970, 63
      %s972 = scalar_select %p971, %s970, 63
      %s973 = smul.addr %s972, 4
      %s974 = scalar_lea.vmem %s5, %s973
      // Predicated region
      $region41: #{_lambda_.38} parent=39 // pred_check
        %p975 = pneg %p149
      $region42: #{_lambda_.38} parent=39 // pred_check_branch
        %977 = sbr.rel (%p975) target = $region44
      $region43: #{_lambda_.38} parent=39 // pred_region
        %s978 = smul.u32 32, %s16
      $region44: #{_lambda_.38} parent=39 // pred_fallthru
        _
    $region40: #{_lambda_.38} parent=5 // pred_fallthru
      _
    %p979 = scmp.le.s32.totalorder 2, %s11
    // Predicated region
    $region45: #{_lambda_.38} parent=5 // pred_check
      %p980 = pneg %p979
    $region46: #{_lambda_.38} parent=5 // pred_check_branch
      %982 = sbr.rel (%p980) target = $region48
    $region47: #{_lambda_.38} parent=5 // pred_region
      %s983 = ssub.s32 %s11, 2
      // Predicated region
      $region49: #{_lambda_.38} parent=47 // pred_check
        %p984 = pneg %p155
      $region50: #{_lambda_.38} parent=47 // pred_check_branch
        %986 = sbr.rel (%p984) target = $region52
      $region51: #{_lambda_.38} parent=47 // pred_region
        %s987 = smul.u32 32, %s17
        %p988 = scmp.lt.s32.totalorder %s987, 63
        %s989 = scalar_select %p988, %s987, 63
        %s990 = smul.addr %s989, 4
        %s991 = scalar_lea.vmem %s5, %s990
      $region52: #{_lambda_.38} parent=47 // pred_fallthru
        _
    $region48: #{_lambda_.38} parent=5 // pred_fallthru
      _
  $region6: #{_lambda_.38} parent=0 // loop_footer
    %s15 = sadd.s32 1, %s11
  $region7: #{_lambda_.38} parent=0 // loop_footer_branch
    %10 = sbr.rel target = $region3
  $region8: #{_lambda_.38} parent=0 // loop_exit
    _

// kernel: _lambda_.43
$region0: #{_lambda_.43}
  #allocation0 [shape = 'u32[]', space=smem, size = 0x4, offset = 0x4, fixed_abs, tag = 'smem constant byte address 0x4 - core index']
  #allocation1 [shape = 'u32[144,128]{1,0:T(1,128)}', space=vmem, size = 0x12000, scoped, tag = 'internal scratch']
  %s0 = inlined_call_operand.vmem [shape: bf16[128,128], index: 0, kind: input, shape index: {}]
  %s1 = inlined_call_operand.vmem [shape: bf16[128,256], index: 1, kind: input, shape index: {}]
  %s2 = inlined_call_operand.vmem [shape: f32[1,256], index: 2, kind: input, shape index: {}]
  %s3 = inlined_call_operand.vmem [shape: f32[1,256], index: 3, kind: input, shape index: {}]
  %s4 = inlined_call_operand.vmem [shape: bf16[128,256], index: 4, kind: output, shape index: {}]
  %s5 = sld [smem:[#allocation0]]
  $region26: #{_lambda_.43} parent=0
    _
  %s7 = ssub.s32 1, %s5
  %s8 = scalar_select 0, %s7, %s5
  // Predicated region
  $region2: #{_lambda_.43} parent=0 // pred_check
    _
  $region3: #{_lambda_.43} parent=0 // pred_check_branch
    %10 = sbr.rel (0) target = $region5
  $region4: #{_lambda_.43} parent=0 // pred_region
    _
  $region5: #{_lambda_.43} parent=0 // pred_fallthru
    _
  // Predicated region
  $region6: #{_lambda_.43} parent=0 // pred_check
    _
  $region7: #{_lambda_.43} parent=0 // pred_check_branch
    %12 = sbr.rel (0) target = $region9
  $region8: #{_lambda_.43} parent=0 // pred_region
    _
  $region9: #{_lambda_.43} parent=0 // pred_fallthru
    _
  // Predicated region
  $region10: #{_lambda_.43} parent=0 // pred_check
    _
  $region11: #{_lambda_.43} parent=0 // pred_check_branch
    %14 = sbr.rel (0) target = $region13
  $region12: #{_lambda_.43} parent=0 // pred_region
    _
  $region13: #{_lambda_.43} parent=0 // pred_fallthru
    _
  // Predicated region
  $region14: #{_lambda_.43} parent=0 // pred_check
    _
  $region15: #{_lambda_.43} parent=0 // pred_check_branch
    %16 = sbr.rel (0) target = $region17
  $region16: #{_lambda_.43} parent=0 // pred_region
    _
  $region17: #{_lambda_.43} parent=0 // pred_fallthru
    _
  %v18 = vld [vmem:[%s0] sm:$0xf]
  %v19 = vld [vmem:[%s0 + $0x4] sm:$0xf]
  %v20 = vld [vmem:[%s0 + $0x8] sm:$0xf]
  %v21 = vld [vmem:[%s0 + $0xc] sm:$0xf]
  %v22 = vld [vmem:[%s0 + $0x10] sm:$0xf]
  %v23 = vld [vmem:[%s0 + $0x14] sm:$0xf]
  %v24 = vld [vmem:[%s0 + $0x18] sm:$0xf]
  %v25 = vld [vmem:[%s0 + $0x1c] sm:$0xf]
  %v26 = vld [vmem:[%s0 + $0x20] sm:$0xf]
  %v27 = vld [vmem:[%s0 + $0x24] sm:$0xf]
  %v28 = vld [vmem:[%s0 + $0x28] sm:$0xf]
  %v29 = vld [vmem:[%s0 + $0x2c] sm:$0xf]
  %v30 = vld [vmem:[%s0 + $0x30] sm:$0xf]
  %v31 = vld [vmem:[%s0 + $0x34] sm:$0xf]
  %v32 = vld [vmem:[%s0 + $0x38] sm:$0xf]
  %v33 = vld [vmem:[%s0 + $0x3c] sm:$0xf]
  %v34 = vld [vmem:[%s1] sm:$0xff]
  %v35 = vld [vmem:[%s1 + $0x8] sm:$0xff]
  %v36 = vld [vmem:[%s1 + $0x10] sm:$0xff]
  %v37 = vld [vmem:[%s1 + $0x18] sm:$0xff]
  %v38 = vld [vmem:[%s1 + $0x20] sm:$0xff]
  %v39 = vld [vmem:[%s1 + $0x28] sm:$0xff]
  %v40 = vld [vmem:[%s1 + $0x30] sm:$0xff]
  %v41 = vld [vmem:[%s1 + $0x38] sm:$0xff]
  %v42 = vld [vmem:[%s1 + $0x40] sm:$0xff]
  %v43 = vld [vmem:[%s1 + $0x48] sm:$0xff]
  %v44 = vld [vmem:[%s1 + $0x50] sm:$0xff]
  %v45 = vld [vmem:[%s1 + $0x58] sm:$0xff]
  %v46 = vld [vmem:[%s1 + $0x60] sm:$0xff]
  %v47 = vld [vmem:[%s1 + $0x68] sm:$0xff]
  %v48 = vld [vmem:[%s1 + $0x70] sm:$0xff]
  %v49 = vld [vmem:[%s1 + $0x78] sm:$0xff]
  %v66 = vunpack.c.l.b16 %v18
  %v67 = vunpack.c.l.b16 %v19
  %v68 = vunpack.c.l.b16 %v20
  %v69 = vunpack.c.l.b16 %v21
  %v70 = vunpack.c.l.b16 %v22
  %v71 = vunpack.c.l.b16 %v23
  %v72 = vunpack.c.l.b16 %v24
  %v73 = vunpack.c.l.b16 %v25
  %v74 = vunpack.c.l.b16 %v26
  %v75 = vunpack.c.l.b16 %v27
  %v76 = vunpack.c.l.b16 %v28
  %v77 = vunpack.c.l.b16 %v29
  %v78 = vunpack.c.l.b16 %v30
  %v79 = vunpack.c.l.b16 %v31
  %v80 = vunpack.c.l.b16 %v32
  %v81 = vunpack.c.l.b16 %v33
  %v82 = vpack.c.b16 %v67, %v66
  %v83 = vpack.c.b16 %v69, %v68
  %v84 = vpack.c.b16 %v71, %v70
  %v85 = vpack.c.b16 %v73, %v72
  %v86 = vpack.c.b16 %v75, %v74
  %v87 = vpack.c.b16 %v77, %v76
  %v88 = vpack.c.b16 %v79, %v78
  %v89 = vpack.c.b16 %v81, %v80
  %v114 = vunpack.c.l.b16 %v34
  %v115 = vunpack.c.h.b16 %v34
  %v116 = vunpack.c.l.b16 %v35
  %v117 = vunpack.c.h.b16 %v35
  %v118 = vunpack.c.l.b16 %v36
  %v119 = vunpack.c.h.b16 %v36
  %v120 = vunpack.c.l.b16 %v37
  %v121 = vunpack.c.h.b16 %v37
  %v122 = vunpack.c.l.b16 %v38
  %v123 = vunpack.c.h.b16 %v38
  %v124 = vunpack.c.l.b16 %v39
  %v125 = vunpack.c.h.b16 %v39
  %v126 = vunpack.c.l.b16 %v40
  %v127 = vunpack.c.h.b16 %v40
  %v128 = vunpack.c.l.b16 %v41
  %v129 = vunpack.c.h.b16 %v41
  %v130 = vunpack.c.l.b16 %v42
  %v131 = vunpack.c.h.b16 %v42
  %v132 = vunpack.c.l.b16 %v43
  %v133 = vunpack.c.h.b16 %v43
  %v134 = vunpack.c.l.b16 %v44
  %v135 = vunpack.c.h.b16 %v44
  %v136 = vunpack.c.l.b16 %v45
  %v137 = vunpack.c.h.b16 %v45
  %v138 = vunpack.c.l.b16 %v46
  %v139 = vunpack.c.h.b16 %v46
  %v140 = vunpack.c.l.b16 %v47
  %v141 = vunpack.c.h.b16 %v47
  %v142 = vunpack.c.l.b16 %v48
  %v143 = vunpack.c.h.b16 %v48
  %v144 = vunpack.c.l.b16 %v49
  %v145 = vunpack.c.h.b16 %v49
  %v146 = vpack.c.b16 %v116, %v114
  %v147 = vpack.c.b16 %v117, %v115
  %v148 = vpack.c.b16 %v120, %v118
  %v149 = vpack.c.b16 %v121, %v119
  %v150 = vpack.c.b16 %v124, %v122
  %v151 = vpack.c.b16 %v125, %v123
  %v152 = vpack.c.b16 %v128, %v126
  %v153 = vpack.c.b16 %v129, %v127
  %v154 = vpack.c.b16 %v132, %v130
  %v155 = vpack.c.b16 %v133, %v131
  %v156 = vpack.c.b16 %v136, %v134
  %v157 = vpack.c.b16 %v137, %v135
  %v158 = vpack.c.b16 %v140, %v138
  %v159 = vpack.c.b16 %v141, %v139
  %v160 = vpack.c.b16 %v144, %v142
  %v161 = vpack.c.b16 %v145, %v143
  %178 = vmatprep.subr.bf16.mxu0 %v161
  %179 = vmatpush1.bf16.msra.mxu0 %v160
  %180 = vmatprep.subr.bf16.mxu0 %v159
  %181 = vmatpush1.bf16.msra.mxu0 %v158
  %182 = vmatprep.subr.bf16.mxu0 %v157
  %183 = vmatpush1.bf16.msra.mxu0 %v156
  %184 = vmatprep.subr.bf16.mxu0 %v155
  %185 = vmatpush1.bf16.msra.mxu0 %v154
  %186 = vmatprep.subr.bf16.mxu0 %v153
  %187 = vmatpush1.bf16.msra.mxu0 %v152
  %188 = vmatprep.subr.bf16.mxu0 %v151
  %189 = vmatpush1.bf16.msra.mxu0 %v150
  %190 = vmatprep.subr.bf16.mxu0 %v149
  %191 = vmatpush1.bf16.msra.mxu0 %v148
  %192 = vmatprep.subr.bf16.mxu0 %v147
  %193 = vmatpush1.bf16.msra.mxu0 %v146
  %194 = vmatprep.subr.bf16.mxu0 0
  %195 = vmatpush2.bf16.msra.mxu0 0
  %196 = vmatprep.subr.bf16.mxu0 0
  %197 = vmatpush2.bf16.msra.mxu0 0
  %198 = vmatprep.subr.bf16.mxu0 0
  %199 = vmatpush2.bf16.msra.mxu0 0
  %200 = vmatprep.subr.bf16.mxu0 0
  %201 = vmatpush2.bf16.msra.mxu0 0
  %202 = vmatprep.subr.bf16.mxu0 0
  %203 = vmatpush2.bf16.msra.mxu0 0
  %204 = vmatprep.subr.bf16.mxu0 0
  %205 = vmatpush2.bf16.msra.mxu0 0
  %206 = vmatprep.subr.bf16.mxu0 0
  %207 = vmatpush2.bf16.msra.mxu0 0
  %208 = vmatprep.subr.bf16.mxu0 0
  %209 = vmatpush2.bf16.msra.mxu0 0
  %210 = vmatprep.mubr.bf16.mxu0 0
  %211 = vmatmul.mubr.bf16.gmra.mxu0 %v82
  %v212 = vpop.f32.mrf.mxu0
  %v213 = vadd.f32 0.0, %v212
  %v214 = vpop.f32.mrf.mxu0
  %v215 = vadd.f32 0.0, %v214
  %v216 = vpop.f32.mrf.mxu0
  %v217 = vadd.f32 0.0, %v216
  %v218 = vpop.f32.mrf.mxu0
  %v219 = vadd.f32 0.0, %v218
  %220 = vmatprep.mubr.bf16.mxu0 0
  %221 = vmatmul.mubr.bf16.gmra.mxu0 %v83
  %v222 = vpop.f32.mrf.mxu0
  %v223 = vadd.f32 0.0, %v222
  %v224 = vpop.f32.mrf.mxu0
  %v225 = vadd.f32 0.0, %v224
  %v226 = vpop.f32.mrf.mxu0
  %v227 = vadd.f32 0.0, %v226
  %v228 = vpop.f32.mrf.mxu0
  %v229 = vadd.f32 0.0, %v228
  %230 = vmatprep.mubr.bf16.mxu0 0
  %231 = vmatmul.mubr.bf16.gmra.mxu0 %v84
  %v232 = vpop.f32.mrf.mxu0
  %v233 = vadd.f32 0.0, %v232
  %v234 = vpop.f32.mrf.mxu0
  %v235 = vadd.f32 0.0, %v234
  %v236 = vpop.f32.mrf.mxu0
  %v237 = vadd.f32 0.0, %v236
  %v238 = vpop.f32.mrf.mxu0
  %v239 = vadd.f32 0.0, %v238
  %240 = vmatprep.mubr.bf16.mxu0 0
  %241 = vmatmul.mubr.bf16.gmra.mxu0 %v85
  %v242 = vpop.f32.mrf.mxu0
  %v243 = vadd.f32 0.0, %v242
  %v244 = vpop.f32.mrf.mxu0
  %v245 = vadd.f32 0.0, %v244
  %v246 = vpop.f32.mrf.mxu0
  %v247 = vadd.f32 0.0, %v246
  %v248 = vpop.f32.mrf.mxu0
  %v249 = vadd.f32 0.0, %v248
  %250 = vmatprep.mubr.bf16.mxu0 0
  %251 = vmatmul.mubr.bf16.gmra.mxu0 %v86
  %v252 = vpop.f32.mrf.mxu0
  %v253 = vadd.f32 0.0, %v252
  %v254 = vpop.f32.mrf.mxu0
  %v255 = vadd.f32 0.0, %v254
  %v256 = vpop.f32.mrf.mxu0
  %v257 = vadd.f32 0.0, %v256
  %v258 = vpop.f32.mrf.mxu0
  %v259 = vadd.f32 0.0, %v258
  %260 = vmatprep.mubr.bf16.mxu0 0
  %261 = vmatmul.mubr.bf16.gmra.mxu0 %v87
  %v262 = vpop.f32.mrf.mxu0
  %v263 = vadd.f32 0.0, %v262
  %v264 = vpop.f32.mrf.mxu0
  %v265 = vadd.f32 0.0, %v264
  %v266 = vpop.f32.mrf.mxu0
  %v267 = vadd.f32 0.0, %v266
  %v268 = vpop.f32.mrf.mxu0
  %v269 = vadd.f32 0.0, %v268
  %270 = vmatprep.mubr.bf16.mxu0 0
  %271 = vmatmul.mubr.bf16.gmra.mxu0 %v88
  %v272 = vpop.f32.mrf.mxu0
  %v273 = vadd.f32 0.0, %v272
  %v274 = vpop.f32.mrf.mxu0
  %v275 = vadd.f32 0.0, %v274
  %v276 = vpop.f32.mrf.mxu0
  %v277 = vadd.f32 0.0, %v276
  %v278 = vpop.f32.mrf.mxu0
  %v279 = vadd.f32 0.0, %v278
  %280 = vmatprep.mubr.bf16.mxu0 0
  %281 = vmatmul.mubr.bf16.gmra.mxu0 %v89
  %v282 = vpop.f32.mrf.mxu0
  %v283 = vadd.f32 0.0, %v282
  %v284 = vpop.f32.mrf.mxu0
  %v285 = vadd.f32 0.0, %v284
  %v286 = vpop.f32.mrf.mxu0
  %v287 = vadd.f32 0.0, %v286
  %v288 = vpop.f32.mrf.mxu0
  %v289 = vadd.f32 0.0, %v288
  %290 = vdwg.mxu0
  %v291 = vld [vmem:[%s2] sm:$0x3]
  %v293 = vlaneseq
  %v294 = vshrl.u32 %v293, 7
  %v295 = vsub.s32 0, %v294
  %v296 = vrot.slane %v291, %v295
  %v297 = vlaneseq
  %v298 = vshrl.u32 %v297, 7
  %v299 = vsub.s32 1, %v298
  %v300 = vrot.slane %v291, %v299
  %v303 = vmul.f32 %v213, %v296
  %v304 = vmul.f32 %v215, %v300
  %v305 = vmul.f32 %v217, %v296
  %v306 = vmul.f32 %v219, %v300
  %v307 = vmul.f32 %v223, %v296
  %v308 = vmul.f32 %v225, %v300
  %v309 = vmul.f32 %v227, %v296
  %v310 = vmul.f32 %v229, %v300
  %v311 = vmul.f32 %v233, %v296
  %v312 = vmul.f32 %v235, %v300
  %v313 = vmul.f32 %v237, %v296
  %v314 = vmul.f32 %v239, %v300
  %v315 = vmul.f32 %v243, %v296
  %v316 = vmul.f32 %v245, %v300
  %v317 = vmul.f32 %v247, %v296
  %v318 = vmul.f32 %v249, %v300
  %v319 = vmul.f32 %v253, %v296
  %v320 = vmul.f32 %v255, %v300
  %v321 = vmul.f32 %v257, %v296
  %v322 = vmul.f32 %v259, %v300
  %v323 = vmul.f32 %v263, %v296
  %v324 = vmul.f32 %v265, %v300
  %v325 = vmul.f32 %v267, %v296
  %v326 = vmul.f32 %v269, %v300
  %v327 = vmul.f32 %v273, %v296
  %v328 = vmul.f32 %v275, %v300
  %v329 = vmul.f32 %v277, %v296
  %v330 = vmul.f32 %v279, %v300
  %v331 = vmul.f32 %v283, %v296
  %v332 = vmul.f32 %v285, %v300
  %v333 = vmul.f32 %v287, %v296
  %v334 = vmul.f32 %v289, %v300
  %v335 = vld [vmem:[%s3] sm:$0x3]
  %v337 = vlaneseq
  %v338 = vshrl.u32 %v337, 7
  %v339 = vsub.s32 0, %v338
  %v340 = vrot.slane %v335, %v339
  %v341 = vlaneseq
  %v342 = vshrl.u32 %v341, 7
  %v343 = vsub.s32 1, %v342
  %v344 = vrot.slane %v335, %v343
  %v347 = vadd.f32 %v303, %v340
  %v348 = vadd.f32 %v304, %v344
  %v349 = vadd.f32 %v305, %v340
  %v350 = vadd.f32 %v306, %v344
  %v351 = vadd.f32 %v307, %v340
  %v352 = vadd.f32 %v308, %v344
  %v353 = vadd.f32 %v309, %v340
  %v354 = vadd.f32 %v310, %v344
  %v355 = vadd.f32 %v311, %v340
  %v356 = vadd.f32 %v312, %v344
  %v357 = vadd.f32 %v313, %v340
  %v358 = vadd.f32 %v314, %v344
  %v359 = vadd.f32 %v315, %v340
  %v360 = vadd.f32 %v316, %v344
  %v361 = vadd.f32 %v317, %v340
  %v362 = vadd.f32 %v318, %v344
  %v363 = vadd.f32 %v319, %v340
  %v364 = vadd.f32 %v320, %v344
  %v365 = vadd.f32 %v321, %v340
  %v366 = vadd.f32 %v322, %v344
  %v367 = vadd.f32 %v323, %v340
  %v368 = vadd.f32 %v324, %v344
  %v369 = vadd.f32 %v325, %v340
  %v370 = vadd.f32 %v326, %v344
  %v371 = vadd.f32 %v327, %v340
  %v372 = vadd.f32 %v328, %v344
  %v373 = vadd.f32 %v329, %v340
  %v374 = vadd.f32 %v330, %v344
  %v375 = vadd.f32 %v331, %v340
  %v376 = vadd.f32 %v332, %v344
  %v377 = vadd.f32 %v333, %v340
  %v378 = vadd.f32 %v334, %v344
  %v379 = vlaneseq
  %v380 = vand.u32 %v379, 127
  %v381 = vadd.s32 %v380, 128
  %vm382 = vcmp.lt.s32.totalorder %v380, 128
  %vm383 = vcmp.lt.s32.totalorder %v381, 128
  %v384 = vmax.f32 %v347, 0.0
  %v385 = vmax.f32 %v348, 0.0
  %v386 = vmax.f32 %v349, 0.0
  %v387 = vmax.f32 %v350, 0.0
  %v388 = vmax.f32 %v351, 0.0
  %v389 = vmax.f32 %v352, 0.0
  %v390 = vmax.f32 %v353, 0.0
  %v391 = vmax.f32 %v354, 0.0
  %v392 = vmax.f32 %v355, 0.0
  %v393 = vmax.f32 %v356, 0.0
  %v394 = vmax.f32 %v357, 0.0
  %v395 = vmax.f32 %v358, 0.0
  %v396 = vmax.f32 %v359, 0.0
  %v397 = vmax.f32 %v360, 0.0
  %v398 = vmax.f32 %v361, 0.0
  %v399 = vmax.f32 %v362, 0.0
  %v400 = vmax.f32 %v363, 0.0
  %v401 = vmax.f32 %v364, 0.0
  %v402 = vmax.f32 %v365, 0.0
  %v403 = vmax.f32 %v366, 0.0
  %v404 = vmax.f32 %v367, 0.0
  %v405 = vmax.f32 %v368, 0.0
  %v406 = vmax.f32 %v369, 0.0
  %v407 = vmax.f32 %v370, 0.0
  %v408 = vmax.f32 %v371, 0.0
  %v409 = vmax.f32 %v372, 0.0
  %v410 = vmax.f32 %v373, 0.0
  %v411 = vmax.f32 %v374, 0.0
  %v412 = vmax.f32 %v375, 0.0
  %v413 = vmax.f32 %v376, 0.0
  %v414 = vmax.f32 %v377, 0.0
  %v415 = vmax.f32 %v378, 0.0
  %v416 = vsel %vm382, %v384, %v347
  %v417 = vsel %vm383, %v385, %v348
  %v418 = vsel %vm382, %v386, %v349
  %v419 = vsel %vm383, %v387, %v350
  %v420 = vsel %vm382, %v388, %v351
  %v421 = vsel %vm383, %v389, %v352
  %v422 = vsel %vm382, %v390, %v353
  %v423 = vsel %vm383, %v391, %v354
  %v424 = vsel %vm382, %v392, %v355
  %v425 = vsel %vm383, %v393, %v356
  %v426 = vsel %vm382, %v394, %v357
  %v427 = vsel %vm383, %v395, %v358
  %v428 = vsel %vm382, %v396, %v359
  %v429 = vsel %vm383, %v397, %v360
  %v430 = vsel %vm382, %v398, %v361
  %v431 = vsel %vm383, %v399, %v362
  %v432 = vsel %vm382, %v400, %v363
  %v433 = vsel %vm383, %v401, %v364
  %v434 = vsel %vm382, %v402, %v365
  %v435 = vsel %vm383, %v403, %v366
  %v436 = vsel %vm382, %v404, %v367
  %v437 = vsel %vm383, %v405, %v368
  %v438 = vsel %vm382, %v406, %v369
  %v439 = vsel %vm383, %v407, %v370
  %v440 = vsel %vm382, %v408, %v371
  %v441 = vsel %vm383, %v409, %v372
  %v442 = vsel %vm382, %v410, %v373
  %v443 = vsel %vm383, %v411, %v374
  %v444 = vsel %vm382, %v412, %v375
  %v445 = vsel %vm383, %v413, %v376
  %v446 = vsel %vm382, %v414, %v377
  %v447 = vsel %vm383, %v415, %v378
  %v448 = vpack.c.bf16 %v418, %v416
  %v449 = vpack.c.bf16 %v419, %v417
  %v450 = vpack.c.bf16 %v422, %v420
  %v451 = vpack.c.bf16 %v423, %v421
  %v452 = vpack.c.bf16 %v426, %v424
  %v453 = vpack.c.bf16 %v427, %v425
  %v454 = vpack.c.bf16 %v430, %v428
  %v455 = vpack.c.bf16 %v431, %v429
  %v456 = vpack.c.bf16 %v434, %v432
  %v457 = vpack.c.bf16 %v435, %v433
  %v458 = vpack.c.bf16 %v438, %v436
  %v459 = vpack.c.bf16 %v439, %v437
  %v460 = vpack.c.bf16 %v442, %v440
  %v461 = vpack.c.bf16 %v443, %v441
  %v462 = vpack.c.bf16 %v446, %v444
  %v463 = vpack.c.bf16 %v447, %v445
  %v480 = vunpack.c.l.b16 %v448
  %v481 = vunpack.c.l.b16 %v449
  %v482 = vunpack.c.h.b16 %v448
  %v483 = vunpack.c.h.b16 %v449
  %v484 = vunpack.c.l.b16 %v450
  %v485 = vunpack.c.l.b16 %v451
  %v486 = vunpack.c.h.b16 %v450
  %v487 = vunpack.c.h.b16 %v451
  %v488 = vunpack.c.l.b16 %v452
  %v489 = vunpack.c.l.b16 %v453
  %v490 = vunpack.c.h.b16 %v452
  %v491 = vunpack.c.h.b16 %v453
  %v492 = vunpack.c.l.b16 %v454
  %v493 = vunpack.c.l.b16 %v455
  %v494 = vunpack.c.h.b16 %v454
  %v495 = vunpack.c.h.b16 %v455
  %v496 = vunpack.c.l.b16 %v456
  %v497 = vunpack.c.l.b16 %v457
  %v498 = vunpack.c.h.b16 %v456
  %v499 = vunpack.c.h.b16 %v457
  %v500 = vunpack.c.l.b16 %v458
  %v501 = vunpack.c.l.b16 %v459
  %v502 = vunpack.c.h.b16 %v458
  %v503 = vunpack.c.h.b16 %v459
  %v504 = vunpack.c.l.b16 %v460
  %v505 = vunpack.c.l.b16 %v461
  %v506 = vunpack.c.h.b16 %v460
  %v507 = vunpack.c.h.b16 %v461
  %v508 = vunpack.c.l.b16 %v462
  %v509 = vunpack.c.l.b16 %v463
  %v510 = vunpack.c.h.b16 %v462
  %v511 = vunpack.c.h.b16 %v463
  %v512 = vpack.c.b16 %v481, %v480
  %v513 = vpack.c.b16 %v483, %v482
  %v514 = vpack.c.b16 %v485, %v484
  %v515 = vpack.c.b16 %v487, %v486
  %v516 = vpack.c.b16 %v489, %v488
  %v517 = vpack.c.b16 %v491, %v490
  %v518 = vpack.c.b16 %v493, %v492
  %v519 = vpack.c.b16 %v495, %v494
  %v520 = vpack.c.b16 %v497, %v496
  %v521 = vpack.c.b16 %v499, %v498
  %v522 = vpack.c.b16 %v501, %v500
  %v523 = vpack.c.b16 %v503, %v502
  %v524 = vpack.c.b16 %v505, %v504
  %v525 = vpack.c.b16 %v507, %v506
  %v526 = vpack.c.b16 %v509, %v508
  %v527 = vpack.c.b16 %v511, %v510
  %544 = vst [vmem:[%s4] sm:$0xff] %v512
  %545 = vst [vmem:[%s4 + $0x8] sm:$0xff] %v513
  %546 = vst [vmem:[%s4 + $0x10] sm:$0xff] %v514
  %547 = vst [vmem:[%s4 + $0x18] sm:$0xff] %v515
  %548 = vst [vmem:[%s4 + $0x20] sm:$0xff] %v516
  %549 = vst [vmem:[%s4 + $0x28] sm:$0xff] %v517
  %550 = vst [vmem:[%s4 + $0x30] sm:$0xff] %v518
  %551 = vst [vmem:[%s4 + $0x38] sm:$0xff] %v519
  %552 = vst [vmem:[%s4 + $0x40] sm:$0xff] %v520
  %553 = vst [vmem:[%s4 + $0x48] sm:$0xff] %v521
  %554 = vst [vmem:[%s4 + $0x50] sm:$0xff] %v522
  %555 = vst [vmem:[%s4 + $0x58] sm:$0xff] %v523
  %556 = vst [vmem:[%s4 + $0x60] sm:$0xff] %v524
  %557 = vst [vmem:[%s4 + $0x68] sm:$0xff] %v525
  %558 = vst [vmem:[%s4 + $0x70] sm:$0xff] %v526
  %559 = vst [vmem:[%s4 + $0x78] sm:$0xff] %v527
  // Predicated region
  $region18: #{_lambda_.43} parent=0 // pred_check
    _
  $region19: #{_lambda_.43} parent=0 // pred_check_branch
    %561 = sbr.rel (0) target = $region21
  $region20: #{_lambda_.43} parent=0 // pred_region
    _
  $region21: #{_lambda_.43} parent=0 // pred_fallthru
    _
  // Predicated region
  $region22: #{_lambda_.43} parent=0 // pred_check
    _
  $region23: #{_lambda_.43} parent=0 // pred_check_branch
    %563 = sbr.rel (0) target = $region25
  $region24: #{_lambda_.43} parent=0 // pred_region
    _
  $region25: #{_lambda_.43} parent=0 // pred_fallthru
    _

// kernel: _lambda_.44
$region0: #{_lambda_.44}
  #allocation0 [shape = 'u32[]', space=smem, size = 0x4, offset = 0x4, fixed_abs, tag = 'smem constant byte address 0x4 - core index']
  #allocation1 [shape = 'u32[144,128]{1,0:T(1,128)}', space=vmem, size = 0x12000, scoped, tag = 'internal scratch']
  %s0 = inlined_call_operand.vmem [shape: bf16[128,256], index: 0, kind: input, shape index: {}]
  %s1 = inlined_call_operand.vmem [shape: bf16[256,128], index: 1, kind: input, shape index: {}]
  %s2 = inlined_call_operand.vmem [shape: f32[1,128], index: 2, kind: input, shape index: {}]
  %s3 = inlined_call_operand.vmem [shape: f32[1,128], index: 3, kind: input, shape index: {}]
  %s4 = inlined_call_operand.vmem [shape: bf16[128,128], index: 4, kind: input, shape index: {}]
  %s5 = inlined_call_operand.vmem [shape: bf16[128,128], index: 5, kind: output, shape index: {}]
  %s6 = sld [smem:[#allocation0]]
  $region30: #{_lambda_.44} parent=0
    _
  %s8 = ssub.s32 1, %s6
  %s9 = scalar_select 0, %s8, %s6
  // Predicated region
  $region2: #{_lambda_.44} parent=0 // pred_check
    _
  $region3: #{_lambda_.44} parent=0 // pred_check_branch
    %11 = sbr.rel (0) target = $region5
  $region4: #{_lambda_.44} parent=0 // pred_region
    _
  $region5: #{_lambda_.44} parent=0 // pred_fallthru
    _
  // Predicated region
  $region6: #{_lambda_.44} parent=0 // pred_check
    _
  $region7: #{_lambda_.44} parent=0 // pred_check_branch
    %13 = sbr.rel (0) target = $region9
  $region8: #{_lambda_.44} parent=0 // pred_region
    _
  $region9: #{_lambda_.44} parent=0 // pred_fallthru
    _
  // Predicated region
  $region10: #{_lambda_.44} parent=0 // pred_check
    _
  $region11: #{_lambda_.44} parent=0 // pred_check_branch
    %15 = sbr.rel (0) target = $region13
  $region12: #{_lambda_.44} parent=0 // pred_region
    _
  $region13: #{_lambda_.44} parent=0 // pred_fallthru
    _
  // Predicated region
  $region14: #{_lambda_.44} parent=0 // pred_check
    _
  $region15: #{_lambda_.44} parent=0 // pred_check_branch
    %17 = sbr.rel (0) target = $region17
  $region16: #{_lambda_.44} parent=0 // pred_region
    _
  $region17: #{_lambda_.44} parent=0 // pred_fallthru
    _
  // Predicated region
  $region18: #{_lambda_.44} parent=0 // pred_check
    _
  $region19: #{_lambda_.44} parent=0 // pred_check_branch
    %19 = sbr.rel (0) target = $region21
  $region20: #{_lambda_.44} parent=0 // pred_region
    _
  $region21: #{_lambda_.44} parent=0 // pred_fallthru
    _
  %v21 = vld [vmem:[%s0] sm:$0xff]
  %v22 = vld [vmem:[%s0 + $0x8] sm:$0xff]
  %v23 = vld [vmem:[%s0 + $0x10] sm:$0xff]
  %v24 = vld [vmem:[%s0 + $0x18] sm:$0xff]
  %v25 = vld [vmem:[%s0 + $0x20] sm:$0xff]
  %v26 = vld [vmem:[%s0 + $0x28] sm:$0xff]
  %v27 = vld [vmem:[%s0 + $0x30] sm:$0xff]
  %v28 = vld [vmem:[%s0 + $0x38] sm:$0xff]
  %v29 = vld [vmem:[%s0 + $0x40] sm:$0xff]
  %v30 = vld [vmem:[%s0 + $0x48] sm:$0xff]
  %v31 = vld [vmem:[%s0 + $0x50] sm:$0xff]
  %v32 = vld [vmem:[%s0 + $0x58] sm:$0xff]
  %v33 = vld [vmem:[%s0 + $0x60] sm:$0xff]
  %v34 = vld [vmem:[%s0 + $0x68] sm:$0xff]
  %v35 = vld [vmem:[%s0 + $0x70] sm:$0xff]
  %v36 = vld [vmem:[%s0 + $0x78] sm:$0xff]
  %v37 = vld [vmem:[%s1] sm:$0xf]
  %v38 = vld [vmem:[%s1 + $0x4] sm:$0xf]
  %v39 = vld [vmem:[%s1 + $0x8] sm:$0xf]
  %v40 = vld [vmem:[%s1 + $0xc] sm:$0xf]
  %v41 = vld [vmem:[%s1 + $0x10] sm:$0xf]
  %v42 = vld [vmem:[%s1 + $0x14] sm:$0xf]
  %v43 = vld [vmem:[%s1 + $0x18] sm:$0xf]
  %v44 = vld [vmem:[%s1 + $0x1c] sm:$0xf]
  %v45 = vld [vmem:[%s1 + $0x20] sm:$0xf]
  %v46 = vld [vmem:[%s1 + $0x24] sm:$0xf]
  %v47 = vld [vmem:[%s1 + $0x28] sm:$0xf]
  %v48 = vld [vmem:[%s1 + $0x2c] sm:$0xf]
  %v49 = vld [vmem:[%s1 + $0x30] sm:$0xf]
  %v50 = vld [vmem:[%s1 + $0x34] sm:$0xf]
  %v51 = vld [vmem:[%s1 + $0x38] sm:$0xf]
  %v52 = vld [vmem:[%s1 + $0x3c] sm:$0xf]
  %v53 = vld [vmem:[%s1 + $0x40] sm:$0xf]
  %v54 = vld [vmem:[%s1 + $0x44] sm:$0xf]
  %v55 = vld [vmem:[%s1 + $0x48] sm:$0xf]
  %v56 = vld [vmem:[%s1 + $0x4c] sm:$0xf]
  %v57 = vld [vmem:[%s1 + $0x50] sm:$0xf]
  %v58 = vld [vmem:[%s1 + $0x54] sm:$0xf]
  %v59 = vld [vmem:[%s1 + $0x58] sm:$0xf]
  %v60 = vld [vmem:[%s1 + $0x5c] sm:$0xf]
  %v61 = vld [vmem:[%s1 + $0x60] sm:$0xf]
  %v62 = vld [vmem:[%s1 + $0x64] sm:$0xf]
  %v63 = vld [vmem:[%s1 + $0x68] sm:$0xf]
  %v64 = vld [vmem:[%s1 + $0x6c] sm:$0xf]
  %v65 = vld [vmem:[%s1 + $0x70] sm:$0xf]
  %v66 = vld [vmem:[%s1 + $0x74] sm:$0xf]
  %v67 = vld [vmem:[%s1 + $0x78] sm:$0xf]
  %v68 = vld [vmem:[%s1 + $0x7c] sm:$0xf]
  %v85 = vunpack.c.l.b16 %v21
  %v86 = vunpack.c.h.b16 %v21
  %v87 = vunpack.c.l.b16 %v22
  %v88 = vunpack.c.h.b16 %v22
  %v89 = vunpack.c.l.b16 %v23
  %v90 = vunpack.c.h.b16 %v23
  %v91 = vunpack.c.l.b16 %v24
  %v92 = vunpack.c.h.b16 %v24
  %v93 = vunpack.c.l.b16 %v25
  %v94 = vunpack.c.h.b16 %v25
  %v95 = vunpack.c.l.b16 %v26
  %v96 = vunpack.c.h.b16 %v26
  %v97 = vunpack.c.l.b16 %v27
  %v98 = vunpack.c.h.b16 %v27
  %v99 = vunpack.c.l.b16 %v28
  %v100 = vunpack.c.h.b16 %v28
  %v101 = vunpack.c.l.b16 %v29
  %v102 = vunpack.c.h.b16 %v29
  %v103 = vunpack.c.l.b16 %v30
  %v104 = vunpack.c.h.b16 %v30
  %v105 = vunpack.c.l.b16 %v31
  %v106 = vunpack.c.h.b16 %v31
  %v107 = vunpack.c.l.b16 %v32
  %v108 = vunpack.c.h.b16 %v32
  %v109 = vunpack.c.l.b16 %v33
  %v110 = vunpack.c.h.b16 %v33
  %v111 = vunpack.c.l.b16 %v34
  %v112 = vunpack.c.h.b16 %v34
  %v113 = vunpack.c.l.b16 %v35
  %v114 = vunpack.c.h.b16 %v35
  %v115 = vunpack.c.l.b16 %v36
  %v116 = vunpack.c.h.b16 %v36
  %v117 = vpack.c.b16 %v87, %v85
  %v118 = vpack.c.b16 %v88, %v86
  %v119 = vpack.c.b16 %v91, %v89
  %v120 = vpack.c.b16 %v92, %v90
  %v121 = vpack.c.b16 %v95, %v93
  %v122 = vpack.c.b16 %v96, %v94
  %v123 = vpack.c.b16 %v99, %v97
  %v124 = vpack.c.b16 %v100, %v98
  %v125 = vpack.c.b16 %v103, %v101
  %v126 = vpack.c.b16 %v104, %v102
  %v127 = vpack.c.b16 %v107, %v105
  %v128 = vpack.c.b16 %v108, %v106
  %v129 = vpack.c.b16 %v111, %v109
  %v130 = vpack.c.b16 %v112, %v110
  %v131 = vpack.c.b16 %v115, %v113
  %v132 = vpack.c.b16 %v116, %v114
  %v181 = vunpack.c.l.b16 %v37
  %v182 = vunpack.c.l.b16 %v38
  %v183 = vunpack.c.l.b16 %v39
  %v184 = vunpack.c.l.b16 %v40
  %v185 = vunpack.c.l.b16 %v41
  %v186 = vunpack.c.l.b16 %v42
  %v187 = vunpack.c.l.b16 %v43
  %v188 = vunpack.c.l.b16 %v44
  %v189 = vunpack.c.l.b16 %v45
  %v190 = vunpack.c.l.b16 %v46
  %v191 = vunpack.c.l.b16 %v47
  %v192 = vunpack.c.l.b16 %v48
  %v193 = vunpack.c.l.b16 %v49
  %v194 = vunpack.c.l.b16 %v50
  %v195 = vunpack.c.l.b16 %v51
  %v196 = vunpack.c.l.b16 %v52
  %v197 = vunpack.c.l.b16 %v53
  %v198 = vunpack.c.l.b16 %v54
  %v199 = vunpack.c.l.b16 %v55
  %v200 = vunpack.c.l.b16 %v56
  %v201 = vunpack.c.l.b16 %v57
  %v202 = vunpack.c.l.b16 %v58
  %v203 = vunpack.c.l.b16 %v59
  %v204 = vunpack.c.l.b16 %v60
  %v205 = vunpack.c.l.b16 %v61
  %v206 = vunpack.c.l.b16 %v62
  %v207 = vunpack.c.l.b16 %v63
  %v208 = vunpack.c.l.b16 %v64
  %v209 = vunpack.c.l.b16 %v65
  %v210 = vunpack.c.l.b16 %v66
  %v211 = vunpack.c.l.b16 %v67
  %v212 = vunpack.c.l.b16 %v68
  %v213 = vpack.c.b16 %v182, %v181
  %v214 = vpack.c.b16 %v184, %v183
  %v215 = vpack.c.b16 %v186, %v185
  %v216 = vpack.c.b16 %v188, %v187
  %v217 = vpack.c.b16 %v190, %v189
  %v218 = vpack.c.b16 %v192, %v191
  %v219 = vpack.c.b16 %v194, %v193
  %v220 = vpack.c.b16 %v196, %v195
  %v221 = vpack.c.b16 %v198, %v197
  %v222 = vpack.c.b16 %v200, %v199
  %v223 = vpack.c.b16 %v202, %v201
  %v224 = vpack.c.b16 %v204, %v203
  %v225 = vpack.c.b16 %v206, %v205
  %v226 = vpack.c.b16 %v208, %v207
  %v227 = vpack.c.b16 %v210, %v209
  %v228 = vpack.c.b16 %v212, %v211
  %245 = vmatprep.subr.bf16.mxu0 0
  %246 = vmatpush1.bf16.msra.mxu0 %v220
  %247 = vmatprep.subr.bf16.mxu0 0
  %248 = vmatpush1.bf16.msra.mxu0 %v219
  %249 = vmatprep.subr.bf16.mxu0 0
  %250 = vmatpush1.bf16.msra.mxu0 %v218
  %251 = vmatprep.subr.bf16.mxu0 0
  %252 = vmatpush1.bf16.msra.mxu0 %v217
  %253 = vmatprep.subr.bf16.mxu0 0
  %254 = vmatpush1.bf16.msra.mxu0 %v216
  %255 = vmatprep.subr.bf16.mxu0 0
  %256 = vmatpush1.bf16.msra.mxu0 %v215
  %257 = vmatprep.subr.bf16.mxu0 0
  %258 = vmatpush1.bf16.msra.mxu0 %v214
  %259 = vmatprep.subr.bf16.mxu0 0
  %260 = vmatpush1.bf16.msra.mxu0 %v213
  %261 = vmatprep.subr.bf16.mxu0 0
  %262 = vmatpush2.bf16.msra.mxu0 %v228
  %263 = vmatprep.subr.bf16.mxu0 0
  %264 = vmatpush2.bf16.msra.mxu0 %v227
  %265 = vmatprep.subr.bf16.mxu0 0
  %266 = vmatpush2.bf16.msra.mxu0 %v226
  %267 = vmatprep.subr.bf16.mxu0 0
  %268 = vmatpush2.bf16.msra.mxu0 %v225
  %269 = vmatprep.subr.bf16.mxu0 0
  %270 = vmatpush2.bf16.msra.mxu0 %v224
  %271 = vmatprep.subr.bf16.mxu0 0
  %272 = vmatpush2.bf16.msra.mxu0 %v223
  %273 = vmatprep.subr.bf16.mxu0 0
  %274 = vmatpush2.bf16.msra.mxu0 %v222
  %275 = vmatprep.subr.bf16.mxu0 0
  %276 = vmatpush2.bf16.msra.mxu0 %v221
  %277 = vmatprep.mubr.bf16.mxu0 %v118
  %278 = vmatmul.mubr.bf16.gmra.mxu0 %v117
  %v279 = vpop.f32.mrf.mxu0
  %v280 = vadd.f32 0.0, %v279
  %v281 = vpop.f32.mrf.mxu0
  %v282 = vpop.f32.mrf.mxu0
  %v283 = vadd.f32 0.0, %v282
  %v284 = vpop.f32.mrf.mxu0
  %285 = vmatprep.mubr.bf16.mxu0 %v120
  %286 = vmatmul.mubr.bf16.gmra.mxu0 %v119
  %v287 = vpop.f32.mrf.mxu0
  %v288 = vadd.f32 0.0, %v287
  %v289 = vpop.f32.mrf.mxu0
  %v290 = vpop.f32.mrf.mxu0
  %v291 = vadd.f32 0.0, %v290
  %v292 = vpop.f32.mrf.mxu0
  %293 = vmatprep.mubr.bf16.mxu0 %v122
  %294 = vmatmul.mubr.bf16.gmra.mxu0 %v121
  %v295 = vpop.f32.mrf.mxu0
  %v296 = vadd.f32 0.0, %v295
  %v297 = vpop.f32.mrf.mxu0
  %v298 = vpop.f32.mrf.mxu0
  %v299 = vadd.f32 0.0, %v298
  %v300 = vpop.f32.mrf.mxu0
  %301 = vmatprep.mubr.bf16.mxu0 %v124
  %302 = vmatmul.mubr.bf16.gmra.mxu0 %v123
  %v303 = vpop.f32.mrf.mxu0
  %v304 = vadd.f32 0.0, %v303
  %v305 = vpop.f32.mrf.mxu0
  %v306 = vpop.f32.mrf.mxu0
  %v307 = vadd.f32 0.0, %v306
  %v308 = vpop.f32.mrf.mxu0
  %309 = vmatprep.mubr.bf16.mxu0 %v126
  %310 = vmatmul.mubr.bf16.gmra.mxu0 %v125
  %v311 = vpop.f32.mrf.mxu0
  %v312 = vadd.f32 0.0, %v311
  %v313 = vpop.f32.mrf.mxu0
  %v314 = vpop.f32.mrf.mxu0
  %v315 = vadd.f32 0.0, %v314
  %v316 = vpop.f32.mrf.mxu0
  %317 = vmatprep.mubr.bf16.mxu0 %v128
  %318 = vmatmul.mubr.bf16.gmra.mxu0 %v127
  %v319 = vpop.f32.mrf.mxu0
  %v320 = vadd.f32 0.0, %v319
  %v321 = vpop.f32.mrf.mxu0
  %v322 = vpop.f32.mrf.mxu0
  %v323 = vadd.f32 0.0, %v322
  %v324 = vpop.f32.mrf.mxu0
  %325 = vmatprep.mubr.bf16.mxu0 %v130
  %326 = vmatmul.mubr.bf16.gmra.mxu0 %v129
  %v327 = vpop.f32.mrf.mxu0
  %v328 = vadd.f32 0.0, %v327
  %v329 = vpop.f32.mrf.mxu0
  %v330 = vpop.f32.mrf.mxu0
  %v331 = vadd.f32 0.0, %v330
  %v332 = vpop.f32.mrf.mxu0
  %333 = vmatprep.mubr.bf16.mxu0 %v132
  %334 = vmatmul.mubr.bf16.gmra.mxu0 %v131
  %v335 = vpop.f32.mrf.mxu0
  %v336 = vadd.f32 0.0, %v335
  %v337 = vpop.f32.mrf.mxu0
  %v338 = vpop.f32.mrf.mxu0
  %v339 = vadd.f32 0.0, %v338
  %v340 = vpop.f32.mrf.mxu0
  %341 = vdwg.mxu0
  %v342 = vld [vmem:[%s2] sm:$0x1]
  %v344 = vlaneseq
  %v345 = vshrl.u32 %v344, 7
  %v346 = vsub.s32 0, %v345
  %v347 = vrot.slane %v342, %v346
  %v349 = vmul.f32 %v280, %v347
  %v350 = vmul.f32 %v283, %v347
  %v351 = vmul.f32 %v288, %v347
  %v352 = vmul.f32 %v291, %v347
  %v353 = vmul.f32 %v296, %v347
  %v354 = vmul.f32 %v299, %v347
  %v355 = vmul.f32 %v304, %v347
  %v356 = vmul.f32 %v307, %v347
  %v357 = vmul.f32 %v312, %v347
  %v358 = vmul.f32 %v315, %v347
  %v359 = vmul.f32 %v320, %v347
  %v360 = vmul.f32 %v323, %v347
  %v361 = vmul.f32 %v328, %v347
  %v362 = vmul.f32 %v331, %v347
  %v363 = vmul.f32 %v336, %v347
  %v364 = vmul.f32 %v339, %v347
  %v365 = vld [vmem:[%s3] sm:$0x1]
  %v367 = vlaneseq
  %v368 = vshrl.u32 %v367, 7
  %v369 = vsub.s32 0, %v368
  %v370 = vrot.slane %v365, %v369
  %v372 = vadd.f32 %v349, %v370
  %v373 = vadd.f32 %v350, %v370
  %v374 = vadd.f32 %v351, %v370
  %v375 = vadd.f32 %v352, %v370
  %v376 = vadd.f32 %v353, %v370
  %v377 = vadd.f32 %v354, %v370
  %v378 = vadd.f32 %v355, %v370
  %v379 = vadd.f32 %v356, %v370
  %v380 = vadd.f32 %v357, %v370
  %v381 = vadd.f32 %v358, %v370
  %v382 = vadd.f32 %v359, %v370
  %v383 = vadd.f32 %v360, %v370
  %v384 = vadd.f32 %v361, %v370
  %v385 = vadd.f32 %v362, %v370
  %v386 = vadd.f32 %v363, %v370
  %v387 = vadd.f32 %v364, %v370
  %v388 = vld [vmem:[%s4] sm:$0xf]
  %v389 = vld [vmem:[%s4 + $0x4] sm:$0xf]
  %v390 = vld [vmem:[%s4 + $0x8] sm:$0xf]
  %v391 = vld [vmem:[%s4 + $0xc] sm:$0xf]
  %v392 = vld [vmem:[%s4 + $0x10] sm:$0xf]
  %v393 = vld [vmem:[%s4 + $0x14] sm:$0xf]
  %v394 = vld [vmem:[%s4 + $0x18] sm:$0xf]
  %v395 = vld [vmem:[%s4 + $0x1c] sm:$0xf]
  %v396 = vld [vmem:[%s4 + $0x20] sm:$0xf]
  %v397 = vld [vmem:[%s4 + $0x24] sm:$0xf]
  %v398 = vld [vmem:[%s4 + $0x28] sm:$0xf]
  %v399 = vld [vmem:[%s4 + $0x2c] sm:$0xf]
  %v400 = vld [vmem:[%s4 + $0x30] sm:$0xf]
  %v401 = vld [vmem:[%s4 + $0x34] sm:$0xf]
  %v402 = vld [vmem:[%s4 + $0x38] sm:$0xf]
  %v403 = vld [vmem:[%s4 + $0x3c] sm:$0xf]
  %v404 = vunpack.c.l.bf16 %v388
  %v405 = vunpack.c.l.bf16 %v389
  %v406 = vunpack.c.l.bf16 %v390
  %v407 = vunpack.c.l.bf16 %v391
  %v408 = vunpack.c.l.bf16 %v392
  %v409 = vunpack.c.l.bf16 %v393
  %v410 = vunpack.c.l.bf16 %v394
  %v411 = vunpack.c.l.bf16 %v395
  %v412 = vunpack.c.l.bf16 %v396
  %v413 = vunpack.c.l.bf16 %v397
  %v414 = vunpack.c.l.bf16 %v398
  %v415 = vunpack.c.l.bf16 %v399
  %v416 = vunpack.c.l.bf16 %v400
  %v417 = vunpack.c.l.bf16 %v401
  %v418 = vunpack.c.l.bf16 %v402
  %v419 = vunpack.c.l.bf16 %v403
  %v420 = vadd.f32 %v372, %v404
  %v421 = vadd.f32 %v373, %v405
  %v422 = vadd.f32 %v374, %v406
  %v423 = vadd.f32 %v375, %v407
  %v424 = vadd.f32 %v376, %v408
  %v425 = vadd.f32 %v377, %v409
  %v426 = vadd.f32 %v378, %v410
  %v427 = vadd.f32 %v379, %v411
  %v428 = vadd.f32 %v380, %v412
  %v429 = vadd.f32 %v381, %v413
  %v430 = vadd.f32 %v382, %v414
  %v431 = vadd.f32 %v383, %v415
  %v432 = vadd.f32 %v384, %v416
  %v433 = vadd.f32 %v385, %v417
  %v434 = vadd.f32 %v386, %v418
  %v435 = vadd.f32 %v387, %v419
  %v436 = vmax.f32 %v420, 0.0
  %v437 = vmax.f32 %v421, 0.0
  %v438 = vmax.f32 %v422, 0.0
  %v439 = vmax.f32 %v423, 0.0
  %v440 = vmax.f32 %v424, 0.0
  %v441 = vmax.f32 %v425, 0.0
  %v442 = vmax.f32 %v426, 0.0
  %v443 = vmax.f32 %v427, 0.0
  %v444 = vmax.f32 %v428, 0.0
  %v445 = vmax.f32 %v429, 0.0
  %v446 = vmax.f32 %v430, 0.0
  %v447 = vmax.f32 %v431, 0.0
  %v448 = vmax.f32 %v432, 0.0
  %v449 = vmax.f32 %v433, 0.0
  %v450 = vmax.f32 %v434, 0.0
  %v451 = vmax.f32 %v435, 0.0
  %v452 = vpack.c.bf16 %v437, %v436
  %v453 = vpack.c.bf16 %v439, %v438
  %v454 = vpack.c.bf16 %v441, %v440
  %v455 = vpack.c.bf16 %v443, %v442
  %v456 = vpack.c.bf16 %v445, %v444
  %v457 = vpack.c.bf16 %v447, %v446
  %v458 = vpack.c.bf16 %v449, %v448
  %v459 = vpack.c.bf16 %v451, %v450
  %v468 = vunpack.c.l.b16 %v452
  %v469 = vunpack.c.h.b16 %v452
  %v470 = vunpack.c.l.b16 %v453
  %v471 = vunpack.c.h.b16 %v453
  %v472 = vunpack.c.l.b16 %v454
  %v473 = vunpack.c.h.b16 %v454
  %v474 = vunpack.c.l.b16 %v455
  %v475 = vunpack.c.h.b16 %v455
  %v476 = vunpack.c.l.b16 %v456
  %v477 = vunpack.c.h.b16 %v456
  %v478 = vunpack.c.l.b16 %v457
  %v479 = vunpack.c.h.b16 %v457
  %v480 = vunpack.c.l.b16 %v458
  %v481 = vunpack.c.h.b16 %v458
  %v482 = vunpack.c.l.b16 %v459
  %v483 = vunpack.c.h.b16 %v459
  %v484 = vpack.c.b16 %v468, %v468
  %v485 = vpack.c.b16 %v469, %v469
  %v486 = vpack.c.b16 %v470, %v470
  %v487 = vpack.c.b16 %v471, %v471
  %v488 = vpack.c.b16 %v472, %v472
  %v489 = vpack.c.b16 %v473, %v473
  %v490 = vpack.c.b16 %v474, %v474
  %v491 = vpack.c.b16 %v475, %v475
  %v492 = vpack.c.b16 %v476, %v476
  %v493 = vpack.c.b16 %v477, %v477
  %v494 = vpack.c.b16 %v478, %v478
  %v495 = vpack.c.b16 %v479, %v479
  %v496 = vpack.c.b16 %v480, %v480
  %v497 = vpack.c.b16 %v481, %v481
  %v498 = vpack.c.b16 %v482, %v482
  %v499 = vpack.c.b16 %v483, %v483
  %516 = vst [vmem:[%s5] sm:$0xf] %v484
  %517 = vst [vmem:[%s5 + $0x4] sm:$0xf] %v485
  %518 = vst [vmem:[%s5 + $0x8] sm:$0xf] %v486
  %519 = vst [vmem:[%s5 + $0xc] sm:$0xf] %v487
  %520 = vst [vmem:[%s5 + $0x10] sm:$0xf] %v488
  %521 = vst [vmem:[%s5 + $0x14] sm:$0xf] %v489
  %522 = vst [vmem:[%s5 + $0x18] sm:$0xf] %v490
  %523 = vst [vmem:[%s5 + $0x1c] sm:$0xf] %v491
  %524 = vst [vmem:[%s5 + $0x20] sm:$0xf] %v492
  %525 = vst [vmem:[%s5 + $0x24] sm:$0xf] %v493
  %526 = vst [vmem:[%s5 + $0x28] sm:$0xf] %v494
  %527 = vst [vmem:[%s5 + $0x2c] sm:$0xf] %v495
  %528 = vst [vmem:[%s5 + $0x30] sm:$0xf] %v496
  %529 = vst [vmem:[%s5 + $0x34] sm:$0xf] %v497
  %530 = vst [vmem:[%s5 + $0x38] sm:$0xf] %v498
  %531 = vst [vmem:[%s5 + $0x3c] sm:$0xf] %v499
  // Predicated region
  $region22: #{_lambda_.44} parent=0 // pred_check
    _
  $region23: #{_lambda_.44} parent=0 // pred_check_branch
    %533 = sbr.rel (0) target = $region25
  $region24: #{_lambda_.44} parent=0 // pred_region
    _
  $region25: #{_lambda_.44} parent=0 // pred_fallthru
    _
  // Predicated region
  $region26: #{_lambda_.44} parent=0 // pred_check
    _
  $region27: #{_lambda_.44} parent=0 // pred_check_branch
    %535 = sbr.rel (0) target = $region29
  $region28: #{_lambda_.44} parent=0 // pred_region
    _
  $region29: #{_lambda_.44} parent=0 // pred_fallthru
    _

// kernel: _lambda_.45
$region0: #{_lambda_.45}
  #allocation0 [shape = 'u32[]', space=smem, size = 0x4, offset = 0x4, fixed_abs, tag = 'smem constant byte address 0x4 - core index']
  #allocation1 [shape = 'u32[144,128]{1,0:T(1,128)}', space=vmem, size = 0x12000, scoped, tag = 'internal scratch']
  %s0 = inlined_call_operand.vmem [shape: bf16[128,256], index: 0, kind: input, shape index: {}]
  %s1 = inlined_call_operand.vmem [shape: bf16[256,128], index: 1, kind: input, shape index: {}]
  %s2 = inlined_call_operand.vmem [shape: f32[1,128], index: 2, kind: input, shape index: {}]
  %s3 = inlined_call_operand.vmem [shape: f32[1,128], index: 3, kind: input, shape index: {}]
  %s4 = inlined_call_operand.vmem [shape: bf16[128,128], index: 4, kind: output, shape index: {}]
  %s5 = sld [smem:[#allocation0]]
  $region26: #{_lambda_.45} parent=0
    _
  %s7 = ssub.s32 1, %s5
  %s8 = scalar_select 0, %s7, %s5
  // Predicated region
  $region2: #{_lambda_.45} parent=0 // pred_check
    _
  $region3: #{_lambda_.45} parent=0 // pred_check_branch
    %10 = sbr.rel (0) target = $region5
  $region4: #{_lambda_.45} parent=0 // pred_region
    _
  $region5: #{_lambda_.45} parent=0 // pred_fallthru
    _
  // Predicated region
  $region6: #{_lambda_.45} parent=0 // pred_check
    _
  $region7: #{_lambda_.45} parent=0 // pred_check_branch
    %12 = sbr.rel (0) target = $region9
  $region8: #{_lambda_.45} parent=0 // pred_region
    _
  $region9: #{_lambda_.45} parent=0 // pred_fallthru
    _
  // Predicated region
  $region10: #{_lambda_.45} parent=0 // pred_check
    _
  $region11: #{_lambda_.45} parent=0 // pred_check_branch
    %14 = sbr.rel (0) target = $region13
  $region12: #{_lambda_.45} parent=0 // pred_region
    _
  $region13: #{_lambda_.45} parent=0 // pred_fallthru
    _
  // Predicated region
  $region14: #{_lambda_.45} parent=0 // pred_check
    _
  $region15: #{_lambda_.45} parent=0 // pred_check_branch
    %16 = sbr.rel (0) target = $region17
  $region16: #{_lambda_.45} parent=0 // pred_region
    _
  $region17: #{_lambda_.45} parent=0 // pred_fallthru
    _
  %v18 = vld [vmem:[%s0] sm:$0xff]
  %v19 = vld [vmem:[%s0 + $0x8] sm:$0xff]
  %v20 = vld [vmem:[%s0 + $0x10] sm:$0xff]
  %v21 = vld [vmem:[%s0 + $0x18] sm:$0xff]
  %v22 = vld [vmem:[%s0 + $0x20] sm:$0xff]
  %v23 = vld [vmem:[%s0 + $0x28] sm:$0xff]
  %v24 = vld [vmem:[%s0 + $0x30] sm:$0xff]
  %v25 = vld [vmem:[%s0 + $0x38] sm:$0xff]
  %v26 = vld [vmem:[%s0 + $0x40] sm:$0xff]
  %v27 = vld [vmem:[%s0 + $0x48] sm:$0xff]
  %v28 = vld [vmem:[%s0 + $0x50] sm:$0xff]
  %v29 = vld [vmem:[%s0 + $0x58] sm:$0xff]
  %v30 = vld [vmem:[%s0 + $0x60] sm:$0xff]
  %v31 = vld [vmem:[%s0 + $0x68] sm:$0xff]
  %v32 = vld [vmem:[%s0 + $0x70] sm:$0xff]
  %v33 = vld [vmem:[%s0 + $0x78] sm:$0xff]
  %v34 = vld [vmem:[%s1] sm:$0xf]
  %v35 = vld [vmem:[%s1 + $0x4] sm:$0xf]
  %v36 = vld [vmem:[%s1 + $0x8] sm:$0xf]
  %v37 = vld [vmem:[%s1 + $0xc] sm:$0xf]
  %v38 = vld [vmem:[%s1 + $0x10] sm:$0xf]
  %v39 = vld [vmem:[%s1 + $0x14] sm:$0xf]
  %v40 = vld [vmem:[%s1 + $0x18] sm:$0xf]
  %v41 = vld [vmem:[%s1 + $0x1c] sm:$0xf]
  %v42 = vld [vmem:[%s1 + $0x20] sm:$0xf]
  %v43 = vld [vmem:[%s1 + $0x24] sm:$0xf]
  %v44 = vld [vmem:[%s1 + $0x28] sm:$0xf]
  %v45 = vld [vmem:[%s1 + $0x2c] sm:$0xf]
  %v46 = vld [vmem:[%s1 + $0x30] sm:$0xf]
  %v47 = vld [vmem:[%s1 + $0x34] sm:$0xf]
  %v48 = vld [vmem:[%s1 + $0x38] sm:$0xf]
  %v49 = vld [vmem:[%s1 + $0x3c] sm:$0xf]
  %v50 = vld [vmem:[%s1 + $0x40] sm:$0xf]
  %v51 = vld [vmem:[%s1 + $0x44] sm:$0xf]
  %v52 = vld [vmem:[%s1 + $0x48] sm:$0xf]
  %v53 = vld [vmem:[%s1 + $0x4c] sm:$0xf]
  %v54 = vld [vmem:[%s1 + $0x50] sm:$0xf]
  %v55 = vld [vmem:[%s1 + $0x54] sm:$0xf]
  %v56 = vld [vmem:[%s1 + $0x58] sm:$0xf]
  %v57 = vld [vmem:[%s1 + $0x5c] sm:$0xf]
  %v58 = vld [vmem:[%s1 + $0x60] sm:$0xf]
  %v59 = vld [vmem:[%s1 + $0x64] sm:$0xf]
  %v60 = vld [vmem:[%s1 + $0x68] sm:$0xf]
  %v61 = vld [vmem:[%s1 + $0x6c] sm:$0xf]
  %v62 = vld [vmem:[%s1 + $0x70] sm:$0xf]
  %v63 = vld [vmem:[%s1 + $0x74] sm:$0xf]
  %v64 = vld [vmem:[%s1 + $0x78] sm:$0xf]
  %v65 = vld [vmem:[%s1 + $0x7c] sm:$0xf]
  %v82 = vunpack.c.l.b16 %v18
  %v83 = vunpack.c.h.b16 %v18
  %v84 = vunpack.c.l.b16 %v19
  %v85 = vunpack.c.h.b16 %v19
  %v86 = vunpack.c.l.b16 %v20
  %v87 = vunpack.c.h.b16 %v20
  %v88 = vunpack.c.l.b16 %v21
  %v89 = vunpack.c.h.b16 %v21
  %v90 = vunpack.c.l.b16 %v22
  %v91 = vunpack.c.h.b16 %v22
  %v92 = vunpack.c.l.b16 %v23
  %v93 = vunpack.c.h.b16 %v23
  %v94 = vunpack.c.l.b16 %v24
  %v95 = vunpack.c.h.b16 %v24
  %v96 = vunpack.c.l.b16 %v25
  %v97 = vunpack.c.h.b16 %v25
  %v98 = vunpack.c.l.b16 %v26
  %v99 = vunpack.c.h.b16 %v26
  %v100 = vunpack.c.l.b16 %v27
  %v101 = vunpack.c.h.b16 %v27
  %v102 = vunpack.c.l.b16 %v28
  %v103 = vunpack.c.h.b16 %v28
  %v104 = vunpack.c.l.b16 %v29
  %v105 = vunpack.c.h.b16 %v29
  %v106 = vunpack.c.l.b16 %v30
  %v107 = vunpack.c.h.b16 %v30
  %v108 = vunpack.c.l.b16 %v31
  %v109 = vunpack.c.h.b16 %v31
  %v110 = vunpack.c.l.b16 %v32
  %v111 = vunpack.c.h.b16 %v32
  %v112 = vunpack.c.l.b16 %v33
  %v113 = vunpack.c.h.b16 %v33
  %v114 = vpack.c.b16 %v84, %v82
  %v115 = vpack.c.b16 %v85, %v83
  %v116 = vpack.c.b16 %v88, %v86
  %v117 = vpack.c.b16 %v89, %v87
  %v118 = vpack.c.b16 %v92, %v90
  %v119 = vpack.c.b16 %v93, %v91
  %v120 = vpack.c.b16 %v96, %v94
  %v121 = vpack.c.b16 %v97, %v95
  %v122 = vpack.c.b16 %v100, %v98
  %v123 = vpack.c.b16 %v101, %v99
  %v124 = vpack.c.b16 %v104, %v102
  %v125 = vpack.c.b16 %v105, %v103
  %v126 = vpack.c.b16 %v108, %v106
  %v127 = vpack.c.b16 %v109, %v107
  %v128 = vpack.c.b16 %v112, %v110
  %v129 = vpack.c.b16 %v113, %v111
  %v178 = vunpack.c.l.b16 %v34
  %v179 = vunpack.c.l.b16 %v35
  %v180 = vunpack.c.l.b16 %v36
  %v181 = vunpack.c.l.b16 %v37
  %v182 = vunpack.c.l.b16 %v38
  %v183 = vunpack.c.l.b16 %v39
  %v184 = vunpack.c.l.b16 %v40
  %v185 = vunpack.c.l.b16 %v41
  %v186 = vunpack.c.l.b16 %v42
  %v187 = vunpack.c.l.b16 %v43
  %v188 = vunpack.c.l.b16 %v44
  %v189 = vunpack.c.l.b16 %v45
  %v190 = vunpack.c.l.b16 %v46
  %v191 = vunpack.c.l.b16 %v47
  %v192 = vunpack.c.l.b16 %v48
  %v193 = vunpack.c.l.b16 %v49
  %v194 = vunpack.c.l.b16 %v50
  %v195 = vunpack.c.l.b16 %v51
  %v196 = vunpack.c.l.b16 %v52
  %v197 = vunpack.c.l.b16 %v53
  %v198 = vunpack.c.l.b16 %v54
  %v199 = vunpack.c.l.b16 %v55
  %v200 = vunpack.c.l.b16 %v56
  %v201 = vunpack.c.l.b16 %v57
  %v202 = vunpack.c.l.b16 %v58
  %v203 = vunpack.c.l.b16 %v59
  %v204 = vunpack.c.l.b16 %v60
  %v205 = vunpack.c.l.b16 %v61
  %v206 = vunpack.c.l.b16 %v62
  %v207 = vunpack.c.l.b16 %v63
  %v208 = vunpack.c.l.b16 %v64
  %v209 = vunpack.c.l.b16 %v65
  %v210 = vpack.c.b16 %v179, %v178
  %v211 = vpack.c.b16 %v181, %v180
  %v212 = vpack.c.b16 %v183, %v182
  %v213 = vpack.c.b16 %v185, %v184
  %v214 = vpack.c.b16 %v187, %v186
  %v215 = vpack.c.b16 %v189, %v188
  %v216 = vpack.c.b16 %v191, %v190
  %v217 = vpack.c.b16 %v193, %v192
  %v218 = vpack.c.b16 %v195, %v194
  %v219 = vpack.c.b16 %v197, %v196
  %v220 = vpack.c.b16 %v199, %v198
  %v221 = vpack.c.b16 %v201, %v200
  %v222 = vpack.c.b16 %v203, %v202
  %v223 = vpack.c.b16 %v205, %v204
  %v224 = vpack.c.b16 %v207, %v206
  %v225 = vpack.c.b16 %v209, %v208
  %242 = vmatprep.subr.bf16.mxu0 0
  %243 = vmatpush1.bf16.msra.mxu0 %v217
  %244 = vmatprep.subr.bf16.mxu0 0
  %245 = vmatpush1.bf16.msra.mxu0 %v216
  %246 = vmatprep.subr.bf16.mxu0 0
  %247 = vmatpush1.bf16.msra.mxu0 %v215
  %248 = vmatprep.subr.bf16.mxu0 0
  %249 = vmatpush1.bf16.msra.mxu0 %v214
  %250 = vmatprep.subr.bf16.mxu0 0
  %251 = vmatpush1.bf16.msra.mxu0 %v213
  %252 = vmatprep.subr.bf16.mxu0 0
  %253 = vmatpush1.bf16.msra.mxu0 %v212
  %254 = vmatprep.subr.bf16.mxu0 0
  %255 = vmatpush1.bf16.msra.mxu0 %v211
  %256 = vmatprep.subr.bf16.mxu0 0
  %257 = vmatpush1.bf16.msra.mxu0 %v210
  %258 = vmatprep.subr.bf16.mxu0 0
  %259 = vmatpush2.bf16.msra.mxu0 %v225
  %260 = vmatprep.subr.bf16.mxu0 0
  %261 = vmatpush2.bf16.msra.mxu0 %v224
  %262 = vmatprep.subr.bf16.mxu0 0
  %263 = vmatpush2.bf16.msra.mxu0 %v223
  %264 = vmatprep.subr.bf16.mxu0 0
  %265 = vmatpush2.bf16.msra.mxu0 %v222
  %266 = vmatprep.subr.bf16.mxu0 0
  %267 = vmatpush2.bf16.msra.mxu0 %v221
  %268 = vmatprep.subr.bf16.mxu0 0
  %269 = vmatpush2.bf16.msra.mxu0 %v220
  %270 = vmatprep.subr.bf16.mxu0 0
  %271 = vmatpush2.bf16.msra.mxu0 %v219
  %272 = vmatprep.subr.bf16.mxu0 0
  %273 = vmatpush2.bf16.msra.mxu0 %v218
  %274 = vmatprep.mubr.bf16.mxu0 %v115
  %275 = vmatmul.mubr.bf16.gmra.mxu0 %v114
  %v276 = vpop.f32.mrf.mxu0
  %v277 = vadd.f32 0.0, %v276
  %v278 = vpop.f32.mrf.mxu0
  %v279 = vpop.f32.mrf.mxu0
  %v280 = vadd.f32 0.0, %v279
  %v281 = vpop.f32.mrf.mxu0
  %282 = vmatprep.mubr.bf16.mxu0 %v117
  %283 = vmatmul.mubr.bf16.gmra.mxu0 %v116
  %v284 = vpop.f32.mrf.mxu0
  %v285 = vadd.f32 0.0, %v284
  %v286 = vpop.f32.mrf.mxu0
  %v287 = vpop.f32.mrf.mxu0
  %v288 = vadd.f32 0.0, %v287
  %v289 = vpop.f32.mrf.mxu0
  %290 = vmatprep.mubr.bf16.mxu0 %v119
  %291 = vmatmul.mubr.bf16.gmra.mxu0 %v118
  %v292 = vpop.f32.mrf.mxu0
  %v293 = vadd.f32 0.0, %v292
  %v294 = vpop.f32.mrf.mxu0
  %v295 = vpop.f32.mrf.mxu0
  %v296 = vadd.f32 0.0, %v295
  %v297 = vpop.f32.mrf.mxu0
  %298 = vmatprep.mubr.bf16.mxu0 %v121
  %299 = vmatmul.mubr.bf16.gmra.mxu0 %v120
  %v300 = vpop.f32.mrf.mxu0
  %v301 = vadd.f32 0.0, %v300
  %v302 = vpop.f32.mrf.mxu0
  %v303 = vpop.f32.mrf.mxu0
  %v304 = vadd.f32 0.0, %v303
  %v305 = vpop.f32.mrf.mxu0
  %306 = vmatprep.mubr.bf16.mxu0 %v123
  %307 = vmatmul.mubr.bf16.gmra.mxu0 %v122
  %v308 = vpop.f32.mrf.mxu0
  %v309 = vadd.f32 0.0, %v308
  %v310 = vpop.f32.mrf.mxu0
  %v311 = vpop.f32.mrf.mxu0
  %v312 = vadd.f32 0.0, %v311
  %v313 = vpop.f32.mrf.mxu0
  %314 = vmatprep.mubr.bf16.mxu0 %v125
  %315 = vmatmul.mubr.bf16.gmra.mxu0 %v124
  %v316 = vpop.f32.mrf.mxu0
  %v317 = vadd.f32 0.0, %v316
  %v318 = vpop.f32.mrf.mxu0
  %v319 = vpop.f32.mrf.mxu0
  %v320 = vadd.f32 0.0, %v319
  %v321 = vpop.f32.mrf.mxu0
  %322 = vmatprep.mubr.bf16.mxu0 %v127
  %323 = vmatmul.mubr.bf16.gmra.mxu0 %v126
  %v324 = vpop.f32.mrf.mxu0
  %v325 = vadd.f32 0.0, %v324
  %v326 = vpop.f32.mrf.mxu0
  %v327 = vpop.f32.mrf.mxu0
  %v328 = vadd.f32 0.0, %v327
  %v329 = vpop.f32.mrf.mxu0
  %330 = vmatprep.mubr.bf16.mxu0 %v129
  %331 = vmatmul.mubr.bf16.gmra.mxu0 %v128
  %v332 = vpop.f32.mrf.mxu0
  %v333 = vadd.f32 0.0, %v332
  %v334 = vpop.f32.mrf.mxu0
  %v335 = vpop.f32.mrf.mxu0
  %v336 = vadd.f32 0.0, %v335
  %v337 = vpop.f32.mrf.mxu0
  %338 = vdwg.mxu0
  %v339 = vld [vmem:[%s2] sm:$0x1]
  %v341 = vlaneseq
  %v342 = vshrl.u32 %v341, 7
  %v343 = vsub.s32 0, %v342
  %v344 = vrot.slane %v339, %v343
  %v346 = vmul.f32 %v277, %v344
  %v347 = vmul.f32 %v280, %v344
  %v348 = vmul.f32 %v285, %v344
  %v349 = vmul.f32 %v288, %v344
  %v350 = vmul.f32 %v293, %v344
  %v351 = vmul.f32 %v296, %v344
  %v352 = vmul.f32 %v301, %v344
  %v353 = vmul.f32 %v304, %v344
  %v354 = vmul.f32 %v309, %v344
  %v355 = vmul.f32 %v312, %v344
  %v356 = vmul.f32 %v317, %v344
  %v357 = vmul.f32 %v320, %v344
  %v358 = vmul.f32 %v325, %v344
  %v359 = vmul.f32 %v328, %v344
  %v360 = vmul.f32 %v333, %v344
  %v361 = vmul.f32 %v336, %v344
  %v362 = vld [vmem:[%s3] sm:$0x1]
  %v364 = vlaneseq
  %v365 = vshrl.u32 %v364, 7
  %v366 = vsub.s32 0, %v365
  %v367 = vrot.slane %v362, %v366
  %v369 = vadd.f32 %v346, %v367
  %v370 = vadd.f32 %v347, %v367
  %v371 = vadd.f32 %v348, %v367
  %v372 = vadd.f32 %v349, %v367
  %v373 = vadd.f32 %v350, %v367
  %v374 = vadd.f32 %v351, %v367
  %v375 = vadd.f32 %v352, %v367
  %v376 = vadd.f32 %v353, %v367
  %v377 = vadd.f32 %v354, %v367
  %v378 = vadd.f32 %v355, %v367
  %v379 = vadd.f32 %v356, %v367
  %v380 = vadd.f32 %v357, %v367
  %v381 = vadd.f32 %v358, %v367
  %v382 = vadd.f32 %v359, %v367
  %v383 = vadd.f32 %v360, %v367
  %v384 = vadd.f32 %v361, %v367
  %v385 = vmax.f32 %v369, 0.0
  %v386 = vmax.f32 %v370, 0.0
  %v387 = vmax.f32 %v371, 0.0
  %v388 = vmax.f32 %v372, 0.0
  %v389 = vmax.f32 %v373, 0.0
  %v390 = vmax.f32 %v374, 0.0
  %v391 = vmax.f32 %v375, 0.0
  %v392 = vmax.f32 %v376, 0.0
  %v393 = vmax.f32 %v377, 0.0
  %v394 = vmax.f32 %v378, 0.0
  %v395 = vmax.f32 %v379, 0.0
  %v396 = vmax.f32 %v380, 0.0
  %v397 = vmax.f32 %v381, 0.0
  %v398 = vmax.f32 %v382, 0.0
  %v399 = vmax.f32 %v383, 0.0
  %v400 = vmax.f32 %v384, 0.0
  %v401 = vpack.c.bf16 %v386, %v385
  %v402 = vpack.c.bf16 %v388, %v387
  %v403 = vpack.c.bf16 %v390, %v389
  %v404 = vpack.c.bf16 %v392, %v391
  %v405 = vpack.c.bf16 %v394, %v393
  %v406 = vpack.c.bf16 %v396, %v395
  %v407 = vpack.c.bf16 %v398, %v397
  %v408 = vpack.c.bf16 %v400, %v399
  %v417 = vunpack.c.l.b16 %v401
  %v418 = vunpack.c.h.b16 %v401
  %v419 = vunpack.c.l.b16 %v402
  %v420 = vunpack.c.h.b16 %v402
  %v421 = vunpack.c.l.b16 %v403
  %v422 = vunpack.c.h.b16 %v403
  %v423 = vunpack.c.l.b16 %v404
  %v424 = vunpack.c.h.b16 %v404
  %v425 = vunpack.c.l.b16 %v405
  %v426 = vunpack.c.h.b16 %v405
  %v427 = vunpack.c.l.b16 %v406
  %v428 = vunpack.c.h.b16 %v406
  %v429 = vunpack.c.l.b16 %v407
  %v430 = vunpack.c.h.b16 %v407
  %v431 = vunpack.c.l.b16 %v408
  %v432 = vunpack.c.h.b16 %v408
  %v433 = vpack.c.b16 %v417, %v417
  %v434 = vpack.c.b16 %v418, %v418
  %v435 = vpack.c.b16 %v419, %v419
  %v436 = vpack.c.b16 %v420, %v420
  %v437 = vpack.c.b16 %v421, %v421
  %v438 = vpack.c.b16 %v422, %v422
  %v439 = vpack.c.b16 %v423, %v423
  %v440 = vpack.c.b16 %v424, %v424
  %v441 = vpack.c.b16 %v425, %v425
  %v442 = vpack.c.b16 %v426, %v426
  %v443 = vpack.c.b16 %v427, %v427
  %v444 = vpack.c.b16 %v428, %v428
  %v445 = vpack.c.b16 %v429, %v429
  %v446 = vpack.c.b16 %v430, %v430
  %v447 = vpack.c.b16 %v431, %v431
  %v448 = vpack.c.b16 %v432, %v432
  %465 = vst [vmem:[%s4] sm:$0xf] %v433
  %466 = vst [vmem:[%s4 + $0x4] sm:$0xf] %v434
  %467 = vst [vmem:[%s4 + $0x8] sm:$0xf] %v435
  %468 = vst [vmem:[%s4 + $0xc] sm:$0xf] %v436
  %469 = vst [vmem:[%s4 + $0x10] sm:$0xf] %v437
  %470 = vst [vmem:[%s4 + $0x14] sm:$0xf] %v438
  %471 = vst [vmem:[%s4 + $0x18] sm:$0xf] %v439
  %472 = vst [vmem:[%s4 + $0x1c] sm:$0xf] %v440
  %473 = vst [vmem:[%s4 + $0x20] sm:$0xf] %v441
  %474 = vst [vmem:[%s4 + $0x24] sm:$0xf] %v442
  %475 = vst [vmem:[%s4 + $0x28] sm:$0xf] %v443
  %476 = vst [vmem:[%s4 + $0x2c] sm:$0xf] %v444
  %477 = vst [vmem:[%s4 + $0x30] sm:$0xf] %v445
  %478 = vst [vmem:[%s4 + $0x34] sm:$0xf] %v446
  %479 = vst [vmem:[%s4 + $0x38] sm:$0xf] %v447
  %480 = vst [vmem:[%s4 + $0x3c] sm:$0xf] %v448
  // Predicated region
  $region18: #{_lambda_.45} parent=0 // pred_check
    _
  $region19: #{_lambda_.45} parent=0 // pred_check_branch
    %482 = sbr.rel (0) target = $region21
  $region20: #{_lambda_.45} parent=0 // pred_region
    _
  $region21: #{_lambda_.45} parent=0 // pred_fallthru
    _
  // Predicated region
  $region22: #{_lambda_.45} parent=0 // pred_check
    _
  $region23: #{_lambda_.45} parent=0 // pred_check_branch
    %484 = sbr.rel (0) target = $region25
  $region24: #{_lambda_.45} parent=0 // pred_region
    _
  $region25: #{_lambda_.45} parent=0 // pred_fallthru
    _

// kernel: _lambda_.51
$region0: #{_lambda_.51}
  #allocation0 [shape = 'u32[]', space=smem, size = 0x4, offset = 0x4, fixed_abs, tag = 'smem constant byte address 0x4 - core index']
  #allocation1 [shape = 'u32[144,128]{1,0:T(1,128)}', space=vmem, size = 0x12000, scoped, tag = 'internal scratch']
  %s0 = inlined_call_operand.vmem [shape: bf16[32,256], index: 0, kind: input, shape index: {}]
  %s1 = inlined_call_operand.vmem [shape: bf16[256,256], index: 1, kind: input, shape index: {}]
  %s2 = inlined_call_operand.vmem [shape: f32[1,256], index: 2, kind: input, shape index: {}]
  %s3 = inlined_call_operand.vmem [shape: f32[1,256], index: 3, kind: input, shape index: {}]
  %s4 = inlined_call_operand.vmem [shape: bf16[32,256], index: 4, kind: output, shape index: {}]
  %s5 = sld [smem:[#allocation0]]
  $region26: #{_lambda_.51} parent=0
    _
  %s7 = ssub.s32 1, %s5
  %s8 = scalar_select 0, %s7, %s5
  // Predicated region
  $region2: #{_lambda_.51} parent=0 // pred_check
    _
  $region3: #{_lambda_.51} parent=0 // pred_check_branch
    %10 = sbr.rel (0) target = $region5
  $region4: #{_lambda_.51} parent=0 // pred_region
    _
  $region5: #{_lambda_.51} parent=0 // pred_fallthru
    _
  // Predicated region
  $region6: #{_lambda_.51} parent=0 // pred_check
    _
  $region7: #{_lambda_.51} parent=0 // pred_check_branch
    %12 = sbr.rel (0) target = $region9
  $region8: #{_lambda_.51} parent=0 // pred_region
    _
  $region9: #{_lambda_.51} parent=0 // pred_fallthru
    _
  // Predicated region
  $region10: #{_lambda_.51} parent=0 // pred_check
    _
  $region11: #{_lambda_.51} parent=0 // pred_check_branch
    %14 = sbr.rel (0) target = $region13
  $region12: #{_lambda_.51} parent=0 // pred_region
    _
  $region13: #{_lambda_.51} parent=0 // pred_fallthru
    _
  // Predicated region
  $region14: #{_lambda_.51} parent=0 // pred_check
    _
  $region15: #{_lambda_.51} parent=0 // pred_check_branch
    %16 = sbr.rel (0) target = $region17
  $region16: #{_lambda_.51} parent=0 // pred_region
    _
  $region17: #{_lambda_.51} parent=0 // pred_fallthru
    _
  %v17 = vld [vmem:[%s0] sm:$0xff]
  %v18 = vld [vmem:[%s0 + $0x8] sm:$0xff]
  %v19 = vld [vmem:[%s0 + $0x10] sm:$0xff]
  %v20 = vld [vmem:[%s0 + $0x18] sm:$0xff]
  %v21 = vld [vmem:[%s1] sm:$0xff]
  %v22 = vld [vmem:[%s1 + $0x8] sm:$0xff]
  %v23 = vld [vmem:[%s1 + $0x10] sm:$0xff]
  %v24 = vld [vmem:[%s1 + $0x18] sm:$0xff]
  %v25 = vld [vmem:[%s1 + $0x20] sm:$0xff]
  %v26 = vld [vmem:[%s1 + $0x28] sm:$0xff]
  %v27 = vld [vmem:[%s1 + $0x30] sm:$0xff]
  %v28 = vld [vmem:[%s1 + $0x38] sm:$0xff]
  %v29 = vld [vmem:[%s1 + $0x40] sm:$0xff]
  %v30 = vld [vmem:[%s1 + $0x48] sm:$0xff]
  %v31 = vld [vmem:[%s1 + $0x50] sm:$0xff]
  %v32 = vld [vmem:[%s1 + $0x58] sm:$0xff]
  %v33 = vld [vmem:[%s1 + $0x60] sm:$0xff]
  %v34 = vld [vmem:[%s1 + $0x68] sm:$0xff]
  %v35 = vld [vmem:[%s1 + $0x70] sm:$0xff]
  %v36 = vld [vmem:[%s1 + $0x78] sm:$0xff]
  %v37 = vld [vmem:[%s1 + $0x80] sm:$0xff]
  %v38 = vld [vmem:[%s1 + $0x88] sm:$0xff]
  %v39 = vld [vmem:[%s1 + $0x90] sm:$0xff]
  %v40 = vld [vmem:[%s1 + $0x98] sm:$0xff]
  %v41 = vld [vmem:[%s1 + $0xa0] sm:$0xff]
  %v42 = vld [vmem:[%s1 + $0xa8] sm:$0xff]
  %v43 = vld [vmem:[%s1 + $0xb0] sm:$0xff]
  %v44 = vld [vmem:[%s1 + $0xb8] sm:$0xff]
  %v45 = vld [vmem:[%s1 + $0xc0] sm:$0xff]
  %v46 = vld [vmem:[%s1 + $0xc8] sm:$0xff]
  %v47 = vld [vmem:[%s1 + $0xd0] sm:$0xff]
  %v48 = vld [vmem:[%s1 + $0xd8] sm:$0xff]
  %v49 = vld [vmem:[%s1 + $0xe0] sm:$0xff]
  %v50 = vld [vmem:[%s1 + $0xe8] sm:$0xff]
  %v51 = vld [vmem:[%s1 + $0xf0] sm:$0xff]
  %v52 = vld [vmem:[%s1 + $0xf8] sm:$0xff]
  %v57 = vunpack.c.l.b16 %v17
  %v58 = vunpack.c.h.b16 %v17
  %v59 = vunpack.c.l.b16 %v18
  %v60 = vunpack.c.h.b16 %v18
  %v61 = vunpack.c.l.b16 %v19
  %v62 = vunpack.c.h.b16 %v19
  %v63 = vunpack.c.l.b16 %v20
  %v64 = vunpack.c.h.b16 %v20
  %v65 = vpack.c.b16 %v59, %v57
  %v66 = vpack.c.b16 %v60, %v58
  %v67 = vpack.c.b16 %v63, %v61
  %v68 = vpack.c.b16 %v64, %v62
  %v105 = vunpack.c.l.b16 %v21
  %v106 = vunpack.c.h.b16 %v21
  %v107 = vunpack.c.l.b16 %v22
  %v108 = vunpack.c.h.b16 %v22
  %v109 = vunpack.c.l.b16 %v23
  %v110 = vunpack.c.h.b16 %v23
  %v111 = vunpack.c.l.b16 %v24
  %v112 = vunpack.c.h.b16 %v24
  %v113 = vunpack.c.l.b16 %v25
  %v114 = vunpack.c.h.b16 %v25
  %v115 = vunpack.c.l.b16 %v26
  %v116 = vunpack.c.h.b16 %v26
  %v117 = vunpack.c.l.b16 %v27
  %v118 = vunpack.c.h.b16 %v27
  %v119 = vunpack.c.l.b16 %v28
  %v120 = vunpack.c.h.b16 %v28
  %v121 = vunpack.c.l.b16 %v29
  %v122 = vunpack.c.h.b16 %v29
  %v123 = vunpack.c.l.b16 %v30
  %v124 = vunpack.c.h.b16 %v30
  %v125 = vunpack.c.l.b16 %v31
  %v126 = vunpack.c.h.b16 %v31
  %v127 = vunpack.c.l.b16 %v32
  %v128 = vunpack.c.h.b16 %v32
  %v129 = vunpack.c.l.b16 %v33
  %v130 = vunpack.c.h.b16 %v33
  %v131 = vunpack.c.l.b16 %v34
  %v132 = vunpack.c.h.b16 %v34
  %v133 = vunpack.c.l.b16 %v35
  %v134 = vunpack.c.h.b16 %v35
  %v135 = vunpack.c.l.b16 %v36
  %v136 = vunpack.c.h.b16 %v36
  %v137 = vunpack.c.l.b16 %v37
  %v138 = vunpack.c.h.b16 %v37
  %v139 = vunpack.c.l.b16 %v38
  %v140 = vunpack.c.h.b16 %v38
  %v141 = vunpack.c.l.b16 %v39
  %v142 = vunpack.c.h.b16 %v39
  %v143 = vunpack.c.l.b16 %v40
  %v144 = vunpack.c.h.b16 %v40
  %v145 = vunpack.c.l.b16 %v41
  %v146 = vunpack.c.h.b16 %v41
  %v147 = vunpack.c.l.b16 %v42
  %v148 = vunpack.c.h.b16 %v42
  %v149 = vunpack.c.l.b16 %v43
  %v150 = vunpack.c.h.b16 %v43
  %v151 = vunpack.c.l.b16 %v44
  %v152 = vunpack.c.h.b16 %v44
  %v153 = vunpack.c.l.b16 %v45
  %v154 = vunpack.c.h.b16 %v45
  %v155 = vunpack.c.l.b16 %v46
  %v156 = vunpack.c.h.b16 %v46
  %v157 = vunpack.c.l.b16 %v47
  %v158 = vunpack.c.h.b16 %v47
  %v159 = vunpack.c.l.b16 %v48
  %v160 = vunpack.c.h.b16 %v48
  %v161 = vunpack.c.l.b16 %v49
  %v162 = vunpack.c.h.b16 %v49
  %v163 = vunpack.c.l.b16 %v50
  %v164 = vunpack.c.h.b16 %v50
  %v165 = vunpack.c.l.b16 %v51
  %v166 = vunpack.c.h.b16 %v51
  %v167 = vunpack.c.l.b16 %v52
  %v168 = vunpack.c.h.b16 %v52
  %v169 = vpack.c.b16 %v107, %v105
  %v170 = vpack.c.b16 %v108, %v106
  %v171 = vpack.c.b16 %v111, %v109
  %v172 = vpack.c.b16 %v112, %v110
  %v173 = vpack.c.b16 %v115, %v113
  %v174 = vpack.c.b16 %v116, %v114
  %v175 = vpack.c.b16 %v119, %v117
  %v176 = vpack.c.b16 %v120, %v118
  %v177 = vpack.c.b16 %v123, %v121
  %v178 = vpack.c.b16 %v124, %v122
  %v179 = vpack.c.b16 %v127, %v125
  %v180 = vpack.c.b16 %v128, %v126
  %v181 = vpack.c.b16 %v131, %v129
  %v182 = vpack.c.b16 %v132, %v130
  %v183 = vpack.c.b16 %v135, %v133
  %v184 = vpack.c.b16 %v136, %v134
  %v185 = vpack.c.b16 %v139, %v137
  %v186 = vpack.c.b16 %v140, %v138
  %v187 = vpack.c.b16 %v143, %v141
  %v188 = vpack.c.b16 %v144, %v142
  %v189 = vpack.c.b16 %v147, %v145
  %v190 = vpack.c.b16 %v148, %v146
  %v191 = vpack.c.b16 %v151, %v149
  %v192 = vpack.c.b16 %v152, %v150
  %v193 = vpack.c.b16 %v155, %v153
  %v194 = vpack.c.b16 %v156, %v154
  %v195 = vpack.c.b16 %v159, %v157
  %v196 = vpack.c.b16 %v160, %v158
  %v197 = vpack.c.b16 %v163, %v161
  %v198 = vpack.c.b16 %v164, %v162
  %v199 = vpack.c.b16 %v167, %v165
  %v200 = vpack.c.b16 %v168, %v166
  %233 = vmatprep.subr.bf16.mxu0 %v184
  %234 = vmatpush1.bf16.msra.mxu0 %v183
  %235 = vmatprep.subr.bf16.mxu0 %v182
  %236 = vmatpush1.bf16.msra.mxu0 %v181
  %237 = vmatprep.subr.bf16.mxu0 %v180
  %238 = vmatpush1.bf16.msra.mxu0 %v179
  %239 = vmatprep.subr.bf16.mxu0 %v178
  %240 = vmatpush1.bf16.msra.mxu0 %v177
  %241 = vmatprep.subr.bf16.mxu0 %v176
  %242 = vmatpush1.bf16.msra.mxu0 %v175
  %243 = vmatprep.subr.bf16.mxu0 %v174
  %244 = vmatpush1.bf16.msra.mxu0 %v173
  %245 = vmatprep.subr.bf16.mxu0 %v172
  %246 = vmatpush1.bf16.msra.mxu0 %v171
  %247 = vmatprep.subr.bf16.mxu0 %v170
  %248 = vmatpush1.bf16.msra.mxu0 %v169
  %249 = vmatprep.subr.bf16.mxu0 %v200
  %250 = vmatpush2.bf16.msra.mxu0 %v199
  %251 = vmatprep.subr.bf16.mxu0 %v198
  %252 = vmatpush2.bf16.msra.mxu0 %v197
  %253 = vmatprep.subr.bf16.mxu0 %v196
  %254 = vmatpush2.bf16.msra.mxu0 %v195
  %255 = vmatprep.subr.bf16.mxu0 %v194
  %256 = vmatpush2.bf16.msra.mxu0 %v193
  %257 = vmatprep.subr.bf16.mxu0 %v192
  %258 = vmatpush2.bf16.msra.mxu0 %v191
  %259 = vmatprep.subr.bf16.mxu0 %v190
  %260 = vmatpush2.bf16.msra.mxu0 %v189
  %261 = vmatprep.subr.bf16.mxu0 %v188
  %262 = vmatpush2.bf16.msra.mxu0 %v187
  %263 = vmatprep.subr.bf16.mxu0 %v186
  %264 = vmatpush2.bf16.msra.mxu0 %v185
  %265 = vmatprep.mubr.bf16.mxu0 %v66
  %266 = vmatmul.mubr.bf16.gmra.mxu0 %v65
  %v267 = vpop.f32.mrf.mxu0
  %v268 = vadd.f32 0.0, %v267
  %v269 = vpop.f32.mrf.mxu0
  %v270 = vadd.f32 0.0, %v269
  %v271 = vpop.f32.mrf.mxu0
  %v272 = vadd.f32 0.0, %v271
  %v273 = vpop.f32.mrf.mxu0
  %v274 = vadd.f32 0.0, %v273
  %275 = vmatprep.mubr.bf16.mxu0 %v68
  %276 = vmatmul.mubr.bf16.gmra.mxu0 %v67
  %v277 = vpop.f32.mrf.mxu0
  %v278 = vadd.f32 0.0, %v277
  %v279 = vpop.f32.mrf.mxu0
  %v280 = vadd.f32 0.0, %v279
  %v281 = vpop.f32.mrf.mxu0
  %v282 = vadd.f32 0.0, %v281
  %v283 = vpop.f32.mrf.mxu0
  %v284 = vadd.f32 0.0, %v283
  %285 = vdwg.mxu0
  %v286 = vld [vmem:[%s2] sm:$0x3]
  %v288 = vlaneseq
  %v289 = vshrl.u32 %v288, 7
  %v290 = vsub.s32 0, %v289
  %v291 = vrot.slane %v286, %v290
  %v292 = vlaneseq
  %v293 = vshrl.u32 %v292, 7
  %v294 = vsub.s32 1, %v293
  %v295 = vrot.slane %v286, %v294
  %v298 = vmul.f32 %v268, %v291
  %v299 = vmul.f32 %v270, %v295
  %v300 = vmul.f32 %v272, %v291
  %v301 = vmul.f32 %v274, %v295
  %v302 = vmul.f32 %v278, %v291
  %v303 = vmul.f32 %v280, %v295
  %v304 = vmul.f32 %v282, %v291
  %v305 = vmul.f32 %v284, %v295
  %v306 = vld [vmem:[%s3] sm:$0x3]
  %v308 = vlaneseq
  %v309 = vshrl.u32 %v308, 7
  %v310 = vsub.s32 0, %v309
  %v311 = vrot.slane %v306, %v310
  %v312 = vlaneseq
  %v313 = vshrl.u32 %v312, 7
  %v314 = vsub.s32 1, %v313
  %v315 = vrot.slane %v306, %v314
  %v318 = vadd.f32 %v298, %v311
  %v319 = vadd.f32 %v299, %v315
  %v320 = vadd.f32 %v300, %v311
  %v321 = vadd.f32 %v301, %v315
  %v322 = vadd.f32 %v302, %v311
  %v323 = vadd.f32 %v303, %v315
  %v324 = vadd.f32 %v304, %v311
  %v325 = vadd.f32 %v305, %v315
  %v326 = vlaneseq
  %v327 = vand.u32 %v326, 127
  %v328 = vadd.s32 %v327, 128
  %vm329 = vcmp.lt.s32.totalorder %v327, 128
  %vm330 = vcmp.lt.s32.totalorder %v328, 128
  %v331 = vmax.f32 %v318, 0.0
  %v332 = vmax.f32 %v319, 0.0
  %v333 = vmax.f32 %v320, 0.0
  %v334 = vmax.f32 %v321, 0.0
  %v335 = vmax.f32 %v322, 0.0
  %v336 = vmax.f32 %v323, 0.0
  %v337 = vmax.f32 %v324, 0.0
  %v338 = vmax.f32 %v325, 0.0
  %v339 = vsel %vm329, %v331, %v318
  %v340 = vsel %vm330, %v332, %v319
  %v341 = vsel %vm329, %v333, %v320
  %v342 = vsel %vm330, %v334, %v321
  %v343 = vsel %vm329, %v335, %v322
  %v344 = vsel %vm330, %v336, %v323
  %v345 = vsel %vm329, %v337, %v324
  %v346 = vsel %vm330, %v338, %v325
  %v347 = vpack.c.bf16 %v341, %v339
  %v348 = vpack.c.bf16 %v342, %v340
  %v349 = vpack.c.bf16 %v345, %v343
  %v350 = vpack.c.bf16 %v346, %v344
  %v355 = vunpack.c.l.b16 %v347
  %v356 = vunpack.c.l.b16 %v348
  %v357 = vunpack.c.h.b16 %v347
  %v358 = vunpack.c.h.b16 %v348
  %v359 = vunpack.c.l.b16 %v349
  %v360 = vunpack.c.l.b16 %v350
  %v361 = vunpack.c.h.b16 %v349
  %v362 = vunpack.c.h.b16 %v350
  %v363 = vpack.c.b16 %v356, %v355
  %v364 = vpack.c.b16 %v358, %v357
  %v365 = vpack.c.b16 %v360, %v359
  %v366 = vpack.c.b16 %v362, %v361
  %371 = vst [vmem:[%s4] sm:$0xff] %v363
  %372 = vst [vmem:[%s4 + $0x8] sm:$0xff] %v364
  %373 = vst [vmem:[%s4 + $0x10] sm:$0xff] %v365
  %374 = vst [vmem:[%s4 + $0x18] sm:$0xff] %v366
  // Predicated region
  $region18: #{_lambda_.51} parent=0 // pred_check
    _
  $region19: #{_lambda_.51} parent=0 // pred_check_branch
    %376 = sbr.rel (0) target = $region21
  $region20: #{_lambda_.51} parent=0 // pred_region
    _
  $region21: #{_lambda_.51} parent=0 // pred_fallthru
    _
  // Predicated region
  $region22: #{_lambda_.51} parent=0 // pred_check
    _
  $region23: #{_lambda_.51} parent=0 // pred_check_branch
    %378 = sbr.rel (0) target = $region25
  $region24: #{_lambda_.51} parent=0 // pred_region
    _
  $region25: #{_lambda_.51} parent=0 // pred_fallthru
    _

// kernel: _lambda_.52
$region0: #{_lambda_.52}
  #allocation0 [shape = 'u32[]', space=smem, size = 0x4, offset = 0x4, fixed_abs, tag = 'smem constant byte address 0x4 - core index']
  #allocation1 [shape = 'u32[144,128]{1,0:T(1,128)}', space=vmem, size = 0x12000, scoped, tag = 'internal scratch']
  %s0 = inlined_call_operand.vmem [shape: bf16[32,384], index: 0, kind: input, shape index: {}]
  %s1 = inlined_call_operand.vmem [shape: bf16[384,128], index: 1, kind: input, shape index: {}]
  %s2 = inlined_call_operand.vmem [shape: f32[1,128], index: 2, kind: input, shape index: {}]
  %s3 = inlined_call_operand.vmem [shape: f32[1,128], index: 3, kind: input, shape index: {}]
  %s4 = inlined_call_operand.vmem [shape: bf16[32,128], index: 4, kind: input, shape index: {}]
  %s5 = inlined_call_operand.vmem [shape: bf16[32,128], index: 5, kind: output, shape index: {}]
  %s6 = sld [smem:[#allocation0]]
  $region30: #{_lambda_.52} parent=0
    _
  %s8 = ssub.s32 1, %s6
  %s9 = scalar_select 0, %s8, %s6
  // Predicated region
  $region2: #{_lambda_.52} parent=0 // pred_check
    _
  $region3: #{_lambda_.52} parent=0 // pred_check_branch
    %11 = sbr.rel (0) target = $region5
  $region4: #{_lambda_.52} parent=0 // pred_region
    _
  $region5: #{_lambda_.52} parent=0 // pred_fallthru
    _
  // Predicated region
  $region6: #{_lambda_.52} parent=0 // pred_check
    _
  $region7: #{_lambda_.52} parent=0 // pred_check_branch
    %13 = sbr.rel (0) target = $region9
  $region8: #{_lambda_.52} parent=0 // pred_region
    _
  $region9: #{_lambda_.52} parent=0 // pred_fallthru
    _
  // Predicated region
  $region10: #{_lambda_.52} parent=0 // pred_check
    _
  $region11: #{_lambda_.52} parent=0 // pred_check_branch
    %15 = sbr.rel (0) target = $region13
  $region12: #{_lambda_.52} parent=0 // pred_region
    _
  $region13: #{_lambda_.52} parent=0 // pred_fallthru
    _
  // Predicated region
  $region14: #{_lambda_.52} parent=0 // pred_check
    _
  $region15: #{_lambda_.52} parent=0 // pred_check_branch
    %17 = sbr.rel (0) target = $region17
  $region16: #{_lambda_.52} parent=0 // pred_region
    _
  $region17: #{_lambda_.52} parent=0 // pred_fallthru
    _
  // Predicated region
  $region18: #{_lambda_.52} parent=0 // pred_check
    _
  $region19: #{_lambda_.52} parent=0 // pred_check_branch
    %19 = sbr.rel (0) target = $region21
  $region20: #{_lambda_.52} parent=0 // pred_region
    _
  $region21: #{_lambda_.52} parent=0 // pred_fallthru
    _
  %v21 = vld [vmem:[%s0] sm:$0xff]
  %v22 = vld [vmem:[%s0 + $0x8] sm:$0xf]
  %v23 = vld [vmem:[%s0 + $0xc] sm:$0xff]
  %v24 = vld [vmem:[%s0 + $0x14] sm:$0xf]
  %v25 = vld [vmem:[%s0 + $0x18] sm:$0xff]
  %v26 = vld [vmem:[%s0 + $0x20] sm:$0xf]
  %v27 = vld [vmem:[%s0 + $0x24] sm:$0xff]
  %v28 = vld [vmem:[%s0 + $0x2c] sm:$0xf]
  %v29 = vld [vmem:[%s1] sm:$0xf]
  %v30 = vld [vmem:[%s1 + $0x4] sm:$0xf]
  %v31 = vld [vmem:[%s1 + $0x8] sm:$0xf]
  %v32 = vld [vmem:[%s1 + $0xc] sm:$0xf]
  %v33 = vld [vmem:[%s1 + $0x10] sm:$0xf]
  %v34 = vld [vmem:[%s1 + $0x14] sm:$0xf]
  %v35 = vld [vmem:[%s1 + $0x18] sm:$0xf]
  %v36 = vld [vmem:[%s1 + $0x1c] sm:$0xf]
  %v37 = vld [vmem:[%s1 + $0x20] sm:$0xf]
  %v38 = vld [vmem:[%s1 + $0x24] sm:$0xf]
  %v39 = vld [vmem:[%s1 + $0x28] sm:$0xf]
  %v40 = vld [vmem:[%s1 + $0x2c] sm:$0xf]
  %v41 = vld [vmem:[%s1 + $0x30] sm:$0xf]
  %v42 = vld [vmem:[%s1 + $0x34] sm:$0xf]
  %v43 = vld [vmem:[%s1 + $0x38] sm:$0xf]
  %v44 = vld [vmem:[%s1 + $0x3c] sm:$0xf]
  %v45 = vld [vmem:[%s1 + $0x40] sm:$0xf]
  %v46 = vld [vmem:[%s1 + $0x44] sm:$0xf]
  %v47 = vld [vmem:[%s1 + $0x48] sm:$0xf]
  %v48 = vld [vmem:[%s1 + $0x4c] sm:$0xf]
  %v49 = vld [vmem:[%s1 + $0x50] sm:$0xf]
  %v50 = vld [vmem:[%s1 + $0x54] sm:$0xf]
  %v51 = vld [vmem:[%s1 + $0x58] sm:$0xf]
  %v52 = vld [vmem:[%s1 + $0x5c] sm:$0xf]
  %v53 = vld [vmem:[%s1 + $0x60] sm:$0xf]
  %v54 = vld [vmem:[%s1 + $0x64] sm:$0xf]
  %v55 = vld [vmem:[%s1 + $0x68] sm:$0xf]
  %v56 = vld [vmem:[%s1 + $0x6c] sm:$0xf]
  %v57 = vld [vmem:[%s1 + $0x70] sm:$0xf]
  %v58 = vld [vmem:[%s1 + $0x74] sm:$0xf]
  %v59 = vld [vmem:[%s1 + $0x78] sm:$0xf]
  %v60 = vld [vmem:[%s1 + $0x7c] sm:$0xf]
  %v61 = vld [vmem:[%s1 + $0x80] sm:$0xf]
  %v62 = vld [vmem:[%s1 + $0x84] sm:$0xf]
  %v63 = vld [vmem:[%s1 + $0x88] sm:$0xf]
  %v64 = vld [vmem:[%s1 + $0x8c] sm:$0xf]
  %v65 = vld [vmem:[%s1 + $0x90] sm:$0xf]
  %v66 = vld [vmem:[%s1 + $0x94] sm:$0xf]
  %v67 = vld [vmem:[%s1 + $0x98] sm:$0xf]
  %v68 = vld [vmem:[%s1 + $0x9c] sm:$0xf]
  %v69 = vld [vmem:[%s1 + $0xa0] sm:$0xf]
  %v70 = vld [vmem:[%s1 + $0xa4] sm:$0xf]
  %v71 = vld [vmem:[%s1 + $0xa8] sm:$0xf]
  %v72 = vld [vmem:[%s1 + $0xac] sm:$0xf]
  %v73 = vld [vmem:[%s1 + $0xb0] sm:$0xf]
  %v74 = vld [vmem:[%s1 + $0xb4] sm:$0xf]
  %v75 = vld [vmem:[%s1 + $0xb8] sm:$0xf]
  %v76 = vld [vmem:[%s1 + $0xbc] sm:$0xf]
  %v85 = vunpack.c.l.b16 %v21
  %v86 = vunpack.c.h.b16 %v21
  %v87 = vunpack.c.l.b16 %v22
  %v88 = vunpack.c.l.b16 %v23
  %v89 = vunpack.c.h.b16 %v23
  %v90 = vunpack.c.l.b16 %v24
  %v91 = vunpack.c.l.b16 %v25
  %v92 = vunpack.c.h.b16 %v25
  %v93 = vunpack.c.l.b16 %v26
  %v94 = vunpack.c.l.b16 %v27
  %v95 = vunpack.c.h.b16 %v27
  %v96 = vunpack.c.l.b16 %v28
  %v97 = vpack.c.b16 %v88, %v85
  %v98 = vpack.c.b16 %v89, %v86
  %v99 = vpack.c.b16 %v90, %v87
  %v100 = vpack.c.b16 %v94, %v91
  %v101 = vpack.c.b16 %v95, %v92
  %v102 = vpack.c.b16 %v96, %v93
  %v157 = vunpack.c.l.b16 %v29
  %v158 = vunpack.c.l.b16 %v30
  %v159 = vunpack.c.l.b16 %v31
  %v160 = vunpack.c.l.b16 %v32
  %v161 = vunpack.c.l.b16 %v33
  %v162 = vunpack.c.l.b16 %v34
  %v163 = vunpack.c.l.b16 %v35
  %v164 = vunpack.c.l.b16 %v36
  %v165 = vunpack.c.l.b16 %v37
  %v166 = vunpack.c.l.b16 %v38
  %v167 = vunpack.c.l.b16 %v39
  %v168 = vunpack.c.l.b16 %v40
  %v169 = vunpack.c.l.b16 %v41
  %v170 = vunpack.c.l.b16 %v42
  %v171 = vunpack.c.l.b16 %v43
  %v172 = vunpack.c.l.b16 %v44
  %v173 = vunpack.c.l.b16 %v45
  %v174 = vunpack.c.l.b16 %v46
  %v175 = vunpack.c.l.b16 %v47
  %v176 = vunpack.c.l.b16 %v48
  %v177 = vunpack.c.l.b16 %v49
  %v178 = vunpack.c.l.b16 %v50
  %v179 = vunpack.c.l.b16 %v51
  %v180 = vunpack.c.l.b16 %v52
  %v181 = vunpack.c.l.b16 %v53
  %v182 = vunpack.c.l.b16 %v54
  %v183 = vunpack.c.l.b16 %v55
  %v184 = vunpack.c.l.b16 %v56
  %v185 = vunpack.c.l.b16 %v57
  %v186 = vunpack.c.l.b16 %v58
  %v187 = vunpack.c.l.b16 %v59
  %v188 = vunpack.c.l.b16 %v60
  %v189 = vunpack.c.l.b16 %v61
  %v190 = vunpack.c.l.b16 %v62
  %v191 = vunpack.c.l.b16 %v63
  %v192 = vunpack.c.l.b16 %v64
  %v193 = vunpack.c.l.b16 %v65
  %v194 = vunpack.c.l.b16 %v66
  %v195 = vunpack.c.l.b16 %v67
  %v196 = vunpack.c.l.b16 %v68
  %v197 = vunpack.c.l.b16 %v69
  %v198 = vunpack.c.l.b16 %v70
  %v199 = vunpack.c.l.b16 %v71
  %v200 = vunpack.c.l.b16 %v72
  %v201 = vunpack.c.l.b16 %v73
  %v202 = vunpack.c.l.b16 %v74
  %v203 = vunpack.c.l.b16 %v75
  %v204 = vunpack.c.l.b16 %v76
  %v205 = vpack.c.b16 %v158, %v157
  %v206 = vpack.c.b16 %v160, %v159
  %v207 = vpack.c.b16 %v162, %v161
  %v208 = vpack.c.b16 %v164, %v163
  %v209 = vpack.c.b16 %v166, %v165
  %v210 = vpack.c.b16 %v168, %v167
  %v211 = vpack.c.b16 %v170, %v169
  %v212 = vpack.c.b16 %v172, %v171
  %v213 = vpack.c.b16 %v174, %v173
  %v214 = vpack.c.b16 %v176, %v175
  %v215 = vpack.c.b16 %v178, %v177
  %v216 = vpack.c.b16 %v180, %v179
  %v217 = vpack.c.b16 %v182, %v181
  %v218 = vpack.c.b16 %v184, %v183
  %v219 = vpack.c.b16 %v186, %v185
  %v220 = vpack.c.b16 %v188, %v187
  %v221 = vpack.c.b16 %v190, %v189
  %v222 = vpack.c.b16 %v192, %v191
  %v223 = vpack.c.b16 %v194, %v193
  %v224 = vpack.c.b16 %v196, %v195
  %v225 = vpack.c.b16 %v198, %v197
  %v226 = vpack.c.b16 %v200, %v199
  %v227 = vpack.c.b16 %v202, %v201
  %v228 = vpack.c.b16 %v204, %v203
  %253 = vmatprep.subr.bf16.mxu0 0
  %254 = vmatpush1.bf16.msra.mxu0 %v212
  %255 = vmatprep.subr.bf16.mxu0 0
  %256 = vmatpush1.bf16.msra.mxu0 %v211
  %257 = vmatprep.subr.bf16.mxu0 0
  %258 = vmatpush1.bf16.msra.mxu0 %v210
  %259 = vmatprep.subr.bf16.mxu0 0
  %260 = vmatpush1.bf16.msra.mxu0 %v209
  %261 = vmatprep.subr.bf16.mxu0 0
  %262 = vmatpush1.bf16.msra.mxu0 %v208
  %263 = vmatprep.subr.bf16.mxu0 0
  %264 = vmatpush1.bf16.msra.mxu0 %v207
  %265 = vmatprep.subr.bf16.mxu0 0
  %266 = vmatpush1.bf16.msra.mxu0 %v206
  %267 = vmatprep.subr.bf16.mxu0 0
  %268 = vmatpush1.bf16.msra.mxu0 %v205
  %269 = vmatprep.subr.bf16.mxu0 0
  %270 = vmatpush2.bf16.msra.mxu0 %v220
  %271 = vmatprep.subr.bf16.mxu0 0
  %272 = vmatpush2.bf16.msra.mxu0 %v219
  %273 = vmatprep.subr.bf16.mxu0 0
  %274 = vmatpush2.bf16.msra.mxu0 %v218
  %275 = vmatprep.subr.bf16.mxu0 0
  %276 = vmatpush2.bf16.msra.mxu0 %v217
  %277 = vmatprep.subr.bf16.mxu0 0
  %278 = vmatpush2.bf16.msra.mxu0 %v216
  %279 = vmatprep.subr.bf16.mxu0 0
  %280 = vmatpush2.bf16.msra.mxu0 %v215
  %281 = vmatprep.subr.bf16.mxu0 0
  %282 = vmatpush2.bf16.msra.mxu0 %v214
  %283 = vmatprep.subr.bf16.mxu0 0
  %284 = vmatpush2.bf16.msra.mxu0 %v213
  %285 = vmatprep.mubr.bf16.mxu0 %v98
  %286 = vmatmul.mubr.bf16.gmra.mxu0 %v97
  %v287 = vpop.f32.mrf.mxu0
  %v288 = vadd.f32 0.0, %v287
  %v289 = vpop.f32.mrf.mxu0
  %v290 = vpop.f32.mrf.mxu0
  %v291 = vadd.f32 0.0, %v290
  %v292 = vpop.f32.mrf.mxu0
  %293 = vmatprep.mubr.bf16.mxu0 %v101
  %294 = vmatmul.mubr.bf16.gmra.mxu0 %v100
  %v295 = vpop.f32.mrf.mxu0
  %v296 = vadd.f32 0.0, %v295
  %v297 = vpop.f32.mrf.mxu0
  %v298 = vpop.f32.mrf.mxu0
  %v299 = vadd.f32 0.0, %v298
  %v300 = vpop.f32.mrf.mxu0
  %301 = vdwg.mxu0
  %302 = vmatprep.subr.bf16.mxu0 0
  %303 = vmatpush1.bf16.msra.mxu0 %v228
  %304 = vmatprep.subr.bf16.mxu0 0
  %305 = vmatpush1.bf16.msra.mxu0 %v227
  %306 = vmatprep.subr.bf16.mxu0 0
  %307 = vmatpush1.bf16.msra.mxu0 %v226
  %308 = vmatprep.subr.bf16.mxu0 0
  %309 = vmatpush1.bf16.msra.mxu0 %v225
  %310 = vmatprep.subr.bf16.mxu0 0
  %311 = vmatpush1.bf16.msra.mxu0 %v224
  %312 = vmatprep.subr.bf16.mxu0 0
  %313 = vmatpush1.bf16.msra.mxu0 %v223
  %314 = vmatprep.subr.bf16.mxu0 0
  %315 = vmatpush1.bf16.msra.mxu0 %v222
  %316 = vmatprep.subr.bf16.mxu0 0
  %317 = vmatpush1.bf16.msra.mxu0 %v221
  %318 = vmatprep.subr.bf16.mxu0 0
  %319 = vmatpush2.bf16.msra.mxu0 0
  %320 = vmatprep.subr.bf16.mxu0 0
  %321 = vmatpush2.bf16.msra.mxu0 0
  %322 = vmatprep.subr.bf16.mxu0 0
  %323 = vmatpush2.bf16.msra.mxu0 0
  %324 = vmatprep.subr.bf16.mxu0 0
  %325 = vmatpush2.bf16.msra.mxu0 0
  %326 = vmatprep.subr.bf16.mxu0 0
  %327 = vmatpush2.bf16.msra.mxu0 0
  %328 = vmatprep.subr.bf16.mxu0 0
  %329 = vmatpush2.bf16.msra.mxu0 0
  %330 = vmatprep.subr.bf16.mxu0 0
  %331 = vmatpush2.bf16.msra.mxu0 0
  %332 = vmatprep.subr.bf16.mxu0 0
  %333 = vmatpush2.bf16.msra.mxu0 0
  %334 = vmatprep.mubr.bf16.mxu0 0
  %335 = vmatmul.mubr.bf16.gmra.mxu0 %v99
  %v336 = vpop.f32.mrf.mxu0
  %v337 = vadd.f32 %v288, %v336
  %v338 = vpop.f32.mrf.mxu0
  %v339 = vpop.f32.mrf.mxu0
  %v340 = vadd.f32 %v291, %v339
  %v341 = vpop.f32.mrf.mxu0
  %342 = vmatprep.mubr.bf16.mxu0 0
  %343 = vmatmul.mubr.bf16.gmra.mxu0 %v102
  %v344 = vpop.f32.mrf.mxu0
  %v345 = vadd.f32 %v296, %v344
  %v346 = vpop.f32.mrf.mxu0
  %v347 = vpop.f32.mrf.mxu0
  %v348 = vadd.f32 %v299, %v347
  %v349 = vpop.f32.mrf.mxu0
  %350 = vdwg.mxu0
  %v351 = vld [vmem:[%s2] sm:$0x1]
  %v353 = vlaneseq
  %v354 = vshrl.u32 %v353, 7
  %v355 = vsub.s32 0, %v354
  %v356 = vrot.slane %v351, %v355
  %v358 = vmul.f32 %v337, %v356
  %v359 = vmul.f32 %v340, %v356
  %v360 = vmul.f32 %v345, %v356
  %v361 = vmul.f32 %v348, %v356
  %v362 = vld [vmem:[%s3] sm:$0x1]
  %v364 = vlaneseq
  %v365 = vshrl.u32 %v364, 7
  %v366 = vsub.s32 0, %v365
  %v367 = vrot.slane %v362, %v366
  %v369 = vadd.f32 %v358, %v367
  %v370 = vadd.f32 %v359, %v367
  %v371 = vadd.f32 %v360, %v367
  %v372 = vadd.f32 %v361, %v367
  %v373 = vld [vmem:[%s4] sm:$0xf]
  %v374 = vld [vmem:[%s4 + $0x4] sm:$0xf]
  %v375 = vld [vmem:[%s4 + $0x8] sm:$0xf]
  %v376 = vld [vmem:[%s4 + $0xc] sm:$0xf]
  %v377 = vunpack.c.l.bf16 %v373
  %v378 = vunpack.c.l.bf16 %v374
  %v379 = vunpack.c.l.bf16 %v375
  %v380 = vunpack.c.l.bf16 %v376
  %v381 = vadd.f32 %v369, %v377
  %v382 = vadd.f32 %v370, %v378
  %v383 = vadd.f32 %v371, %v379
  %v384 = vadd.f32 %v372, %v380
  %v385 = vmax.f32 %v381, 0.0
  %v386 = vmax.f32 %v382, 0.0
  %v387 = vmax.f32 %v383, 0.0
  %v388 = vmax.f32 %v384, 0.0
  %v389 = vpack.c.bf16 %v386, %v385
  %v390 = vpack.c.bf16 %v388, %v387
  %v393 = vunpack.c.l.b16 %v389
  %v394 = vunpack.c.h.b16 %v389
  %v395 = vunpack.c.l.b16 %v390
  %v396 = vunpack.c.h.b16 %v390
  %v397 = vpack.c.b16 %v393, %v393
  %v398 = vpack.c.b16 %v394, %v394
  %v399 = vpack.c.b16 %v395, %v395
  %v400 = vpack.c.b16 %v396, %v396
  %405 = vst [vmem:[%s5] sm:$0xf] %v397
  %406 = vst [vmem:[%s5 + $0x4] sm:$0xf] %v398
  %407 = vst [vmem:[%s5 + $0x8] sm:$0xf] %v399
  %408 = vst [vmem:[%s5 + $0xc] sm:$0xf] %v400
  // Predicated region
  $region22: #{_lambda_.52} parent=0 // pred_check
    _
  $region23: #{_lambda_.52} parent=0 // pred_check_branch
    %410 = sbr.rel (0) target = $region25
  $region24: #{_lambda_.52} parent=0 // pred_region
    _
  $region25: #{_lambda_.52} parent=0 // pred_fallthru
    _
  // Predicated region
  $region26: #{_lambda_.52} parent=0 // pred_check
    _
  $region27: #{_lambda_.52} parent=0 // pred_check_branch
    %412 = sbr.rel (0) target = $region29
  $region28: #{_lambda_.52} parent=0 // pred_region
    _
  $region29: #{_lambda_.52} parent=0 // pred_fallthru
    _

// kernel: _lambda_.53
$region0: #{_lambda_.53}
  #allocation0 [shape = 'u32[]', space=smem, size = 0x4, offset = 0x4, fixed_abs, tag = 'smem constant byte address 0x4 - core index']
  #allocation1 [shape = 'u32[144,128]{1,0:T(1,128)}', space=vmem, size = 0x12000, scoped, tag = 'internal scratch']
  %s0 = inlined_call_operand.vmem [shape: bf16[32,384], index: 0, kind: input, shape index: {}]
  %s1 = inlined_call_operand.vmem [shape: bf16[384,128], index: 1, kind: input, shape index: {}]
  %s2 = inlined_call_operand.vmem [shape: f32[1,128], index: 2, kind: input, shape index: {}]
  %s3 = inlined_call_operand.vmem [shape: f32[1,128], index: 3, kind: input, shape index: {}]
  %s4 = inlined_call_operand.vmem [shape: bf16[32,128], index: 4, kind: output, shape index: {}]
  %s5 = sld [smem:[#allocation0]]
  $region26: #{_lambda_.53} parent=0
    _
  %s7 = ssub.s32 1, %s5
  %s8 = scalar_select 0, %s7, %s5
  // Predicated region
  $region2: #{_lambda_.53} parent=0 // pred_check
    _
  $region3: #{_lambda_.53} parent=0 // pred_check_branch
    %10 = sbr.rel (0) target = $region5
  $region4: #{_lambda_.53} parent=0 // pred_region
    _
  $region5: #{_lambda_.53} parent=0 // pred_fallthru
    _
  // Predicated region
  $region6: #{_lambda_.53} parent=0 // pred_check
    _
  $region7: #{_lambda_.53} parent=0 // pred_check_branch
    %12 = sbr.rel (0) target = $region9
  $region8: #{_lambda_.53} parent=0 // pred_region
    _
  $region9: #{_lambda_.53} parent=0 // pred_fallthru
    _
  // Predicated region
  $region10: #{_lambda_.53} parent=0 // pred_check
    _
  $region11: #{_lambda_.53} parent=0 // pred_check_branch
    %14 = sbr.rel (0) target = $region13
  $region12: #{_lambda_.53} parent=0 // pred_region
    _
  $region13: #{_lambda_.53} parent=0 // pred_fallthru
    _
  // Predicated region
  $region14: #{_lambda_.53} parent=0 // pred_check
    _
  $region15: #{_lambda_.53} parent=0 // pred_check_branch
    %16 = sbr.rel (0) target = $region17
  $region16: #{_lambda_.53} parent=0 // pred_region
    _
  $region17: #{_lambda_.53} parent=0 // pred_fallthru
    _
  %v18 = vld [vmem:[%s0] sm:$0xff]
  %v19 = vld [vmem:[%s0 + $0x8] sm:$0xf]
  %v20 = vld [vmem:[%s0 + $0xc] sm:$0xff]
  %v21 = vld [vmem:[%s0 + $0x14] sm:$0xf]
  %v22 = vld [vmem:[%s0 + $0x18] sm:$0xff]
  %v23 = vld [vmem:[%s0 + $0x20] sm:$0xf]
  %v24 = vld [vmem:[%s0 + $0x24] sm:$0xff]
  %v25 = vld [vmem:[%s0 + $0x2c] sm:$0xf]
  %v26 = vld [vmem:[%s1] sm:$0xf]
  %v27 = vld [vmem:[%s1 + $0x4] sm:$0xf]
  %v28 = vld [vmem:[%s1 + $0x8] sm:$0xf]
  %v29 = vld [vmem:[%s1 + $0xc] sm:$0xf]
  %v30 = vld [vmem:[%s1 + $0x10] sm:$0xf]
  %v31 = vld [vmem:[%s1 + $0x14] sm:$0xf]
  %v32 = vld [vmem:[%s1 + $0x18] sm:$0xf]
  %v33 = vld [vmem:[%s1 + $0x1c] sm:$0xf]
  %v34 = vld [vmem:[%s1 + $0x20] sm:$0xf]
  %v35 = vld [vmem:[%s1 + $0x24] sm:$0xf]
  %v36 = vld [vmem:[%s1 + $0x28] sm:$0xf]
  %v37 = vld [vmem:[%s1 + $0x2c] sm:$0xf]
  %v38 = vld [vmem:[%s1 + $0x30] sm:$0xf]
  %v39 = vld [vmem:[%s1 + $0x34] sm:$0xf]
  %v40 = vld [vmem:[%s1 + $0x38] sm:$0xf]
  %v41 = vld [vmem:[%s1 + $0x3c] sm:$0xf]
  %v42 = vld [vmem:[%s1 + $0x40] sm:$0xf]
  %v43 = vld [vmem:[%s1 + $0x44] sm:$0xf]
  %v44 = vld [vmem:[%s1 + $0x48] sm:$0xf]
  %v45 = vld [vmem:[%s1 + $0x4c] sm:$0xf]
  %v46 = vld [vmem:[%s1 + $0x50] sm:$0xf]
  %v47 = vld [vmem:[%s1 + $0x54] sm:$0xf]
  %v48 = vld [vmem:[%s1 + $0x58] sm:$0xf]
  %v49 = vld [vmem:[%s1 + $0x5c] sm:$0xf]
  %v50 = vld [vmem:[%s1 + $0x60] sm:$0xf]
  %v51 = vld [vmem:[%s1 + $0x64] sm:$0xf]
  %v52 = vld [vmem:[%s1 + $0x68] sm:$0xf]
  %v53 = vld [vmem:[%s1 + $0x6c] sm:$0xf]
  %v54 = vld [vmem:[%s1 + $0x70] sm:$0xf]
  %v55 = vld [vmem:[%s1 + $0x74] sm:$0xf]
  %v56 = vld [vmem:[%s1 + $0x78] sm:$0xf]
  %v57 = vld [vmem:[%s1 + $0x7c] sm:$0xf]
  %v58 = vld [vmem:[%s1 + $0x80] sm:$0xf]
  %v59 = vld [vmem:[%s1 + $0x84] sm:$0xf]
  %v60 = vld [vmem:[%s1 + $0x88] sm:$0xf]
  %v61 = vld [vmem:[%s1 + $0x8c] sm:$0xf]
  %v62 = vld [vmem:[%s1 + $0x90] sm:$0xf]
  %v63 = vld [vmem:[%s1 + $0x94] sm:$0xf]
  %v64 = vld [vmem:[%s1 + $0x98] sm:$0xf]
  %v65 = vld [vmem:[%s1 + $0x9c] sm:$0xf]
  %v66 = vld [vmem:[%s1 + $0xa0] sm:$0xf]
  %v67 = vld [vmem:[%s1 + $0xa4] sm:$0xf]
  %v68 = vld [vmem:[%s1 + $0xa8] sm:$0xf]
  %v69 = vld [vmem:[%s1 + $0xac] sm:$0xf]
  %v70 = vld [vmem:[%s1 + $0xb0] sm:$0xf]
  %v71 = vld [vmem:[%s1 + $0xb4] sm:$0xf]
  %v72 = vld [vmem:[%s1 + $0xb8] sm:$0xf]
  %v73 = vld [vmem:[%s1 + $0xbc] sm:$0xf]
  %v82 = vunpack.c.l.b16 %v18
  %v83 = vunpack.c.h.b16 %v18
  %v84 = vunpack.c.l.b16 %v19
  %v85 = vunpack.c.l.b16 %v20
  %v86 = vunpack.c.h.b16 %v20
  %v87 = vunpack.c.l.b16 %v21
  %v88 = vunpack.c.l.b16 %v22
  %v89 = vunpack.c.h.b16 %v22
  %v90 = vunpack.c.l.b16 %v23
  %v91 = vunpack.c.l.b16 %v24
  %v92 = vunpack.c.h.b16 %v24
  %v93 = vunpack.c.l.b16 %v25
  %v94 = vpack.c.b16 %v85, %v82
  %v95 = vpack.c.b16 %v86, %v83
  %v96 = vpack.c.b16 %v87, %v84
  %v97 = vpack.c.b16 %v91, %v88
  %v98 = vpack.c.b16 %v92, %v89
  %v99 = vpack.c.b16 %v93, %v90
  %v154 = vunpack.c.l.b16 %v26
  %v155 = vunpack.c.l.b16 %v27
  %v156 = vunpack.c.l.b16 %v28
  %v157 = vunpack.c.l.b16 %v29
  %v158 = vunpack.c.l.b16 %v30
  %v159 = vunpack.c.l.b16 %v31
  %v160 = vunpack.c.l.b16 %v32
  %v161 = vunpack.c.l.b16 %v33
  %v162 = vunpack.c.l.b16 %v34
  %v163 = vunpack.c.l.b16 %v35
  %v164 = vunpack.c.l.b16 %v36
  %v165 = vunpack.c.l.b16 %v37
  %v166 = vunpack.c.l.b16 %v38
  %v167 = vunpack.c.l.b16 %v39
  %v168 = vunpack.c.l.b16 %v40
  %v169 = vunpack.c.l.b16 %v41
  %v170 = vunpack.c.l.b16 %v42
  %v171 = vunpack.c.l.b16 %v43
  %v172 = vunpack.c.l.b16 %v44
  %v173 = vunpack.c.l.b16 %v45
  %v174 = vunpack.c.l.b16 %v46
  %v175 = vunpack.c.l.b16 %v47
  %v176 = vunpack.c.l.b16 %v48
  %v177 = vunpack.c.l.b16 %v49
  %v178 = vunpack.c.l.b16 %v50
  %v179 = vunpack.c.l.b16 %v51
  %v180 = vunpack.c.l.b16 %v52
  %v181 = vunpack.c.l.b16 %v53
  %v182 = vunpack.c.l.b16 %v54
  %v183 = vunpack.c.l.b16 %v55
  %v184 = vunpack.c.l.b16 %v56
  %v185 = vunpack.c.l.b16 %v57
  %v186 = vunpack.c.l.b16 %v58
  %v187 = vunpack.c.l.b16 %v59
  %v188 = vunpack.c.l.b16 %v60
  %v189 = vunpack.c.l.b16 %v61
  %v190 = vunpack.c.l.b16 %v62
  %v191 = vunpack.c.l.b16 %v63
  %v192 = vunpack.c.l.b16 %v64
  %v193 = vunpack.c.l.b16 %v65
  %v194 = vunpack.c.l.b16 %v66
  %v195 = vunpack.c.l.b16 %v67
  %v196 = vunpack.c.l.b16 %v68
  %v197 = vunpack.c.l.b16 %v69
  %v198 = vunpack.c.l.b16 %v70
  %v199 = vunpack.c.l.b16 %v71
  %v200 = vunpack.c.l.b16 %v72
  %v201 = vunpack.c.l.b16 %v73
  %v202 = vpack.c.b16 %v155, %v154
  %v203 = vpack.c.b16 %v157, %v156
  %v204 = vpack.c.b16 %v159, %v158
  %v205 = vpack.c.b16 %v161, %v160
  %v206 = vpack.c.b16 %v163, %v162
  %v207 = vpack.c.b16 %v165, %v164
  %v208 = vpack.c.b16 %v167, %v166
  %v209 = vpack.c.b16 %v169, %v168
  %v210 = vpack.c.b16 %v171, %v170
  %v211 = vpack.c.b16 %v173, %v172
  %v212 = vpack.c.b16 %v175, %v174
  %v213 = vpack.c.b16 %v177, %v176
  %v214 = vpack.c.b16 %v179, %v178
  %v215 = vpack.c.b16 %v181, %v180
  %v216 = vpack.c.b16 %v183, %v182
  %v217 = vpack.c.b16 %v185, %v184
  %v218 = vpack.c.b16 %v187, %v186
  %v219 = vpack.c.b16 %v189, %v188
  %v220 = vpack.c.b16 %v191, %v190
  %v221 = vpack.c.b16 %v193, %v192
  %v222 = vpack.c.b16 %v195, %v194
  %v223 = vpack.c.b16 %v197, %v196
  %v224 = vpack.c.b16 %v199, %v198
  %v225 = vpack.c.b16 %v201, %v200
  %250 = vmatprep.subr.bf16.mxu0 0
  %251 = vmatpush1.bf16.msra.mxu0 %v209
  %252 = vmatprep.subr.bf16.mxu0 0
  %253 = vmatpush1.bf16.msra.mxu0 %v208
  %254 = vmatprep.subr.bf16.mxu0 0
  %255 = vmatpush1.bf16.msra.mxu0 %v207
  %256 = vmatprep.subr.bf16.mxu0 0
  %257 = vmatpush1.bf16.msra.mxu0 %v206
  %258 = vmatprep.subr.bf16.mxu0 0
  %259 = vmatpush1.bf16.msra.mxu0 %v205
  %260 = vmatprep.subr.bf16.mxu0 0
  %261 = vmatpush1.bf16.msra.mxu0 %v204
  %262 = vmatprep.subr.bf16.mxu0 0
  %263 = vmatpush1.bf16.msra.mxu0 %v203
  %264 = vmatprep.subr.bf16.mxu0 0
  %265 = vmatpush1.bf16.msra.mxu0 %v202
  %266 = vmatprep.subr.bf16.mxu0 0
  %267 = vmatpush2.bf16.msra.mxu0 %v217
  %268 = vmatprep.subr.bf16.mxu0 0
  %269 = vmatpush2.bf16.msra.mxu0 %v216
  %270 = vmatprep.subr.bf16.mxu0 0
  %271 = vmatpush2.bf16.msra.mxu0 %v215
  %272 = vmatprep.subr.bf16.mxu0 0
  %273 = vmatpush2.bf16.msra.mxu0 %v214
  %274 = vmatprep.subr.bf16.mxu0 0
  %275 = vmatpush2.bf16.msra.mxu0 %v213
  %276 = vmatprep.subr.bf16.mxu0 0
  %277 = vmatpush2.bf16.msra.mxu0 %v212
  %278 = vmatprep.subr.bf16.mxu0 0
  %279 = vmatpush2.bf16.msra.mxu0 %v211
  %280 = vmatprep.subr.bf16.mxu0 0
  %281 = vmatpush2.bf16.msra.mxu0 %v210
  %282 = vmatprep.mubr.bf16.mxu0 %v95
  %283 = vmatmul.mubr.bf16.gmra.mxu0 %v94
  %v284 = vpop.f32.mrf.mxu0
  %v285 = vadd.f32 0.0, %v284
  %v286 = vpop.f32.mrf.mxu0
  %v287 = vpop.f32.mrf.mxu0
  %v288 = vadd.f32 0.0, %v287
  %v289 = vpop.f32.mrf.mxu0
  %290 = vmatprep.mubr.bf16.mxu0 %v98
  %291 = vmatmul.mubr.bf16.gmra.mxu0 %v97
  %v292 = vpop.f32.mrf.mxu0
  %v293 = vadd.f32 0.0, %v292
  %v294 = vpop.f32.mrf.mxu0
  %v295 = vpop.f32.mrf.mxu0
  %v296 = vadd.f32 0.0, %v295
  %v297 = vpop.f32.mrf.mxu0
  %298 = vdwg.mxu0
  %299 = vmatprep.subr.bf16.mxu0 0
  %300 = vmatpush1.bf16.msra.mxu0 %v225
  %301 = vmatprep.subr.bf16.mxu0 0
  %302 = vmatpush1.bf16.msra.mxu0 %v224
  %303 = vmatprep.subr.bf16.mxu0 0
  %304 = vmatpush1.bf16.msra.mxu0 %v223
  %305 = vmatprep.subr.bf16.mxu0 0
  %306 = vmatpush1.bf16.msra.mxu0 %v222
  %307 = vmatprep.subr.bf16.mxu0 0
  %308 = vmatpush1.bf16.msra.mxu0 %v221
  %309 = vmatprep.subr.bf16.mxu0 0
  %310 = vmatpush1.bf16.msra.mxu0 %v220
  %311 = vmatprep.subr.bf16.mxu0 0
  %312 = vmatpush1.bf16.msra.mxu0 %v219
  %313 = vmatprep.subr.bf16.mxu0 0
  %314 = vmatpush1.bf16.msra.mxu0 %v218
  %315 = vmatprep.subr.bf16.mxu0 0
  %316 = vmatpush2.bf16.msra.mxu0 0
  %317 = vmatprep.subr.bf16.mxu0 0
  %318 = vmatpush2.bf16.msra.mxu0 0
  %319 = vmatprep.subr.bf16.mxu0 0
  %320 = vmatpush2.bf16.msra.mxu0 0
  %321 = vmatprep.subr.bf16.mxu0 0
  %322 = vmatpush2.bf16.msra.mxu0 0
  %323 = vmatprep.subr.bf16.mxu0 0
  %324 = vmatpush2.bf16.msra.mxu0 0
  %325 = vmatprep.subr.bf16.mxu0 0
  %326 = vmatpush2.bf16.msra.mxu0 0
  %327 = vmatprep.subr.bf16.mxu0 0
  %328 = vmatpush2.bf16.msra.mxu0 0
  %329 = vmatprep.subr.bf16.mxu0 0
  %330 = vmatpush2.bf16.msra.mxu0 0
  %331 = vmatprep.mubr.bf16.mxu0 0
  %332 = vmatmul.mubr.bf16.gmra.mxu0 %v96
  %v333 = vpop.f32.mrf.mxu0
  %v334 = vadd.f32 %v285, %v333
  %v335 = vpop.f32.mrf.mxu0
  %v336 = vpop.f32.mrf.mxu0
  %v337 = vadd.f32 %v288, %v336
  %v338 = vpop.f32.mrf.mxu0
  %339 = vmatprep.mubr.bf16.mxu0 0
  %340 = vmatmul.mubr.bf16.gmra.mxu0 %v99
  %v341 = vpop.f32.mrf.mxu0
  %v342 = vadd.f32 %v293, %v341
  %v343 = vpop.f32.mrf.mxu0
  %v344 = vpop.f32.mrf.mxu0
  %v345 = vadd.f32 %v296, %v344
  %v346 = vpop.f32.mrf.mxu0
  %347 = vdwg.mxu0
  %v348 = vld [vmem:[%s2] sm:$0x1]
  %v350 = vlaneseq
  %v351 = vshrl.u32 %v350, 7
  %v352 = vsub.s32 0, %v351
  %v353 = vrot.slane %v348, %v352
  %v355 = vmul.f32 %v334, %v353
  %v356 = vmul.f32 %v337, %v353
  %v357 = vmul.f32 %v342, %v353
  %v358 = vmul.f32 %v345, %v353
  %v359 = vld [vmem:[%s3] sm:$0x1]
  %v361 = vlaneseq
  %v362 = vshrl.u32 %v361, 7
  %v363 = vsub.s32 0, %v362
  %v364 = vrot.slane %v359, %v363
  %v366 = vadd.f32 %v355, %v364
  %v367 = vadd.f32 %v356, %v364
  %v368 = vadd.f32 %v357, %v364
  %v369 = vadd.f32 %v358, %v364
  %v370 = vmax.f32 %v366, 0.0
  %v371 = vmax.f32 %v367, 0.0
  %v372 = vmax.f32 %v368, 0.0
  %v373 = vmax.f32 %v369, 0.0
  %v374 = vpack.c.bf16 %v371, %v370
  %v375 = vpack.c.bf16 %v373, %v372
  %v378 = vunpack.c.l.b16 %v374
  %v379 = vunpack.c.h.b16 %v374
  %v380 = vunpack.c.l.b16 %v375
  %v381 = vunpack.c.h.b16 %v375
  %v382 = vpack.c.b16 %v378, %v378
  %v383 = vpack.c.b16 %v379, %v379
  %v384 = vpack.c.b16 %v380, %v380
  %v385 = vpack.c.b16 %v381, %v381
  %390 = vst [vmem:[%s4] sm:$0xf] %v382
  %391 = vst [vmem:[%s4 + $0x4] sm:$0xf] %v383
  %392 = vst [vmem:[%s4 + $0x8] sm:$0xf] %v384
  %393 = vst [vmem:[%s4 + $0xc] sm:$0xf] %v385
  // Predicated region
  $region18: #{_lambda_.53} parent=0 // pred_check
    _
  $region19: #{_lambda_.53} parent=0 // pred_check_branch
    %395 = sbr.rel (0) target = $region21
  $region20: #{_lambda_.53} parent=0 // pred_region
    _
  $region21: #{_lambda_.53} parent=0 // pred_fallthru
    _
  // Predicated region
  $region22: #{_lambda_.53} parent=0 // pred_check
    _
  $region23: #{_lambda_.53} parent=0 // pred_check_branch
    %397 = sbr.rel (0) target = $region25
  $region24: #{_lambda_.53} parent=0 // pred_region
    _
  $region25: #{_lambda_.53} parent=0 // pred_fallthru
    _

// kernel: _lambda_.63
$region0: #{_lambda_.63}
  #allocation0 [shape = 'u32[]', space=smem, size = 0x4, offset = 0x4, fixed_abs, tag = 'smem constant byte address 0x4 - core index']
  #allocation1 [shape = 'u32[144,128]{1,0:T(1,128)}', space=vmem, size = 0x12000, scoped, tag = 'internal scratch']
  %s0 = inlined_call_operand.vmem [shape: bf16[8,384], index: 0, kind: input, shape index: {}]
  %s1 = inlined_call_operand.vmem [shape: bf16[384,256], index: 1, kind: input, shape index: {}]
  %s2 = inlined_call_operand.vmem [shape: f32[1,256], index: 2, kind: input, shape index: {}]
  %s3 = inlined_call_operand.vmem [shape: f32[1,256], index: 3, kind: input, shape index: {}]
  %s4 = inlined_call_operand.vmem [shape: bf16[8,256], index: 4, kind: output, shape index: {}]
  %s5 = sld [smem:[#allocation0]]
  $region26: #{_lambda_.63} parent=0
    _
  %s7 = ssub.s32 1, %s5
  %s8 = scalar_select 0, %s7, %s5
  // Predicated region
  $region2: #{_lambda_.63} parent=0 // pred_check
    _
  $region3: #{_lambda_.63} parent=0 // pred_check_branch
    %10 = sbr.rel (0) target = $region5
  $region4: #{_lambda_.63} parent=0 // pred_region
    _
  $region5: #{_lambda_.63} parent=0 // pred_fallthru
    _
  // Predicated region
  $region6: #{_lambda_.63} parent=0 // pred_check
    _
  $region7: #{_lambda_.63} parent=0 // pred_check_branch
    %12 = sbr.rel (0) target = $region9
  $region8: #{_lambda_.63} parent=0 // pred_region
    _
  $region9: #{_lambda_.63} parent=0 // pred_fallthru
    _
  // Predicated region
  $region10: #{_lambda_.63} parent=0 // pred_check
    _
  $region11: #{_lambda_.63} parent=0 // pred_check_branch
    %14 = sbr.rel (0) target = $region13
  $region12: #{_lambda_.63} parent=0 // pred_region
    _
  $region13: #{_lambda_.63} parent=0 // pred_fallthru
    _
  // Predicated region
  $region14: #{_lambda_.63} parent=0 // pred_check
    _
  $region15: #{_lambda_.63} parent=0 // pred_check_branch
    %16 = sbr.rel (0) target = $region17
  $region16: #{_lambda_.63} parent=0 // pred_region
    _
  $region17: #{_lambda_.63} parent=0 // pred_fallthru
    _
  %v18 = vld [vmem:[%s0] sm:$0xff]
  %v19 = vld [vmem:[%s0 + $0x8] sm:$0xf]
  %v20 = vld [vmem:[%s1] sm:$0xff]
  %v21 = vld [vmem:[%s1 + $0x8] sm:$0xff]
  %v22 = vld [vmem:[%s1 + $0x10] sm:$0xff]
  %v23 = vld [vmem:[%s1 + $0x18] sm:$0xff]
  %v24 = vld [vmem:[%s1 + $0x20] sm:$0xff]
  %v25 = vld [vmem:[%s1 + $0x28] sm:$0xff]
  %v26 = vld [vmem:[%s1 + $0x30] sm:$0xff]
  %v27 = vld [vmem:[%s1 + $0x38] sm:$0xff]
  %v28 = vld [vmem:[%s1 + $0x40] sm:$0xff]
  %v29 = vld [vmem:[%s1 + $0x48] sm:$0xff]
  %v30 = vld [vmem:[%s1 + $0x50] sm:$0xff]
  %v31 = vld [vmem:[%s1 + $0x58] sm:$0xff]
  %v32 = vld [vmem:[%s1 + $0x60] sm:$0xff]
  %v33 = vld [vmem:[%s1 + $0x68] sm:$0xff]
  %v34 = vld [vmem:[%s1 + $0x70] sm:$0xff]
  %v35 = vld [vmem:[%s1 + $0x78] sm:$0xff]
  %v36 = vld [vmem:[%s1 + $0x80] sm:$0xff]
  %v37 = vld [vmem:[%s1 + $0x88] sm:$0xff]
  %v38 = vld [vmem:[%s1 + $0x90] sm:$0xff]
  %v39 = vld [vmem:[%s1 + $0x98] sm:$0xff]
  %v40 = vld [vmem:[%s1 + $0xa0] sm:$0xff]
  %v41 = vld [vmem:[%s1 + $0xa8] sm:$0xff]
  %v42 = vld [vmem:[%s1 + $0xb0] sm:$0xff]
  %v43 = vld [vmem:[%s1 + $0xb8] sm:$0xff]
  %v44 = vld [vmem:[%s1 + $0xc0] sm:$0xff]
  %v45 = vld [vmem:[%s1 + $0xc8] sm:$0xff]
  %v46 = vld [vmem:[%s1 + $0xd0] sm:$0xff]
  %v47 = vld [vmem:[%s1 + $0xd8] sm:$0xff]
  %v48 = vld [vmem:[%s1 + $0xe0] sm:$0xff]
  %v49 = vld [vmem:[%s1 + $0xe8] sm:$0xff]
  %v50 = vld [vmem:[%s1 + $0xf0] sm:$0xff]
  %v51 = vld [vmem:[%s1 + $0xf8] sm:$0xff]
  %v52 = vld [vmem:[%s1 + $0x100] sm:$0xff]
  %v53 = vld [vmem:[%s1 + $0x108] sm:$0xff]
  %v54 = vld [vmem:[%s1 + $0x110] sm:$0xff]
  %v55 = vld [vmem:[%s1 + $0x118] sm:$0xff]
  %v56 = vld [vmem:[%s1 + $0x120] sm:$0xff]
  %v57 = vld [vmem:[%s1 + $0x128] sm:$0xff]
  %v58 = vld [vmem:[%s1 + $0x130] sm:$0xff]
  %v59 = vld [vmem:[%s1 + $0x138] sm:$0xff]
  %v60 = vld [vmem:[%s1 + $0x140] sm:$0xff]
  %v61 = vld [vmem:[%s1 + $0x148] sm:$0xff]
  %v62 = vld [vmem:[%s1 + $0x150] sm:$0xff]
  %v63 = vld [vmem:[%s1 + $0x158] sm:$0xff]
  %v64 = vld [vmem:[%s1 + $0x160] sm:$0xff]
  %v65 = vld [vmem:[%s1 + $0x168] sm:$0xff]
  %v66 = vld [vmem:[%s1 + $0x170] sm:$0xff]
  %v67 = vld [vmem:[%s1 + $0x178] sm:$0xff]
  %v70 = vunpack.c.l.b16 %v18
  %v71 = vunpack.c.h.b16 %v18
  %v72 = vunpack.c.l.b16 %v19
  %v73 = vpack.c.b16 %v70, %v70
  %v74 = vpack.c.b16 %v71, %v71
  %v75 = vpack.c.b16 %v72, %v72
  %v127 = vunpack.c.l.b16 %v20
  %v128 = vunpack.c.h.b16 %v20
  %v129 = vunpack.c.l.b16 %v21
  %v130 = vunpack.c.h.b16 %v21
  %v131 = vunpack.c.l.b16 %v22
  %v132 = vunpack.c.h.b16 %v22
  %v133 = vunpack.c.l.b16 %v23
  %v134 = vunpack.c.h.b16 %v23
  %v135 = vunpack.c.l.b16 %v24
  %v136 = vunpack.c.h.b16 %v24
  %v137 = vunpack.c.l.b16 %v25
  %v138 = vunpack.c.h.b16 %v25
  %v139 = vunpack.c.l.b16 %v26
  %v140 = vunpack.c.h.b16 %v26
  %v141 = vunpack.c.l.b16 %v27
  %v142 = vunpack.c.h.b16 %v27
  %v143 = vunpack.c.l.b16 %v28
  %v144 = vunpack.c.h.b16 %v28
  %v145 = vunpack.c.l.b16 %v29
  %v146 = vunpack.c.h.b16 %v29
  %v147 = vunpack.c.l.b16 %v30
  %v148 = vunpack.c.h.b16 %v30
  %v149 = vunpack.c.l.b16 %v31
  %v150 = vunpack.c.h.b16 %v31
  %v151 = vunpack.c.l.b16 %v32
  %v152 = vunpack.c.h.b16 %v32
  %v153 = vunpack.c.l.b16 %v33
  %v154 = vunpack.c.h.b16 %v33
  %v155 = vunpack.c.l.b16 %v34
  %v156 = vunpack.c.h.b16 %v34
  %v157 = vunpack.c.l.b16 %v35
  %v158 = vunpack.c.h.b16 %v35
  %v159 = vunpack.c.l.b16 %v36
  %v160 = vunpack.c.h.b16 %v36
  %v161 = vunpack.c.l.b16 %v37
  %v162 = vunpack.c.h.b16 %v37
  %v163 = vunpack.c.l.b16 %v38
  %v164 = vunpack.c.h.b16 %v38
  %v165 = vunpack.c.l.b16 %v39
  %v166 = vunpack.c.h.b16 %v39
  %v167 = vunpack.c.l.b16 %v40
  %v168 = vunpack.c.h.b16 %v40
  %v169 = vunpack.c.l.b16 %v41
  %v170 = vunpack.c.h.b16 %v41
  %v171 = vunpack.c.l.b16 %v42
  %v172 = vunpack.c.h.b16 %v42
  %v173 = vunpack.c.l.b16 %v43
  %v174 = vunpack.c.h.b16 %v43
  %v175 = vunpack.c.l.b16 %v44
  %v176 = vunpack.c.h.b16 %v44
  %v177 = vunpack.c.l.b16 %v45
  %v178 = vunpack.c.h.b16 %v45
  %v179 = vunpack.c.l.b16 %v46
  %v180 = vunpack.c.h.b16 %v46
  %v181 = vunpack.c.l.b16 %v47
  %v182 = vunpack.c.h.b16 %v47
  %v183 = vunpack.c.l.b16 %v48
  %v184 = vunpack.c.h.b16 %v48
  %v185 = vunpack.c.l.b16 %v49
  %v186 = vunpack.c.h.b16 %v49
  %v187 = vunpack.c.l.b16 %v50
  %v188 = vunpack.c.h.b16 %v50
  %v189 = vunpack.c.l.b16 %v51
  %v190 = vunpack.c.h.b16 %v51
  %v191 = vunpack.c.l.b16 %v52
  %v192 = vunpack.c.h.b16 %v52
  %v193 = vunpack.c.l.b16 %v53
  %v194 = vunpack.c.h.b16 %v53
  %v195 = vunpack.c.l.b16 %v54
  %v196 = vunpack.c.h.b16 %v54
  %v197 = vunpack.c.l.b16 %v55
  %v198 = vunpack.c.h.b16 %v55
  %v199 = vunpack.c.l.b16 %v56
  %v200 = vunpack.c.h.b16 %v56
  %v201 = vunpack.c.l.b16 %v57
  %v202 = vunpack.c.h.b16 %v57
  %v203 = vunpack.c.l.b16 %v58
  %v204 = vunpack.c.h.b16 %v58
  %v205 = vunpack.c.l.b16 %v59
  %v206 = vunpack.c.h.b16 %v59
  %v207 = vunpack.c.l.b16 %v60
  %v208 = vunpack.c.h.b16 %v60
  %v209 = vunpack.c.l.b16 %v61
  %v210 = vunpack.c.h.b16 %v61
  %v211 = vunpack.c.l.b16 %v62
  %v212 = vunpack.c.h.b16 %v62
  %v213 = vunpack.c.l.b16 %v63
  %v214 = vunpack.c.h.b16 %v63
  %v215 = vunpack.c.l.b16 %v64
  %v216 = vunpack.c.h.b16 %v64
  %v217 = vunpack.c.l.b16 %v65
  %v218 = vunpack.c.h.b16 %v65
  %v219 = vunpack.c.l.b16 %v66
  %v220 = vunpack.c.h.b16 %v66
  %v221 = vunpack.c.l.b16 %v67
  %v222 = vunpack.c.h.b16 %v67
  %v223 = vpack.c.b16 %v129, %v127
  %v224 = vpack.c.b16 %v130, %v128
  %v225 = vpack.c.b16 %v133, %v131
  %v226 = vpack.c.b16 %v134, %v132
  %v227 = vpack.c.b16 %v137, %v135
  %v228 = vpack.c.b16 %v138, %v136
  %v229 = vpack.c.b16 %v141, %v139
  %v230 = vpack.c.b16 %v142, %v140
  %v231 = vpack.c.b16 %v145, %v143
  %v232 = vpack.c.b16 %v146, %v144
  %v233 = vpack.c.b16 %v149, %v147
  %v234 = vpack.c.b16 %v150, %v148
  %v235 = vpack.c.b16 %v153, %v151
  %v236 = vpack.c.b16 %v154, %v152
  %v237 = vpack.c.b16 %v157, %v155
  %v238 = vpack.c.b16 %v158, %v156
  %v239 = vpack.c.b16 %v161, %v159
  %v240 = vpack.c.b16 %v162, %v160
  %v241 = vpack.c.b16 %v165, %v163
  %v242 = vpack.c.b16 %v166, %v164
  %v243 = vpack.c.b16 %v169, %v167
  %v244 = vpack.c.b16 %v170, %v168
  %v245 = vpack.c.b16 %v173, %v171
  %v246 = vpack.c.b16 %v174, %v172
  %v247 = vpack.c.b16 %v177, %v175
  %v248 = vpack.c.b16 %v178, %v176
  %v249 = vpack.c.b16 %v181, %v179
  %v250 = vpack.c.b16 %v182, %v180
  %v251 = vpack.c.b16 %v185, %v183
  %v252 = vpack.c.b16 %v186, %v184
  %v253 = vpack.c.b16 %v189, %v187
  %v254 = vpack.c.b16 %v190, %v188
  %v255 = vpack.c.b16 %v193, %v191
  %v256 = vpack.c.b16 %v194, %v192
  %v257 = vpack.c.b16 %v197, %v195
  %v258 = vpack.c.b16 %v198, %v196
  %v259 = vpack.c.b16 %v201, %v199
  %v260 = vpack.c.b16 %v202, %v200
  %v261 = vpack.c.b16 %v205, %v203
  %v262 = vpack.c.b16 %v206, %v204
  %v263 = vpack.c.b16 %v209, %v207
  %v264 = vpack.c.b16 %v210, %v208
  %v265 = vpack.c.b16 %v213, %v211
  %v266 = vpack.c.b16 %v214, %v212
  %v267 = vpack.c.b16 %v217, %v215
  %v268 = vpack.c.b16 %v218, %v216
  %v269 = vpack.c.b16 %v221, %v219
  %v270 = vpack.c.b16 %v222, %v220
  %319 = vmatprep.subr.bf16.mxu0 %v238
  %320 = vmatpush1.bf16.msra.mxu0 %v237
  %321 = vmatprep.subr.bf16.mxu0 %v236
  %322 = vmatpush1.bf16.msra.mxu0 %v235
  %323 = vmatprep.subr.bf16.mxu0 %v234
  %324 = vmatpush1.bf16.msra.mxu0 %v233
  %325 = vmatprep.subr.bf16.mxu0 %v232
  %326 = vmatpush1.bf16.msra.mxu0 %v231
  %327 = vmatprep.subr.bf16.mxu0 %v230
  %328 = vmatpush1.bf16.msra.mxu0 %v229
  %329 = vmatprep.subr.bf16.mxu0 %v228
  %330 = vmatpush1.bf16.msra.mxu0 %v227
  %331 = vmatprep.subr.bf16.mxu0 %v226
  %332 = vmatpush1.bf16.msra.mxu0 %v225
  %333 = vmatprep.subr.bf16.mxu0 %v224
  %334 = vmatpush1.bf16.msra.mxu0 %v223
  %335 = vmatprep.subr.bf16.mxu0 %v254
  %336 = vmatpush2.bf16.msra.mxu0 %v253
  %337 = vmatprep.subr.bf16.mxu0 %v252
  %338 = vmatpush2.bf16.msra.mxu0 %v251
  %339 = vmatprep.subr.bf16.mxu0 %v250
  %340 = vmatpush2.bf16.msra.mxu0 %v249
  %341 = vmatprep.subr.bf16.mxu0 %v248
  %342 = vmatpush2.bf16.msra.mxu0 %v247
  %343 = vmatprep.subr.bf16.mxu0 %v246
  %344 = vmatpush2.bf16.msra.mxu0 %v245
  %345 = vmatprep.subr.bf16.mxu0 %v244
  %346 = vmatpush2.bf16.msra.mxu0 %v243
  %347 = vmatprep.subr.bf16.mxu0 %v242
  %348 = vmatpush2.bf16.msra.mxu0 %v241
  %349 = vmatprep.subr.bf16.mxu0 %v240
  %350 = vmatpush2.bf16.msra.mxu0 %v239
  %351 = vmatprep.mubr.bf16.mxu0 %v74
  %352 = vmatmul.mubr.bf16.gmra.mxu0 %v73
  %v353 = vpop.f32.mrf.mxu0
  %v354 = vadd.f32 0.0, %v353
  %v355 = vpop.f32.mrf.mxu0
  %v356 = vadd.f32 0.0, %v355
  %v357 = vpop.f32.mrf.mxu0
  %v358 = vpop.f32.mrf.mxu0
  %359 = vdwg.mxu0
  %360 = vmatprep.subr.bf16.mxu0 %v270
  %361 = vmatpush1.bf16.msra.mxu0 %v269
  %362 = vmatprep.subr.bf16.mxu0 %v268
  %363 = vmatpush1.bf16.msra.mxu0 %v267
  %364 = vmatprep.subr.bf16.mxu0 %v266
  %365 = vmatpush1.bf16.msra.mxu0 %v265
  %366 = vmatprep.subr.bf16.mxu0 %v264
  %367 = vmatpush1.bf16.msra.mxu0 %v263
  %368 = vmatprep.subr.bf16.mxu0 %v262
  %369 = vmatpush1.bf16.msra.mxu0 %v261
  %370 = vmatprep.subr.bf16.mxu0 %v260
  %371 = vmatpush1.bf16.msra.mxu0 %v259
  %372 = vmatprep.subr.bf16.mxu0 %v258
  %373 = vmatpush1.bf16.msra.mxu0 %v257
  %374 = vmatprep.subr.bf16.mxu0 %v256
  %375 = vmatpush1.bf16.msra.mxu0 %v255
  %376 = vmatprep.subr.bf16.mxu0 0
  %377 = vmatpush2.bf16.msra.mxu0 0
  %378 = vmatprep.subr.bf16.mxu0 0
  %379 = vmatpush2.bf16.msra.mxu0 0
  %380 = vmatprep.subr.bf16.mxu0 0
  %381 = vmatpush2.bf16.msra.mxu0 0
  %382 = vmatprep.subr.bf16.mxu0 0
  %383 = vmatpush2.bf16.msra.mxu0 0
  %384 = vmatprep.subr.bf16.mxu0 0
  %385 = vmatpush2.bf16.msra.mxu0 0
  %386 = vmatprep.subr.bf16.mxu0 0
  %387 = vmatpush2.bf16.msra.mxu0 0
  %388 = vmatprep.subr.bf16.mxu0 0
  %389 = vmatpush2.bf16.msra.mxu0 0
  %390 = vmatprep.subr.bf16.mxu0 0
  %391 = vmatpush2.bf16.msra.mxu0 0
  %392 = vmatprep.mubr.bf16.mxu0 0
  %393 = vmatmul.mubr.bf16.gmra.mxu0 %v75
  %v394 = vpop.f32.mrf.mxu0
  %v395 = vadd.f32 %v354, %v394
  %v396 = vpop.f32.mrf.mxu0
  %v397 = vadd.f32 %v356, %v396
  %v398 = vpop.f32.mrf.mxu0
  %v399 = vpop.f32.mrf.mxu0
  %400 = vdwg.mxu0
  %v401 = vld [vmem:[%s2] sm:$0x3]
  %v403 = vlaneseq
  %v404 = vshrl.u32 %v403, 7
  %v405 = vsub.s32 0, %v404
  %v406 = vrot.slane %v401, %v405
  %v407 = vlaneseq
  %v408 = vshrl.u32 %v407, 7
  %v409 = vsub.s32 1, %v408
  %v410 = vrot.slane %v401, %v409
  %v413 = vmul.f32 %v395, %v406
  %v414 = vmul.f32 %v397, %v410
  %v415 = vld [vmem:[%s3] sm:$0x3]
  %v417 = vlaneseq
  %v418 = vshrl.u32 %v417, 7
  %v419 = vsub.s32 0, %v418
  %v420 = vrot.slane %v415, %v419
  %v421 = vlaneseq
  %v422 = vshrl.u32 %v421, 7
  %v423 = vsub.s32 1, %v422
  %v424 = vrot.slane %v415, %v423
  %v427 = vadd.f32 %v413, %v420
  %v428 = vadd.f32 %v414, %v424
  %v429 = vlaneseq
  %v430 = vand.u32 %v429, 127
  %v431 = vadd.s32 %v430, 128
  %vm432 = vcmp.lt.s32.totalorder %v430, 128
  %vm433 = vcmp.lt.s32.totalorder %v431, 128
  %v434 = vmax.f32 %v427, 0.0
  %v435 = vmax.f32 %v428, 0.0
  %v436 = vsel %vm432, %v434, %v427
  %v437 = vsel %vm433, %v435, %v428
  %v438 = vpack.c.bf16 %v436, %v436
  %v439 = vpack.c.bf16 %v437, %v437
  %v442 = vunpack.c.l.b16 %v438
  %v443 = vunpack.c.l.b16 %v439
  %v444 = vpack.c.b16 %v443, %v442
  %446 = vst [vmem:[%s4] sm:$0xff] %v444
  // Predicated region
  $region18: #{_lambda_.63} parent=0 // pred_check
    _
  $region19: #{_lambda_.63} parent=0 // pred_check_branch
    %448 = sbr.rel (0) target = $region21
  $region20: #{_lambda_.63} parent=0 // pred_region
    _
  $region21: #{_lambda_.63} parent=0 // pred_fallthru
    _
  // Predicated region
  $region22: #{_lambda_.63} parent=0 // pred_check
    _
  $region23: #{_lambda_.63} parent=0 // pred_check_branch
    %450 = sbr.rel (0) target = $region25
  $region24: #{_lambda_.63} parent=0 // pred_region
    _
  $region25: #{_lambda_.63} parent=0 // pred_fallthru
    _

// kernel: _lambda_.65
$region0: #{_lambda_.65}
  #allocation0 [shape = 'u32[]', space=smem, size = 0x4, offset = 0x4, fixed_abs, tag = 'smem constant byte address 0x4 - core index']
  #allocation1 [shape = 'u32[144,128]{1,0:T(1,128)}', space=vmem, size = 0x12000, scoped, tag = 'internal scratch']
  %s0 = inlined_call_operand.vmem [shape: bf16[8,640], index: 0, kind: input, shape index: {}]
  %s1 = inlined_call_operand.vmem [shape: bf16[640,128], index: 1, kind: input, shape index: {}]
  %s2 = inlined_call_operand.vmem [shape: f32[1,128], index: 2, kind: input, shape index: {}]
  %s3 = inlined_call_operand.vmem [shape: f32[1,128], index: 3, kind: input, shape index: {}]
  %s4 = inlined_call_operand.vmem [shape: bf16[8,128], index: 4, kind: output, shape index: {}]
  %s5 = sld [smem:[#allocation0]]
  $region26: #{_lambda_.65} parent=0
    _
  %s7 = ssub.s32 1, %s5
  %s8 = scalar_select 0, %s7, %s5
  // Predicated region
  $region2: #{_lambda_.65} parent=0 // pred_check
    _
  $region3: #{_lambda_.65} parent=0 // pred_check_branch
    %10 = sbr.rel (0) target = $region5
  $region4: #{_lambda_.65} parent=0 // pred_region
    _
  $region5: #{_lambda_.65} parent=0 // pred_fallthru
    _
  // Predicated region
  $region6: #{_lambda_.65} parent=0 // pred_check
    _
  $region7: #{_lambda_.65} parent=0 // pred_check_branch
    %12 = sbr.rel (0) target = $region9
  $region8: #{_lambda_.65} parent=0 // pred_region
    _
  $region9: #{_lambda_.65} parent=0 // pred_fallthru
    _
  // Predicated region
  $region10: #{_lambda_.65} parent=0 // pred_check
    _
  $region11: #{_lambda_.65} parent=0 // pred_check_branch
    %14 = sbr.rel (0) target = $region13
  $region12: #{_lambda_.65} parent=0 // pred_region
    _
  $region13: #{_lambda_.65} parent=0 // pred_fallthru
    _
  // Predicated region
  $region14: #{_lambda_.65} parent=0 // pred_check
    _
  $region15: #{_lambda_.65} parent=0 // pred_check_branch
    %16 = sbr.rel (0) target = $region17
  $region16: #{_lambda_.65} parent=0 // pred_region
    _
  $region17: #{_lambda_.65} parent=0 // pred_fallthru
    _
  %v18 = vld [vmem:[%s0] sm:$0xff]
  %v19 = vld [vmem:[%s0 + $0x8] sm:$0xff]
  %v20 = vld [vmem:[%s0 + $0x10] sm:$0xf]
  %v21 = vld [vmem:[%s1] sm:$0xf]
  %v22 = vld [vmem:[%s1 + $0x4] sm:$0xf]
  %v23 = vld [vmem:[%s1 + $0x8] sm:$0xf]
  %v24 = vld [vmem:[%s1 + $0xc] sm:$0xf]
  %v25 = vld [vmem:[%s1 + $0x10] sm:$0xf]
  %v26 = vld [vmem:[%s1 + $0x14] sm:$0xf]
  %v27 = vld [vmem:[%s1 + $0x18] sm:$0xf]
  %v28 = vld [vmem:[%s1 + $0x1c] sm:$0xf]
  %v29 = vld [vmem:[%s1 + $0x20] sm:$0xf]
  %v30 = vld [vmem:[%s1 + $0x24] sm:$0xf]
  %v31 = vld [vmem:[%s1 + $0x28] sm:$0xf]
  %v32 = vld [vmem:[%s1 + $0x2c] sm:$0xf]
  %v33 = vld [vmem:[%s1 + $0x30] sm:$0xf]
  %v34 = vld [vmem:[%s1 + $0x34] sm:$0xf]
  %v35 = vld [vmem:[%s1 + $0x38] sm:$0xf]
  %v36 = vld [vmem:[%s1 + $0x3c] sm:$0xf]
  %v37 = vld [vmem:[%s1 + $0x40] sm:$0xf]
  %v38 = vld [vmem:[%s1 + $0x44] sm:$0xf]
  %v39 = vld [vmem:[%s1 + $0x48] sm:$0xf]
  %v40 = vld [vmem:[%s1 + $0x4c] sm:$0xf]
  %v41 = vld [vmem:[%s1 + $0x50] sm:$0xf]
  %v42 = vld [vmem:[%s1 + $0x54] sm:$0xf]
  %v43 = vld [vmem:[%s1 + $0x58] sm:$0xf]
  %v44 = vld [vmem:[%s1 + $0x5c] sm:$0xf]
  %v45 = vld [vmem:[%s1 + $0x60] sm:$0xf]
  %v46 = vld [vmem:[%s1 + $0x64] sm:$0xf]
  %v47 = vld [vmem:[%s1 + $0x68] sm:$0xf]
  %v48 = vld [vmem:[%s1 + $0x6c] sm:$0xf]
  %v49 = vld [vmem:[%s1 + $0x70] sm:$0xf]
  %v50 = vld [vmem:[%s1 + $0x74] sm:$0xf]
  %v51 = vld [vmem:[%s1 + $0x78] sm:$0xf]
  %v52 = vld [vmem:[%s1 + $0x7c] sm:$0xf]
  %v53 = vld [vmem:[%s1 + $0x80] sm:$0xf]
  %v54 = vld [vmem:[%s1 + $0x84] sm:$0xf]
  %v55 = vld [vmem:[%s1 + $0x88] sm:$0xf]
  %v56 = vld [vmem:[%s1 + $0x8c] sm:$0xf]
  %v57 = vld [vmem:[%s1 + $0x90] sm:$0xf]
  %v58 = vld [vmem:[%s1 + $0x94] sm:$0xf]
  %v59 = vld [vmem:[%s1 + $0x98] sm:$0xf]
  %v60 = vld [vmem:[%s1 + $0x9c] sm:$0xf]
  %v61 = vld [vmem:[%s1 + $0xa0] sm:$0xf]
  %v62 = vld [vmem:[%s1 + $0xa4] sm:$0xf]
  %v63 = vld [vmem:[%s1 + $0xa8] sm:$0xf]
  %v64 = vld [vmem:[%s1 + $0xac] sm:$0xf]
  %v65 = vld [vmem:[%s1 + $0xb0] sm:$0xf]
  %v66 = vld [vmem:[%s1 + $0xb4] sm:$0xf]
  %v67 = vld [vmem:[%s1 + $0xb8] sm:$0xf]
  %v68 = vld [vmem:[%s1 + $0xbc] sm:$0xf]
  %v69 = vld [vmem:[%s1 + $0xc0] sm:$0xf]
  %v70 = vld [vmem:[%s1 + $0xc4] sm:$0xf]
  %v71 = vld [vmem:[%s1 + $0xc8] sm:$0xf]
  %v72 = vld [vmem:[%s1 + $0xcc] sm:$0xf]
  %v73 = vld [vmem:[%s1 + $0xd0] sm:$0xf]
  %v74 = vld [vmem:[%s1 + $0xd4] sm:$0xf]
  %v75 = vld [vmem:[%s1 + $0xd8] sm:$0xf]
  %v76 = vld [vmem:[%s1 + $0xdc] sm:$0xf]
  %v77 = vld [vmem:[%s1 + $0xe0] sm:$0xf]
  %v78 = vld [vmem:[%s1 + $0xe4] sm:$0xf]
  %v79 = vld [vmem:[%s1 + $0xe8] sm:$0xf]
  %v80 = vld [vmem:[%s1 + $0xec] sm:$0xf]
  %v81 = vld [vmem:[%s1 + $0xf0] sm:$0xf]
  %v82 = vld [vmem:[%s1 + $0xf4] sm:$0xf]
  %v83 = vld [vmem:[%s1 + $0xf8] sm:$0xf]
  %v84 = vld [vmem:[%s1 + $0xfc] sm:$0xf]
  %v85 = vld [vmem:[%s1 + $0x100] sm:$0xf]
  %v86 = vld [vmem:[%s1 + $0x104] sm:$0xf]
  %v87 = vld [vmem:[%s1 + $0x108] sm:$0xf]
  %v88 = vld [vmem:[%s1 + $0x10c] sm:$0xf]
  %v89 = vld [vmem:[%s1 + $0x110] sm:$0xf]
  %v90 = vld [vmem:[%s1 + $0x114] sm:$0xf]
  %v91 = vld [vmem:[%s1 + $0x118] sm:$0xf]
  %v92 = vld [vmem:[%s1 + $0x11c] sm:$0xf]
  %v93 = vld [vmem:[%s1 + $0x120] sm:$0xf]
  %v94 = vld [vmem:[%s1 + $0x124] sm:$0xf]
  %v95 = vld [vmem:[%s1 + $0x128] sm:$0xf]
  %v96 = vld [vmem:[%s1 + $0x12c] sm:$0xf]
  %v97 = vld [vmem:[%s1 + $0x130] sm:$0xf]
  %v98 = vld [vmem:[%s1 + $0x134] sm:$0xf]
  %v99 = vld [vmem:[%s1 + $0x138] sm:$0xf]
  %v100 = vld [vmem:[%s1 + $0x13c] sm:$0xf]
  %v104 = vunpack.c.l.b16 %v18
  %v105 = vunpack.c.h.b16 %v18
  %v106 = vunpack.c.l.b16 %v19
  %v107 = vunpack.c.h.b16 %v19
  %v108 = vunpack.c.l.b16 %v20
  %v109 = vpack.c.b16 %v104, %v104
  %v110 = vpack.c.b16 %v105, %v105
  %v111 = vpack.c.b16 %v106, %v106
  %v112 = vpack.c.b16 %v107, %v107
  %v113 = vpack.c.b16 %v108, %v108
  %v199 = vunpack.c.l.b16 %v21
  %v200 = vunpack.c.l.b16 %v22
  %v201 = vunpack.c.l.b16 %v23
  %v202 = vunpack.c.l.b16 %v24
  %v203 = vunpack.c.l.b16 %v25
  %v204 = vunpack.c.l.b16 %v26
  %v205 = vunpack.c.l.b16 %v27
  %v206 = vunpack.c.l.b16 %v28
  %v207 = vunpack.c.l.b16 %v29
  %v208 = vunpack.c.l.b16 %v30
  %v209 = vunpack.c.l.b16 %v31
  %v210 = vunpack.c.l.b16 %v32
  %v211 = vunpack.c.l.b16 %v33
  %v212 = vunpack.c.l.b16 %v34
  %v213 = vunpack.c.l.b16 %v35
  %v214 = vunpack.c.l.b16 %v36
  %v215 = vunpack.c.l.b16 %v37
  %v216 = vunpack.c.l.b16 %v38
  %v217 = vunpack.c.l.b16 %v39
  %v218 = vunpack.c.l.b16 %v40
  %v219 = vunpack.c.l.b16 %v41
  %v220 = vunpack.c.l.b16 %v42
  %v221 = vunpack.c.l.b16 %v43
  %v222 = vunpack.c.l.b16 %v44
  %v223 = vunpack.c.l.b16 %v45
  %v224 = vunpack.c.l.b16 %v46
  %v225 = vunpack.c.l.b16 %v47
  %v226 = vunpack.c.l.b16 %v48
  %v227 = vunpack.c.l.b16 %v49
  %v228 = vunpack.c.l.b16 %v50
  %v229 = vunpack.c.l.b16 %v51
  %v230 = vunpack.c.l.b16 %v52
  %v231 = vunpack.c.l.b16 %v53
  %v232 = vunpack.c.l.b16 %v54
  %v233 = vunpack.c.l.b16 %v55
  %v234 = vunpack.c.l.b16 %v56
  %v235 = vunpack.c.l.b16 %v57
  %v236 = vunpack.c.l.b16 %v58
  %v237 = vunpack.c.l.b16 %v59
  %v238 = vunpack.c.l.b16 %v60
  %v239 = vunpack.c.l.b16 %v61
  %v240 = vunpack.c.l.b16 %v62
  %v241 = vunpack.c.l.b16 %v63
  %v242 = vunpack.c.l.b16 %v64
  %v243 = vunpack.c.l.b16 %v65
  %v244 = vunpack.c.l.b16 %v66
  %v245 = vunpack.c.l.b16 %v67
  %v246 = vunpack.c.l.b16 %v68
  %v247 = vunpack.c.l.b16 %v69
  %v248 = vunpack.c.l.b16 %v70
  %v249 = vunpack.c.l.b16 %v71
  %v250 = vunpack.c.l.b16 %v72
  %v251 = vunpack.c.l.b16 %v73
  %v252 = vunpack.c.l.b16 %v74
  %v253 = vunpack.c.l.b16 %v75
  %v254 = vunpack.c.l.b16 %v76
  %v255 = vunpack.c.l.b16 %v77
  %v256 = vunpack.c.l.b16 %v78
  %v257 = vunpack.c.l.b16 %v79
  %v258 = vunpack.c.l.b16 %v80
  %v259 = vunpack.c.l.b16 %v81
  %v260 = vunpack.c.l.b16 %v82
  %v261 = vunpack.c.l.b16 %v83
  %v262 = vunpack.c.l.b16 %v84
  %v263 = vunpack.c.l.b16 %v85
  %v264 = vunpack.c.l.b16 %v86
  %v265 = vunpack.c.l.b16 %v87
  %v266 = vunpack.c.l.b16 %v88
  %v267 = vunpack.c.l.b16 %v89
  %v268 = vunpack.c.l.b16 %v90
  %v269 = vunpack.c.l.b16 %v91
  %v270 = vunpack.c.l.b16 %v92
  %v271 = vunpack.c.l.b16 %v93
  %v272 = vunpack.c.l.b16 %v94
  %v273 = vunpack.c.l.b16 %v95
  %v274 = vunpack.c.l.b16 %v96
  %v275 = vunpack.c.l.b16 %v97
  %v276 = vunpack.c.l.b16 %v98
  %v277 = vunpack.c.l.b16 %v99
  %v278 = vunpack.c.l.b16 %v100
  %v279 = vpack.c.b16 %v200, %v199
  %v280 = vpack.c.b16 %v202, %v201
  %v281 = vpack.c.b16 %v204, %v203
  %v282 = vpack.c.b16 %v206, %v205
  %v283 = vpack.c.b16 %v208, %v207
  %v284 = vpack.c.b16 %v210, %v209
  %v285 = vpack.c.b16 %v212, %v211
  %v286 = vpack.c.b16 %v214, %v213
  %v287 = vpack.c.b16 %v216, %v215
  %v288 = vpack.c.b16 %v218, %v217
  %v289 = vpack.c.b16 %v220, %v219
  %v290 = vpack.c.b16 %v222, %v221
  %v291 = vpack.c.b16 %v224, %v223
  %v292 = vpack.c.b16 %v226, %v225
  %v293 = vpack.c.b16 %v228, %v227
  %v294 = vpack.c.b16 %v230, %v229
  %v295 = vpack.c.b16 %v232, %v231
  %v296 = vpack.c.b16 %v234, %v233
  %v297 = vpack.c.b16 %v236, %v235
  %v298 = vpack.c.b16 %v238, %v237
  %v299 = vpack.c.b16 %v240, %v239
  %v300 = vpack.c.b16 %v242, %v241
  %v301 = vpack.c.b16 %v244, %v243
  %v302 = vpack.c.b16 %v246, %v245
  %v303 = vpack.c.b16 %v248, %v247
  %v304 = vpack.c.b16 %v250, %v249
  %v305 = vpack.c.b16 %v252, %v251
  %v306 = vpack.c.b16 %v254, %v253
  %v307 = vpack.c.b16 %v256, %v255
  %v308 = vpack.c.b16 %v258, %v257
  %v309 = vpack.c.b16 %v260, %v259
  %v310 = vpack.c.b16 %v262, %v261
  %v311 = vpack.c.b16 %v264, %v263
  %v312 = vpack.c.b16 %v266, %v265
  %v313 = vpack.c.b16 %v268, %v267
  %v314 = vpack.c.b16 %v270, %v269
  %v315 = vpack.c.b16 %v272, %v271
  %v316 = vpack.c.b16 %v274, %v273
  %v317 = vpack.c.b16 %v276, %v275
  %v318 = vpack.c.b16 %v278, %v277
  %359 = vmatprep.subr.bf16.mxu0 0
  %360 = vmatpush1.bf16.msra.mxu0 %v286
  %361 = vmatprep.subr.bf16.mxu0 0
  %362 = vmatpush1.bf16.msra.mxu0 %v285
  %363 = vmatprep.subr.bf16.mxu0 0
  %364 = vmatpush1.bf16.msra.mxu0 %v284
  %365 = vmatprep.subr.bf16.mxu0 0
  %366 = vmatpush1.bf16.msra.mxu0 %v283
  %367 = vmatprep.subr.bf16.mxu0 0
  %368 = vmatpush1.bf16.msra.mxu0 %v282
  %369 = vmatprep.subr.bf16.mxu0 0
  %370 = vmatpush1.bf16.msra.mxu0 %v281
  %371 = vmatprep.subr.bf16.mxu0 0
  %372 = vmatpush1.bf16.msra.mxu0 %v280
  %373 = vmatprep.subr.bf16.mxu0 0
  %374 = vmatpush1.bf16.msra.mxu0 %v279
  %375 = vmatprep.subr.bf16.mxu0 0
  %376 = vmatpush2.bf16.msra.mxu0 %v294
  %377 = vmatprep.subr.bf16.mxu0 0
  %378 = vmatpush2.bf16.msra.mxu0 %v293
  %379 = vmatprep.subr.bf16.mxu0 0
  %380 = vmatpush2.bf16.msra.mxu0 %v292
  %381 = vmatprep.subr.bf16.mxu0 0
  %382 = vmatpush2.bf16.msra.mxu0 %v291
  %383 = vmatprep.subr.bf16.mxu0 0
  %384 = vmatpush2.bf16.msra.mxu0 %v290
  %385 = vmatprep.subr.bf16.mxu0 0
  %386 = vmatpush2.bf16.msra.mxu0 %v289
  %387 = vmatprep.subr.bf16.mxu0 0
  %388 = vmatpush2.bf16.msra.mxu0 %v288
  %389 = vmatprep.subr.bf16.mxu0 0
  %390 = vmatpush2.bf16.msra.mxu0 %v287
  %391 = vmatprep.mubr.bf16.mxu0 %v110
  %392 = vmatmul.mubr.bf16.gmra.mxu0 %v109
  %v393 = vpop.f32.mrf.mxu0
  %v394 = vadd.f32 0.0, %v393
  %v395 = vpop.f32.mrf.mxu0
  %v396 = vpop.f32.mrf.mxu0
  %v397 = vpop.f32.mrf.mxu0
  %398 = vdwg.mxu0
  %399 = vmatprep.subr.bf16.mxu0 0
  %400 = vmatpush1.bf16.msra.mxu0 %v302
  %401 = vmatprep.subr.bf16.mxu0 0
  %402 = vmatpush1.bf16.msra.mxu0 %v301
  %403 = vmatprep.subr.bf16.mxu0 0
  %404 = vmatpush1.bf16.msra.mxu0 %v300
  %405 = vmatprep.subr.bf16.mxu0 0
  %406 = vmatpush1.bf16.msra.mxu0 %v299
  %407 = vmatprep.subr.bf16.mxu0 0
  %408 = vmatpush1.bf16.msra.mxu0 %v298
  %409 = vmatprep.subr.bf16.mxu0 0
  %410 = vmatpush1.bf16.msra.mxu0 %v297
  %411 = vmatprep.subr.bf16.mxu0 0
  %412 = vmatpush1.bf16.msra.mxu0 %v296
  %413 = vmatprep.subr.bf16.mxu0 0
  %414 = vmatpush1.bf16.msra.mxu0 %v295
  %415 = vmatprep.subr.bf16.mxu0 0
  %416 = vmatpush2.bf16.msra.mxu0 %v310
  %417 = vmatprep.subr.bf16.mxu0 0
  %418 = vmatpush2.bf16.msra.mxu0 %v309
  %419 = vmatprep.subr.bf16.mxu0 0
  %420 = vmatpush2.bf16.msra.mxu0 %v308
  %421 = vmatprep.subr.bf16.mxu0 0
  %422 = vmatpush2.bf16.msra.mxu0 %v307
  %423 = vmatprep.subr.bf16.mxu0 0
  %424 = vmatpush2.bf16.msra.mxu0 %v306
  %425 = vmatprep.subr.bf16.mxu0 0
  %426 = vmatpush2.bf16.msra.mxu0 %v305
  %427 = vmatprep.subr.bf16.mxu0 0
  %428 = vmatpush2.bf16.msra.mxu0 %v304
  %429 = vmatprep.subr.bf16.mxu0 0
  %430 = vmatpush2.bf16.msra.mxu0 %v303
  %431 = vmatprep.mubr.bf16.mxu0 %v112
  %432 = vmatmul.mubr.bf16.gmra.mxu0 %v111
  %v433 = vpop.f32.mrf.mxu0
  %v434 = vadd.f32 %v394, %v433
  %v435 = vpop.f32.mrf.mxu0
  %v436 = vpop.f32.mrf.mxu0
  %v437 = vpop.f32.mrf.mxu0
  %438 = vdwg.mxu0
  %439 = vmatprep.subr.bf16.mxu0 0
  %440 = vmatpush1.bf16.msra.mxu0 %v318
  %441 = vmatprep.subr.bf16.mxu0 0
  %442 = vmatpush1.bf16.msra.mxu0 %v317
  %443 = vmatprep.subr.bf16.mxu0 0
  %444 = vmatpush1.bf16.msra.mxu0 %v316
  %445 = vmatprep.subr.bf16.mxu0 0
  %446 = vmatpush1.bf16.msra.mxu0 %v315
  %447 = vmatprep.subr.bf16.mxu0 0
  %448 = vmatpush1.bf16.msra.mxu0 %v314
  %449 = vmatprep.subr.bf16.mxu0 0
  %450 = vmatpush1.bf16.msra.mxu0 %v313
  %451 = vmatprep.subr.bf16.mxu0 0
  %452 = vmatpush1.bf16.msra.mxu0 %v312
  %453 = vmatprep.subr.bf16.mxu0 0
  %454 = vmatpush1.bf16.msra.mxu0 %v311
  %455 = vmatprep.subr.bf16.mxu0 0
  %456 = vmatpush2.bf16.msra.mxu0 0
  %457 = vmatprep.subr.bf16.mxu0 0
  %458 = vmatpush2.bf16.msra.mxu0 0
  %459 = vmatprep.subr.bf16.mxu0 0
  %460 = vmatpush2.bf16.msra.mxu0 0
  %461 = vmatprep.subr.bf16.mxu0 0
  %462 = vmatpush2.bf16.msra.mxu0 0
  %463 = vmatprep.subr.bf16.mxu0 0
  %464 = vmatpush2.bf16.msra.mxu0 0
  %465 = vmatprep.subr.bf16.mxu0 0
  %466 = vmatpush2.bf16.msra.mxu0 0
  %467 = vmatprep.subr.bf16.mxu0 0
  %468 = vmatpush2.bf16.msra.mxu0 0
  %469 = vmatprep.subr.bf16.mxu0 0
  %470 = vmatpush2.bf16.msra.mxu0 0
  %471 = vmatprep.mubr.bf16.mxu0 0
  %472 = vmatmul.mubr.bf16.gmra.mxu0 %v113
  %v473 = vpop.f32.mrf.mxu0
  %v474 = vadd.f32 %v434, %v473
  %v475 = vpop.f32.mrf.mxu0
  %v476 = vpop.f32.mrf.mxu0
  %v477 = vpop.f32.mrf.mxu0
  %478 = vdwg.mxu0
  %v479 = vld [vmem:[%s2] sm:$0x1]
  %v481 = vlaneseq
  %v482 = vshrl.u32 %v481, 7
  %v483 = vsub.s32 0, %v482
  %v484 = vrot.slane %v479, %v483
  %v486 = vmul.f32 %v474, %v484
  %v487 = vld [vmem:[%s3] sm:$0x1]
  %v489 = vlaneseq
  %v490 = vshrl.u32 %v489, 7
  %v491 = vsub.s32 0, %v490
  %v492 = vrot.slane %v487, %v491
  %v494 = vadd.f32 %v486, %v492
  %v495 = vmax.f32 %v494, 0.0
  %v496 = vpack.c.bf16 %v495, %v495
  %497 = vst [vmem:[%s4] sm:$0xf] %v496
  // Predicated region
  $region18: #{_lambda_.65} parent=0 // pred_check
    _
  $region19: #{_lambda_.65} parent=0 // pred_check_branch
    %499 = sbr.rel (0) target = $region21
  $region20: #{_lambda_.65} parent=0 // pred_region
    _
  $region21: #{_lambda_.65} parent=0 // pred_fallthru
    _
  // Predicated region
  $region22: #{_lambda_.65} parent=0 // pred_check
    _
  $region23: #{_lambda_.65} parent=0 // pred_check_branch
    %501 = sbr.rel (0) target = $region25
  $region24: #{_lambda_.65} parent=0 // pred_region
    _
  $region25: #{_lambda_.65} parent=0 // pred_fallthru
    _

// kernel: _lambda_.69
$region0: #{_lambda_.69}
  #allocation0 [shape = 'u32[]', space=smem, size = 0x4, offset = 0x4, fixed_abs, tag = 'smem constant byte address 0x4 - core index']
  #allocation1 [shape = 'u32[144,128]{1,0:T(1,128)}', space=vmem, size = 0x12000, scoped, tag = 'internal scratch']
  %s0 = inlined_call_operand.vmem [shape: bf16[2,4,128], index: 0, kind: input, shape index: {}]
  %s1 = inlined_call_operand.vmem [shape: bf16[128,128], index: 1, kind: input, shape index: {}]
  %s2 = inlined_call_operand.vmem [shape: f32[1,128], index: 2, kind: input, shape index: {}]
  %s3 = inlined_call_operand.hbm [shape: f32[2,128], index: 3, kind: output, shape index: {}]
  %s4 = sld [smem:[#allocation0]]
  $region22: #{_lambda_.69} parent=0
    _
  %s6 = ssub.s32 1, %s4
  %s7 = scalar_select 0, %s6, %s4
  $region1: #{_lambda_.69} parent=0
    #allocation2 [shape = 'u8[1024]{0}', space=vmem, size = 0x400, scoped, tag = 'output window, operand 0, single buffered']
    #allocation3 [shape = 's32[1]{0}', space=sflag, size = 0x4, scoped, tag = 'scoped memory for _lambda_.69']
    %8 = vsyncpa [#allocation3], 0
    // Predicated region
    $region2: #{_lambda_.69} parent=1 // pred_check
      _
    $region3: #{_lambda_.69} parent=1 // pred_check_branch
      %10 = sbr.rel (0) target = $region5
    $region4: #{_lambda_.69} parent=1 // pred_region
      _
    $region5: #{_lambda_.69} parent=1 // pred_fallthru
      _
    // Predicated region
    $region6: #{_lambda_.69} parent=1 // pred_check
      _
    $region7: #{_lambda_.69} parent=1 // pred_check_branch
      %12 = sbr.rel (0) target = $region9
    $region8: #{_lambda_.69} parent=1 // pred_region
      _
    $region9: #{_lambda_.69} parent=1 // pred_fallthru
      _
    // Predicated region
    $region10: #{_lambda_.69} parent=1 // pred_check
      _
    $region11: #{_lambda_.69} parent=1 // pred_check_branch
      %14 = sbr.rel (0) target = $region13
    $region12: #{_lambda_.69} parent=1 // pred_region
      _
    $region13: #{_lambda_.69} parent=1 // pred_fallthru
      _
    %v16 = vld [vmem:[%s0] sm:$0x3]
    %v17 = vld [vmem:[%s0 + $0x2] sm:$0x3]
    %v18 = vunpack.c.l.bf16 %v16
    %v19 = vunpack.c.l.bf16 %v17
    %vm20 = vcmask 1043456
    %v21 = vsel %vm20, %v18, 0.0
    %v22 = vrot.slane %v21, 4
    %v23 = vadd.f32 %v21, %v22
    %v24 = vrot.slane %v23, 2
    %v25 = vadd.f32 %v23, %v24
    %v26 = vrot.slane %v25, 1
    %v27 = vadd.f32 %v25, %v26
    %v28 = vsel %vm20, %v19, 0.0
    %v29 = vrot.slane %v28, 4
    %v30 = vadd.f32 %v28, %v29
    %v31 = vrot.slane %v30, 2
    %v32 = vadd.f32 %v30, %v31
    %v33 = vrot.slane %v32, 1
    %v34 = vadd.f32 %v32, %v33
    %v35 = vrcp.pop 4.0
    %v36 = vmul.f32 %v27, %v35
    %v37 = vmul.f32 %v34, %v35
    %v38 = vpack.c.bf16 %v36, %v36
    %v39 = vpack.c.bf16 %v37, %v37
    %v40 = vld [vmem:[%s1] sm:$0xf]
    %v41 = vld [vmem:[%s1 + $0x4] sm:$0xf]
    %v42 = vld [vmem:[%s1 + $0x8] sm:$0xf]
    %v43 = vld [vmem:[%s1 + $0xc] sm:$0xf]
    %v44 = vld [vmem:[%s1 + $0x10] sm:$0xf]
    %v45 = vld [vmem:[%s1 + $0x14] sm:$0xf]
    %v46 = vld [vmem:[%s1 + $0x18] sm:$0xf]
    %v47 = vld [vmem:[%s1 + $0x1c] sm:$0xf]
    %v48 = vld [vmem:[%s1 + $0x20] sm:$0xf]
    %v49 = vld [vmem:[%s1 + $0x24] sm:$0xf]
    %v50 = vld [vmem:[%s1 + $0x28] sm:$0xf]
    %v51 = vld [vmem:[%s1 + $0x2c] sm:$0xf]
    %v52 = vld [vmem:[%s1 + $0x30] sm:$0xf]
    %v53 = vld [vmem:[%s1 + $0x34] sm:$0xf]
    %v54 = vld [vmem:[%s1 + $0x38] sm:$0xf]
    %v55 = vld [vmem:[%s1 + $0x3c] sm:$0xf]
    %v56 = vld [vmem:[%s2] sm:$0x1]
    %v58 = vlaneseq
    %v59 = vshrl.u32 %v58, 7
    %v60 = vsub.s32 0, %v59
    %v61 = vrot.slane %v56, %v60
    %v65 = vunpack.c.l.b16 %v38
    %v66 = vunpack.c.l.b16 %v39
    %vm67 = vcmask 1041409
    %v68 = vsel %vm67, %v66, %v65
    %v69 = vpack.c.b16 %v68, %v68
    %v87 = vunpack.c.l.b16 %v40
    %v88 = vunpack.c.l.b16 %v41
    %v89 = vunpack.c.l.b16 %v42
    %v90 = vunpack.c.l.b16 %v43
    %v91 = vunpack.c.l.b16 %v44
    %v92 = vunpack.c.l.b16 %v45
    %v93 = vunpack.c.l.b16 %v46
    %v94 = vunpack.c.l.b16 %v47
    %v95 = vunpack.c.l.b16 %v48
    %v96 = vunpack.c.l.b16 %v49
    %v97 = vunpack.c.l.b16 %v50
    %v98 = vunpack.c.l.b16 %v51
    %v99 = vunpack.c.l.b16 %v52
    %v100 = vunpack.c.l.b16 %v53
    %v101 = vunpack.c.l.b16 %v54
    %v102 = vunpack.c.l.b16 %v55
    %v103 = vpack.c.b16 %v88, %v87
    %v104 = vpack.c.b16 %v90, %v89
    %v105 = vpack.c.b16 %v92, %v91
    %v106 = vpack.c.b16 %v94, %v93
    %v107 = vpack.c.b16 %v96, %v95
    %v108 = vpack.c.b16 %v98, %v97
    %v109 = vpack.c.b16 %v100, %v99
    %v110 = vpack.c.b16 %v102, %v101
    %119 = vmatprep.subr.bf16.mxu0 0
    %120 = vmatpush1.bf16.msra.mxu0 %v110
    %121 = vmatprep.subr.bf16.mxu0 0
    %122 = vmatpush1.bf16.msra.mxu0 %v109
    %123 = vmatprep.subr.bf16.mxu0 0
    %124 = vmatpush1.bf16.msra.mxu0 %v108
    %125 = vmatprep.subr.bf16.mxu0 0
    %126 = vmatpush1.bf16.msra.mxu0 %v107
    %127 = vmatprep.subr.bf16.mxu0 0
    %128 = vmatpush1.bf16.msra.mxu0 %v106
    %129 = vmatprep.subr.bf16.mxu0 0
    %130 = vmatpush1.bf16.msra.mxu0 %v105
    %131 = vmatprep.subr.bf16.mxu0 0
    %132 = vmatpush1.bf16.msra.mxu0 %v104
    %133 = vmatprep.subr.bf16.mxu0 0
    %134 = vmatpush1.bf16.msra.mxu0 %v103
    %135 = vmatprep.subr.bf16.mxu0 0
    %136 = vmatpush2.bf16.msra.mxu0 0
    %137 = vmatprep.subr.bf16.mxu0 0
    %138 = vmatpush2.bf16.msra.mxu0 0
    %139 = vmatprep.subr.bf16.mxu0 0
    %140 = vmatpush2.bf16.msra.mxu0 0
    %141 = vmatprep.subr.bf16.mxu0 0
    %142 = vmatpush2.bf16.msra.mxu0 0
    %143 = vmatprep.subr.bf16.mxu0 0
    %144 = vmatpush2.bf16.msra.mxu0 0
    %145 = vmatprep.subr.bf16.mxu0 0
    %146 = vmatpush2.bf16.msra.mxu0 0
    %147 = vmatprep.subr.bf16.mxu0 0
    %148 = vmatpush2.bf16.msra.mxu0 0
    %149 = vmatprep.subr.bf16.mxu0 0
    %150 = vmatpush2.bf16.msra.mxu0 0
    %151 = vmatprep.mubr.bf16.mxu0 0
    %152 = vmatmul.mubr.bf16.gmra.mxu0 %v69
    %v153 = vpop.f32.mrf.mxu0
    %v154 = vadd.f32 %v61, %v153
    %v155 = vpop.f32.mrf.mxu0
    %v156 = vpop.f32.mrf.mxu0
    %v157 = vpop.f32.mrf.mxu0
    %158 = vdwg.mxu0
    %159 = vst [vmem:[#allocation2] sm:$0x3] %v154
    // Predicated region
    $region14: #{_lambda_.69} parent=1 // pred_check
      _
    $region15: #{_lambda_.69} parent=1 // pred_check_branch
      %161 = sbr.rel (0) target = $region17
    $region16: #{_lambda_.69} parent=1 // pred_region
      %s163 = ssub.s32 32, 32
      %164 = vsyncadd [#allocation3], %s163
      %s166 = sshll.u32 [#allocation2], 4
      %s167 = int_to_ptr.vmem [resolvable:$true] %s166
      %169 = dma.vmem_to_hbm [thread:$0]  %s167, 32, %s3, [#allocation3]
    $region17: #{_lambda_.69} parent=1 // pred_fallthru
      _
    // Predicated region
    $region18: #{_lambda_.69} parent=1 // pred_check
      _
    $region19: #{_lambda_.69} parent=1 // pred_check_branch
      %171 = sbr.rel (0) target = $region21
    $region20: #{_lambda_.69} parent=1 // pred_region
      %172 = dma.done [#allocation3], 32
    $region21: #{_lambda_.69} parent=1 // pred_fallthru
      _
    %173 = vsyncpa [#allocation3], 1

// kernel: _lambda_.64
$region0: #{_lambda_.64}
  #allocation0 [shape = 'u32[]', space=smem, size = 0x4, offset = 0x4, fixed_abs, tag = 'smem constant byte address 0x4 - core index']
  #allocation1 [shape = 'u32[144,128]{1,0:T(1,128)}', space=vmem, size = 0x12000, scoped, tag = 'internal scratch']
  %s0 = inlined_call_operand.vmem [shape: bf16[8,640], index: 0, kind: input, shape index: {}]
  %s1 = inlined_call_operand.vmem [shape: bf16[640,128], index: 1, kind: input, shape index: {}]
  %s2 = inlined_call_operand.vmem [shape: f32[1,128], index: 2, kind: input, shape index: {}]
  %s3 = inlined_call_operand.vmem [shape: f32[1,128], index: 3, kind: input, shape index: {}]
  %s4 = inlined_call_operand.vmem [shape: bf16[8,128], index: 4, kind: input, shape index: {}]
  %s5 = inlined_call_operand.vmem [shape: bf16[8,128], index: 5, kind: output, shape index: {}]
  %s6 = sld [smem:[#allocation0]]
  $region30: #{_lambda_.64} parent=0
    _
  %s8 = ssub.s32 1, %s6
  %s9 = scalar_select 0, %s8, %s6
  // Predicated region
  $region2: #{_lambda_.64} parent=0 // pred_check
    _
  $region3: #{_lambda_.64} parent=0 // pred_check_branch
    %11 = sbr.rel (0) target = $region5
  $region4: #{_lambda_.64} parent=0 // pred_region
    _
  $region5: #{_lambda_.64} parent=0 // pred_fallthru
    _
  // Predicated region
  $region6: #{_lambda_.64} parent=0 // pred_check
    _
  $region7: #{_lambda_.64} parent=0 // pred_check_branch
    %13 = sbr.rel (0) target = $region9
  $region8: #{_lambda_.64} parent=0 // pred_region
    _
  $region9: #{_lambda_.64} parent=0 // pred_fallthru
    _
  // Predicated region
  $region10: #{_lambda_.64} parent=0 // pred_check
    _
  $region11: #{_lambda_.64} parent=0 // pred_check_branch
    %15 = sbr.rel (0) target = $region13
  $region12: #{_lambda_.64} parent=0 // pred_region
    _
  $region13: #{_lambda_.64} parent=0 // pred_fallthru
    _
  // Predicated region
  $region14: #{_lambda_.64} parent=0 // pred_check
    _
  $region15: #{_lambda_.64} parent=0 // pred_check_branch
    %17 = sbr.rel (0) target = $region17
  $region16: #{_lambda_.64} parent=0 // pred_region
    _
  $region17: #{_lambda_.64} parent=0 // pred_fallthru
    _
  // Predicated region
  $region18: #{_lambda_.64} parent=0 // pred_check
    _
  $region19: #{_lambda_.64} parent=0 // pred_check_branch
    %19 = sbr.rel (0) target = $region21
  $region20: #{_lambda_.64} parent=0 // pred_region
    _
  $region21: #{_lambda_.64} parent=0 // pred_fallthru
    _
  %v21 = vld [vmem:[%s0] sm:$0xff]
  %v22 = vld [vmem:[%s0 + $0x8] sm:$0xff]
  %v23 = vld [vmem:[%s0 + $0x10] sm:$0xf]
  %v24 = vld [vmem:[%s1] sm:$0xf]
  %v25 = vld [vmem:[%s1 + $0x4] sm:$0xf]
  %v26 = vld [vmem:[%s1 + $0x8] sm:$0xf]
  %v27 = vld [vmem:[%s1 + $0xc] sm:$0xf]
  %v28 = vld [vmem:[%s1 + $0x10] sm:$0xf]
  %v29 = vld [vmem:[%s1 + $0x14] sm:$0xf]
  %v30 = vld [vmem:[%s1 + $0x18] sm:$0xf]
  %v31 = vld [vmem:[%s1 + $0x1c] sm:$0xf]
  %v32 = vld [vmem:[%s1 + $0x20] sm:$0xf]
  %v33 = vld [vmem:[%s1 + $0x24] sm:$0xf]
  %v34 = vld [vmem:[%s1 + $0x28] sm:$0xf]
  %v35 = vld [vmem:[%s1 + $0x2c] sm:$0xf]
  %v36 = vld [vmem:[%s1 + $0x30] sm:$0xf]
  %v37 = vld [vmem:[%s1 + $0x34] sm:$0xf]
  %v38 = vld [vmem:[%s1 + $0x38] sm:$0xf]
  %v39 = vld [vmem:[%s1 + $0x3c] sm:$0xf]
  %v40 = vld [vmem:[%s1 + $0x40] sm:$0xf]
  %v41 = vld [vmem:[%s1 + $0x44] sm:$0xf]
  %v42 = vld [vmem:[%s1 + $0x48] sm:$0xf]
  %v43 = vld [vmem:[%s1 + $0x4c] sm:$0xf]
  %v44 = vld [vmem:[%s1 + $0x50] sm:$0xf]
  %v45 = vld [vmem:[%s1 + $0x54] sm:$0xf]
  %v46 = vld [vmem:[%s1 + $0x58] sm:$0xf]
  %v47 = vld [vmem:[%s1 + $0x5c] sm:$0xf]
  %v48 = vld [vmem:[%s1 + $0x60] sm:$0xf]
  %v49 = vld [vmem:[%s1 + $0x64] sm:$0xf]
  %v50 = vld [vmem:[%s1 + $0x68] sm:$0xf]
  %v51 = vld [vmem:[%s1 + $0x6c] sm:$0xf]
  %v52 = vld [vmem:[%s1 + $0x70] sm:$0xf]
  %v53 = vld [vmem:[%s1 + $0x74] sm:$0xf]
  %v54 = vld [vmem:[%s1 + $0x78] sm:$0xf]
  %v55 = vld [vmem:[%s1 + $0x7c] sm:$0xf]
  %v56 = vld [vmem:[%s1 + $0x80] sm:$0xf]
  %v57 = vld [vmem:[%s1 + $0x84] sm:$0xf]
  %v58 = vld [vmem:[%s1 + $0x88] sm:$0xf]
  %v59 = vld [vmem:[%s1 + $0x8c] sm:$0xf]
  %v60 = vld [vmem:[%s1 + $0x90] sm:$0xf]
  %v61 = vld [vmem:[%s1 + $0x94] sm:$0xf]
  %v62 = vld [vmem:[%s1 + $0x98] sm:$0xf]
  %v63 = vld [vmem:[%s1 + $0x9c] sm:$0xf]
  %v64 = vld [vmem:[%s1 + $0xa0] sm:$0xf]
  %v65 = vld [vmem:[%s1 + $0xa4] sm:$0xf]
  %v66 = vld [vmem:[%s1 + $0xa8] sm:$0xf]
  %v67 = vld [vmem:[%s1 + $0xac] sm:$0xf]
  %v68 = vld [vmem:[%s1 + $0xb0] sm:$0xf]
  %v69 = vld [vmem:[%s1 + $0xb4] sm:$0xf]
  %v70 = vld [vmem:[%s1 + $0xb8] sm:$0xf]
  %v71 = vld [vmem:[%s1 + $0xbc] sm:$0xf]
  %v72 = vld [vmem:[%s1 + $0xc0] sm:$0xf]
  %v73 = vld [vmem:[%s1 + $0xc4] sm:$0xf]
  %v74 = vld [vmem:[%s1 + $0xc8] sm:$0xf]
  %v75 = vld [vmem:[%s1 + $0xcc] sm:$0xf]
  %v76 = vld [vmem:[%s1 + $0xd0] sm:$0xf]
  %v77 = vld [vmem:[%s1 + $0xd4] sm:$0xf]
  %v78 = vld [vmem:[%s1 + $0xd8] sm:$0xf]
  %v79 = vld [vmem:[%s1 + $0xdc] sm:$0xf]
  %v80 = vld [vmem:[%s1 + $0xe0] sm:$0xf]
  %v81 = vld [vmem:[%s1 + $0xe4] sm:$0xf]
  %v82 = vld [vmem:[%s1 + $0xe8] sm:$0xf]
  %v83 = vld [vmem:[%s1 + $0xec] sm:$0xf]
  %v84 = vld [vmem:[%s1 + $0xf0] sm:$0xf]
  %v85 = vld [vmem:[%s1 + $0xf4] sm:$0xf]
  %v86 = vld [vmem:[%s1 + $0xf8] sm:$0xf]
  %v87 = vld [vmem:[%s1 + $0xfc] sm:$0xf]
  %v88 = vld [vmem:[%s1 + $0x100] sm:$0xf]
  %v89 = vld [vmem:[%s1 + $0x104] sm:$0xf]
  %v90 = vld [vmem:[%s1 + $0x108] sm:$0xf]
  %v91 = vld [vmem:[%s1 + $0x10c] sm:$0xf]
  %v92 = vld [vmem:[%s1 + $0x110] sm:$0xf]
  %v93 = vld [vmem:[%s1 + $0x114] sm:$0xf]
  %v94 = vld [vmem:[%s1 + $0x118] sm:$0xf]
  %v95 = vld [vmem:[%s1 + $0x11c] sm:$0xf]
  %v96 = vld [vmem:[%s1 + $0x120] sm:$0xf]
  %v97 = vld [vmem:[%s1 + $0x124] sm:$0xf]
  %v98 = vld [vmem:[%s1 + $0x128] sm:$0xf]
  %v99 = vld [vmem:[%s1 + $0x12c] sm:$0xf]
  %v100 = vld [vmem:[%s1 + $0x130] sm:$0xf]
  %v101 = vld [vmem:[%s1 + $0x134] sm:$0xf]
  %v102 = vld [vmem:[%s1 + $0x138] sm:$0xf]
  %v103 = vld [vmem:[%s1 + $0x13c] sm:$0xf]
  %v107 = vunpack.c.l.b16 %v21
  %v108 = vunpack.c.h.b16 %v21
  %v109 = vunpack.c.l.b16 %v22
  %v110 = vunpack.c.h.b16 %v22
  %v111 = vunpack.c.l.b16 %v23
  %v112 = vpack.c.b16 %v107, %v107
  %v113 = vpack.c.b16 %v108, %v108
  %v114 = vpack.c.b16 %v109, %v109
  %v115 = vpack.c.b16 %v110, %v110
  %v116 = vpack.c.b16 %v111, %v111
  %v202 = vunpack.c.l.b16 %v24
  %v203 = vunpack.c.l.b16 %v25
  %v204 = vunpack.c.l.b16 %v26
  %v205 = vunpack.c.l.b16 %v27
  %v206 = vunpack.c.l.b16 %v28
  %v207 = vunpack.c.l.b16 %v29
  %v208 = vunpack.c.l.b16 %v30
  %v209 = vunpack.c.l.b16 %v31
  %v210 = vunpack.c.l.b16 %v32
  %v211 = vunpack.c.l.b16 %v33
  %v212 = vunpack.c.l.b16 %v34
  %v213 = vunpack.c.l.b16 %v35
  %v214 = vunpack.c.l.b16 %v36
  %v215 = vunpack.c.l.b16 %v37
  %v216 = vunpack.c.l.b16 %v38
  %v217 = vunpack.c.l.b16 %v39
  %v218 = vunpack.c.l.b16 %v40
  %v219 = vunpack.c.l.b16 %v41
  %v220 = vunpack.c.l.b16 %v42
  %v221 = vunpack.c.l.b16 %v43
  %v222 = vunpack.c.l.b16 %v44
  %v223 = vunpack.c.l.b16 %v45
  %v224 = vunpack.c.l.b16 %v46
  %v225 = vunpack.c.l.b16 %v47
  %v226 = vunpack.c.l.b16 %v48
  %v227 = vunpack.c.l.b16 %v49
  %v228 = vunpack.c.l.b16 %v50
  %v229 = vunpack.c.l.b16 %v51
  %v230 = vunpack.c.l.b16 %v52
  %v231 = vunpack.c.l.b16 %v53
  %v232 = vunpack.c.l.b16 %v54
  %v233 = vunpack.c.l.b16 %v55
  %v234 = vunpack.c.l.b16 %v56
  %v235 = vunpack.c.l.b16 %v57
  %v236 = vunpack.c.l.b16 %v58
  %v237 = vunpack.c.l.b16 %v59
  %v238 = vunpack.c.l.b16 %v60
  %v239 = vunpack.c.l.b16 %v61
  %v240 = vunpack.c.l.b16 %v62
  %v241 = vunpack.c.l.b16 %v63
  %v242 = vunpack.c.l.b16 %v64
  %v243 = vunpack.c.l.b16 %v65
  %v244 = vunpack.c.l.b16 %v66
  %v245 = vunpack.c.l.b16 %v67
  %v246 = vunpack.c.l.b16 %v68
  %v247 = vunpack.c.l.b16 %v69
  %v248 = vunpack.c.l.b16 %v70
  %v249 = vunpack.c.l.b16 %v71
  %v250 = vunpack.c.l.b16 %v72
  %v251 = vunpack.c.l.b16 %v73
  %v252 = vunpack.c.l.b16 %v74
  %v253 = vunpack.c.l.b16 %v75
  %v254 = vunpack.c.l.b16 %v76
  %v255 = vunpack.c.l.b16 %v77
  %v256 = vunpack.c.l.b16 %v78
  %v257 = vunpack.c.l.b16 %v79
  %v258 = vunpack.c.l.b16 %v80
  %v259 = vunpack.c.l.b16 %v81
  %v260 = vunpack.c.l.b16 %v82
  %v261 = vunpack.c.l.b16 %v83
  %v262 = vunpack.c.l.b16 %v84
  %v263 = vunpack.c.l.b16 %v85
  %v264 = vunpack.c.l.b16 %v86
  %v265 = vunpack.c.l.b16 %v87
  %v266 = vunpack.c.l.b16 %v88
  %v267 = vunpack.c.l.b16 %v89
  %v268 = vunpack.c.l.b16 %v90
  %v269 = vunpack.c.l.b16 %v91
  %v270 = vunpack.c.l.b16 %v92
  %v271 = vunpack.c.l.b16 %v93
  %v272 = vunpack.c.l.b16 %v94
  %v273 = vunpack.c.l.b16 %v95
  %v274 = vunpack.c.l.b16 %v96
  %v275 = vunpack.c.l.b16 %v97
  %v276 = vunpack.c.l.b16 %v98
  %v277 = vunpack.c.l.b16 %v99
  %v278 = vunpack.c.l.b16 %v100
  %v279 = vunpack.c.l.b16 %v101
  %v280 = vunpack.c.l.b16 %v102
  %v281 = vunpack.c.l.b16 %v103
  %v282 = vpack.c.b16 %v203, %v202
  %v283 = vpack.c.b16 %v205, %v204
  %v284 = vpack.c.b16 %v207, %v206
  %v285 = vpack.c.b16 %v209, %v208
  %v286 = vpack.c.b16 %v211, %v210
  %v287 = vpack.c.b16 %v213, %v212
  %v288 = vpack.c.b16 %v215, %v214
  %v289 = vpack.c.b16 %v217, %v216
  %v290 = vpack.c.b16 %v219, %v218
  %v291 = vpack.c.b16 %v221, %v220
  %v292 = vpack.c.b16 %v223, %v222
  %v293 = vpack.c.b16 %v225, %v224
  %v294 = vpack.c.b16 %v227, %v226
  %v295 = vpack.c.b16 %v229, %v228
  %v296 = vpack.c.b16 %v231, %v230
  %v297 = vpack.c.b16 %v233, %v232
  %v298 = vpack.c.b16 %v235, %v234
  %v299 = vpack.c.b16 %v237, %v236
  %v300 = vpack.c.b16 %v239, %v238
  %v301 = vpack.c.b16 %v241, %v240
  %v302 = vpack.c.b16 %v243, %v242
  %v303 = vpack.c.b16 %v245, %v244
  %v304 = vpack.c.b16 %v247, %v246
  %v305 = vpack.c.b16 %v249, %v248
  %v306 = vpack.c.b16 %v251, %v250
  %v307 = vpack.c.b16 %v253, %v252
  %v308 = vpack.c.b16 %v255, %v254
  %v309 = vpack.c.b16 %v257, %v256
  %v310 = vpack.c.b16 %v259, %v258
  %v311 = vpack.c.b16 %v261, %v260
  %v312 = vpack.c.b16 %v263, %v262
  %v313 = vpack.c.b16 %v265, %v264
  %v314 = vpack.c.b16 %v267, %v266
  %v315 = vpack.c.b16 %v269, %v268
  %v316 = vpack.c.b16 %v271, %v270
  %v317 = vpack.c.b16 %v273, %v272
  %v318 = vpack.c.b16 %v275, %v274
  %v319 = vpack.c.b16 %v277, %v276
  %v320 = vpack.c.b16 %v279, %v278
  %v321 = vpack.c.b16 %v281, %v280
  %362 = vmatprep.subr.bf16.mxu0 0
  %363 = vmatpush1.bf16.msra.mxu0 %v289
  %364 = vmatprep.subr.bf16.mxu0 0
  %365 = vmatpush1.bf16.msra.mxu0 %v288
  %366 = vmatprep.subr.bf16.mxu0 0
  %367 = vmatpush1.bf16.msra.mxu0 %v287
  %368 = vmatprep.subr.bf16.mxu0 0
  %369 = vmatpush1.bf16.msra.mxu0 %v286
  %370 = vmatprep.subr.bf16.mxu0 0
  %371 = vmatpush1.bf16.msra.mxu0 %v285
  %372 = vmatprep.subr.bf16.mxu0 0
  %373 = vmatpush1.bf16.msra.mxu0 %v284
  %374 = vmatprep.subr.bf16.mxu0 0
  %375 = vmatpush1.bf16.msra.mxu0 %v283
  %376 = vmatprep.subr.bf16.mxu0 0
  %377 = vmatpush1.bf16.msra.mxu0 %v282
  %378 = vmatprep.subr.bf16.mxu0 0
  %379 = vmatpush2.bf16.msra.mxu0 %v297
  %380 = vmatprep.subr.bf16.mxu0 0
  %381 = vmatpush2.bf16.msra.mxu0 %v296
  %382 = vmatprep.subr.bf16.mxu0 0
  %383 = vmatpush2.bf16.msra.mxu0 %v295
  %384 = vmatprep.subr.bf16.mxu0 0
  %385 = vmatpush2.bf16.msra.mxu0 %v294
  %386 = vmatprep.subr.bf16.mxu0 0
  %387 = vmatpush2.bf16.msra.mxu0 %v293
  %388 = vmatprep.subr.bf16.mxu0 0
  %389 = vmatpush2.bf16.msra.mxu0 %v292
  %390 = vmatprep.subr.bf16.mxu0 0
  %391 = vmatpush2.bf16.msra.mxu0 %v291
  %392 = vmatprep.subr.bf16.mxu0 0
  %393 = vmatpush2.bf16.msra.mxu0 %v290
  %394 = vmatprep.mubr.bf16.mxu0 %v113
  %395 = vmatmul.mubr.bf16.gmra.mxu0 %v112
  %v396 = vpop.f32.mrf.mxu0
  %v397 = vadd.f32 0.0, %v396
  %v398 = vpop.f32.mrf.mxu0
  %v399 = vpop.f32.mrf.mxu0
  %v400 = vpop.f32.mrf.mxu0
  %401 = vdwg.mxu0
  %402 = vmatprep.subr.bf16.mxu0 0
  %403 = vmatpush1.bf16.msra.mxu0 %v305
  %404 = vmatprep.subr.bf16.mxu0 0
  %405 = vmatpush1.bf16.msra.mxu0 %v304
  %406 = vmatprep.subr.bf16.mxu0 0
  %407 = vmatpush1.bf16.msra.mxu0 %v303
  %408 = vmatprep.subr.bf16.mxu0 0
  %409 = vmatpush1.bf16.msra.mxu0 %v302
  %410 = vmatprep.subr.bf16.mxu0 0
  %411 = vmatpush1.bf16.msra.mxu0 %v301
  %412 = vmatprep.subr.bf16.mxu0 0
  %413 = vmatpush1.bf16.msra.mxu0 %v300
  %414 = vmatprep.subr.bf16.mxu0 0
  %415 = vmatpush1.bf16.msra.mxu0 %v299
  %416 = vmatprep.subr.bf16.mxu0 0
  %417 = vmatpush1.bf16.msra.mxu0 %v298
  %418 = vmatprep.subr.bf16.mxu0 0
  %419 = vmatpush2.bf16.msra.mxu0 %v313
  %420 = vmatprep.subr.bf16.mxu0 0
  %421 = vmatpush2.bf16.msra.mxu0 %v312
  %422 = vmatprep.subr.bf16.mxu0 0
  %423 = vmatpush2.bf16.msra.mxu0 %v311
  %424 = vmatprep.subr.bf16.mxu0 0
  %425 = vmatpush2.bf16.msra.mxu0 %v310
  %426 = vmatprep.subr.bf16.mxu0 0
  %427 = vmatpush2.bf16.msra.mxu0 %v309
  %428 = vmatprep.subr.bf16.mxu0 0
  %429 = vmatpush2.bf16.msra.mxu0 %v308
  %430 = vmatprep.subr.bf16.mxu0 0
  %431 = vmatpush2.bf16.msra.mxu0 %v307
  %432 = vmatprep.subr.bf16.mxu0 0
  %433 = vmatpush2.bf16.msra.mxu0 %v306
  %434 = vmatprep.mubr.bf16.mxu0 %v115
  %435 = vmatmul.mubr.bf16.gmra.mxu0 %v114
  %v436 = vpop.f32.mrf.mxu0
  %v437 = vadd.f32 %v397, %v436
  %v438 = vpop.f32.mrf.mxu0
  %v439 = vpop.f32.mrf.mxu0
  %v440 = vpop.f32.mrf.mxu0
  %441 = vdwg.mxu0
  %442 = vmatprep.subr.bf16.mxu0 0
  %443 = vmatpush1.bf16.msra.mxu0 %v321
  %444 = vmatprep.subr.bf16.mxu0 0
  %445 = vmatpush1.bf16.msra.mxu0 %v320
  %446 = vmatprep.subr.bf16.mxu0 0
  %447 = vmatpush1.bf16.msra.mxu0 %v319
  %448 = vmatprep.subr.bf16.mxu0 0
  %449 = vmatpush1.bf16.msra.mxu0 %v318
  %450 = vmatprep.subr.bf16.mxu0 0
  %451 = vmatpush1.bf16.msra.mxu0 %v317
  %452 = vmatprep.subr.bf16.mxu0 0
  %453 = vmatpush1.bf16.msra.mxu0 %v316
  %454 = vmatprep.subr.bf16.mxu0 0
  %455 = vmatpush1.bf16.msra.mxu0 %v315
  %456 = vmatprep.subr.bf16.mxu0 0
  %457 = vmatpush1.bf16.msra.mxu0 %v314
  %458 = vmatprep.subr.bf16.mxu0 0
  %459 = vmatpush2.bf16.msra.mxu0 0
  %460 = vmatprep.subr.bf16.mxu0 0
  %461 = vmatpush2.bf16.msra.mxu0 0
  %462 = vmatprep.subr.bf16.mxu0 0
  %463 = vmatpush2.bf16.msra.mxu0 0
  %464 = vmatprep.subr.bf16.mxu0 0
  %465 = vmatpush2.bf16.msra.mxu0 0
  %466 = vmatprep.subr.bf16.mxu0 0
  %467 = vmatpush2.bf16.msra.mxu0 0
  %468 = vmatprep.subr.bf16.mxu0 0
  %469 = vmatpush2.bf16.msra.mxu0 0
  %470 = vmatprep.subr.bf16.mxu0 0
  %471 = vmatpush2.bf16.msra.mxu0 0
  %472 = vmatprep.subr.bf16.mxu0 0
  %473 = vmatpush2.bf16.msra.mxu0 0
  %474 = vmatprep.mubr.bf16.mxu0 0
  %475 = vmatmul.mubr.bf16.gmra.mxu0 %v116
  %v476 = vpop.f32.mrf.mxu0
  %v477 = vadd.f32 %v437, %v476
  %v478 = vpop.f32.mrf.mxu0
  %v479 = vpop.f32.mrf.mxu0
  %v480 = vpop.f32.mrf.mxu0
  %481 = vdwg.mxu0
  %v482 = vld [vmem:[%s2] sm:$0x1]
  %v484 = vlaneseq
  %v485 = vshrl.u32 %v484, 7
  %v486 = vsub.s32 0, %v485
  %v487 = vrot.slane %v482, %v486
  %v489 = vmul.f32 %v477, %v487
  %v490 = vld [vmem:[%s3] sm:$0x1]
  %v492 = vlaneseq
  %v493 = vshrl.u32 %v492, 7
  %v494 = vsub.s32 0, %v493
  %v495 = vrot.slane %v490, %v494
  %v497 = vadd.f32 %v489, %v495
  %v498 = vld [vmem:[%s4] sm:$0xf]
  %v499 = vunpack.c.l.bf16 %v498
  %v500 = vadd.f32 %v497, %v499
  %v501 = vmax.f32 %v500, 0.0
  %v502 = vpack.c.bf16 %v501, %v501
  %503 = vst [vmem:[%s5] sm:$0xf] %v502
  // Predicated region
  $region22: #{_lambda_.64} parent=0 // pred_check
    _
  $region23: #{_lambda_.64} parent=0 // pred_check_branch
    %505 = sbr.rel (0) target = $region25
  $region24: #{_lambda_.64} parent=0 // pred_region
    _
  $region25: #{_lambda_.64} parent=0 // pred_fallthru
    _
  // Predicated region
  $region26: #{_lambda_.64} parent=0 // pred_check
    _
  $region27: #{_lambda_.64} parent=0 // pred_check_branch
    %507 = sbr.rel (0) target = $region29
  $region28: #{_lambda_.64} parent=0 // pred_region
    _
  $region29: #{_lambda_.64} parent=0 // pred_fallthru
    _

</llo_original>
